<compile_context>
chip_gen: v5e
topology: v5e:2x2
jax: 0.10.0
libtpu: 0.0.40
codegen_flags: <defaults>
</compile_context>

<pallas_src>
import jax
import jax.numpy as jnp
from jax.experimental import pallas as pl
from jax.experimental.pallas import tpu as pltpu

_LANES = 128


def _basic_block_kernel(x_ref, w1_ref, w2_ref, s1_ref, b1_ref, s2_ref, b2_ref,
                        out_ref, xpad_ref, col_ref, acc_ref):
    _, H, W, Cp = x_ref.shape
    HW = H * W
    cdt = xpad_ref.dtype  # bf16 compute dtype for the MXU operands

    # ---- zero the 1-pixel border of the padded-activation scratch ----------
    # Once per grid step; both convs reuse this buffer and only rewrite the
    # interior, so the border survives.  Rows are full-lane stores; the column
    # border uses 8-wide sublane strips (one unmasked vst per vreg) that the
    # interior write overwrites, instead of width-1 masked stores.
    zrow = jnp.zeros((1, W + 2, Cp), cdt)
    xpad_ref[0:1, :, :] = zrow
    xpad_ref[H + 1:H + 2, :, :] = zrow
    zcol = jnp.zeros((H + 2, 8, Cp), cdt)
    xpad_ref[:, 0:8, :] = zcol                 # covers left border column 0
    xpad_ref[:, W - 6:W + 2, :] = zcol         # covers right border column W+1

    def conv3x3(w_ref):
        # dx-expanded buffer: col[py*W + x, dx*Cp:(dx+1)*Cp] = xpad[py, x+dx, :]
        # (3 lane-dense slab writes; border rows/cols come from xpad's zeros).
        for dx in range(3):
            col_ref[:, dx * Cp:(dx + 1) * Cp] = (
                xpad_ref[:, dx:dx + W, :].reshape((H + 2) * W, Cp))
        # dy-blocked accumulation: 3 matmuls, each LHS a free row-offset slice.
        acc_ref[...] = jnp.dot(col_ref[pl.ds(0 * W, HW), :], w_ref[0],
                               preferred_element_type=jnp.float32)
        acc_ref[...] += jnp.dot(col_ref[pl.ds(1 * W, HW), :], w_ref[1],
                                preferred_element_type=jnp.float32)
        acc_ref[...] += jnp.dot(col_ref[pl.ds(2 * W, HW), :], w_ref[2],
                                preferred_element_type=jnp.float32)

    # ---- conv1 (3x3, pad 1) -> bn1 -> relu ---------------------------------
    xpad_ref[1:H + 1, 1:W + 1, :] = x_ref[0].astype(cdt)
    conv3x3(w1_ref)
    h = jnp.maximum(acc_ref[...] * s1_ref[...] + b1_ref[...], 0.0)
    # fused bn1+relu result goes straight back into the padded scratch as bf16
    xpad_ref[1:H + 1, 1:W + 1, :] = h.astype(cdt).reshape(H, W, Cp)

    # ---- conv2 (3x3, pad 1) -> bn2 -> + identity -> relu -------------------
    conv3x3(w2_ref)
    ident = x_ref[0].reshape(HW, Cp).astype(jnp.float32)
    out = jnp.maximum(acc_ref[...] * s2_ref[...] + b2_ref[...] + ident, 0.0)
    out_ref[0] = out.reshape(H, W, Cp).astype(out_ref.dtype)


def _resident_spec(block_shape, index_map):
    """BlockSpec for a constant-index (grid-resident) operand.

    Requests single buffering (halves VMEM residency for the big C=512 weights
    on v7x).  Falls back to the default spec if this JAX version's BlockSpec
    has no pipeline_mode kwarg.
    """
    try:
        return pl.BlockSpec(block_shape, index_map, pipeline_mode=pl.Buffered(1))
    except (TypeError, AttributeError):
        return pl.BlockSpec(block_shape, index_map)


def prepare_basic_block_params(w1, w2, scale1, bias1, scale2, bias2):
    """One-time parameter prep (channel padding + weight reshape), hoisted out
    of the per-forward wrapper.

    w1, w2        : (3, 3, C, C) HWIO conv weights (bias=False)
    scale*, bias* : (C,) folded BatchNorm (inference) scale / bias
    """
    C = w1.shape[2]
    assert w1.shape[3] == C and w2.shape[2] == C and w2.shape[3] == C, (
        "stride=1 / downsample=None requires planes == inplanes")
    Cp = pl.cdiv(C, _LANES) * _LANES
    pc = Cp - C
    cdt = jnp.bfloat16

    def prep_w(w):
        wp = jnp.pad(w, ((0, 0), (0, 0), (0, pc), (0, pc))).astype(cdt)
        # (dy, dx, cin, cout) -> (dy, dx*Cp + cin, cout): per-dy K = 3*Cp slab
        return wp.reshape(3, 3 * Cp, Cp)

    def prep_v(v):
        return jnp.pad(v.reshape(1, -1), ((0, 0), (0, pc)))

    return dict(C=C, Cp=Cp,
                w1=prep_w(w1), w2=prep_w(w2),
                s1=prep_v(scale1), b1=prep_v(bias1),
                s2=prep_v(scale2), b2=prep_v(bias2))


def basic_block(x_nhwc, params):
    """BasicBlock forward, stride=1 / downsample=None.

    x_nhwc : (N, H, W, C) f32
    params : output of prepare_basic_block_params
    """
    N, H, W, C = x_nhwc.shape
    assert params["C"] == C
    assert W >= 6, "8-wide border strips need W >= 6 (all ResNet stages qualify)"
    Cp = params["Cp"]
    pc = Cp - C
    cdt = jnp.bfloat16

    # Lane-dense channel padding of the activation.  (In a multi-block network
    # keep activations Cp-padded NHWC between blocks and drop this pad/slice.)
    xp = jnp.pad(x_nhwc, ((0, 0), (0, 0), (0, 0), (0, pc))) if pc else x_nhwc

    img_spec = pl.BlockSpec((1, H, W, Cp), lambda n: (n, 0, 0, 0))
    w_spec = _resident_spec((3, 3 * Cp, Cp), lambda n: (0, 0, 0))
    v_spec = _resident_spec((1, Cp), lambda n: (0, 0))

    # Explicit VMEM budget from the actual shapes (v7x only has 64 MiB).
    f32b, b16b = 4, 2
    img_bytes = H * W * Cp * f32b
    vmem = (2 * 2 * img_bytes                        # x + out, double-buffered
            + 2 * 2 * 3 * 3 * Cp * Cp * b16b         # two weights (assume 2 bufs)
            + (H + 2) * (W + 2) * Cp * b16b          # padded-activation scratch
            + (H + 2) * W * 3 * Cp * b16b            # dx-expanded col scratch
            + H * W * Cp * f32b)                     # f32 accumulator
    vmem_limit = min(max(int(1.5 * vmem) + (8 << 20), 16 << 20), 96 << 20)

    out_p = pl.pallas_call(
        _basic_block_kernel,
        out_shape=jax.ShapeDtypeStruct((N, H, W, Cp), x_nhwc.dtype),
        grid=(N,),
        in_specs=[img_spec, w_spec, w_spec, v_spec, v_spec, v_spec, v_spec],
        out_specs=img_spec,
        scratch_shapes=[
            pltpu.VMEM((H + 2, W + 2, Cp), cdt),        # padded activation (shared)
            pltpu.VMEM(((H + 2) * W, 3 * Cp), cdt),     # dx-expanded col buffer
            pltpu.VMEM((H * W, Cp), jnp.float32),       # f32 conv accumulator
        ],
        compiler_params=pltpu.CompilerParams(
            dimension_semantics=("parallel",),          # megacore split on v7x
            vmem_limit_bytes=vmem_limit,
        ),
    )(xp, params["w1"], params["w2"],
      params["s1"], params["b1"], params["s2"], params["b2"])
    return out_p if pc == 0 else out_p[..., :C]


def _fold_bn(gamma, beta, mean, var, eps=1e-5):
    scale = gamma / jnp.sqrt(var + eps)
    bias = beta - mean * scale
    return scale, bias


def _reference(x_nhwc, w1, w2, s1, b1, s2, b2):
    """Plain-JAX f32 reference for verification."""
    dn = jax.lax.conv_dimension_numbers(x_nhwc.shape, w1.shape,
                                        ('NHWC', 'HWIO', 'NHWC'))
    c1 = jax.lax.conv_general_dilated(x_nhwc, w1, (1, 1), 'SAME',
                                      dimension_numbers=dn)
    h = jnp.maximum(c1 * s1.reshape(1, 1, 1, -1) + b1.reshape(1, 1, 1, -1), 0.0)
    c2 = jax.lax.conv_general_dilated(h, w2, (1, 1), 'SAME',
                                      dimension_numbers=dn)
    o = c2 * s2.reshape(1, 1, 1, -1) + b2.reshape(1, 1, 1, -1) + x_nhwc
    return jnp.maximum(o, 0.0)


if __name__ == "__main__":
    key = jax.random.PRNGKey(0)
    N, C, H, W = 2, 4, 16, 16          # inplanes = planes = 4, stride = 1
    ks = jax.random.split(key, 11)

    # input in PyTorch NCHW convention, transposed to kernel NHWC layout
    x_nchw = jax.random.normal(ks[0], (N, C, H, W), jnp.float32)
    x_nhwc = jnp.transpose(x_nchw, (0, 2, 3, 1))

    # conv weights (HWIO), no bias (matches nn.Conv2d(..., bias=False))
    w1 = jax.random.normal(ks[1], (3, 3, C, C), jnp.float32) * 0.1
    w2 = jax.random.normal(ks[2], (3, 3, C, C), jnp.float32) * 0.1

    # BatchNorm2d params / running stats (inference form), deterministic
    g1 = 1.0 + 0.1 * jax.random.normal(ks[3], (C,), jnp.float32)
    be1 = 0.1 * jax.random.normal(ks[4], (C,), jnp.float32)
    m1 = 0.1 * jax.random.normal(ks[5], (C,), jnp.float32)
    v1 = 0.5 + jax.random.uniform(ks[6], (C,), jnp.float32)
    g2 = 1.0 + 0.1 * jax.random.normal(ks[7], (C,), jnp.float32)
    be2 = 0.1 * jax.random.normal(ks[8], (C,), jnp.float32)
    m2 = 0.1 * jax.random.normal(ks[9], (C,), jnp.float32)
    v2 = 0.5 + jax.random.uniform(ks[10], (C,), jnp.float32)

    s1, b1 = _fold_bn(g1, be1, m1, v1)
    s2, b2 = _fold_bn(g2, be2, m2, v2)

    params = prepare_basic_block_params(w1, w2, s1, b1, s2, b2)
    out_nhwc = basic_block(x_nhwc, params)
    out_nhwc = jax.block_until_ready(out_nhwc)

    ref = _reference(x_nhwc, w1, w2, s1, b1, s2, b2)
    assert out_nhwc.shape == (N, H, W, C)
    # bf16 MXU operands -> relaxed tolerance vs f32 reference
    assert jnp.allclose(out_nhwc, ref, atol=3e-2, rtol=3e-2), "mismatch vs reference"

    # back to PyTorch NCHW convention for the caller
    out_nchw = jnp.transpose(out_nhwc, (0, 3, 1, 2))
    assert out_nchw.shape == (N, C, H, W)
    print("KERNEL_OK")
</pallas_src>

<mosaic_0001>
module attributes {stable_mosaic.version = 11 : i64} {
  func.func @_basic_block_kernel(%arg0: i32, %arg1: memref<1x16x16x128xf32, #tpu.memory_space<vmem>>, %arg2: memref<3x384x128xbf16, #tpu.memory_space<vmem>>, %arg3: memref<3x384x128xbf16, #tpu.memory_space<vmem>>, %arg4: memref<1x128xf32, #tpu.memory_space<vmem>>, %arg5: memref<1x128xf32, #tpu.memory_space<vmem>>, %arg6: memref<1x128xf32, #tpu.memory_space<vmem>>, %arg7: memref<1x128xf32, #tpu.memory_space<vmem>>, %arg8: memref<1x16x16x128xf32, #tpu.memory_space<vmem>>, %arg9: memref<18x18x128xbf16, #tpu.memory_space<vmem>>, %arg10: memref<288x384xbf16, #tpu.memory_space<vmem>>, %arg11: memref<256x128xf32, #tpu.memory_space<vmem>>) attributes {dimension_semantics = [#tpu.dimension_semantics<parallel>], iteration_bounds = array<i64: 2>, scalar_prefetch = 0 : i64, scratch_operands = 3 : i64, tpu.core_type = #tpu.core_type<tc>, window_params = [{transform_indices = @transform_0, window_bounds = array<i64: 1, 16, 16, 128>}, {pipeline_mode = #tpu.pipeline_mode<synchronous>, transform_indices = @transform_1, window_bounds = array<i64: 3, 384, 128>}, {pipeline_mode = #tpu.pipeline_mode<synchronous>, transform_indices = @transform_2, window_bounds = array<i64: 3, 384, 128>}, {pipeline_mode = #tpu.pipeline_mode<synchronous>, transform_indices = @transform_3, window_bounds = array<i64: 1, 128>}, {pipeline_mode = #tpu.pipeline_mode<synchronous>, transform_indices = @transform_4, window_bounds = array<i64: 1, 128>}, {pipeline_mode = #tpu.pipeline_mode<synchronous>, transform_indices = @transform_5, window_bounds = array<i64: 1, 128>}, {pipeline_mode = #tpu.pipeline_mode<synchronous>, transform_indices = @transform_6, window_bounds = array<i64: 1, 128>}, {transform_indices = @transform_7, window_bounds = array<i64: 1, 16, 16, 128>}]} {
    %cst = arith.constant 0.000000e+00 : bf16
    %0 = vector.broadcast %cst : bf16 to vector<1x18x128xbf16>
    %c0 = arith.constant 0 : index
    %c0_0 = arith.constant 0 : index
    %c0_1 = arith.constant 0 : index
    %1 = vector.load %arg9[%c0, %c0_0, %c0_1] : memref<18x18x128xbf16, #tpu.memory_space<vmem>>, vector<1x18x128xbf16>
    tpu.vector_store %arg9[%c0, %c0_0, %c0_1], %0 {strides = array<i32>} : memref<18x18x128xbf16, #tpu.memory_space<vmem>>, vector<1x18x128xbf16>,
    %c17 = arith.constant 17 : index
    %c0_2 = arith.constant 0 : index
    %c0_3 = arith.constant 0 : index
    %2 = vector.load %arg9[%c17, %c0_2, %c0_3] : memref<18x18x128xbf16, #tpu.memory_space<vmem>>, vector<1x18x128xbf16>
    tpu.vector_store %arg9[%c17, %c0_2, %c0_3], %0 {strides = array<i32>} : memref<18x18x128xbf16, #tpu.memory_space<vmem>>, vector<1x18x128xbf16>,
    %cst_4 = arith.constant 0.000000e+00 : bf16
    %3 = vector.broadcast %cst_4 : bf16 to vector<18x8x128xbf16>
    %c0_5 = arith.constant 0 : index
    %c0_6 = arith.constant 0 : index
    %c0_7 = arith.constant 0 : index
    %4 = vector.load %arg9[%c0_5, %c0_6, %c0_7] : memref<18x18x128xbf16, #tpu.memory_space<vmem>>, vector<18x8x128xbf16>
    tpu.vector_store %arg9[%c0_5, %c0_6, %c0_7], %3 {strides = array<i32>} : memref<18x18x128xbf16, #tpu.memory_space<vmem>>, vector<18x8x128xbf16>,
    %c0_8 = arith.constant 0 : index
    %c10 = arith.constant 10 : index
    %c0_9 = arith.constant 0 : index
    %5 = vector.load %arg9[%c0_8, %c10, %c0_9] : memref<18x18x128xbf16, #tpu.memory_space<vmem>>, vector<18x8x128xbf16>
    tpu.vector_store %arg9[%c0_8, %c10, %c0_9], %3 {strides = array<i32>} : memref<18x18x128xbf16, #tpu.memory_space<vmem>>, vector<18x8x128xbf16>,
    %c0_10 = arith.constant 0 : index
    %c0_11 = arith.constant 0 : index
    %c0_12 = arith.constant 0 : index
    %c0_13 = arith.constant 0 : index
    %6 = vector.load %arg1[%c0_10, %c0_11, %c0_12, %c0_13] : memref<1x16x16x128xf32, #tpu.memory_space<vmem>>, vector<1x16x16x128xf32>
    %7 = vector.shape_cast %6 : vector<1x16x16x128xf32> to vector<16x16x128xf32>
    %8 = arith.truncf %7 : vector<16x16x128xf32> to vector<16x16x128xbf16>
    %c1 = arith.constant 1 : index
    %c1_14 = arith.constant 1 : index
    %c0_15 = arith.constant 0 : index
    %9 = vector.load %arg9[%c1, %c1_14, %c0_15] : memref<18x18x128xbf16, #tpu.memory_space<vmem>>, vector<16x16x128xbf16>
    tpu.vector_store %arg9[%c1, %c1_14, %c0_15], %8 {strides = array<i32>} : memref<18x18x128xbf16, #tpu.memory_space<vmem>>, vector<16x16x128xbf16>,
    %c0_16 = arith.constant 0 : index
    %c0_17 = arith.constant 0 : index
    %c0_18 = arith.constant 0 : index
    %10 = vector.load %arg9[%c0_16, %c0_17, %c0_18] : memref<18x18x128xbf16, #tpu.memory_space<vmem>>, vector<18x16x128xbf16>
    %11 = vector.shape_cast %10 : vector<18x16x128xbf16> to vector<288x128xbf16>
    %c0_19 = arith.constant 0 : index
    %c0_20 = arith.constant 0 : index
    %12 = vector.load %arg10[%c0_19, %c0_20] : memref<288x384xbf16, #tpu.memory_space<vmem>>, vector<288x128xbf16>
    tpu.vector_store %arg10[%c0_19, %c0_20], %11 {strides = array<i32>} : memref<288x384xbf16, #tpu.memory_space<vmem>>, vector<288x128xbf16>,
    %c0_21 = arith.constant 0 : index
    %c1_22 = arith.constant 1 : index
    %c0_23 = arith.constant 0 : index
    %13 = vector.load %arg9[%c0_21, %c1_22, %c0_23] : memref<18x18x128xbf16, #tpu.memory_space<vmem>>, vector<18x16x128xbf16>
    %14 = vector.shape_cast %13 : vector<18x16x128xbf16> to vector<288x128xbf16>
    %c0_24 = arith.constant 0 : index
    %c128 = arith.constant 128 : index
    %15 = vector.load %arg10[%c0_24, %c128] : memref<288x384xbf16, #tpu.memory_space<vmem>>, vector<288x128xbf16>
    tpu.vector_store %arg10[%c0_24, %c128], %14 {strides = array<i32>} : memref<288x384xbf16, #tpu.memory_space<vmem>>, vector<288x128xbf16>,
    %c0_25 = arith.constant 0 : index
    %c2 = arith.constant 2 : index
    %c0_26 = arith.constant 0 : index
    %16 = vector.load %arg9[%c0_25, %c2, %c0_26] : memref<18x18x128xbf16, #tpu.memory_space<vmem>>, vector<18x16x128xbf16>
    %17 = vector.shape_cast %16 : vector<18x16x128xbf16> to vector<288x128xbf16>
    %c0_27 = arith.constant 0 : index
    %c256 = arith.constant 256 : index
    %18 = vector.load %arg10[%c0_27, %c256] : memref<288x384xbf16, #tpu.memory_space<vmem>>, vector<288x128xbf16>
    tpu.vector_store %arg10[%c0_27, %c256], %17 {strides = array<i32>} : memref<288x384xbf16, #tpu.memory_space<vmem>>, vector<288x128xbf16>,
    %c0_28 = arith.constant 0 : index
    %c0_29 = arith.constant 0 : index
    %19 = vector.load %arg10[%c0_28, %c0_29] : memref<288x384xbf16, #tpu.memory_space<vmem>>, vector<256x384xbf16>
    %c0_30 = arith.constant 0 : index
    %c0_31 = arith.constant 0 : index
    %c0_32 = arith.constant 0 : index
    %20 = vector.load %arg2[%c0_30, %c0_31, %c0_32] : memref<3x384x128xbf16, #tpu.memory_space<vmem>>, vector<1x384x128xbf16>
    %21 = vector.shape_cast %20 : vector<1x384x128xbf16> to vector<384x128xbf16>
    %cst_33 = arith.constant dense<0.000000e+00> : vector<256x128xf32>
    %22 = tpu.matmul %19, %21, %cst_33 {dimension_numbers = #tpu.dot_dimension_numbers<[1], [0], [0], [1], [0, 0, 1, 1], [], []>} : vector<256x384xbf16>, vector<384x128xbf16>, vector<256x128xf32> -> vector<256x128xf32>
    %c0_34 = arith.constant 0 : index
    %c0_35 = arith.constant 0 : index
    %23 = vector.load %arg11[%c0_34, %c0_35] : memref<256x128xf32, #tpu.memory_space<vmem>>, vector<256x128xf32>
    tpu.vector_store %arg11[%c0_34, %c0_35], %22 {strides = array<i32>} : memref<256x128xf32, #tpu.memory_space<vmem>>, vector<256x128xf32>,
    %c0_36 = arith.constant 0 : index
    %c0_37 = arith.constant 0 : index
    %24 = vector.load %arg11[%c0_36, %c0_37] : memref<256x128xf32, #tpu.memory_space<vmem>>, vector<256x128xf32>
    %c16 = arith.constant 16 : index
    %c0_38 = arith.constant 0 : index
    %25 = vector.load %arg10[%c16, %c0_38] : memref<288x384xbf16, #tpu.memory_space<vmem>>, vector<256x384xbf16>
    %c1_39 = arith.constant 1 : index
    %c0_40 = arith.constant 0 : index
    %c0_41 = arith.constant 0 : index
    %26 = vector.load %arg2[%c1_39, %c0_40, %c0_41] : memref<3x384x128xbf16, #tpu.memory_space<vmem>>, vector<1x384x128xbf16>
    %27 = vector.shape_cast %26 : vector<1x384x128xbf16> to vector<384x128xbf16>
    %cst_42 = arith.constant dense<0.000000e+00> : vector<256x128xf32>
    %28 = tpu.matmul %25, %27, %cst_42 {dimension_numbers = #tpu.dot_dimension_numbers<[1], [0], [0], [1], [0, 0, 1, 1], [], []>} : vector<256x384xbf16>, vector<384x128xbf16>, vector<256x128xf32> -> vector<256x128xf32>
    %29 = arith.addf %24, %28 : vector<256x128xf32>
    %c0_43 = arith.constant 0 : index
    %c0_44 = arith.constant 0 : index
    %30 = vector.load %arg11[%c0_43, %c0_44] : memref<256x128xf32, #tpu.memory_space<vmem>>, vector<256x128xf32>
    tpu.vector_store %arg11[%c0_43, %c0_44], %29 {strides = array<i32>} : memref<256x128xf32, #tpu.memory_space<vmem>>, vector<256x128xf32>,
    %c0_45 = arith.constant 0 : index
    %c0_46 = arith.constant 0 : index
    %31 = vector.load %arg11[%c0_45, %c0_46] : memref<256x128xf32, #tpu.memory_space<vmem>>, vector<256x128xf32>
    %c32 = arith.constant 32 : index
    %c0_47 = arith.constant 0 : index
    %32 = vector.load %arg10[%c32, %c0_47] : memref<288x384xbf16, #tpu.memory_space<vmem>>, vector<256x384xbf16>
    %c2_48 = arith.constant 2 : index
    %c0_49 = arith.constant 0 : index
    %c0_50 = arith.constant 0 : index
    %33 = vector.load %arg2[%c2_48, %c0_49, %c0_50] : memref<3x384x128xbf16, #tpu.memory_space<vmem>>, vector<1x384x128xbf16>
    %34 = vector.shape_cast %33 : vector<1x384x128xbf16> to vector<384x128xbf16>
    %cst_51 = arith.constant dense<0.000000e+00> : vector<256x128xf32>
    %35 = tpu.matmul %32, %34, %cst_51 {dimension_numbers = #tpu.dot_dimension_numbers<[1], [0], [0], [1], [0, 0, 1, 1], [], []>} : vector<256x384xbf16>, vector<384x128xbf16>, vector<256x128xf32> -> vector<256x128xf32>
    %36 = arith.addf %31, %35 : vector<256x128xf32>
    %c0_52 = arith.constant 0 : index
    %c0_53 = arith.constant 0 : index
    %37 = vector.load %arg11[%c0_52, %c0_53] : memref<256x128xf32, #tpu.memory_space<vmem>>, vector<256x128xf32>
    tpu.vector_store %arg11[%c0_52, %c0_53], %36 {strides = array<i32>} : memref<256x128xf32, #tpu.memory_space<vmem>>, vector<256x128xf32>,
    %c0_54 = arith.constant 0 : index
    %c0_55 = arith.constant 0 : index
    %38 = vector.load %arg11[%c0_54, %c0_55] : memref<256x128xf32, #tpu.memory_space<vmem>>, vector<256x128xf32>
    %c0_56 = arith.constant 0 : index
    %c0_57 = arith.constant 0 : index
    %39 = vector.load %arg4[%c0_56, %c0_57] : memref<1x128xf32, #tpu.memory_space<vmem>>, vector<1x128xf32>
    %40 = vector.broadcast %39 : vector<1x128xf32> to vector<256x128xf32>
    %41 = arith.mulf %38, %40 : vector<256x128xf32>
    %c0_58 = arith.constant 0 : index
    %c0_59 = arith.constant 0 : index
    %42 = vector.load %arg5[%c0_58, %c0_59] : memref<1x128xf32, #tpu.memory_space<vmem>>, vector<1x128xf32>
    %43 = vector.broadcast %42 : vector<1x128xf32> to vector<256x128xf32>
    %44 = arith.addf %41, %43 : vector<256x128xf32>
    %cst_60 = arith.constant 0.000000e+00 : f32
    %45 = vector.broadcast %cst_60 : f32 to vector<256x128xf32>
    %46 = arith.maximumf %44, %45 : vector<256x128xf32>
    %47 = arith.truncf %46 : vector<256x128xf32> to vector<256x128xbf16>
    %48 = vector.shape_cast %47 : vector<256x128xbf16> to vector<16x16x128xbf16>
    %c1_61 = arith.constant 1 : index
    %c1_62 = arith.constant 1 : index
    %c0_63 = arith.constant 0 : index
    %49 = vector.load %arg9[%c1_61, %c1_62, %c0_63] : memref<18x18x128xbf16, #tpu.memory_space<vmem>>, vector<16x16x128xbf16>
    tpu.vector_store %arg9[%c1_61, %c1_62, %c0_63], %48 {strides = array<i32>} : memref<18x18x128xbf16, #tpu.memory_space<vmem>>, vector<16x16x128xbf16>,
    %c0_64 = arith.constant 0 : index
    %c0_65 = arith.constant 0 : index
    %c0_66 = arith.constant 0 : index
    %50 = vector.load %arg9[%c0_64, %c0_65, %c0_66] : memref<18x18x128xbf16, #tpu.memory_space<vmem>>, vector<18x16x128xbf16>
    %51 = vector.shape_cast %50 : vector<18x16x128xbf16> to vector<288x128xbf16>
    %c0_67 = arith.constant 0 : index
    %c0_68 = arith.constant 0 : index
    %52 = vector.load %arg10[%c0_67, %c0_68] : memref<288x384xbf16, #tpu.memory_space<vmem>>, vector<288x128xbf16>
    tpu.vector_store %arg10[%c0_67, %c0_68], %51 {strides = array<i32>} : memref<288x384xbf16, #tpu.memory_space<vmem>>, vector<288x128xbf16>,
    %c0_69 = arith.constant 0 : index
    %c1_70 = arith.constant 1 : index
    %c0_71 = arith.constant 0 : index
    %53 = vector.load %arg9[%c0_69, %c1_70, %c0_71] : memref<18x18x128xbf16, #tpu.memory_space<vmem>>, vector<18x16x128xbf16>
    %54 = vector.shape_cast %53 : vector<18x16x128xbf16> to vector<288x128xbf16>
    %c0_72 = arith.constant 0 : index
    %c128_73 = arith.constant 128 : index
    %55 = vector.load %arg10[%c0_72, %c128_73] : memref<288x384xbf16, #tpu.memory_space<vmem>>, vector<288x128xbf16>
    tpu.vector_store %arg10[%c0_72, %c128_73], %54 {strides = array<i32>} : memref<288x384xbf16, #tpu.memory_space<vmem>>, vector<288x128xbf16>,
    %c0_74 = arith.constant 0 : index
    %c2_75 = arith.constant 2 : index
    %c0_76 = arith.constant 0 : index
    %56 = vector.load %arg9[%c0_74, %c2_75, %c0_76] : memref<18x18x128xbf16, #tpu.memory_space<vmem>>, vector<18x16x128xbf16>
    %57 = vector.shape_cast %56 : vector<18x16x128xbf16> to vector<288x128xbf16>
    %c0_77 = arith.constant 0 : index
    %c256_78 = arith.constant 256 : index
    %58 = vector.load %arg10[%c0_77, %c256_78] : memref<288x384xbf16, #tpu.memory_space<vmem>>, vector<288x128xbf16>
    tpu.vector_store %arg10[%c0_77, %c256_78], %57 {strides = array<i32>} : memref<288x384xbf16, #tpu.memory_space<vmem>>, vector<288x128xbf16>,
    %c0_79 = arith.constant 0 : index
    %c0_80 = arith.constant 0 : index
    %59 = vector.load %arg10[%c0_79, %c0_80] : memref<288x384xbf16, #tpu.memory_space<vmem>>, vector<256x384xbf16>
    %c0_81 = arith.constant 0 : index
    %c0_82 = arith.constant 0 : index
    %c0_83 = arith.constant 0 : index
    %60 = vector.load %arg3[%c0_81, %c0_82, %c0_83] : memref<3x384x128xbf16, #tpu.memory_space<vmem>>, vector<1x384x128xbf16>
    %61 = vector.shape_cast %60 : vector<1x384x128xbf16> to vector<384x128xbf16>
    %cst_84 = arith.constant dense<0.000000e+00> : vector<256x128xf32>
    %62 = tpu.matmul %59, %61, %cst_84 {dimension_numbers = #tpu.dot_dimension_numbers<[1], [0], [0], [1], [0, 0, 1, 1], [], []>} : vector<256x384xbf16>, vector<384x128xbf16>, vector<256x128xf32> -> vector<256x128xf32>
    %c0_85 = arith.constant 0 : index
    %c0_86 = arith.constant 0 : index
    %63 = vector.load %arg11[%c0_85, %c0_86] : memref<256x128xf32, #tpu.memory_space<vmem>>, vector<256x128xf32>
    tpu.vector_store %arg11[%c0_85, %c0_86], %62 {strides = array<i32>} : memref<256x128xf32, #tpu.memory_space<vmem>>, vector<256x128xf32>,
    %c0_87 = arith.constant 0 : index
    %c0_88 = arith.constant 0 : index
    %64 = vector.load %arg11[%c0_87, %c0_88] : memref<256x128xf32, #tpu.memory_space<vmem>>, vector<256x128xf32>
    %c16_89 = arith.constant 16 : index
    %c0_90 = arith.constant 0 : index
    %65 = vector.load %arg10[%c16_89, %c0_90] : memref<288x384xbf16, #tpu.memory_space<vmem>>, vector<256x384xbf16>
    %c1_91 = arith.constant 1 : index
    %c0_92 = arith.constant 0 : index
    %c0_93 = arith.constant 0 : index
    %66 = vector.load %arg3[%c1_91, %c0_92, %c0_93] : memref<3x384x128xbf16, #tpu.memory_space<vmem>>, vector<1x384x128xbf16>
    %67 = vector.shape_cast %66 : vector<1x384x128xbf16> to vector<384x128xbf16>
    %cst_94 = arith.constant dense<0.000000e+00> : vector<256x128xf32>
    %68 = tpu.matmul %65, %67, %cst_94 {dimension_numbers = #tpu.dot_dimension_numbers<[1], [0], [0], [1], [0, 0, 1, 1], [], []>} : vector<256x384xbf16>, vector<384x128xbf16>, vector<256x128xf32> -> vector<256x128xf32>
    %69 = arith.addf %64, %68 : vector<256x128xf32>
    %c0_95 = arith.constant 0 : index
    %c0_96 = arith.constant 0 : index
    %70 = vector.load %arg11[%c0_95, %c0_96] : memref<256x128xf32, #tpu.memory_space<vmem>>, vector<256x128xf32>
    tpu.vector_store %arg11[%c0_95, %c0_96], %69 {strides = array<i32>} : memref<256x128xf32, #tpu.memory_space<vmem>>, vector<256x128xf32>,
    %c0_97 = arith.constant 0 : index
    %c0_98 = arith.constant 0 : index
    %71 = vector.load %arg11[%c0_97, %c0_98] : memref<256x128xf32, #tpu.memory_space<vmem>>, vector<256x128xf32>
    %c32_99 = arith.constant 32 : index
    %c0_100 = arith.constant 0 : index
    %72 = vector.load %arg10[%c32_99, %c0_100] : memref<288x384xbf16, #tpu.memory_space<vmem>>, vector<256x384xbf16>
    %c2_101 = arith.constant 2 : index
    %c0_102 = arith.constant 0 : index
    %c0_103 = arith.constant 0 : index
    %73 = vector.load %arg3[%c2_101, %c0_102, %c0_103] : memref<3x384x128xbf16, #tpu.memory_space<vmem>>, vector<1x384x128xbf16>
    %74 = vector.shape_cast %73 : vector<1x384x128xbf16> to vector<384x128xbf16>
    %cst_104 = arith.constant dense<0.000000e+00> : vector<256x128xf32>
    %75 = tpu.matmul %72, %74, %cst_104 {dimension_numbers = #tpu.dot_dimension_numbers<[1], [0], [0], [1], [0, 0, 1, 1], [], []>} : vector<256x384xbf16>, vector<384x128xbf16>, vector<256x128xf32> -> vector<256x128xf32>
    %76 = arith.addf %71, %75 : vector<256x128xf32>
    %c0_105 = arith.constant 0 : index
    %c0_106 = arith.constant 0 : index
    %77 = vector.load %arg11[%c0_105, %c0_106] : memref<256x128xf32, #tpu.memory_space<vmem>>, vector<256x128xf32>
    tpu.vector_store %arg11[%c0_105, %c0_106], %76 {strides = array<i32>} : memref<256x128xf32, #tpu.memory_space<vmem>>, vector<256x128xf32>,
    %c0_107 = arith.constant 0 : index
    %c0_108 = arith.constant 0 : index
    %c0_109 = arith.constant 0 : index
    %c0_110 = arith.constant 0 : index
    %78 = vector.load %arg1[%c0_107, %c0_108, %c0_109, %c0_110] : memref<1x16x16x128xf32, #tpu.memory_space<vmem>>, vector<1x16x16x128xf32>
    %79 = vector.shape_cast %78 : vector<1x16x16x128xf32> to vector<16x16x128xf32>
    %80 = vector.shape_cast %79 : vector<16x16x128xf32> to vector<256x128xf32>
    %c0_111 = arith.constant 0 : index
    %c0_112 = arith.constant 0 : index
    %81 = vector.load %arg11[%c0_111, %c0_112] : memref<256x128xf32, #tpu.memory_space<vmem>>, vector<256x128xf32>
    %c0_113 = arith.constant 0 : index
    %c0_114 = arith.constant 0 : index
    %82 = vector.load %arg6[%c0_113, %c0_114] : memref<1x128xf32, #tpu.memory_space<vmem>>, vector<1x128xf32>
    %83 = vector.broadcast %82 : vector<1x128xf32> to vector<256x128xf32>
    %84 = arith.mulf %81, %83 : vector<256x128xf32>
    %c0_115 = arith.constant 0 : index
    %c0_116 = arith.constant 0 : index
    %85 = vector.load %arg7[%c0_115, %c0_116] : memref<1x128xf32, #tpu.memory_space<vmem>>, vector<1x128xf32>
    %86 = vector.broadcast %85 : vector<1x128xf32> to vector<256x128xf32>
    %87 = arith.addf %84, %86 : vector<256x128xf32>
    %88 = arith.addf %87, %80 : vector<256x128xf32>
    %cst_117 = arith.constant 0.000000e+00 : f32
    %89 = vector.broadcast %cst_117 : f32 to vector<256x128xf32>
    %90 = arith.maximumf %88, %89 : vector<256x128xf32>
    %91 = vector.shape_cast %90 : vector<256x128xf32> to vector<16x16x128xf32>
    %c0_118 = arith.constant 0 : index
    %c0_119 = arith.constant 0 : index
    %c0_120 = arith.constant 0 : index
    %c0_121 = arith.constant 0 : index
    %92 = vector.load %arg8[%c0_118, %c0_119, %c0_120, %c0_121] : memref<1x16x16x128xf32, #tpu.memory_space<vmem>>, vector<1x16x16x128xf32>
    %93 = vector.shape_cast %92 : vector<1x16x16x128xf32> to vector<16x16x128xf32>
    %94 = vector.shape_cast %91 : vector<16x16x128xf32> to vector<1x16x16x128xf32>
    tpu.vector_store %arg8[%c0_118, %c0_119, %c0_120, %c0_121], %94 {strides = array<i32>} : memref<1x16x16x128xf32, #tpu.memory_space<vmem>>, vector<1x16x16x128xf32>,
    return
  }
  func.func @transform_0(%arg0: i32) -> (i32, i32, i32, i32) {
    %c0_i32 = arith.constant 0 : i32
    %c0_i32_0 = arith.constant 0 : i32
    %c0_i32_1 = arith.constant 0 : i32
    %c0_i32_2 = arith.constant 0 : i32
    return %arg0, %c0_i32, %c0_i32_0, %c0_i32_1 : i32, i32, i32, i32
  }
  func.func @transform_1(%arg0: i32) -> (i32, i32, i32) {
    %c0_i32 = arith.constant 0 : i32
    %c0_i32_0 = arith.constant 0 : i32
    %c0_i32_1 = arith.constant 0 : i32
    %c0_i32_2 = arith.constant 0 : i32
    return %c0_i32, %c0_i32_0, %c0_i32_1 : i32, i32, i32
  }
  func.func @transform_2(%arg0: i32) -> (i32, i32, i32) {
    %c0_i32 = arith.constant 0 : i32
    %c0_i32_0 = arith.constant 0 : i32
    %c0_i32_1 = arith.constant 0 : i32
    %c0_i32_2 = arith.constant 0 : i32
    return %c0_i32, %c0_i32_0, %c0_i32_1 : i32, i32, i32
  }
  func.func @transform_3(%arg0: i32) -> (i32, i32) {
    %c0_i32 = arith.constant 0 : i32
    %c0_i32_0 = arith.constant 0 : i32
    %c0_i32_1 = arith.constant 0 : i32
    return %c0_i32, %c0_i32_0 : i32, i32
  }
  func.func @transform_4(%arg0: i32) -> (i32, i32) {
    %c0_i32 = arith.constant 0 : i32
    %c0_i32_0 = arith.constant 0 : i32
    %c0_i32_1 = arith.constant 0 : i32
    return %c0_i32, %c0_i32_0 : i32, i32
  }
  func.func @transform_5(%arg0: i32) -> (i32, i32) {
    %c0_i32 = arith.constant 0 : i32
    %c0_i32_0 = arith.constant 0 : i32
    %c0_i32_1 = arith.constant 0 : i32
    return %c0_i32, %c0_i32_0 : i32, i32
  }
  func.func @transform_6(%arg0: i32) -> (i32, i32) {
    %c0_i32 = arith.constant 0 : i32
    %c0_i32_0 = arith.constant 0 : i32
    %c0_i32_1 = arith.constant 0 : i32
    return %c0_i32, %c0_i32_0 : i32, i32
  }
  func.func @transform_7(%arg0: i32) -> (i32, i32, i32, i32) {
    %c0_i32 = arith.constant 0 : i32
    %c0_i32_0 = arith.constant 0 : i32
    %c0_i32_1 = arith.constant 0 : i32
    %c0_i32_2 = arith.constant 0 : i32
    return %arg0, %c0_i32, %c0_i32_0, %c0_i32_1 : i32, i32, i32, i32
  }
}

</mosaic_0001>

<llo_original>
// kernel: tpu_custom_call.1
$region0: #{tpu_custom_call.1}
  #allocation0 [shape = 'u32[]', space=smem, size = 0x4, offset = 0x4, fixed_abs, tag = 'smem constant byte address 0x4 - core index']
  #allocation1 [shape = 'u32[72,128]{1,0:T(1,128)}', space=vmem, size = 0x9000, scoped, tag = 'internal scratch']
  #allocation2 [shape = 'bf16[18,18,128]{2,1,0:T(8,128)(2,1)}', space=vmem, size = 0x1b000, scoped, tag = 'scratch operand']
  #allocation3 [shape = 'bf16[288,384]{1,0:T(8,128)(2,1)}', space=vmem, size = 0x36000, scoped, tag = 'scratch operand']
  #allocation4 [shape = 'f32[256,128]{1,0:T(8,128)}', space=vmem, size = 0x20000, scoped, tag = 'scratch operand']
  %s0 = inlined_call_operand.hbm [shape: f32[2,16,16,128], index: 0, kind: input, shape index: {}]
  %s1 = inlined_call_operand.hbm [shape: bf16[3,384,128], index: 1, kind: input, shape index: {}]
  %s2 = inlined_call_operand.hbm [shape: bf16[3,384,128], index: 2, kind: input, shape index: {}]
  %s3 = inlined_call_operand.vmem [shape: f32[1,128], index: 3, kind: input, shape index: {}]
  %s4 = inlined_call_operand.vmem [shape: f32[1,128], index: 4, kind: input, shape index: {}]
  %s5 = inlined_call_operand.vmem [shape: f32[1,128], index: 5, kind: input, shape index: {}]
  %s6 = inlined_call_operand.vmem [shape: f32[1,128], index: 6, kind: input, shape index: {}]
  %s7 = inlined_call_operand.hbm [shape: f32[2,16,16,128], index: 7, kind: output, shape index: {}]
  %s8 = sld [smem:[#allocation0]]
  $region73: #{tpu_custom_call.1} parent=0
    _
  %s10 = ssub.s32 1, %s8
  %s11 = scalar_select 0, %s10, %s8
  $region1: #{tpu_custom_call.1} parent=0
    #allocation5 [shape = 'u8[262144]{0}', space=vmem, size = 0x40000, scoped, tag = 'input window, operand 0']
    #allocation6 [shape = 's32[2]{0}', space=sflag, size = 0x8, scoped, tag = 'scoped memory for tpu_custom_call.1']
    #allocation7 [shape = 's32[2]{0}', space=sflag, size = 0x8, scoped, tag = 'scoped memory for tpu_custom_call.1']
    #allocation8 [shape = 'u8[294912]{0}', space=vmem, size = 0x48000, scoped, tag = 'input window, operand 1, single buffered']
    #allocation9 [shape = 's32[1]{0}', space=sflag, size = 0x4, scoped, tag = 'scoped memory for tpu_custom_call.1']
    #allocation10 [shape = 'u8[294912]{0}', space=vmem, size = 0x48000, scoped, tag = 'input window, operand 2, single buffered']
    #allocation11 [shape = 'u8[262144]{0}', space=vmem, size = 0x40000, scoped, tag = 'output window, operand 0']
    %12 = vsyncpa [#allocation6], 0
    %s13 = scalar_lea.sflag [#allocation6], 1
    %14 = vsyncpa %s13, 0
    %15 = vsyncpa [#allocation9], 0
    %16 = vsyncpa [#allocation7], 0
    %s17 = scalar_lea.sflag [#allocation7], 1
    %18 = vsyncpa %s17, 0
    loop: start=0, step=1, limit=4
    $region2: #{tpu_custom_call.1} parent=1 // loop_pre_header
      _
    $region3: #{tpu_custom_call.1} parent=1 // loop_header
      %s20 = sphi 0, %s24
      %p21 = scmp.ge.s32.totalorder %s20, 4
      %s30 = sphi 0, %s32
      %s33 = sphi 0, %s30
      %s34 = sphi 0, %s33
      %s50 = sphi 0, %s34
      %s54 = sphi 0, %s54
      %s56 = sphi 0, %s54
      %s57 = sphi 0, %s56
      %s71 = sphi 0, %s57
      %s75 = sphi 0, %s75
      %s77 = sphi 0, %s75
      %s78 = sphi 0, %s77
      %s92 = sphi 0, %s78
      %s96 = sphi 0, %s96
      %s98 = sphi 0, %s96
      %s99 = sphi 0, %s98
      %s113 = sphi 0, %s99
      %s117 = sphi 0, %s117
      %s119 = sphi 0, %s117
      %s120 = sphi 0, %s119
      %s134 = sphi 0, %s120
      %s138 = sphi 0, %s138
      %s140 = sphi 0, %s138
      %s141 = sphi 0, %s140
      %s155 = sphi 0, %s141
      %s159 = sphi 0, %s159
      %s161 = sphi 0, %s159
      %s162 = sphi 0, %s161
      %s176 = sphi 0, %s162
      %s182 = sphi 0, %s184
      %s185 = sphi 0, %s182
      %s186 = sphi 0, %s185
      %s202 = sphi 0, %s186
    $region4: #{tpu_custom_call.1} parent=1 // loop_header_branch
      %23 = sbr.rel (%p21) target = $region8
    $region5: #{tpu_custom_call.1} parent=1 // loop_body
      %s25 = ssub.s32 %s20, 1
      %s26 = ssub.s32 %s20, 2
      %s27 = sadd.s32 %s20, 1
      %s28 = ssub.s32 %s20, %s27
      %p29 = scmp.eq.s32.totalorder %s28, 0
      %s31 = sadd.s32 %s30, 1
      %s32 = scalar_select %p29, %s30, %s31
      %p35 = pneg %p29
      %p36 = scmp.eq.s32.totalorder %s20, 1
      %p37 = por %p35, %p36
      %p38 = scmp.ne.s32.totalorder %s30, %s33
      %p39 = scmp.eq.s32.totalorder %s20, 0
      %p40 = por %p38, %p39
      %p41 = scmp.ne.s32.totalorder %s30, %s33
      %p42 = scmp.eq.s32.totalorder %s25, 1
      %p43 = por %p41, %p42
      %p44 = scmp.ne.s32.totalorder %s33, %s34
      %p45 = scmp.eq.s32.totalorder %s25, 0
      %p46 = por %p44, %p45
      %p47 = scmp.ne.s32.totalorder %s33, %s34
      %p48 = scmp.eq.s32.totalorder %s26, 1
      %p49 = por %p47, %p48
      %p51 = scmp.ne.s32.totalorder %s34, %s50
      %p52 = scmp.eq.s32.totalorder %s26, 0
      %p53 = por %p51, %p52
      %s55 = sadd.s32 %s54, 1
      %p58 = scmp.eq.s32.totalorder %s20, 1
      %p59 = scmp.ne.s32.totalorder %s54, %s56
      %p60 = scmp.eq.s32.totalorder %s20, 0
      %p61 = por %p59, %p60
      %p62 = scmp.ne.s32.totalorder %s54, %s56
      %p63 = scmp.eq.s32.totalorder %s25, 1
      %p64 = por %p62, %p63
      %p65 = scmp.ne.s32.totalorder %s56, %s57
      %p66 = scmp.eq.s32.totalorder %s25, 0
      %p67 = por %p65, %p66
      %p68 = scmp.ne.s32.totalorder %s56, %s57
      %p69 = scmp.eq.s32.totalorder %s26, 1
      %p70 = por %p68, %p69
      %p72 = scmp.ne.s32.totalorder %s57, %s71
      %p73 = scmp.eq.s32.totalorder %s26, 0
      %p74 = por %p72, %p73
      %s76 = sadd.s32 %s75, 1
      %p79 = scmp.eq.s32.totalorder %s20, 1
      %p80 = scmp.ne.s32.totalorder %s75, %s77
      %p81 = scmp.eq.s32.totalorder %s20, 0
      %p82 = por %p80, %p81
      %p83 = scmp.ne.s32.totalorder %s75, %s77
      %p84 = scmp.eq.s32.totalorder %s25, 1
      %p85 = por %p83, %p84
      %p86 = scmp.ne.s32.totalorder %s77, %s78
      %p87 = scmp.eq.s32.totalorder %s25, 0
      %p88 = por %p86, %p87
      %p89 = scmp.ne.s32.totalorder %s77, %s78
      %p90 = scmp.eq.s32.totalorder %s26, 1
      %p91 = por %p89, %p90
      %p93 = scmp.ne.s32.totalorder %s78, %s92
      %p94 = scmp.eq.s32.totalorder %s26, 0
      %p95 = por %p93, %p94
      %s97 = sadd.s32 %s96, 1
      %p100 = scmp.eq.s32.totalorder %s20, 1
      %p101 = scmp.ne.s32.totalorder %s96, %s98
      %p102 = scmp.eq.s32.totalorder %s20, 0
      %p103 = por %p101, %p102
      %p104 = scmp.ne.s32.totalorder %s96, %s98
      %p105 = scmp.eq.s32.totalorder %s25, 1
      %p106 = por %p104, %p105
      %p107 = scmp.ne.s32.totalorder %s98, %s99
      %p108 = scmp.eq.s32.totalorder %s25, 0
      %p109 = por %p107, %p108
      %p110 = scmp.ne.s32.totalorder %s98, %s99
      %p111 = scmp.eq.s32.totalorder %s26, 1
      %p112 = por %p110, %p111
      %p114 = scmp.ne.s32.totalorder %s99, %s113
      %p115 = scmp.eq.s32.totalorder %s26, 0
      %p116 = por %p114, %p115
      %s118 = sadd.s32 %s117, 1
      %p121 = scmp.eq.s32.totalorder %s20, 1
      %p122 = scmp.ne.s32.totalorder %s117, %s119
      %p123 = scmp.eq.s32.totalorder %s20, 0
      %p124 = por %p122, %p123
      %p125 = scmp.ne.s32.totalorder %s117, %s119
      %p126 = scmp.eq.s32.totalorder %s25, 1
      %p127 = por %p125, %p126
      %p128 = scmp.ne.s32.totalorder %s119, %s120
      %p129 = scmp.eq.s32.totalorder %s25, 0
      %p130 = por %p128, %p129
      %p131 = scmp.ne.s32.totalorder %s119, %s120
      %p132 = scmp.eq.s32.totalorder %s26, 1
      %p133 = por %p131, %p132
      %p135 = scmp.ne.s32.totalorder %s120, %s134
      %p136 = scmp.eq.s32.totalorder %s26, 0
      %p137 = por %p135, %p136
      %s139 = sadd.s32 %s138, 1
      %p142 = scmp.eq.s32.totalorder %s20, 1
      %p143 = scmp.ne.s32.totalorder %s138, %s140
      %p144 = scmp.eq.s32.totalorder %s20, 0
      %p145 = por %p143, %p144
      %p146 = scmp.ne.s32.totalorder %s138, %s140
      %p147 = scmp.eq.s32.totalorder %s25, 1
      %p148 = por %p146, %p147
      %p149 = scmp.ne.s32.totalorder %s140, %s141
      %p150 = scmp.eq.s32.totalorder %s25, 0
      %p151 = por %p149, %p150
      %p152 = scmp.ne.s32.totalorder %s140, %s141
      %p153 = scmp.eq.s32.totalorder %s26, 1
      %p154 = por %p152, %p153
      %p156 = scmp.ne.s32.totalorder %s141, %s155
      %p157 = scmp.eq.s32.totalorder %s26, 0
      %p158 = por %p156, %p157
      %s160 = sadd.s32 %s159, 1
      %p163 = scmp.eq.s32.totalorder %s20, 1
      %p164 = scmp.ne.s32.totalorder %s159, %s161
      %p165 = scmp.eq.s32.totalorder %s20, 0
      %p166 = por %p164, %p165
      %p167 = scmp.ne.s32.totalorder %s159, %s161
      %p168 = scmp.eq.s32.totalorder %s25, 1
      %p169 = por %p167, %p168
      %p170 = scmp.ne.s32.totalorder %s161, %s162
      %p171 = scmp.eq.s32.totalorder %s25, 0
      %p172 = por %p170, %p171
      %p173 = scmp.ne.s32.totalorder %s161, %s162
      %p174 = scmp.eq.s32.totalorder %s26, 1
      %p175 = por %p173, %p174
      %p177 = scmp.ne.s32.totalorder %s162, %s176
      %p178 = scmp.eq.s32.totalorder %s26, 0
      %p179 = por %p177, %p178
      %s180 = ssub.s32 %s20, %s27
      %p181 = scmp.eq.s32.totalorder %s180, 0
      %s183 = sadd.s32 %s182, 1
      %s184 = scalar_select %p181, %s182, %s183
      %p187 = pneg %p181
      %p188 = scmp.eq.s32.totalorder %s20, 1
      %p189 = por %p187, %p188
      %p190 = scmp.ne.s32.totalorder %s182, %s185
      %p191 = scmp.eq.s32.totalorder %s20, 0
      %p192 = por %p190, %p191
      %p193 = scmp.ne.s32.totalorder %s182, %s185
      %p194 = scmp.eq.s32.totalorder %s25, 1
      %p195 = por %p193, %p194
      %p196 = scmp.ne.s32.totalorder %s185, %s186
      %p197 = scmp.eq.s32.totalorder %s25, 0
      %p198 = por %p196, %p197
      %p199 = scmp.ne.s32.totalorder %s185, %s186
      %p200 = scmp.eq.s32.totalorder %s26, 1
      %p201 = por %p199, %p200
      %p203 = scmp.ne.s32.totalorder %s186, %s202
      %p204 = scmp.eq.s32.totalorder %s26, 0
      %p205 = por %p203, %p204
      %p206 = scmp.le.s32.totalorder 1, %s20
      %p207 = scmp.lt.s32.totalorder %s20, 3
      %p208 = pnand %p206, %p207
      %p209 = pneg %p208
      // Predicated region
      $region9: #{tpu_custom_call.1} parent=5 // pred_check
        _
      $region10: #{tpu_custom_call.1} parent=5 // pred_check_branch
        %211 = sbr.rel (%p208) target = $region12
      $region11: #{tpu_custom_call.1} parent=5 // pred_region
        %s212 = ssub.s32 %s20, 1
        // Predicated region
        $region13: #{tpu_custom_call.1} parent=11 // pred_check
          %p213 = pneg %p67
        $region14: #{tpu_custom_call.1} parent=11 // pred_check_branch
          %215 = sbr.rel (%p213) target = $region16
        $region15: #{tpu_custom_call.1} parent=11 // pred_region
          %217 = vsyncadd [#allocation9], 0
          %s218 = sshll.u32 %s1, 4
          %s219 = int_to_ptr.hbm [resolvable:$true] %s218
          %s220 = sshll.u32 [#allocation8], 4
          %s221 = int_to_ptr.vmem [resolvable:$true] %s220
          %226 = dma.hbm_to_vmem [thread:$0]  %s219, 9216, %s221, [#allocation9], 64, 64, 4
        $region16: #{tpu_custom_call.1} parent=11 // pred_fallthru
          _
        // Predicated region
        $region17: #{tpu_custom_call.1} parent=11 // pred_check
          %p227 = pneg %p88
        $region18: #{tpu_custom_call.1} parent=11 // pred_check_branch
          %229 = sbr.rel (%p227) target = $region20
        $region19: #{tpu_custom_call.1} parent=11 // pred_region
          %231 = vsyncadd [#allocation9], 0
          %s232 = sshll.u32 %s2, 4
          %s233 = int_to_ptr.hbm [resolvable:$true] %s232
          %s234 = sshll.u32 [#allocation10], 4
          %s235 = int_to_ptr.vmem [resolvable:$true] %s234
          %240 = dma.hbm_to_vmem [thread:$0]  %s233, 9216, %s235, [#allocation9], 64, 64, 4
        $region20: #{tpu_custom_call.1} parent=11 // pred_fallthru
          _
        // Predicated region
        $region21: #{tpu_custom_call.1} parent=11 // pred_check
          %p241 = pneg %p109
        $region22: #{tpu_custom_call.1} parent=11 // pred_check_branch
          %243 = sbr.rel (%p241) target = $region24
        $region23: #{tpu_custom_call.1} parent=11 // pred_region
          _
        $region24: #{tpu_custom_call.1} parent=11 // pred_fallthru
          _
        // Predicated region
        $region25: #{tpu_custom_call.1} parent=11 // pred_check
          %p244 = pneg %p130
        $region26: #{tpu_custom_call.1} parent=11 // pred_check_branch
          %246 = sbr.rel (%p244) target = $region28
        $region27: #{tpu_custom_call.1} parent=11 // pred_region
          _
        $region28: #{tpu_custom_call.1} parent=11 // pred_fallthru
          _
        // Predicated region
        $region29: #{tpu_custom_call.1} parent=11 // pred_check
          %p247 = pneg %p151
        $region30: #{tpu_custom_call.1} parent=11 // pred_check_branch
          %249 = sbr.rel (%p247) target = $region32
        $region31: #{tpu_custom_call.1} parent=11 // pred_region
          _
        $region32: #{tpu_custom_call.1} parent=11 // pred_fallthru
          _
        // Predicated region
        $region33: #{tpu_custom_call.1} parent=11 // pred_check
          %p250 = pneg %p172
        $region34: #{tpu_custom_call.1} parent=11 // pred_check_branch
          %252 = sbr.rel (%p250) target = $region36
        $region35: #{tpu_custom_call.1} parent=11 // pred_region
          _
        $region36: #{tpu_custom_call.1} parent=11 // pred_fallthru
          _
      $region12: #{tpu_custom_call.1} parent=5 // pred_fallthru
        _
      %p253 = scmp.lt.s32.totalorder %s20, 2
      // Predicated region
      $region37: #{tpu_custom_call.1} parent=5 // pred_check
        %p254 = pneg %p253
      $region38: #{tpu_custom_call.1} parent=5 // pred_check_branch
        %256 = sbr.rel (%p254) target = $region40
      $region39: #{tpu_custom_call.1} parent=5 // pred_region
        // Predicated region
        $region41: #{tpu_custom_call.1} parent=39 // pred_check
          %p257 = pneg %p40
        $region42: #{tpu_custom_call.1} parent=39 // pred_check_branch
          %259 = sbr.rel (%p257) target = $region44
        $region43: #{tpu_custom_call.1} parent=39 // pred_region
          %s260 = sand.u32 %s30, 1
          %s261 = scalar_lea.sflag [#allocation6], %s260
          %s262 = sand.u32 %s30, 1
          %s263 = smul.addr %s262, 256
          %s264 = scalar_lea.vmem [#allocation5], %s263
          %266 = vsyncadd %s261, 0
          %s267 = smul.addr %s20, 32
          %s268 = smul.addr %s267, 8
          %s269 = scalar_lea.hbm %s0, %s268
          %s270 = sshll.u32 %s269, 4
          %s271 = int_to_ptr.hbm [resolvable:$true] %s270
          %s272 = sshll.u32 %s264, 4
          %s273 = int_to_ptr.vmem [resolvable:$true] %s272
          %278 = dma.hbm_to_vmem [thread:$0]  %s271, 4096, %s273, %s261, 128, 128, 8
        $region44: #{tpu_custom_call.1} parent=39 // pred_fallthru
          _
      $region40: #{tpu_custom_call.1} parent=5 // pred_fallthru
        _
      %p279 = scmp.le.s32.totalorder 1, %s20
      %p280 = scmp.lt.s32.totalorder %s20, 3
      %p281 = pnand %p279, %p280
      %p282 = pneg %p281
      // Predicated region
      $region45: #{tpu_custom_call.1} parent=5 // pred_check
        _
      $region46: #{tpu_custom_call.1} parent=5 // pred_check_branch
        %284 = sbr.rel (%p281) target = $region48
      $region47: #{tpu_custom_call.1} parent=5 // pred_region
        %s285 = ssub.s32 %s20, 1
        %s286 = sand.u32 %s33, 1
        %s287 = scalar_lea.sflag [#allocation6], %s286
        %s288 = sand.u32 %s33, 1
        %s289 = smul.addr %s288, 256
        %s290 = scalar_lea.vmem [#allocation5], %s289
        // Predicated region
        $region49: #{tpu_custom_call.1} parent=47 // pred_check
          %p291 = pneg %p46
        $region50: #{tpu_custom_call.1} parent=47 // pred_check_branch
          %293 = sbr.rel (%p291) target = $region52
        $region51: #{tpu_custom_call.1} parent=47 // pred_region
          %295 = dma.done %s287, 4096
        $region52: #{tpu_custom_call.1} parent=47 // pred_fallthru
          _
        // Predicated region
        $region53: #{tpu_custom_call.1} parent=47 // pred_check
          %p296 = pneg %p67
        $region54: #{tpu_custom_call.1} parent=47 // pred_check_branch
          %298 = sbr.rel (%p296) target = $region56
        $region55: #{tpu_custom_call.1} parent=47 // pred_region
          %300 = dma.done [#allocation9], 9216
        $region56: #{tpu_custom_call.1} parent=47 // pred_fallthru
          _
        // Predicated region
        $region57: #{tpu_custom_call.1} parent=47 // pred_check
          %p301 = pneg %p88
        $region58: #{tpu_custom_call.1} parent=47 // pred_check_branch
          %303 = sbr.rel (%p301) target = $region60
        $region59: #{tpu_custom_call.1} parent=47 // pred_region
          %305 = dma.done [#allocation9], 9216
        $region60: #{tpu_custom_call.1} parent=47 // pred_fallthru
          _
        %s306 = sand.u32 %s33, 1
        %s307 = scalar_lea.sflag [#allocation6], %s306
        %s308 = sand.u32 %s33, 1
        %s309 = smul.addr %s308, 256
        %s310 = scalar_lea.vmem [#allocation5], %s309
        %p311 = pneg %p46
        %p312 = pneg %p43
        %p313 = pneg %p67
        %p314 = pneg %p64
        %p315 = pneg %p88
        %p316 = pneg %p85
        %p317 = pneg %p109
        %p318 = pneg %p106
        %p319 = pneg %p130
        %p320 = pneg %p127
        %p321 = pneg %p151
        %p322 = pneg %p148
        %p323 = pneg %p172
        %p324 = pneg %p169
        %p325 = pneg %p198
        %p326 = pneg %p195
        %s327 = sand.u32 %s185, 1
        %s328 = scalar_lea.sflag [#allocation7], %s327
        %s329 = sand.u32 %s185, 1
        %s330 = smul.addr %s329, 256
        %s331 = scalar_lea.vmem [#allocation11], %s330
        %333 = vst [vmem:[#allocation2] sm:$0xf] 0
        %334 = vst [vmem:[#allocation2 + $0x4] sm:$0xf] 0
        %335 = vst [vmem:[#allocation2 + $0x8] sm:$0x1] 0
        %s336 = scalar_lea.vmem [#allocation2], 204
        %337 = vst [vmem:[%s336] sm:$0xf] 0
        %338 = vst [vmem:[%s336 + $0x4] sm:$0xf] 0
        %339 = vst [vmem:[%s336 + $0x8] sm:$0x1] 0
        %340 = vst [vmem:[#allocation2] sm:$0xf] 0
        %341 = vst [vmem:[#allocation2 + $0xc] sm:$0xf] 0
        %342 = vst [vmem:[#allocation2 + $0x18] sm:$0xf] 0
        %343 = vst [vmem:[#allocation2 + $0x24] sm:$0xf] 0
        %344 = vst [vmem:[#allocation2 + $0x30] sm:$0xf] 0
        %345 = vst [vmem:[#allocation2 + $0x3c] sm:$0xf] 0
        %346 = vst [vmem:[#allocation2 + $0x48] sm:$0xf] 0
        %347 = vst [vmem:[#allocation2 + $0x54] sm:$0xf] 0
        %348 = vst [vmem:[#allocation2 + $0x60] sm:$0xf] 0
        %349 = vst [vmem:[#allocation2 + $0x6c] sm:$0xf] 0
        %350 = vst [vmem:[#allocation2 + $0x78] sm:$0xf] 0
        %351 = vst [vmem:[#allocation2 + $0x84] sm:$0xf] 0
        %352 = vst [vmem:[#allocation2 + $0x90] sm:$0xf] 0
        %353 = vst [vmem:[#allocation2 + $0x9c] sm:$0xf] 0
        %354 = vst [vmem:[#allocation2 + $0xa8] sm:$0xf] 0
        %355 = vst [vmem:[#allocation2 + $0xb4] sm:$0xf] 0
        %356 = vst [vmem:[#allocation2 + $0xc0] sm:$0xf] 0
        %357 = vst [vmem:[#allocation2 + $0xcc] sm:$0xf] 0
        %358 = vst [vmem:[#allocation2 + $0x4] sm:$0xe] 0
        %359 = vst [vmem:[#allocation2 + $0x8] sm:$0x1] 0
        %360 = vst [vmem:[#allocation2 + $0x10] sm:$0xe] 0
        %361 = vst [vmem:[#allocation2 + $0x14] sm:$0x1] 0
        %362 = vst [vmem:[#allocation2 + $0x1c] sm:$0xe] 0
        %363 = vst [vmem:[#allocation2 + $0x20] sm:$0x1] 0
        %364 = vst [vmem:[#allocation2 + $0x28] sm:$0xe] 0
        %365 = vst [vmem:[#allocation2 + $0x2c] sm:$0x1] 0
        %366 = vst [vmem:[#allocation2 + $0x34] sm:$0xe] 0
        %367 = vst [vmem:[#allocation2 + $0x38] sm:$0x1] 0
        %368 = vst [vmem:[#allocation2 + $0x40] sm:$0xe] 0
        %369 = vst [vmem:[#allocation2 + $0x44] sm:$0x1] 0
        %370 = vst [vmem:[#allocation2 + $0x4c] sm:$0xe] 0
        %371 = vst [vmem:[#allocation2 + $0x50] sm:$0x1] 0
        %372 = vst [vmem:[#allocation2 + $0x58] sm:$0xe] 0
        %373 = vst [vmem:[#allocation2 + $0x5c] sm:$0x1] 0
        %374 = vst [vmem:[#allocation2 + $0x64] sm:$0xe] 0
        %375 = vst [vmem:[#allocation2 + $0x68] sm:$0x1] 0
        %376 = vst [vmem:[#allocation2 + $0x70] sm:$0xe] 0
        %377 = vst [vmem:[#allocation2 + $0x74] sm:$0x1] 0
        %378 = vst [vmem:[#allocation2 + $0x7c] sm:$0xe] 0
        %379 = vst [vmem:[#allocation2 + $0x80] sm:$0x1] 0
        %380 = vst [vmem:[#allocation2 + $0x88] sm:$0xe] 0
        %381 = vst [vmem:[#allocation2 + $0x8c] sm:$0x1] 0
        %382 = vst [vmem:[#allocation2 + $0x94] sm:$0xe] 0
        %383 = vst [vmem:[#allocation2 + $0x98] sm:$0x1] 0
        %384 = vst [vmem:[#allocation2 + $0xa0] sm:$0xe] 0
        %385 = vst [vmem:[#allocation2 + $0xa4] sm:$0x1] 0
        %386 = vst [vmem:[#allocation2 + $0xac] sm:$0xe] 0
        %387 = vst [vmem:[#allocation2 + $0xb0] sm:$0x1] 0
        %388 = vst [vmem:[#allocation2 + $0xb8] sm:$0xe] 0
        %389 = vst [vmem:[#allocation2 + $0xbc] sm:$0x1] 0
        %390 = vst [vmem:[#allocation2 + $0xc4] sm:$0xe] 0
        %391 = vst [vmem:[#allocation2 + $0xc8] sm:$0x1] 0
        %392 = vst [vmem:[#allocation2 + $0xd0] sm:$0xe] 0
        %393 = vst [vmem:[#allocation2 + $0xd4] sm:$0x1] 0
        %v394 = vld [vmem:[%s290] sm:$0xff]
        %v395 = vld [vmem:[%s290 + $0x8] sm:$0xff]
        %v396 = vld [vmem:[%s290 + $0x10] sm:$0xff]
        %v397 = vld [vmem:[%s290 + $0x18] sm:$0xff]
        %v398 = vld [vmem:[%s290 + $0x20] sm:$0xff]
        %v399 = vld [vmem:[%s290 + $0x28] sm:$0xff]
        %v400 = vld [vmem:[%s290 + $0x30] sm:$0xff]
        %v401 = vld [vmem:[%s290 + $0x38] sm:$0xff]
        %v402 = vld [vmem:[%s290 + $0x40] sm:$0xff]
        %v403 = vld [vmem:[%s290 + $0x48] sm:$0xff]
        %v404 = vld [vmem:[%s290 + $0x50] sm:$0xff]
        %v405 = vld [vmem:[%s290 + $0x58] sm:$0xff]
        %v406 = vld [vmem:[%s290 + $0x60] sm:$0xff]
        %v407 = vld [vmem:[%s290 + $0x68] sm:$0xff]
        %v408 = vld [vmem:[%s290 + $0x70] sm:$0xff]
        %v409 = vld [vmem:[%s290 + $0x78] sm:$0xff]
        %v410 = vld [vmem:[%s290 + $0x80] sm:$0xff]
        %v411 = vld [vmem:[%s290 + $0x88] sm:$0xff]
        %v412 = vld [vmem:[%s290 + $0x90] sm:$0xff]
        %v413 = vld [vmem:[%s290 + $0x98] sm:$0xff]
        %v414 = vld [vmem:[%s290 + $0xa0] sm:$0xff]
        %v415 = vld [vmem:[%s290 + $0xa8] sm:$0xff]
        %v416 = vld [vmem:[%s290 + $0xb0] sm:$0xff]
        %v417 = vld [vmem:[%s290 + $0xb8] sm:$0xff]
        %v418 = vld [vmem:[%s290 + $0xc0] sm:$0xff]
        %v419 = vld [vmem:[%s290 + $0xc8] sm:$0xff]
        %v420 = vld [vmem:[%s290 + $0xd0] sm:$0xff]
        %v421 = vld [vmem:[%s290 + $0xd8] sm:$0xff]
        %v422 = vld [vmem:[%s290 + $0xe0] sm:$0xff]
        %v423 = vld [vmem:[%s290 + $0xe8] sm:$0xff]
        %v424 = vld [vmem:[%s290 + $0xf0] sm:$0xff]
        %v425 = vld [vmem:[%s290 + $0xf8] sm:$0xff]
        %v426 = vpack.c.bf16 %v394, %v394
        %v427 = vpack.c.bf16 %v395, %v395
        %v428 = vpack.c.bf16 %v396, %v396
        %v429 = vpack.c.bf16 %v397, %v397
        %v430 = vpack.c.bf16 %v398, %v398
        %v431 = vpack.c.bf16 %v399, %v399
        %v432 = vpack.c.bf16 %v400, %v400
        %v433 = vpack.c.bf16 %v401, %v401
        %v434 = vpack.c.bf16 %v402, %v402
        %v435 = vpack.c.bf16 %v403, %v403
        %v436 = vpack.c.bf16 %v404, %v404
        %v437 = vpack.c.bf16 %v405, %v405
        %v438 = vpack.c.bf16 %v406, %v406
        %v439 = vpack.c.bf16 %v407, %v407
        %v440 = vpack.c.bf16 %v408, %v408
        %v441 = vpack.c.bf16 %v409, %v409
        %v442 = vpack.c.bf16 %v410, %v410
        %v443 = vpack.c.bf16 %v411, %v411
        %v444 = vpack.c.bf16 %v412, %v412
        %v445 = vpack.c.bf16 %v413, %v413
        %v446 = vpack.c.bf16 %v414, %v414
        %v447 = vpack.c.bf16 %v415, %v415
        %v448 = vpack.c.bf16 %v416, %v416
        %v449 = vpack.c.bf16 %v417, %v417
        %v450 = vpack.c.bf16 %v418, %v418
        %v451 = vpack.c.bf16 %v419, %v419
        %v452 = vpack.c.bf16 %v420, %v420
        %v453 = vpack.c.bf16 %v421, %v421
        %v454 = vpack.c.bf16 %v422, %v422
        %v455 = vpack.c.bf16 %v423, %v423
        %v456 = vpack.c.bf16 %v424, %v424
        %v457 = vpack.c.bf16 %v425, %v425
        %vm458 = vsmask.f32 256
        %vm459 = vsmask.f32 4368
        %vm460 = vmor %vm458, %vm459
        %v462 = vshrl.u32 %v426, 16
        %v464 = vrot.slane %v462, 7
        %v465 = vshll.u32 %v426, 16
        %v467 = vor.u32 %v464, %v465
        %v468 = vrot.slane %v464, 4
        %v470 = vshrl.u32 %v427, 16
        %v472 = vrot.slane %v470, 7
        %v473 = vshll.u32 %v427, 16
        %v475 = vor.u32 %v472, %v473
        %v476 = vsel %vm460, %v468, %v475
        %v477 = vrot.slane %v472, 4
        %v479 = vshrl.u32 %v428, 16
        %v481 = vrot.slane %v479, 7
        %v482 = vshll.u32 %v428, 16
        %v484 = vor.u32 %v481, %v482
        %v485 = vrot.slane %v481, 4
        %v487 = vshrl.u32 %v429, 16
        %v489 = vrot.slane %v487, 7
        %v490 = vshll.u32 %v429, 16
        %v492 = vor.u32 %v489, %v490
        %v493 = vsel %vm460, %v485, %v492
        %v494 = vrot.slane %v489, 4
        %v496 = vshrl.u32 %v430, 16
        %v498 = vrot.slane %v496, 7
        %v499 = vshll.u32 %v430, 16
        %v501 = vor.u32 %v498, %v499
        %v502 = vrot.slane %v498, 4
        %v504 = vshrl.u32 %v431, 16
        %v506 = vrot.slane %v504, 7
        %v507 = vshll.u32 %v431, 16
        %v509 = vor.u32 %v506, %v507
        %v510 = vsel %vm460, %v502, %v509
        %v511 = vrot.slane %v506, 4
        %v513 = vshrl.u32 %v432, 16
        %v515 = vrot.slane %v513, 7
        %v516 = vshll.u32 %v432, 16
        %v518 = vor.u32 %v515, %v516
        %v519 = vrot.slane %v515, 4
        %v521 = vshrl.u32 %v433, 16
        %v523 = vrot.slane %v521, 7
        %v524 = vshll.u32 %v433, 16
        %v526 = vor.u32 %v523, %v524
        %v527 = vsel %vm460, %v519, %v526
        %v528 = vrot.slane %v523, 4
        %v530 = vshrl.u32 %v434, 16
        %v532 = vrot.slane %v530, 7
        %v533 = vshll.u32 %v434, 16
        %v535 = vor.u32 %v532, %v533
        %v536 = vrot.slane %v532, 4
        %v538 = vshrl.u32 %v435, 16
        %v540 = vrot.slane %v538, 7
        %v541 = vshll.u32 %v435, 16
        %v543 = vor.u32 %v540, %v541
        %v544 = vsel %vm460, %v536, %v543
        %v545 = vrot.slane %v540, 4
        %v547 = vshrl.u32 %v436, 16
        %v549 = vrot.slane %v547, 7
        %v550 = vshll.u32 %v436, 16
        %v552 = vor.u32 %v549, %v550
        %v553 = vrot.slane %v549, 4
        %v555 = vshrl.u32 %v437, 16
        %v557 = vrot.slane %v555, 7
        %v558 = vshll.u32 %v437, 16
        %v560 = vor.u32 %v557, %v558
        %v561 = vsel %vm460, %v553, %v560
        %v562 = vrot.slane %v557, 4
        %v564 = vshrl.u32 %v438, 16
        %v566 = vrot.slane %v564, 7
        %v567 = vshll.u32 %v438, 16
        %v569 = vor.u32 %v566, %v567
        %v570 = vrot.slane %v566, 4
        %v572 = vshrl.u32 %v439, 16
        %v574 = vrot.slane %v572, 7
        %v575 = vshll.u32 %v439, 16
        %v577 = vor.u32 %v574, %v575
        %v578 = vsel %vm460, %v570, %v577
        %v579 = vrot.slane %v574, 4
        %v581 = vshrl.u32 %v440, 16
        %v583 = vrot.slane %v581, 7
        %v584 = vshll.u32 %v440, 16
        %v586 = vor.u32 %v583, %v584
        %v587 = vrot.slane %v583, 4
        %v589 = vshrl.u32 %v441, 16
        %v591 = vrot.slane %v589, 7
        %v592 = vshll.u32 %v441, 16
        %v594 = vor.u32 %v591, %v592
        %v595 = vsel %vm460, %v587, %v594
        %v596 = vrot.slane %v591, 4
        %v598 = vshrl.u32 %v442, 16
        %v600 = vrot.slane %v598, 7
        %v601 = vshll.u32 %v442, 16
        %v603 = vor.u32 %v600, %v601
        %v604 = vrot.slane %v600, 4
        %v606 = vshrl.u32 %v443, 16
        %v608 = vrot.slane %v606, 7
        %v609 = vshll.u32 %v443, 16
        %v611 = vor.u32 %v608, %v609
        %v612 = vsel %vm460, %v604, %v611
        %v613 = vrot.slane %v608, 4
        %v615 = vshrl.u32 %v444, 16
        %v617 = vrot.slane %v615, 7
        %v618 = vshll.u32 %v444, 16
        %v620 = vor.u32 %v617, %v618
        %v621 = vrot.slane %v617, 4
        %v623 = vshrl.u32 %v445, 16
        %v625 = vrot.slane %v623, 7
        %v626 = vshll.u32 %v445, 16
        %v628 = vor.u32 %v625, %v626
        %v629 = vsel %vm460, %v621, %v628
        %v630 = vrot.slane %v625, 4
        %v632 = vshrl.u32 %v446, 16
        %v634 = vrot.slane %v632, 7
        %v635 = vshll.u32 %v446, 16
        %v637 = vor.u32 %v634, %v635
        %v638 = vrot.slane %v634, 4
        %v640 = vshrl.u32 %v447, 16
        %v642 = vrot.slane %v640, 7
        %v643 = vshll.u32 %v447, 16
        %v645 = vor.u32 %v642, %v643
        %v646 = vsel %vm460, %v638, %v645
        %v647 = vrot.slane %v642, 4
        %v649 = vshrl.u32 %v448, 16
        %v651 = vrot.slane %v649, 7
        %v652 = vshll.u32 %v448, 16
        %v654 = vor.u32 %v651, %v652
        %v655 = vrot.slane %v651, 4
        %v657 = vshrl.u32 %v449, 16
        %v659 = vrot.slane %v657, 7
        %v660 = vshll.u32 %v449, 16
        %v662 = vor.u32 %v659, %v660
        %v663 = vsel %vm460, %v655, %v662
        %v664 = vrot.slane %v659, 4
        %v666 = vshrl.u32 %v450, 16
        %v668 = vrot.slane %v666, 7
        %v669 = vshll.u32 %v450, 16
        %v671 = vor.u32 %v668, %v669
        %v672 = vrot.slane %v668, 4
        %v674 = vshrl.u32 %v451, 16
        %v676 = vrot.slane %v674, 7
        %v677 = vshll.u32 %v451, 16
        %v679 = vor.u32 %v676, %v677
        %v680 = vsel %vm460, %v672, %v679
        %v681 = vrot.slane %v676, 4
        %v683 = vshrl.u32 %v452, 16
        %v685 = vrot.slane %v683, 7
        %v686 = vshll.u32 %v452, 16
        %v688 = vor.u32 %v685, %v686
        %v689 = vrot.slane %v685, 4
        %v691 = vshrl.u32 %v453, 16
        %v693 = vrot.slane %v691, 7
        %v694 = vshll.u32 %v453, 16
        %v696 = vor.u32 %v693, %v694
        %v697 = vsel %vm460, %v689, %v696
        %v698 = vrot.slane %v693, 4
        %v700 = vshrl.u32 %v454, 16
        %v702 = vrot.slane %v700, 7
        %v703 = vshll.u32 %v454, 16
        %v705 = vor.u32 %v702, %v703
        %v706 = vrot.slane %v702, 4
        %v708 = vshrl.u32 %v455, 16
        %v710 = vrot.slane %v708, 7
        %v711 = vshll.u32 %v455, 16
        %v713 = vor.u32 %v710, %v711
        %v714 = vsel %vm460, %v706, %v713
        %v715 = vrot.slane %v710, 4
        %v717 = vshrl.u32 %v456, 16
        %v719 = vrot.slane %v717, 7
        %v720 = vshll.u32 %v456, 16
        %v722 = vor.u32 %v719, %v720
        %v723 = vrot.slane %v719, 4
        %v725 = vshrl.u32 %v457, 16
        %v727 = vrot.slane %v725, 7
        %v728 = vshll.u32 %v457, 16
        %v730 = vor.u32 %v727, %v728
        %v731 = vsel %vm460, %v723, %v730
        %v732 = vrot.slane %v727, 4
        %s781 = scalar_lea.vmem [#allocation2], 12
        %vm782 = vcmask 1043456
        %vm783 = vsmask.f32 7938
        %vm784 = vmand %vm782, %vm783
        %v785 = vld [vmem:[%s781] sm:$0xf]
        %v786 = vsel %vm784, %v467, %v785
        %787 = vst [vmem:[%s781] sm:$0xf] %v786
        %788 = vst [vmem:[%s781 + $0x4] sm:$0xf] %v476
        %vm789 = vcmask 1040384
        %vm790 = vmand %vm789, %vm458
        %v791 = vld [vmem:[%s781 + $0x8] sm:$0x1]
        %v792 = vsel %vm790, %v477, %v791
        %793 = vst [vmem:[%s781 + $0x8] sm:$0x1] %v792
        %v794 = vld [vmem:[%s781 + $0xc] sm:$0xf]
        %v795 = vsel %vm784, %v484, %v794
        %796 = vst [vmem:[%s781 + $0xc] sm:$0xf] %v795
        %797 = vst [vmem:[%s781 + $0x10] sm:$0xf] %v493
        %v798 = vld [vmem:[%s781 + $0x14] sm:$0x1]
        %v799 = vsel %vm790, %v494, %v798
        %800 = vst [vmem:[%s781 + $0x14] sm:$0x1] %v799
        %v801 = vld [vmem:[%s781 + $0x18] sm:$0xf]
        %v802 = vsel %vm784, %v501, %v801
        %803 = vst [vmem:[%s781 + $0x18] sm:$0xf] %v802
        %804 = vst [vmem:[%s781 + $0x1c] sm:$0xf] %v510
        %v805 = vld [vmem:[%s781 + $0x20] sm:$0x1]
        %v806 = vsel %vm790, %v511, %v805
        %807 = vst [vmem:[%s781 + $0x20] sm:$0x1] %v806
        %v808 = vld [vmem:[%s781 + $0x24] sm:$0xf]
        %v809 = vsel %vm784, %v518, %v808
        %810 = vst [vmem:[%s781 + $0x24] sm:$0xf] %v809
        %811 = vst [vmem:[%s781 + $0x28] sm:$0xf] %v527
        %v812 = vld [vmem:[%s781 + $0x2c] sm:$0x1]
        %v813 = vsel %vm790, %v528, %v812
        %814 = vst [vmem:[%s781 + $0x2c] sm:$0x1] %v813
        %v815 = vld [vmem:[%s781 + $0x30] sm:$0xf]
        %v816 = vsel %vm784, %v535, %v815
        %817 = vst [vmem:[%s781 + $0x30] sm:$0xf] %v816
        %818 = vst [vmem:[%s781 + $0x34] sm:$0xf] %v544
        %v819 = vld [vmem:[%s781 + $0x38] sm:$0x1]
        %v820 = vsel %vm790, %v545, %v819
        %821 = vst [vmem:[%s781 + $0x38] sm:$0x1] %v820
        %v822 = vld [vmem:[%s781 + $0x3c] sm:$0xf]
        %v823 = vsel %vm784, %v552, %v822
        %824 = vst [vmem:[%s781 + $0x3c] sm:$0xf] %v823
        %825 = vst [vmem:[%s781 + $0x40] sm:$0xf] %v561
        %v826 = vld [vmem:[%s781 + $0x44] sm:$0x1]
        %v827 = vsel %vm790, %v562, %v826
        %828 = vst [vmem:[%s781 + $0x44] sm:$0x1] %v827
        %v829 = vld [vmem:[%s781 + $0x48] sm:$0xf]
        %v830 = vsel %vm784, %v569, %v829
        %831 = vst [vmem:[%s781 + $0x48] sm:$0xf] %v830
        %832 = vst [vmem:[%s781 + $0x4c] sm:$0xf] %v578
        %v833 = vld [vmem:[%s781 + $0x50] sm:$0x1]
        %v834 = vsel %vm790, %v579, %v833
        %835 = vst [vmem:[%s781 + $0x50] sm:$0x1] %v834
        %v836 = vld [vmem:[%s781 + $0x54] sm:$0xf]
        %v837 = vsel %vm784, %v586, %v836
        %838 = vst [vmem:[%s781 + $0x54] sm:$0xf] %v837
        %839 = vst [vmem:[%s781 + $0x58] sm:$0xf] %v595
        %v840 = vld [vmem:[%s781 + $0x5c] sm:$0x1]
        %v841 = vsel %vm790, %v596, %v840
        %842 = vst [vmem:[%s781 + $0x5c] sm:$0x1] %v841
        %v843 = vld [vmem:[%s781 + $0x60] sm:$0xf]
        %v844 = vsel %vm784, %v603, %v843
        %845 = vst [vmem:[%s781 + $0x60] sm:$0xf] %v844
        %846 = vst [vmem:[%s781 + $0x64] sm:$0xf] %v612
        %v847 = vld [vmem:[%s781 + $0x68] sm:$0x1]
        %v848 = vsel %vm790, %v613, %v847
        %849 = vst [vmem:[%s781 + $0x68] sm:$0x1] %v848
        %v850 = vld [vmem:[%s781 + $0x6c] sm:$0xf]
        %v851 = vsel %vm784, %v620, %v850
        %852 = vst [vmem:[%s781 + $0x6c] sm:$0xf] %v851
        %853 = vst [vmem:[%s781 + $0x70] sm:$0xf] %v629
        %v854 = vld [vmem:[%s781 + $0x74] sm:$0x1]
        %v855 = vsel %vm790, %v630, %v854
        %856 = vst [vmem:[%s781 + $0x74] sm:$0x1] %v855
        %v857 = vld [vmem:[%s781 + $0x78] sm:$0xf]
        %v858 = vsel %vm784, %v637, %v857
        %859 = vst [vmem:[%s781 + $0x78] sm:$0xf] %v858
        %860 = vst [vmem:[%s781 + $0x7c] sm:$0xf] %v646
        %v861 = vld [vmem:[%s781 + $0x80] sm:$0x1]
        %v862 = vsel %vm790, %v647, %v861
        %863 = vst [vmem:[%s781 + $0x80] sm:$0x1] %v862
        %v864 = vld [vmem:[%s781 + $0x84] sm:$0xf]
        %v865 = vsel %vm784, %v654, %v864
        %866 = vst [vmem:[%s781 + $0x84] sm:$0xf] %v865
        %867 = vst [vmem:[%s781 + $0x88] sm:$0xf] %v663
        %v868 = vld [vmem:[%s781 + $0x8c] sm:$0x1]
        %v869 = vsel %vm790, %v664, %v868
        %870 = vst [vmem:[%s781 + $0x8c] sm:$0x1] %v869
        %v871 = vld [vmem:[%s781 + $0x90] sm:$0xf]
        %v872 = vsel %vm784, %v671, %v871
        %873 = vst [vmem:[%s781 + $0x90] sm:$0xf] %v872
        %874 = vst [vmem:[%s781 + $0x94] sm:$0xf] %v680
        %v875 = vld [vmem:[%s781 + $0x98] sm:$0x1]
        %v876 = vsel %vm790, %v681, %v875
        %877 = vst [vmem:[%s781 + $0x98] sm:$0x1] %v876
        %v878 = vld [vmem:[%s781 + $0x9c] sm:$0xf]
        %v879 = vsel %vm784, %v688, %v878
        %880 = vst [vmem:[%s781 + $0x9c] sm:$0xf] %v879
        %881 = vst [vmem:[%s781 + $0xa0] sm:$0xf] %v697
        %v882 = vld [vmem:[%s781 + $0xa4] sm:$0x1]
        %v883 = vsel %vm790, %v698, %v882
        %884 = vst [vmem:[%s781 + $0xa4] sm:$0x1] %v883
        %v885 = vld [vmem:[%s781 + $0xa8] sm:$0xf]
        %v886 = vsel %vm784, %v705, %v885
        %887 = vst [vmem:[%s781 + $0xa8] sm:$0xf] %v886
        %888 = vst [vmem:[%s781 + $0xac] sm:$0xf] %v714
        %v889 = vld [vmem:[%s781 + $0xb0] sm:$0x1]
        %v890 = vsel %vm790, %v715, %v889
        %891 = vst [vmem:[%s781 + $0xb0] sm:$0x1] %v890
        %v892 = vld [vmem:[%s781 + $0xb4] sm:$0xf]
        %v893 = vsel %vm784, %v722, %v892
        %894 = vst [vmem:[%s781 + $0xb4] sm:$0xf] %v893
        %895 = vst [vmem:[%s781 + $0xb8] sm:$0xf] %v731
        %v896 = vld [vmem:[%s781 + $0xbc] sm:$0x1]
        %v897 = vsel %vm790, %v732, %v896
        %898 = vst [vmem:[%s781 + $0xbc] sm:$0x1] %v897
        %v899 = vld [vmem:[#allocation2] sm:$0xf]
        %v900 = vld [vmem:[#allocation2 + $0x4] sm:$0xf]
        %v901 = vld [vmem:[#allocation2 + $0xc] sm:$0xf]
        %v902 = vld [vmem:[#allocation2 + $0x10] sm:$0xf]
        %v903 = vld [vmem:[#allocation2 + $0x18] sm:$0xf]
        %v904 = vld [vmem:[#allocation2 + $0x1c] sm:$0xf]
        %v905 = vld [vmem:[#allocation2 + $0x24] sm:$0xf]
        %v906 = vld [vmem:[#allocation2 + $0x28] sm:$0xf]
        %v907 = vld [vmem:[#allocation2 + $0x30] sm:$0xf]
        %v908 = vld [vmem:[#allocation2 + $0x34] sm:$0xf]
        %v909 = vld [vmem:[#allocation2 + $0x3c] sm:$0xf]
        %v910 = vld [vmem:[#allocation2 + $0x40] sm:$0xf]
        %v911 = vld [vmem:[#allocation2 + $0x48] sm:$0xf]
        %v912 = vld [vmem:[#allocation2 + $0x4c] sm:$0xf]
        %v913 = vld [vmem:[#allocation2 + $0x54] sm:$0xf]
        %v914 = vld [vmem:[#allocation2 + $0x58] sm:$0xf]
        %v915 = vld [vmem:[#allocation2 + $0x60] sm:$0xf]
        %v916 = vld [vmem:[#allocation2 + $0x64] sm:$0xf]
        %v917 = vld [vmem:[#allocation2 + $0x6c] sm:$0xf]
        %v918 = vld [vmem:[#allocation2 + $0x70] sm:$0xf]
        %v919 = vld [vmem:[#allocation2 + $0x78] sm:$0xf]
        %v920 = vld [vmem:[#allocation2 + $0x7c] sm:$0xf]
        %v921 = vld [vmem:[#allocation2 + $0x84] sm:$0xf]
        %v922 = vld [vmem:[#allocation2 + $0x88] sm:$0xf]
        %v923 = vld [vmem:[#allocation2 + $0x90] sm:$0xf]
        %v924 = vld [vmem:[#allocation2 + $0x94] sm:$0xf]
        %v925 = vld [vmem:[#allocation2 + $0x9c] sm:$0xf]
        %v926 = vld [vmem:[#allocation2 + $0xa0] sm:$0xf]
        %v927 = vld [vmem:[#allocation2 + $0xa8] sm:$0xf]
        %v928 = vld [vmem:[#allocation2 + $0xac] sm:$0xf]
        %v929 = vld [vmem:[#allocation2 + $0xb4] sm:$0xf]
        %v930 = vld [vmem:[#allocation2 + $0xb8] sm:$0xf]
        %v931 = vld [vmem:[#allocation2 + $0xc0] sm:$0xf]
        %v932 = vld [vmem:[#allocation2 + $0xc4] sm:$0xf]
        %v933 = vld [vmem:[#allocation2 + $0xcc] sm:$0xf]
        %v934 = vld [vmem:[#allocation2 + $0xd0] sm:$0xf]
        %935 = vst [vmem:[#allocation3] sm:$0xf] %v899
        %936 = vst [vmem:[#allocation3 + $0xc] sm:$0xf] %v900
        %937 = vst [vmem:[#allocation3 + $0x18] sm:$0xf] %v901
        %938 = vst [vmem:[#allocation3 + $0x24] sm:$0xf] %v902
        %939 = vst [vmem:[#allocation3 + $0x30] sm:$0xf] %v903
        %940 = vst [vmem:[#allocation3 + $0x3c] sm:$0xf] %v904
        %941 = vst [vmem:[#allocation3 + $0x48] sm:$0xf] %v905
        %942 = vst [vmem:[#allocation3 + $0x54] sm:$0xf] %v906
        %943 = vst [vmem:[#allocation3 + $0x60] sm:$0xf] %v907
        %944 = vst [vmem:[#allocation3 + $0x6c] sm:$0xf] %v908
        %945 = vst [vmem:[#allocation3 + $0x78] sm:$0xf] %v909
        %946 = vst [vmem:[#allocation3 + $0x84] sm:$0xf] %v910
        %947 = vst [vmem:[#allocation3 + $0x90] sm:$0xf] %v911
        %948 = vst [vmem:[#allocation3 + $0x9c] sm:$0xf] %v912
        %949 = vst [vmem:[#allocation3 + $0xa8] sm:$0xf] %v913
        %950 = vst [vmem:[#allocation3 + $0xb4] sm:$0xf] %v914
        %951 = vst [vmem:[#allocation3 + $0xc0] sm:$0xf] %v915
        %952 = vst [vmem:[#allocation3 + $0xcc] sm:$0xf] %v916
        %953 = vst [vmem:[#allocation3 + $0xd8] sm:$0xf] %v917
        %954 = vst [vmem:[#allocation3 + $0xe4] sm:$0xf] %v918
        %955 = vst [vmem:[#allocation3 + $0xf0] sm:$0xf] %v919
        %956 = vst [vmem:[#allocation3 + $0xfc] sm:$0xf] %v920
        %957 = vst [vmem:[#allocation3 + $0x108] sm:$0xf] %v921
        %958 = vst [vmem:[#allocation3 + $0x114] sm:$0xf] %v922
        %959 = vst [vmem:[#allocation3 + $0x120] sm:$0xf] %v923
        %960 = vst [vmem:[#allocation3 + $0x12c] sm:$0xf] %v924
        %961 = vst [vmem:[#allocation3 + $0x138] sm:$0xf] %v925
        %962 = vst [vmem:[#allocation3 + $0x144] sm:$0xf] %v926
        %963 = vst [vmem:[#allocation3 + $0x150] sm:$0xf] %v927
        %964 = vst [vmem:[#allocation3 + $0x15c] sm:$0xf] %v928
        %965 = vst [vmem:[#allocation3 + $0x168] sm:$0xf] %v929
        %966 = vst [vmem:[#allocation3 + $0x174] sm:$0xf] %v930
        %967 = vst [vmem:[#allocation3 + $0x180] sm:$0xf] %v931
        %968 = vst [vmem:[#allocation3 + $0x18c] sm:$0xf] %v932
        %969 = vst [vmem:[#allocation3 + $0x198] sm:$0xf] %v933
        %970 = vst [vmem:[#allocation3 + $0x1a4] sm:$0xf] %v934
        %v971 = vld [vmem:[#allocation2] sm:$0xf]
        %v972 = vld [vmem:[#allocation2 + $0x4] sm:$0xf]
        %v973 = vld [vmem:[#allocation2 + $0x8] sm:$0x1]
        %v974 = vld [vmem:[#allocation2 + $0xc] sm:$0xf]
        %v975 = vld [vmem:[#allocation2 + $0x10] sm:$0xf]
        %v976 = vld [vmem:[#allocation2 + $0x14] sm:$0x1]
        %v977 = vld [vmem:[#allocation2 + $0x18] sm:$0xf]
        %v978 = vld [vmem:[#allocation2 + $0x1c] sm:$0xf]
        %v979 = vld [vmem:[#allocation2 + $0x20] sm:$0x1]
        %v980 = vld [vmem:[#allocation2 + $0x24] sm:$0xf]
        %v981 = vld [vmem:[#allocation2 + $0x28] sm:$0xf]
        %v982 = vld [vmem:[#allocation2 + $0x2c] sm:$0x1]
        %v983 = vld [vmem:[#allocation2 + $0x30] sm:$0xf]
        %v984 = vld [vmem:[#allocation2 + $0x34] sm:$0xf]
        %v985 = vld [vmem:[#allocation2 + $0x38] sm:$0x1]
        %v986 = vld [vmem:[#allocation2 + $0x3c] sm:$0xf]
        %v987 = vld [vmem:[#allocation2 + $0x40] sm:$0xf]
        %v988 = vld [vmem:[#allocation2 + $0x44] sm:$0x1]
        %v989 = vld [vmem:[#allocation2 + $0x48] sm:$0xf]
        %v990 = vld [vmem:[#allocation2 + $0x4c] sm:$0xf]
        %v991 = vld [vmem:[#allocation2 + $0x50] sm:$0x1]
        %v992 = vld [vmem:[#allocation2 + $0x54] sm:$0xf]
        %v993 = vld [vmem:[#allocation2 + $0x58] sm:$0xf]
        %v994 = vld [vmem:[#allocation2 + $0x5c] sm:$0x1]
        %v995 = vld [vmem:[#allocation2 + $0x60] sm:$0xf]
        %v996 = vld [vmem:[#allocation2 + $0x64] sm:$0xf]
        %v997 = vld [vmem:[#allocation2 + $0x68] sm:$0x1]
        %v998 = vld [vmem:[#allocation2 + $0x6c] sm:$0xf]
        %v999 = vld [vmem:[#allocation2 + $0x70] sm:$0xf]
        %v1000 = vld [vmem:[#allocation2 + $0x74] sm:$0x1]
        %v1001 = vld [vmem:[#allocation2 + $0x78] sm:$0xf]
        %v1002 = vld [vmem:[#allocation2 + $0x7c] sm:$0xf]
        %v1003 = vld [vmem:[#allocation2 + $0x80] sm:$0x1]
        %v1004 = vld [vmem:[#allocation2 + $0x84] sm:$0xf]
        %v1005 = vld [vmem:[#allocation2 + $0x88] sm:$0xf]
        %v1006 = vld [vmem:[#allocation2 + $0x8c] sm:$0x1]
        %v1007 = vld [vmem:[#allocation2 + $0x90] sm:$0xf]
        %v1008 = vld [vmem:[#allocation2 + $0x94] sm:$0xf]
        %v1009 = vld [vmem:[#allocation2 + $0x98] sm:$0x1]
        %v1010 = vld [vmem:[#allocation2 + $0x9c] sm:$0xf]
        %v1011 = vld [vmem:[#allocation2 + $0xa0] sm:$0xf]
        %v1012 = vld [vmem:[#allocation2 + $0xa4] sm:$0x1]
        %v1013 = vld [vmem:[#allocation2 + $0xa8] sm:$0xf]
        %v1014 = vld [vmem:[#allocation2 + $0xac] sm:$0xf]
        %v1015 = vld [vmem:[#allocation2 + $0xb0] sm:$0x1]
        %v1016 = vld [vmem:[#allocation2 + $0xb4] sm:$0xf]
        %v1017 = vld [vmem:[#allocation2 + $0xb8] sm:$0xf]
        %v1018 = vld [vmem:[#allocation2 + $0xbc] sm:$0x1]
        %v1019 = vld [vmem:[#allocation2 + $0xc0] sm:$0xf]
        %v1020 = vld [vmem:[#allocation2 + $0xc4] sm:$0xf]
        %v1021 = vld [vmem:[#allocation2 + $0xc8] sm:$0x1]
        %v1022 = vld [vmem:[#allocation2 + $0xcc] sm:$0xf]
        %v1023 = vld [vmem:[#allocation2 + $0xd0] sm:$0xf]
        %v1024 = vld [vmem:[#allocation2 + $0xd4] sm:$0x1]
        %vm1025 = vsmask.f32 3328
        %vm1026 = vsmask.f32 7440
        %vm1027 = vmor %vm1025, %vm1026
        %v1029 = vshrl.u32 %v971, 16
        %v1031 = vrot.slane %v1029, 4
        %v1032 = vshll.u32 %v971, 16
        %v1034 = vrot.slane %v1032, 5
        %v1035 = vor.u32 %v1031, %v1034
        %v1036 = vrot.slane %v1035, 4
        %v1038 = vshll.u32 %v972, 16
        %v1040 = vrot.slane %v1038, 5
        %v1041 = vsel %vm1027, %v1036, %v1040
        %v1042 = vshrl.u32 %v972, 16
        %v1044 = vrot.slane %v1042, 4
        %v1045 = vor.u32 %v1044, %v1040
        %v1046 = vrot.slane %v1045, 4
        %v1048 = vshll.u32 %v973, 16
        %v1050 = vrot.slane %v1048, 5
        %v1051 = vsel %vm1027, %v1046, %v1050
        %v1053 = vshrl.u32 %v974, 16
        %v1055 = vrot.slane %v1053, 4
        %v1056 = vshll.u32 %v974, 16
        %v1058 = vrot.slane %v1056, 5
        %v1059 = vor.u32 %v1055, %v1058
        %v1060 = vrot.slane %v1059, 4
        %v1062 = vshll.u32 %v975, 16
        %v1064 = vrot.slane %v1062, 5
        %v1065 = vsel %vm1027, %v1060, %v1064
        %v1066 = vshrl.u32 %v975, 16
        %v1068 = vrot.slane %v1066, 4
        %v1069 = vor.u32 %v1068, %v1064
        %v1070 = vrot.slane %v1069, 4
        %v1072 = vshll.u32 %v976, 16
        %v1074 = vrot.slane %v1072, 5
        %v1075 = vsel %vm1027, %v1070, %v1074
        %v1077 = vshrl.u32 %v977, 16
        %v1079 = vrot.slane %v1077, 4
        %v1080 = vshll.u32 %v977, 16
        %v1082 = vrot.slane %v1080, 5
        %v1083 = vor.u32 %v1079, %v1082
        %v1084 = vrot.slane %v1083, 4
        %v1086 = vshll.u32 %v978, 16
        %v1088 = vrot.slane %v1086, 5
        %v1089 = vsel %vm1027, %v1084, %v1088
        %v1090 = vshrl.u32 %v978, 16
        %v1092 = vrot.slane %v1090, 4
        %v1093 = vor.u32 %v1092, %v1088
        %v1094 = vrot.slane %v1093, 4
        %v1096 = vshll.u32 %v979, 16
        %v1098 = vrot.slane %v1096, 5
        %v1099 = vsel %vm1027, %v1094, %v1098
        %v1101 = vshrl.u32 %v980, 16
        %v1103 = vrot.slane %v1101, 4
        %v1104 = vshll.u32 %v980, 16
        %v1106 = vrot.slane %v1104, 5
        %v1107 = vor.u32 %v1103, %v1106
        %v1108 = vrot.slane %v1107, 4
        %v1110 = vshll.u32 %v981, 16
        %v1112 = vrot.slane %v1110, 5
        %v1113 = vsel %vm1027, %v1108, %v1112
        %v1114 = vshrl.u32 %v981, 16
        %v1116 = vrot.slane %v1114, 4
        %v1117 = vor.u32 %v1116, %v1112
        %v1118 = vrot.slane %v1117, 4
        %v1120 = vshll.u32 %v982, 16
        %v1122 = vrot.slane %v1120, 5
        %v1123 = vsel %vm1027, %v1118, %v1122
        %v1125 = vshrl.u32 %v983, 16
        %v1127 = vrot.slane %v1125, 4
        %v1128 = vshll.u32 %v983, 16
        %v1130 = vrot.slane %v1128, 5
        %v1131 = vor.u32 %v1127, %v1130
        %v1132 = vrot.slane %v1131, 4
        %v1134 = vshll.u32 %v984, 16
        %v1136 = vrot.slane %v1134, 5
        %v1137 = vsel %vm1027, %v1132, %v1136
        %v1138 = vshrl.u32 %v984, 16
        %v1140 = vrot.slane %v1138, 4
        %v1141 = vor.u32 %v1140, %v1136
        %v1142 = vrot.slane %v1141, 4
        %v1144 = vshll.u32 %v985, 16
        %v1146 = vrot.slane %v1144, 5
        %v1147 = vsel %vm1027, %v1142, %v1146
        %v1149 = vshrl.u32 %v986, 16
        %v1151 = vrot.slane %v1149, 4
        %v1152 = vshll.u32 %v986, 16
        %v1154 = vrot.slane %v1152, 5
        %v1155 = vor.u32 %v1151, %v1154
        %v1156 = vrot.slane %v1155, 4
        %v1158 = vshll.u32 %v987, 16
        %v1160 = vrot.slane %v1158, 5
        %v1161 = vsel %vm1027, %v1156, %v1160
        %v1162 = vshrl.u32 %v987, 16
        %v1164 = vrot.slane %v1162, 4
        %v1165 = vor.u32 %v1164, %v1160
        %v1166 = vrot.slane %v1165, 4
        %v1168 = vshll.u32 %v988, 16
        %v1170 = vrot.slane %v1168, 5
        %v1171 = vsel %vm1027, %v1166, %v1170
        %v1173 = vshrl.u32 %v989, 16
        %v1175 = vrot.slane %v1173, 4
        %v1176 = vshll.u32 %v989, 16
        %v1178 = vrot.slane %v1176, 5
        %v1179 = vor.u32 %v1175, %v1178
        %v1180 = vrot.slane %v1179, 4
        %v1182 = vshll.u32 %v990, 16
        %v1184 = vrot.slane %v1182, 5
        %v1185 = vsel %vm1027, %v1180, %v1184
        %v1186 = vshrl.u32 %v990, 16
        %v1188 = vrot.slane %v1186, 4
        %v1189 = vor.u32 %v1188, %v1184
        %v1190 = vrot.slane %v1189, 4
        %v1192 = vshll.u32 %v991, 16
        %v1194 = vrot.slane %v1192, 5
        %v1195 = vsel %vm1027, %v1190, %v1194
        %v1197 = vshrl.u32 %v992, 16
        %v1199 = vrot.slane %v1197, 4
        %v1200 = vshll.u32 %v992, 16
        %v1202 = vrot.slane %v1200, 5
        %v1203 = vor.u32 %v1199, %v1202
        %v1204 = vrot.slane %v1203, 4
        %v1206 = vshll.u32 %v993, 16
        %v1208 = vrot.slane %v1206, 5
        %v1209 = vsel %vm1027, %v1204, %v1208
        %v1210 = vshrl.u32 %v993, 16
        %v1212 = vrot.slane %v1210, 4
        %v1213 = vor.u32 %v1212, %v1208
        %v1214 = vrot.slane %v1213, 4
        %v1216 = vshll.u32 %v994, 16
        %v1218 = vrot.slane %v1216, 5
        %v1219 = vsel %vm1027, %v1214, %v1218
        %v1221 = vshrl.u32 %v995, 16
        %v1223 = vrot.slane %v1221, 4
        %v1224 = vshll.u32 %v995, 16
        %v1226 = vrot.slane %v1224, 5
        %v1227 = vor.u32 %v1223, %v1226
        %v1228 = vrot.slane %v1227, 4
        %v1230 = vshll.u32 %v996, 16
        %v1232 = vrot.slane %v1230, 5
        %v1233 = vsel %vm1027, %v1228, %v1232
        %v1234 = vshrl.u32 %v996, 16
        %v1236 = vrot.slane %v1234, 4
        %v1237 = vor.u32 %v1236, %v1232
        %v1238 = vrot.slane %v1237, 4
        %v1240 = vshll.u32 %v997, 16
        %v1242 = vrot.slane %v1240, 5
        %v1243 = vsel %vm1027, %v1238, %v1242
        %v1245 = vshrl.u32 %v998, 16
        %v1247 = vrot.slane %v1245, 4
        %v1248 = vshll.u32 %v998, 16
        %v1250 = vrot.slane %v1248, 5
        %v1251 = vor.u32 %v1247, %v1250
        %v1252 = vrot.slane %v1251, 4
        %v1254 = vshll.u32 %v999, 16
        %v1256 = vrot.slane %v1254, 5
        %v1257 = vsel %vm1027, %v1252, %v1256
        %v1258 = vshrl.u32 %v999, 16
        %v1260 = vrot.slane %v1258, 4
        %v1261 = vor.u32 %v1260, %v1256
        %v1262 = vrot.slane %v1261, 4
        %v1264 = vshll.u32 %v1000, 16
        %v1266 = vrot.slane %v1264, 5
        %v1267 = vsel %vm1027, %v1262, %v1266
        %v1269 = vshrl.u32 %v1001, 16
        %v1271 = vrot.slane %v1269, 4
        %v1272 = vshll.u32 %v1001, 16
        %v1274 = vrot.slane %v1272, 5
        %v1275 = vor.u32 %v1271, %v1274
        %v1276 = vrot.slane %v1275, 4
        %v1278 = vshll.u32 %v1002, 16
        %v1280 = vrot.slane %v1278, 5
        %v1281 = vsel %vm1027, %v1276, %v1280
        %v1282 = vshrl.u32 %v1002, 16
        %v1284 = vrot.slane %v1282, 4
        %v1285 = vor.u32 %v1284, %v1280
        %v1286 = vrot.slane %v1285, 4
        %v1288 = vshll.u32 %v1003, 16
        %v1290 = vrot.slane %v1288, 5
        %v1291 = vsel %vm1027, %v1286, %v1290
        %v1293 = vshrl.u32 %v1004, 16
        %v1295 = vrot.slane %v1293, 4
        %v1296 = vshll.u32 %v1004, 16
        %v1298 = vrot.slane %v1296, 5
        %v1299 = vor.u32 %v1295, %v1298
        %v1300 = vrot.slane %v1299, 4
        %v1302 = vshll.u32 %v1005, 16
        %v1304 = vrot.slane %v1302, 5
        %v1305 = vsel %vm1027, %v1300, %v1304
        %v1306 = vshrl.u32 %v1005, 16
        %v1308 = vrot.slane %v1306, 4
        %v1309 = vor.u32 %v1308, %v1304
        %v1310 = vrot.slane %v1309, 4
        %v1312 = vshll.u32 %v1006, 16
        %v1314 = vrot.slane %v1312, 5
        %v1315 = vsel %vm1027, %v1310, %v1314
        %v1317 = vshrl.u32 %v1007, 16
        %v1319 = vrot.slane %v1317, 4
        %v1320 = vshll.u32 %v1007, 16
        %v1322 = vrot.slane %v1320, 5
        %v1323 = vor.u32 %v1319, %v1322
        %v1324 = vrot.slane %v1323, 4
        %v1326 = vshll.u32 %v1008, 16
        %v1328 = vrot.slane %v1326, 5
        %v1329 = vsel %vm1027, %v1324, %v1328
        %v1330 = vshrl.u32 %v1008, 16
        %v1332 = vrot.slane %v1330, 4
        %v1333 = vor.u32 %v1332, %v1328
        %v1334 = vrot.slane %v1333, 4
        %v1336 = vshll.u32 %v1009, 16
        %v1338 = vrot.slane %v1336, 5
        %v1339 = vsel %vm1027, %v1334, %v1338
        %v1341 = vshrl.u32 %v1010, 16
        %v1343 = vrot.slane %v1341, 4
        %v1344 = vshll.u32 %v1010, 16
        %v1346 = vrot.slane %v1344, 5
        %v1347 = vor.u32 %v1343, %v1346
        %v1348 = vrot.slane %v1347, 4
        %v1350 = vshll.u32 %v1011, 16
        %v1352 = vrot.slane %v1350, 5
        %v1353 = vsel %vm1027, %v1348, %v1352
        %v1354 = vshrl.u32 %v1011, 16
        %v1356 = vrot.slane %v1354, 4
        %v1357 = vor.u32 %v1356, %v1352
        %v1358 = vrot.slane %v1357, 4
        %v1360 = vshll.u32 %v1012, 16
        %v1362 = vrot.slane %v1360, 5
        %v1363 = vsel %vm1027, %v1358, %v1362
        %v1365 = vshrl.u32 %v1013, 16
        %v1367 = vrot.slane %v1365, 4
        %v1368 = vshll.u32 %v1013, 16
        %v1370 = vrot.slane %v1368, 5
        %v1371 = vor.u32 %v1367, %v1370
        %v1372 = vrot.slane %v1371, 4
        %v1374 = vshll.u32 %v1014, 16
        %v1376 = vrot.slane %v1374, 5
        %v1377 = vsel %vm1027, %v1372, %v1376
        %v1378 = vshrl.u32 %v1014, 16
        %v1380 = vrot.slane %v1378, 4
        %v1381 = vor.u32 %v1380, %v1376
        %v1382 = vrot.slane %v1381, 4
        %v1384 = vshll.u32 %v1015, 16
        %v1386 = vrot.slane %v1384, 5
        %v1387 = vsel %vm1027, %v1382, %v1386
        %v1389 = vshrl.u32 %v1016, 16
        %v1391 = vrot.slane %v1389, 4
        %v1392 = vshll.u32 %v1016, 16
        %v1394 = vrot.slane %v1392, 5
        %v1395 = vor.u32 %v1391, %v1394
        %v1396 = vrot.slane %v1395, 4
        %v1398 = vshll.u32 %v1017, 16
        %v1400 = vrot.slane %v1398, 5
        %v1401 = vsel %vm1027, %v1396, %v1400
        %v1402 = vshrl.u32 %v1017, 16
        %v1404 = vrot.slane %v1402, 4
        %v1405 = vor.u32 %v1404, %v1400
        %v1406 = vrot.slane %v1405, 4
        %v1408 = vshll.u32 %v1018, 16
        %v1410 = vrot.slane %v1408, 5
        %v1411 = vsel %vm1027, %v1406, %v1410
        %v1413 = vshrl.u32 %v1019, 16
        %v1415 = vrot.slane %v1413, 4
        %v1416 = vshll.u32 %v1019, 16
        %v1418 = vrot.slane %v1416, 5
        %v1419 = vor.u32 %v1415, %v1418
        %v1420 = vrot.slane %v1419, 4
        %v1422 = vshll.u32 %v1020, 16
        %v1424 = vrot.slane %v1422, 5
        %v1425 = vsel %vm1027, %v1420, %v1424
        %v1426 = vshrl.u32 %v1020, 16
        %v1428 = vrot.slane %v1426, 4
        %v1429 = vor.u32 %v1428, %v1424
        %v1430 = vrot.slane %v1429, 4
        %v1432 = vshll.u32 %v1021, 16
        %v1434 = vrot.slane %v1432, 5
        %v1435 = vsel %vm1027, %v1430, %v1434
        %v1437 = vshrl.u32 %v1022, 16
        %v1439 = vrot.slane %v1437, 4
        %v1440 = vshll.u32 %v1022, 16
        %v1442 = vrot.slane %v1440, 5
        %v1443 = vor.u32 %v1439, %v1442
        %v1444 = vrot.slane %v1443, 4
        %v1446 = vshll.u32 %v1023, 16
        %v1448 = vrot.slane %v1446, 5
        %v1449 = vsel %vm1027, %v1444, %v1448
        %v1450 = vshrl.u32 %v1023, 16
        %v1452 = vrot.slane %v1450, 4
        %v1453 = vor.u32 %v1452, %v1448
        %v1454 = vrot.slane %v1453, 4
        %v1456 = vshll.u32 %v1024, 16
        %v1458 = vrot.slane %v1456, 5
        %v1459 = vsel %vm1027, %v1454, %v1458
        %1496 = vst [vmem:[#allocation3 + $0x4] sm:$0xf] %v1041
        %1497 = vst [vmem:[#allocation3 + $0x10] sm:$0xf] %v1051
        %1498 = vst [vmem:[#allocation3 + $0x1c] sm:$0xf] %v1065
        %1499 = vst [vmem:[#allocation3 + $0x28] sm:$0xf] %v1075
        %1500 = vst [vmem:[#allocation3 + $0x34] sm:$0xf] %v1089
        %1501 = vst [vmem:[#allocation3 + $0x40] sm:$0xf] %v1099
        %1502 = vst [vmem:[#allocation3 + $0x4c] sm:$0xf] %v1113
        %1503 = vst [vmem:[#allocation3 + $0x58] sm:$0xf] %v1123
        %1504 = vst [vmem:[#allocation3 + $0x64] sm:$0xf] %v1137
        %1505 = vst [vmem:[#allocation3 + $0x70] sm:$0xf] %v1147
        %1506 = vst [vmem:[#allocation3 + $0x7c] sm:$0xf] %v1161
        %1507 = vst [vmem:[#allocation3 + $0x88] sm:$0xf] %v1171
        %1508 = vst [vmem:[#allocation3 + $0x94] sm:$0xf] %v1185
        %1509 = vst [vmem:[#allocation3 + $0xa0] sm:$0xf] %v1195
        %1510 = vst [vmem:[#allocation3 + $0xac] sm:$0xf] %v1209
        %1511 = vst [vmem:[#allocation3 + $0xb8] sm:$0xf] %v1219
        %1512 = vst [vmem:[#allocation3 + $0xc4] sm:$0xf] %v1233
        %1513 = vst [vmem:[#allocation3 + $0xd0] sm:$0xf] %v1243
        %1514 = vst [vmem:[#allocation3 + $0xdc] sm:$0xf] %v1257
        %1515 = vst [vmem:[#allocation3 + $0xe8] sm:$0xf] %v1267
        %1516 = vst [vmem:[#allocation3 + $0xf4] sm:$0xf] %v1281
        %1517 = vst [vmem:[#allocation3 + $0x100] sm:$0xf] %v1291
        %1518 = vst [vmem:[#allocation3 + $0x10c] sm:$0xf] %v1305
        %1519 = vst [vmem:[#allocation3 + $0x118] sm:$0xf] %v1315
        %1520 = vst [vmem:[#allocation3 + $0x124] sm:$0xf] %v1329
        %1521 = vst [vmem:[#allocation3 + $0x130] sm:$0xf] %v1339
        %1522 = vst [vmem:[#allocation3 + $0x13c] sm:$0xf] %v1353
        %1523 = vst [vmem:[#allocation3 + $0x148] sm:$0xf] %v1363
        %1524 = vst [vmem:[#allocation3 + $0x154] sm:$0xf] %v1377
        %1525 = vst [vmem:[#allocation3 + $0x160] sm:$0xf] %v1387
        %1526 = vst [vmem:[#allocation3 + $0x16c] sm:$0xf] %v1401
        %1527 = vst [vmem:[#allocation3 + $0x178] sm:$0xf] %v1411
        %1528 = vst [vmem:[#allocation3 + $0x184] sm:$0xf] %v1425
        %1529 = vst [vmem:[#allocation3 + $0x190] sm:$0xf] %v1435
        %1530 = vst [vmem:[#allocation3 + $0x19c] sm:$0xf] %v1449
        %1531 = vst [vmem:[#allocation3 + $0x1a8] sm:$0xf] %v1459
        %v1532 = vld [vmem:[#allocation2] sm:$0xe]
        %v1533 = vld [vmem:[#allocation2 + $0x4] sm:$0xf]
        %v1534 = vld [vmem:[#allocation2 + $0x8] sm:$0x1]
        %v1535 = vld [vmem:[#allocation2 + $0xc] sm:$0xe]
        %v1536 = vld [vmem:[#allocation2 + $0x10] sm:$0xf]
        %v1537 = vld [vmem:[#allocation2 + $0x14] sm:$0x1]
        %v1538 = vld [vmem:[#allocation2 + $0x18] sm:$0xe]
        %v1539 = vld [vmem:[#allocation2 + $0x1c] sm:$0xf]
        %v1540 = vld [vmem:[#allocation2 + $0x20] sm:$0x1]
        %v1541 = vld [vmem:[#allocation2 + $0x24] sm:$0xe]
        %v1542 = vld [vmem:[#allocation2 + $0x28] sm:$0xf]
        %v1543 = vld [vmem:[#allocation2 + $0x2c] sm:$0x1]
        %v1544 = vld [vmem:[#allocation2 + $0x30] sm:$0xe]
        %v1545 = vld [vmem:[#allocation2 + $0x34] sm:$0xf]
        %v1546 = vld [vmem:[#allocation2 + $0x38] sm:$0x1]
        %v1547 = vld [vmem:[#allocation2 + $0x3c] sm:$0xe]
        %v1548 = vld [vmem:[#allocation2 + $0x40] sm:$0xf]
        %v1549 = vld [vmem:[#allocation2 + $0x44] sm:$0x1]
        %v1550 = vld [vmem:[#allocation2 + $0x48] sm:$0xe]
        %v1551 = vld [vmem:[#allocation2 + $0x4c] sm:$0xf]
        %v1552 = vld [vmem:[#allocation2 + $0x50] sm:$0x1]
        %v1553 = vld [vmem:[#allocation2 + $0x54] sm:$0xe]
        %v1554 = vld [vmem:[#allocation2 + $0x58] sm:$0xf]
        %v1555 = vld [vmem:[#allocation2 + $0x5c] sm:$0x1]
        %v1556 = vld [vmem:[#allocation2 + $0x60] sm:$0xe]
        %v1557 = vld [vmem:[#allocation2 + $0x64] sm:$0xf]
        %v1558 = vld [vmem:[#allocation2 + $0x68] sm:$0x1]
        %v1559 = vld [vmem:[#allocation2 + $0x6c] sm:$0xe]
        %v1560 = vld [vmem:[#allocation2 + $0x70] sm:$0xf]
        %v1561 = vld [vmem:[#allocation2 + $0x74] sm:$0x1]
        %v1562 = vld [vmem:[#allocation2 + $0x78] sm:$0xe]
        %v1563 = vld [vmem:[#allocation2 + $0x7c] sm:$0xf]
        %v1564 = vld [vmem:[#allocation2 + $0x80] sm:$0x1]
        %v1565 = vld [vmem:[#allocation2 + $0x84] sm:$0xe]
        %v1566 = vld [vmem:[#allocation2 + $0x88] sm:$0xf]
        %v1567 = vld [vmem:[#allocation2 + $0x8c] sm:$0x1]
        %v1568 = vld [vmem:[#allocation2 + $0x90] sm:$0xe]
        %v1569 = vld [vmem:[#allocation2 + $0x94] sm:$0xf]
        %v1570 = vld [vmem:[#allocation2 + $0x98] sm:$0x1]
        %v1571 = vld [vmem:[#allocation2 + $0x9c] sm:$0xe]
        %v1572 = vld [vmem:[#allocation2 + $0xa0] sm:$0xf]
        %v1573 = vld [vmem:[#allocation2 + $0xa4] sm:$0x1]
        %v1574 = vld [vmem:[#allocation2 + $0xa8] sm:$0xe]
        %v1575 = vld [vmem:[#allocation2 + $0xac] sm:$0xf]
        %v1576 = vld [vmem:[#allocation2 + $0xb0] sm:$0x1]
        %v1577 = vld [vmem:[#allocation2 + $0xb4] sm:$0xe]
        %v1578 = vld [vmem:[#allocation2 + $0xb8] sm:$0xf]
        %v1579 = vld [vmem:[#allocation2 + $0xbc] sm:$0x1]
        %v1580 = vld [vmem:[#allocation2 + $0xc0] sm:$0xe]
        %v1581 = vld [vmem:[#allocation2 + $0xc4] sm:$0xf]
        %v1582 = vld [vmem:[#allocation2 + $0xc8] sm:$0x1]
        %v1583 = vld [vmem:[#allocation2 + $0xcc] sm:$0xe]
        %v1584 = vld [vmem:[#allocation2 + $0xd0] sm:$0xf]
        %v1585 = vld [vmem:[#allocation2 + $0xd4] sm:$0x1]
        %vm1640 = vcmask 1042432
        %vm1641 = vcmask 1046532
        %vm1642 = vmor %vm1640, %vm1641
        %v1643 = vrot.slane %v1532, 5
        %v1644 = vrot.slane %v1643, 4
        %v1645 = vrot.slane %v1533, 5
        %v1646 = vsel %vm1642, %v1644, %v1645
        %v1647 = vrot.slane %v1645, 4
        %v1648 = vrot.slane %v1534, 5
        %v1649 = vsel %vm1642, %v1647, %v1648
        %v1650 = vrot.slane %v1535, 5
        %v1651 = vrot.slane %v1650, 4
        %v1652 = vrot.slane %v1536, 5
        %v1653 = vsel %vm1642, %v1651, %v1652
        %v1654 = vrot.slane %v1652, 4
        %v1655 = vrot.slane %v1537, 5
        %v1656 = vsel %vm1642, %v1654, %v1655
        %v1657 = vrot.slane %v1538, 5
        %v1658 = vrot.slane %v1657, 4
        %v1659 = vrot.slane %v1539, 5
        %v1660 = vsel %vm1642, %v1658, %v1659
        %v1661 = vrot.slane %v1659, 4
        %v1662 = vrot.slane %v1540, 5
        %v1663 = vsel %vm1642, %v1661, %v1662
        %v1664 = vrot.slane %v1541, 5
        %v1665 = vrot.slane %v1664, 4
        %v1666 = vrot.slane %v1542, 5
        %v1667 = vsel %vm1642, %v1665, %v1666
        %v1668 = vrot.slane %v1666, 4
        %v1669 = vrot.slane %v1543, 5
        %v1670 = vsel %vm1642, %v1668, %v1669
        %v1671 = vrot.slane %v1544, 5
        %v1672 = vrot.slane %v1671, 4
        %v1673 = vrot.slane %v1545, 5
        %v1674 = vsel %vm1642, %v1672, %v1673
        %v1675 = vrot.slane %v1673, 4
        %v1676 = vrot.slane %v1546, 5
        %v1677 = vsel %vm1642, %v1675, %v1676
        %v1678 = vrot.slane %v1547, 5
        %v1679 = vrot.slane %v1678, 4
        %v1680 = vrot.slane %v1548, 5
        %v1681 = vsel %vm1642, %v1679, %v1680
        %v1682 = vrot.slane %v1680, 4
        %v1683 = vrot.slane %v1549, 5
        %v1684 = vsel %vm1642, %v1682, %v1683
        %v1685 = vrot.slane %v1550, 5
        %v1686 = vrot.slane %v1685, 4
        %v1687 = vrot.slane %v1551, 5
        %v1688 = vsel %vm1642, %v1686, %v1687
        %v1689 = vrot.slane %v1687, 4
        %v1690 = vrot.slane %v1552, 5
        %v1691 = vsel %vm1642, %v1689, %v1690
        %v1692 = vrot.slane %v1553, 5
        %v1693 = vrot.slane %v1692, 4
        %v1694 = vrot.slane %v1554, 5
        %v1695 = vsel %vm1642, %v1693, %v1694
        %v1696 = vrot.slane %v1694, 4
        %v1697 = vrot.slane %v1555, 5
        %v1698 = vsel %vm1642, %v1696, %v1697
        %v1699 = vrot.slane %v1556, 5
        %v1700 = vrot.slane %v1699, 4
        %v1701 = vrot.slane %v1557, 5
        %v1702 = vsel %vm1642, %v1700, %v1701
        %v1703 = vrot.slane %v1701, 4
        %v1704 = vrot.slane %v1558, 5
        %v1705 = vsel %vm1642, %v1703, %v1704
        %v1706 = vrot.slane %v1559, 5
        %v1707 = vrot.slane %v1706, 4
        %v1708 = vrot.slane %v1560, 5
        %v1709 = vsel %vm1642, %v1707, %v1708
        %v1710 = vrot.slane %v1708, 4
        %v1711 = vrot.slane %v1561, 5
        %v1712 = vsel %vm1642, %v1710, %v1711
        %v1713 = vrot.slane %v1562, 5
        %v1714 = vrot.slane %v1713, 4
        %v1715 = vrot.slane %v1563, 5
        %v1716 = vsel %vm1642, %v1714, %v1715
        %v1717 = vrot.slane %v1715, 4
        %v1718 = vrot.slane %v1564, 5
        %v1719 = vsel %vm1642, %v1717, %v1718
        %v1720 = vrot.slane %v1565, 5
        %v1721 = vrot.slane %v1720, 4
        %v1722 = vrot.slane %v1566, 5
        %v1723 = vsel %vm1642, %v1721, %v1722
        %v1724 = vrot.slane %v1722, 4
        %v1725 = vrot.slane %v1567, 5
        %v1726 = vsel %vm1642, %v1724, %v1725
        %v1727 = vrot.slane %v1568, 5
        %v1728 = vrot.slane %v1727, 4
        %v1729 = vrot.slane %v1569, 5
        %v1730 = vsel %vm1642, %v1728, %v1729
        %v1731 = vrot.slane %v1729, 4
        %v1732 = vrot.slane %v1570, 5
        %v1733 = vsel %vm1642, %v1731, %v1732
        %v1734 = vrot.slane %v1571, 5
        %v1735 = vrot.slane %v1734, 4
        %v1736 = vrot.slane %v1572, 5
        %v1737 = vsel %vm1642, %v1735, %v1736
        %v1738 = vrot.slane %v1736, 4
        %v1739 = vrot.slane %v1573, 5
        %v1740 = vsel %vm1642, %v1738, %v1739
        %v1741 = vrot.slane %v1574, 5
        %v1742 = vrot.slane %v1741, 4
        %v1743 = vrot.slane %v1575, 5
        %v1744 = vsel %vm1642, %v1742, %v1743
        %v1745 = vrot.slane %v1743, 4
        %v1746 = vrot.slane %v1576, 5
        %v1747 = vsel %vm1642, %v1745, %v1746
        %v1748 = vrot.slane %v1577, 5
        %v1749 = vrot.slane %v1748, 4
        %v1750 = vrot.slane %v1578, 5
        %v1751 = vsel %vm1642, %v1749, %v1750
        %v1752 = vrot.slane %v1750, 4
        %v1753 = vrot.slane %v1579, 5
        %v1754 = vsel %vm1642, %v1752, %v1753
        %v1755 = vrot.slane %v1580, 5
        %v1756 = vrot.slane %v1755, 4
        %v1757 = vrot.slane %v1581, 5
        %v1758 = vsel %vm1642, %v1756, %v1757
        %v1759 = vrot.slane %v1757, 4
        %v1760 = vrot.slane %v1582, 5
        %v1761 = vsel %vm1642, %v1759, %v1760
        %v1762 = vrot.slane %v1583, 5
        %v1763 = vrot.slane %v1762, 4
        %v1764 = vrot.slane %v1584, 5
        %v1765 = vsel %vm1642, %v1763, %v1764
        %v1766 = vrot.slane %v1764, 4
        %v1767 = vrot.slane %v1585, 5
        %v1768 = vsel %vm1642, %v1766, %v1767
        %1805 = vst [vmem:[#allocation3 + $0x8] sm:$0xf] %v1646
        %1806 = vst [vmem:[#allocation3 + $0x14] sm:$0xf] %v1649
        %1807 = vst [vmem:[#allocation3 + $0x20] sm:$0xf] %v1653
        %1808 = vst [vmem:[#allocation3 + $0x2c] sm:$0xf] %v1656
        %1809 = vst [vmem:[#allocation3 + $0x38] sm:$0xf] %v1660
        %1810 = vst [vmem:[#allocation3 + $0x44] sm:$0xf] %v1663
        %1811 = vst [vmem:[#allocation3 + $0x50] sm:$0xf] %v1667
        %1812 = vst [vmem:[#allocation3 + $0x5c] sm:$0xf] %v1670
        %1813 = vst [vmem:[#allocation3 + $0x68] sm:$0xf] %v1674
        %1814 = vst [vmem:[#allocation3 + $0x74] sm:$0xf] %v1677
        %1815 = vst [vmem:[#allocation3 + $0x80] sm:$0xf] %v1681
        %1816 = vst [vmem:[#allocation3 + $0x8c] sm:$0xf] %v1684
        %1817 = vst [vmem:[#allocation3 + $0x98] sm:$0xf] %v1688
        %1818 = vst [vmem:[#allocation3 + $0xa4] sm:$0xf] %v1691
        %1819 = vst [vmem:[#allocation3 + $0xb0] sm:$0xf] %v1695
        %1820 = vst [vmem:[#allocation3 + $0xbc] sm:$0xf] %v1698
        %1821 = vst [vmem:[#allocation3 + $0xc8] sm:$0xf] %v1702
        %1822 = vst [vmem:[#allocation3 + $0xd4] sm:$0xf] %v1705
        %1823 = vst [vmem:[#allocation3 + $0xe0] sm:$0xf] %v1709
        %1824 = vst [vmem:[#allocation3 + $0xec] sm:$0xf] %v1712
        %1825 = vst [vmem:[#allocation3 + $0xf8] sm:$0xf] %v1716
        %1826 = vst [vmem:[#allocation3 + $0x104] sm:$0xf] %v1719
        %1827 = vst [vmem:[#allocation3 + $0x110] sm:$0xf] %v1723
        %1828 = vst [vmem:[#allocation3 + $0x11c] sm:$0xf] %v1726
        %1829 = vst [vmem:[#allocation3 + $0x128] sm:$0xf] %v1730
        %1830 = vst [vmem:[#allocation3 + $0x134] sm:$0xf] %v1733
        %1831 = vst [vmem:[#allocation3 + $0x140] sm:$0xf] %v1737
        %1832 = vst [vmem:[#allocation3 + $0x14c] sm:$0xf] %v1740
        %1833 = vst [vmem:[#allocation3 + $0x158] sm:$0xf] %v1744
        %1834 = vst [vmem:[#allocation3 + $0x164] sm:$0xf] %v1747
        %1835 = vst [vmem:[#allocation3 + $0x170] sm:$0xf] %v1751
        %1836 = vst [vmem:[#allocation3 + $0x17c] sm:$0xf] %v1754
        %1837 = vst [vmem:[#allocation3 + $0x188] sm:$0xf] %v1758
        %1838 = vst [vmem:[#allocation3 + $0x194] sm:$0xf] %v1761
        %1839 = vst [vmem:[#allocation3 + $0x1a0] sm:$0xf] %v1765
        %1840 = vst [vmem:[#allocation3 + $0x1ac] sm:$0xf] %v1768
        %v1841 = vld [vmem:[#allocation3] sm:$0xff]
        %v1842 = vld [vmem:[#allocation3 + $0x8] sm:$0xf]
        %v1843 = vld [vmem:[#allocation3 + $0xc] sm:$0xff]
        %v1844 = vld [vmem:[#allocation3 + $0x14] sm:$0xf]
        %v1845 = vld [vmem:[#allocation3 + $0x18] sm:$0xff]
        %v1846 = vld [vmem:[#allocation3 + $0x20] sm:$0xf]
        %v1847 = vld [vmem:[#allocation3 + $0x24] sm:$0xff]
        %v1848 = vld [vmem:[#allocation3 + $0x2c] sm:$0xf]
        %v1849 = vld [vmem:[#allocation3 + $0x30] sm:$0xff]
        %v1850 = vld [vmem:[#allocation3 + $0x38] sm:$0xf]
        %v1851 = vld [vmem:[#allocation3 + $0x3c] sm:$0xff]
        %v1852 = vld [vmem:[#allocation3 + $0x44] sm:$0xf]
        %v1853 = vld [vmem:[#allocation3 + $0x48] sm:$0xff]
        %v1854 = vld [vmem:[#allocation3 + $0x50] sm:$0xf]
        %v1855 = vld [vmem:[#allocation3 + $0x54] sm:$0xff]
        %v1856 = vld [vmem:[#allocation3 + $0x5c] sm:$0xf]
        %v1857 = vld [vmem:[#allocation3 + $0x60] sm:$0xff]
        %v1858 = vld [vmem:[#allocation3 + $0x68] sm:$0xf]
        %v1859 = vld [vmem:[#allocation3 + $0x6c] sm:$0xff]
        %v1860 = vld [vmem:[#allocation3 + $0x74] sm:$0xf]
        %v1861 = vld [vmem:[#allocation3 + $0x78] sm:$0xff]
        %v1862 = vld [vmem:[#allocation3 + $0x80] sm:$0xf]
        %v1863 = vld [vmem:[#allocation3 + $0x84] sm:$0xff]
        %v1864 = vld [vmem:[#allocation3 + $0x8c] sm:$0xf]
        %v1865 = vld [vmem:[#allocation3 + $0x90] sm:$0xff]
        %v1866 = vld [vmem:[#allocation3 + $0x98] sm:$0xf]
        %v1867 = vld [vmem:[#allocation3 + $0x9c] sm:$0xff]
        %v1868 = vld [vmem:[#allocation3 + $0xa4] sm:$0xf]
        %v1869 = vld [vmem:[#allocation3 + $0xa8] sm:$0xff]
        %v1870 = vld [vmem:[#allocation3 + $0xb0] sm:$0xf]
        %v1871 = vld [vmem:[#allocation3 + $0xb4] sm:$0xff]
        %v1872 = vld [vmem:[#allocation3 + $0xbc] sm:$0xf]
        %v1873 = vld [vmem:[#allocation3 + $0xc0] sm:$0xff]
        %v1874 = vld [vmem:[#allocation3 + $0xc8] sm:$0xf]
        %v1875 = vld [vmem:[#allocation3 + $0xcc] sm:$0xff]
        %v1876 = vld [vmem:[#allocation3 + $0xd4] sm:$0xf]
        %v1877 = vld [vmem:[#allocation3 + $0xd8] sm:$0xff]
        %v1878 = vld [vmem:[#allocation3 + $0xe0] sm:$0xf]
        %v1879 = vld [vmem:[#allocation3 + $0xe4] sm:$0xff]
        %v1880 = vld [vmem:[#allocation3 + $0xec] sm:$0xf]
        %v1881 = vld [vmem:[#allocation3 + $0xf0] sm:$0xff]
        %v1882 = vld [vmem:[#allocation3 + $0xf8] sm:$0xf]
        %v1883 = vld [vmem:[#allocation3 + $0xfc] sm:$0xff]
        %v1884 = vld [vmem:[#allocation3 + $0x104] sm:$0xf]
        %v1885 = vld [vmem:[#allocation3 + $0x108] sm:$0xff]
        %v1886 = vld [vmem:[#allocation3 + $0x110] sm:$0xf]
        %v1887 = vld [vmem:[#allocation3 + $0x114] sm:$0xff]
        %v1888 = vld [vmem:[#allocation3 + $0x11c] sm:$0xf]
        %v1889 = vld [vmem:[#allocation3 + $0x120] sm:$0xff]
        %v1890 = vld [vmem:[#allocation3 + $0x128] sm:$0xf]
        %v1891 = vld [vmem:[#allocation3 + $0x12c] sm:$0xff]
        %v1892 = vld [vmem:[#allocation3 + $0x134] sm:$0xf]
        %v1893 = vld [vmem:[#allocation3 + $0x138] sm:$0xff]
        %v1894 = vld [vmem:[#allocation3 + $0x140] sm:$0xf]
        %v1895 = vld [vmem:[#allocation3 + $0x144] sm:$0xff]
        %v1896 = vld [vmem:[#allocation3 + $0x14c] sm:$0xf]
        %v1897 = vld [vmem:[#allocation3 + $0x150] sm:$0xff]
        %v1898 = vld [vmem:[#allocation3 + $0x158] sm:$0xf]
        %v1899 = vld [vmem:[#allocation3 + $0x15c] sm:$0xff]
        %v1900 = vld [vmem:[#allocation3 + $0x164] sm:$0xf]
        %v1901 = vld [vmem:[#allocation3 + $0x168] sm:$0xff]
        %v1902 = vld [vmem:[#allocation3 + $0x170] sm:$0xf]
        %v1903 = vld [vmem:[#allocation3 + $0x174] sm:$0xff]
        %v1904 = vld [vmem:[#allocation3 + $0x17c] sm:$0xf]
        %v1905 = vld [vmem:[#allocation8] sm:$0xf]
        %v1906 = vld [vmem:[#allocation8 + $0x4] sm:$0xf]
        %v1907 = vld [vmem:[#allocation8 + $0x8] sm:$0xf]
        %v1908 = vld [vmem:[#allocation8 + $0xc] sm:$0xf]
        %v1909 = vld [vmem:[#allocation8 + $0x10] sm:$0xf]
        %v1910 = vld [vmem:[#allocation8 + $0x14] sm:$0xf]
        %v1911 = vld [vmem:[#allocation8 + $0x18] sm:$0xf]
        %v1912 = vld [vmem:[#allocation8 + $0x1c] sm:$0xf]
        %v1913 = vld [vmem:[#allocation8 + $0x20] sm:$0xf]
        %v1914 = vld [vmem:[#allocation8 + $0x24] sm:$0xf]
        %v1915 = vld [vmem:[#allocation8 + $0x28] sm:$0xf]
        %v1916 = vld [vmem:[#allocation8 + $0x2c] sm:$0xf]
        %v1917 = vld [vmem:[#allocation8 + $0x30] sm:$0xf]
        %v1918 = vld [vmem:[#allocation8 + $0x34] sm:$0xf]
        %v1919 = vld [vmem:[#allocation8 + $0x38] sm:$0xf]
        %v1920 = vld [vmem:[#allocation8 + $0x3c] sm:$0xf]
        %v1921 = vld [vmem:[#allocation8 + $0x40] sm:$0xf]
        %v1922 = vld [vmem:[#allocation8 + $0x44] sm:$0xf]
        %v1923 = vld [vmem:[#allocation8 + $0x48] sm:$0xf]
        %v1924 = vld [vmem:[#allocation8 + $0x4c] sm:$0xf]
        %v1925 = vld [vmem:[#allocation8 + $0x50] sm:$0xf]
        %v1926 = vld [vmem:[#allocation8 + $0x54] sm:$0xf]
        %v1927 = vld [vmem:[#allocation8 + $0x58] sm:$0xf]
        %v1928 = vld [vmem:[#allocation8 + $0x5c] sm:$0xf]
        %v1929 = vld [vmem:[#allocation8 + $0x60] sm:$0xf]
        %v1930 = vld [vmem:[#allocation8 + $0x64] sm:$0xf]
        %v1931 = vld [vmem:[#allocation8 + $0x68] sm:$0xf]
        %v1932 = vld [vmem:[#allocation8 + $0x6c] sm:$0xf]
        %v1933 = vld [vmem:[#allocation8 + $0x70] sm:$0xf]
        %v1934 = vld [vmem:[#allocation8 + $0x74] sm:$0xf]
        %v1935 = vld [vmem:[#allocation8 + $0x78] sm:$0xf]
        %v1936 = vld [vmem:[#allocation8 + $0x7c] sm:$0xf]
        %v1937 = vld [vmem:[#allocation8 + $0x80] sm:$0xf]
        %v1938 = vld [vmem:[#allocation8 + $0x84] sm:$0xf]
        %v1939 = vld [vmem:[#allocation8 + $0x88] sm:$0xf]
        %v1940 = vld [vmem:[#allocation8 + $0x8c] sm:$0xf]
        %v1941 = vld [vmem:[#allocation8 + $0x90] sm:$0xf]
        %v1942 = vld [vmem:[#allocation8 + $0x94] sm:$0xf]
        %v1943 = vld [vmem:[#allocation8 + $0x98] sm:$0xf]
        %v1944 = vld [vmem:[#allocation8 + $0x9c] sm:$0xf]
        %v1945 = vld [vmem:[#allocation8 + $0xa0] sm:$0xf]
        %v1946 = vld [vmem:[#allocation8 + $0xa4] sm:$0xf]
        %v1947 = vld [vmem:[#allocation8 + $0xa8] sm:$0xf]
        %v1948 = vld [vmem:[#allocation8 + $0xac] sm:$0xf]
        %v1949 = vld [vmem:[#allocation8 + $0xb0] sm:$0xf]
        %v1950 = vld [vmem:[#allocation8 + $0xb4] sm:$0xf]
        %v1951 = vld [vmem:[#allocation8 + $0xb8] sm:$0xf]
        %v1952 = vld [vmem:[#allocation8 + $0xbc] sm:$0xf]
        %v2017 = vunpack.c.l.b16 %v1841
        %v2018 = vunpack.c.h.b16 %v1841
        %v2019 = vunpack.c.l.b16 %v1842
        %v2020 = vunpack.c.l.b16 %v1843
        %v2021 = vunpack.c.h.b16 %v1843
        %v2022 = vunpack.c.l.b16 %v1844
        %v2023 = vunpack.c.l.b16 %v1845
        %v2024 = vunpack.c.h.b16 %v1845
        %v2025 = vunpack.c.l.b16 %v1846
        %v2026 = vunpack.c.l.b16 %v1847
        %v2027 = vunpack.c.h.b16 %v1847
        %v2028 = vunpack.c.l.b16 %v1848
        %v2029 = vunpack.c.l.b16 %v1849
        %v2030 = vunpack.c.h.b16 %v1849
        %v2031 = vunpack.c.l.b16 %v1850
        %v2032 = vunpack.c.l.b16 %v1851
        %v2033 = vunpack.c.h.b16 %v1851
        %v2034 = vunpack.c.l.b16 %v1852
        %v2035 = vunpack.c.l.b16 %v1853
        %v2036 = vunpack.c.h.b16 %v1853
        %v2037 = vunpack.c.l.b16 %v1854
        %v2038 = vunpack.c.l.b16 %v1855
        %v2039 = vunpack.c.h.b16 %v1855
        %v2040 = vunpack.c.l.b16 %v1856
        %v2041 = vunpack.c.l.b16 %v1857
        %v2042 = vunpack.c.h.b16 %v1857
        %v2043 = vunpack.c.l.b16 %v1858
        %v2044 = vunpack.c.l.b16 %v1859
        %v2045 = vunpack.c.h.b16 %v1859
        %v2046 = vunpack.c.l.b16 %v1860
        %v2047 = vunpack.c.l.b16 %v1861
        %v2048 = vunpack.c.h.b16 %v1861
        %v2049 = vunpack.c.l.b16 %v1862
        %v2050 = vunpack.c.l.b16 %v1863
        %v2051 = vunpack.c.h.b16 %v1863
        %v2052 = vunpack.c.l.b16 %v1864
        %v2053 = vunpack.c.l.b16 %v1865
        %v2054 = vunpack.c.h.b16 %v1865
        %v2055 = vunpack.c.l.b16 %v1866
        %v2056 = vunpack.c.l.b16 %v1867
        %v2057 = vunpack.c.h.b16 %v1867
        %v2058 = vunpack.c.l.b16 %v1868
        %v2059 = vunpack.c.l.b16 %v1869
        %v2060 = vunpack.c.h.b16 %v1869
        %v2061 = vunpack.c.l.b16 %v1870
        %v2062 = vunpack.c.l.b16 %v1871
        %v2063 = vunpack.c.h.b16 %v1871
        %v2064 = vunpack.c.l.b16 %v1872
        %v2065 = vunpack.c.l.b16 %v1873
        %v2066 = vunpack.c.h.b16 %v1873
        %v2067 = vunpack.c.l.b16 %v1874
        %v2068 = vunpack.c.l.b16 %v1875
        %v2069 = vunpack.c.h.b16 %v1875
        %v2070 = vunpack.c.l.b16 %v1876
        %v2071 = vunpack.c.l.b16 %v1877
        %v2072 = vunpack.c.h.b16 %v1877
        %v2073 = vunpack.c.l.b16 %v1878
        %v2074 = vunpack.c.l.b16 %v1879
        %v2075 = vunpack.c.h.b16 %v1879
        %v2076 = vunpack.c.l.b16 %v1880
        %v2077 = vunpack.c.l.b16 %v1881
        %v2078 = vunpack.c.h.b16 %v1881
        %v2079 = vunpack.c.l.b16 %v1882
        %v2080 = vunpack.c.l.b16 %v1883
        %v2081 = vunpack.c.h.b16 %v1883
        %v2082 = vunpack.c.l.b16 %v1884
        %v2083 = vunpack.c.l.b16 %v1885
        %v2084 = vunpack.c.h.b16 %v1885
        %v2085 = vunpack.c.l.b16 %v1886
        %v2086 = vunpack.c.l.b16 %v1887
        %v2087 = vunpack.c.h.b16 %v1887
        %v2088 = vunpack.c.l.b16 %v1888
        %v2089 = vunpack.c.l.b16 %v1889
        %v2090 = vunpack.c.h.b16 %v1889
        %v2091 = vunpack.c.l.b16 %v1890
        %v2092 = vunpack.c.l.b16 %v1891
        %v2093 = vunpack.c.h.b16 %v1891
        %v2094 = vunpack.c.l.b16 %v1892
        %v2095 = vunpack.c.l.b16 %v1893
        %v2096 = vunpack.c.h.b16 %v1893
        %v2097 = vunpack.c.l.b16 %v1894
        %v2098 = vunpack.c.l.b16 %v1895
        %v2099 = vunpack.c.h.b16 %v1895
        %v2100 = vunpack.c.l.b16 %v1896
        %v2101 = vunpack.c.l.b16 %v1897
        %v2102 = vunpack.c.h.b16 %v1897
        %v2103 = vunpack.c.l.b16 %v1898
        %v2104 = vunpack.c.l.b16 %v1899
        %v2105 = vunpack.c.h.b16 %v1899
        %v2106 = vunpack.c.l.b16 %v1900
        %v2107 = vunpack.c.l.b16 %v1901
        %v2108 = vunpack.c.h.b16 %v1901
        %v2109 = vunpack.c.l.b16 %v1902
        %v2110 = vunpack.c.l.b16 %v1903
        %v2111 = vunpack.c.h.b16 %v1903
        %v2112 = vunpack.c.l.b16 %v1904
        %v2113 = vpack.c.b16 %v2020, %v2017
        %v2114 = vpack.c.b16 %v2021, %v2018
        %v2115 = vpack.c.b16 %v2022, %v2019
        %v2116 = vpack.c.b16 %v2026, %v2023
        %v2117 = vpack.c.b16 %v2027, %v2024
        %v2118 = vpack.c.b16 %v2028, %v2025
        %v2119 = vpack.c.b16 %v2032, %v2029
        %v2120 = vpack.c.b16 %v2033, %v2030
        %v2121 = vpack.c.b16 %v2034, %v2031
        %v2122 = vpack.c.b16 %v2038, %v2035
        %v2123 = vpack.c.b16 %v2039, %v2036
        %v2124 = vpack.c.b16 %v2040, %v2037
        %v2125 = vpack.c.b16 %v2044, %v2041
        %v2126 = vpack.c.b16 %v2045, %v2042
        %v2127 = vpack.c.b16 %v2046, %v2043
        %v2128 = vpack.c.b16 %v2050, %v2047
        %v2129 = vpack.c.b16 %v2051, %v2048
        %v2130 = vpack.c.b16 %v2052, %v2049
        %v2131 = vpack.c.b16 %v2056, %v2053
        %v2132 = vpack.c.b16 %v2057, %v2054
        %v2133 = vpack.c.b16 %v2058, %v2055
        %v2134 = vpack.c.b16 %v2062, %v2059
        %v2135 = vpack.c.b16 %v2063, %v2060
        %v2136 = vpack.c.b16 %v2064, %v2061
        %v2137 = vpack.c.b16 %v2068, %v2065
        %v2138 = vpack.c.b16 %v2069, %v2066
        %v2139 = vpack.c.b16 %v2070, %v2067
        %v2140 = vpack.c.b16 %v2074, %v2071
        %v2141 = vpack.c.b16 %v2075, %v2072
        %v2142 = vpack.c.b16 %v2076, %v2073
        %v2143 = vpack.c.b16 %v2080, %v2077
        %v2144 = vpack.c.b16 %v2081, %v2078
        %v2145 = vpack.c.b16 %v2082, %v2079
        %v2146 = vpack.c.b16 %v2086, %v2083
        %v2147 = vpack.c.b16 %v2087, %v2084
        %v2148 = vpack.c.b16 %v2088, %v2085
        %v2149 = vpack.c.b16 %v2092, %v2089
        %v2150 = vpack.c.b16 %v2093, %v2090
        %v2151 = vpack.c.b16 %v2094, %v2091
        %v2152 = vpack.c.b16 %v2098, %v2095
        %v2153 = vpack.c.b16 %v2099, %v2096
        %v2154 = vpack.c.b16 %v2100, %v2097
        %v2155 = vpack.c.b16 %v2104, %v2101
        %v2156 = vpack.c.b16 %v2105, %v2102
        %v2157 = vpack.c.b16 %v2106, %v2103
        %v2158 = vpack.c.b16 %v2110, %v2107
        %v2159 = vpack.c.b16 %v2111, %v2108
        %v2160 = vpack.c.b16 %v2112, %v2109
        %v2257 = vunpack.c.l.b16 %v1905
        %v2258 = vunpack.c.l.b16 %v1906
        %v2259 = vunpack.c.l.b16 %v1907
        %v2260 = vunpack.c.l.b16 %v1908
        %v2261 = vunpack.c.l.b16 %v1909
        %v2262 = vunpack.c.l.b16 %v1910
        %v2263 = vunpack.c.l.b16 %v1911
        %v2264 = vunpack.c.l.b16 %v1912
        %v2265 = vunpack.c.l.b16 %v1913
        %v2266 = vunpack.c.l.b16 %v1914
        %v2267 = vunpack.c.l.b16 %v1915
        %v2268 = vunpack.c.l.b16 %v1916
        %v2269 = vunpack.c.l.b16 %v1917
        %v2270 = vunpack.c.l.b16 %v1918
        %v2271 = vunpack.c.l.b16 %v1919
        %v2272 = vunpack.c.l.b16 %v1920
        %v2273 = vunpack.c.l.b16 %v1921
        %v2274 = vunpack.c.l.b16 %v1922
        %v2275 = vunpack.c.l.b16 %v1923
        %v2276 = vunpack.c.l.b16 %v1924
        %v2277 = vunpack.c.l.b16 %v1925
        %v2278 = vunpack.c.l.b16 %v1926
        %v2279 = vunpack.c.l.b16 %v1927
        %v2280 = vunpack.c.l.b16 %v1928
        %v2281 = vunpack.c.l.b16 %v1929
        %v2282 = vunpack.c.l.b16 %v1930
        %v2283 = vunpack.c.l.b16 %v1931
        %v2284 = vunpack.c.l.b16 %v1932
        %v2285 = vunpack.c.l.b16 %v1933
        %v2286 = vunpack.c.l.b16 %v1934
        %v2287 = vunpack.c.l.b16 %v1935
        %v2288 = vunpack.c.l.b16 %v1936
        %v2289 = vunpack.c.l.b16 %v1937
        %v2290 = vunpack.c.l.b16 %v1938
        %v2291 = vunpack.c.l.b16 %v1939
        %v2292 = vunpack.c.l.b16 %v1940
        %v2293 = vunpack.c.l.b16 %v1941
        %v2294 = vunpack.c.l.b16 %v1942
        %v2295 = vunpack.c.l.b16 %v1943
        %v2296 = vunpack.c.l.b16 %v1944
        %v2297 = vunpack.c.l.b16 %v1945
        %v2298 = vunpack.c.l.b16 %v1946
        %v2299 = vunpack.c.l.b16 %v1947
        %v2300 = vunpack.c.l.b16 %v1948
        %v2301 = vunpack.c.l.b16 %v1949
        %v2302 = vunpack.c.l.b16 %v1950
        %v2303 = vunpack.c.l.b16 %v1951
        %v2304 = vunpack.c.l.b16 %v1952
        %v2305 = vpack.c.b16 %v2258, %v2257
        %v2306 = vpack.c.b16 %v2260, %v2259
        %v2307 = vpack.c.b16 %v2262, %v2261
        %v2308 = vpack.c.b16 %v2264, %v2263
        %v2309 = vpack.c.b16 %v2266, %v2265
        %v2310 = vpack.c.b16 %v2268, %v2267
        %v2311 = vpack.c.b16 %v2270, %v2269
        %v2312 = vpack.c.b16 %v2272, %v2271
        %v2313 = vpack.c.b16 %v2274, %v2273
        %v2314 = vpack.c.b16 %v2276, %v2275
        %v2315 = vpack.c.b16 %v2278, %v2277
        %v2316 = vpack.c.b16 %v2280, %v2279
        %v2317 = vpack.c.b16 %v2282, %v2281
        %v2318 = vpack.c.b16 %v2284, %v2283
        %v2319 = vpack.c.b16 %v2286, %v2285
        %v2320 = vpack.c.b16 %v2288, %v2287
        %v2321 = vpack.c.b16 %v2290, %v2289
        %v2322 = vpack.c.b16 %v2292, %v2291
        %v2323 = vpack.c.b16 %v2294, %v2293
        %v2324 = vpack.c.b16 %v2296, %v2295
        %v2325 = vpack.c.b16 %v2298, %v2297
        %v2326 = vpack.c.b16 %v2300, %v2299
        %v2327 = vpack.c.b16 %v2302, %v2301
        %v2328 = vpack.c.b16 %v2304, %v2303
        %2353 = vmatpush.bf16.msra.mxu0 %v2312
        %2354 = vmatpush.bf16.msra.mxu0 %v2311
        %2355 = vmatpush.bf16.msra.mxu0 %v2310
        %2356 = vmatpush.bf16.msra.mxu0 %v2309
        %2357 = vmatpush.bf16.msra.mxu0 %v2308
        %2358 = vmatpush.bf16.msra.mxu0 %v2307
        %2359 = vmatpush.bf16.msra.mxu0 %v2306
        %2360 = vmatpush.bf16.msra.mxu0 %v2305
        %2361 = vmatmul.bf16.gmra.mxu0 %v2113
        %v2362 = vpop.f32.mrf.mxu0
        %v2363 = vadd.f32 0.0, %v2362
        %v2364 = vpop.f32.mrf.mxu0
        %v2365 = vadd.f32 0.0, %v2364
        %2366 = vmatmul.bf16.gmra.mxu0 %v2116
        %v2367 = vpop.f32.mrf.mxu0
        %v2368 = vadd.f32 0.0, %v2367
        %v2369 = vpop.f32.mrf.mxu0
        %v2370 = vadd.f32 0.0, %v2369
        %2371 = vmatmul.bf16.gmra.mxu0 %v2119
        %v2372 = vpop.f32.mrf.mxu0
        %v2373 = vadd.f32 0.0, %v2372
        %v2374 = vpop.f32.mrf.mxu0
        %v2375 = vadd.f32 0.0, %v2374
        %2376 = vmatmul.bf16.gmra.mxu0 %v2122
        %v2377 = vpop.f32.mrf.mxu0
        %v2378 = vadd.f32 0.0, %v2377
        %v2379 = vpop.f32.mrf.mxu0
        %v2380 = vadd.f32 0.0, %v2379
        %2381 = vmatmul.bf16.gmra.mxu0 %v2125
        %v2382 = vpop.f32.mrf.mxu0
        %v2383 = vadd.f32 0.0, %v2382
        %v2384 = vpop.f32.mrf.mxu0
        %v2385 = vadd.f32 0.0, %v2384
        %2386 = vmatmul.bf16.gmra.mxu0 %v2128
        %v2387 = vpop.f32.mrf.mxu0
        %v2388 = vadd.f32 0.0, %v2387
        %v2389 = vpop.f32.mrf.mxu0
        %v2390 = vadd.f32 0.0, %v2389
        %2391 = vmatmul.bf16.gmra.mxu0 %v2131
        %v2392 = vpop.f32.mrf.mxu0
        %v2393 = vadd.f32 0.0, %v2392
        %v2394 = vpop.f32.mrf.mxu0
        %v2395 = vadd.f32 0.0, %v2394
        %2396 = vmatmul.bf16.gmra.mxu0 %v2134
        %v2397 = vpop.f32.mrf.mxu0
        %v2398 = vadd.f32 0.0, %v2397
        %v2399 = vpop.f32.mrf.mxu0
        %v2400 = vadd.f32 0.0, %v2399
        %2401 = vmatmul.bf16.gmra.mxu0 %v2137
        %v2402 = vpop.f32.mrf.mxu0
        %v2403 = vadd.f32 0.0, %v2402
        %v2404 = vpop.f32.mrf.mxu0
        %v2405 = vadd.f32 0.0, %v2404
        %2406 = vmatmul.bf16.gmra.mxu0 %v2140
        %v2407 = vpop.f32.mrf.mxu0
        %v2408 = vadd.f32 0.0, %v2407
        %v2409 = vpop.f32.mrf.mxu0
        %v2410 = vadd.f32 0.0, %v2409
        %2411 = vmatmul.bf16.gmra.mxu0 %v2143
        %v2412 = vpop.f32.mrf.mxu0
        %v2413 = vadd.f32 0.0, %v2412
        %v2414 = vpop.f32.mrf.mxu0
        %v2415 = vadd.f32 0.0, %v2414
        %2416 = vmatmul.bf16.gmra.mxu0 %v2146
        %v2417 = vpop.f32.mrf.mxu0
        %v2418 = vadd.f32 0.0, %v2417
        %v2419 = vpop.f32.mrf.mxu0
        %v2420 = vadd.f32 0.0, %v2419
        %2421 = vmatmul.bf16.gmra.mxu0 %v2149
        %v2422 = vpop.f32.mrf.mxu0
        %v2423 = vadd.f32 0.0, %v2422
        %v2424 = vpop.f32.mrf.mxu0
        %v2425 = vadd.f32 0.0, %v2424
        %2426 = vmatmul.bf16.gmra.mxu0 %v2152
        %v2427 = vpop.f32.mrf.mxu0
        %v2428 = vadd.f32 0.0, %v2427
        %v2429 = vpop.f32.mrf.mxu0
        %v2430 = vadd.f32 0.0, %v2429
        %2431 = vmatmul.bf16.gmra.mxu0 %v2155
        %v2432 = vpop.f32.mrf.mxu0
        %v2433 = vadd.f32 0.0, %v2432
        %v2434 = vpop.f32.mrf.mxu0
        %v2435 = vadd.f32 0.0, %v2434
        %2436 = vmatmul.bf16.gmra.mxu0 %v2158
        %v2437 = vpop.f32.mrf.mxu0
        %v2438 = vadd.f32 0.0, %v2437
        %v2439 = vpop.f32.mrf.mxu0
        %v2440 = vadd.f32 0.0, %v2439
        %2441 = vdwg.mxu0
        %2442 = vmatpush.bf16.msra.mxu0 %v2320
        %2443 = vmatpush.bf16.msra.mxu0 %v2319
        %2444 = vmatpush.bf16.msra.mxu0 %v2318
        %2445 = vmatpush.bf16.msra.mxu0 %v2317
        %2446 = vmatpush.bf16.msra.mxu0 %v2316
        %2447 = vmatpush.bf16.msra.mxu0 %v2315
        %2448 = vmatpush.bf16.msra.mxu0 %v2314
        %2449 = vmatpush.bf16.msra.mxu0 %v2313
        %2450 = vmatmul.bf16.gmra.mxu0 %v2114
        %v2451 = vpop.f32.mrf.mxu0
        %v2452 = vadd.f32 %v2363, %v2451
        %v2453 = vpop.f32.mrf.mxu0
        %v2454 = vadd.f32 %v2365, %v2453
        %2455 = vmatmul.bf16.gmra.mxu0 %v2117
        %v2456 = vpop.f32.mrf.mxu0
        %v2457 = vadd.f32 %v2368, %v2456
        %v2458 = vpop.f32.mrf.mxu0
        %v2459 = vadd.f32 %v2370, %v2458
        %2460 = vmatmul.bf16.gmra.mxu0 %v2120
        %v2461 = vpop.f32.mrf.mxu0
        %v2462 = vadd.f32 %v2373, %v2461
        %v2463 = vpop.f32.mrf.mxu0
        %v2464 = vadd.f32 %v2375, %v2463
        %2465 = vmatmul.bf16.gmra.mxu0 %v2123
        %v2466 = vpop.f32.mrf.mxu0
        %v2467 = vadd.f32 %v2378, %v2466
        %v2468 = vpop.f32.mrf.mxu0
        %v2469 = vadd.f32 %v2380, %v2468
        %2470 = vmatmul.bf16.gmra.mxu0 %v2126
        %v2471 = vpop.f32.mrf.mxu0
        %v2472 = vadd.f32 %v2383, %v2471
        %v2473 = vpop.f32.mrf.mxu0
        %v2474 = vadd.f32 %v2385, %v2473
        %2475 = vmatmul.bf16.gmra.mxu0 %v2129
        %v2476 = vpop.f32.mrf.mxu0
        %v2477 = vadd.f32 %v2388, %v2476
        %v2478 = vpop.f32.mrf.mxu0
        %v2479 = vadd.f32 %v2390, %v2478
        %2480 = vmatmul.bf16.gmra.mxu0 %v2132
        %v2481 = vpop.f32.mrf.mxu0
        %v2482 = vadd.f32 %v2393, %v2481
        %v2483 = vpop.f32.mrf.mxu0
        %v2484 = vadd.f32 %v2395, %v2483
        %2485 = vmatmul.bf16.gmra.mxu0 %v2135
        %v2486 = vpop.f32.mrf.mxu0
        %v2487 = vadd.f32 %v2398, %v2486
        %v2488 = vpop.f32.mrf.mxu0
        %v2489 = vadd.f32 %v2400, %v2488
        %2490 = vmatmul.bf16.gmra.mxu0 %v2138
        %v2491 = vpop.f32.mrf.mxu0
        %v2492 = vadd.f32 %v2403, %v2491
        %v2493 = vpop.f32.mrf.mxu0
        %v2494 = vadd.f32 %v2405, %v2493
        %2495 = vmatmul.bf16.gmra.mxu0 %v2141
        %v2496 = vpop.f32.mrf.mxu0
        %v2497 = vadd.f32 %v2408, %v2496
        %v2498 = vpop.f32.mrf.mxu0
        %v2499 = vadd.f32 %v2410, %v2498
        %2500 = vmatmul.bf16.gmra.mxu0 %v2144
        %v2501 = vpop.f32.mrf.mxu0
        %v2502 = vadd.f32 %v2413, %v2501
        %v2503 = vpop.f32.mrf.mxu0
        %v2504 = vadd.f32 %v2415, %v2503
        %2505 = vmatmul.bf16.gmra.mxu0 %v2147
        %v2506 = vpop.f32.mrf.mxu0
        %v2507 = vadd.f32 %v2418, %v2506
        %v2508 = vpop.f32.mrf.mxu0
        %v2509 = vadd.f32 %v2420, %v2508
        %2510 = vmatmul.bf16.gmra.mxu0 %v2150
        %v2511 = vpop.f32.mrf.mxu0
        %v2512 = vadd.f32 %v2423, %v2511
        %v2513 = vpop.f32.mrf.mxu0
        %v2514 = vadd.f32 %v2425, %v2513
        %2515 = vmatmul.bf16.gmra.mxu0 %v2153
        %v2516 = vpop.f32.mrf.mxu0
        %v2517 = vadd.f32 %v2428, %v2516
        %v2518 = vpop.f32.mrf.mxu0
        %v2519 = vadd.f32 %v2430, %v2518
        %2520 = vmatmul.bf16.gmra.mxu0 %v2156
        %v2521 = vpop.f32.mrf.mxu0
        %v2522 = vadd.f32 %v2433, %v2521
        %v2523 = vpop.f32.mrf.mxu0
        %v2524 = vadd.f32 %v2435, %v2523
        %2525 = vmatmul.bf16.gmra.mxu0 %v2159
        %v2526 = vpop.f32.mrf.mxu0
        %v2527 = vadd.f32 %v2438, %v2526
        %v2528 = vpop.f32.mrf.mxu0
        %v2529 = vadd.f32 %v2440, %v2528
        %2530 = vdwg.mxu0
        %2531 = vmatpush.bf16.msra.mxu0 %v2328
        %2532 = vmatpush.bf16.msra.mxu0 %v2327
        %2533 = vmatpush.bf16.msra.mxu0 %v2326
        %2534 = vmatpush.bf16.msra.mxu0 %v2325
        %2535 = vmatpush.bf16.msra.mxu0 %v2324
        %2536 = vmatpush.bf16.msra.mxu0 %v2323
        %2537 = vmatpush.bf16.msra.mxu0 %v2322
        %2538 = vmatpush.bf16.msra.mxu0 %v2321
        %2539 = vmatmul.bf16.gmra.mxu0 %v2115
        %v2540 = vpop.f32.mrf.mxu0
        %v2541 = vadd.f32 %v2452, %v2540
        %v2542 = vpop.f32.mrf.mxu0
        %v2543 = vadd.f32 %v2454, %v2542
        %2544 = vmatmul.bf16.gmra.mxu0 %v2118
        %v2545 = vpop.f32.mrf.mxu0
        %v2546 = vadd.f32 %v2457, %v2545
        %v2547 = vpop.f32.mrf.mxu0
        %v2548 = vadd.f32 %v2459, %v2547
        %2549 = vmatmul.bf16.gmra.mxu0 %v2121
        %v2550 = vpop.f32.mrf.mxu0
        %v2551 = vadd.f32 %v2462, %v2550
        %v2552 = vpop.f32.mrf.mxu0
        %v2553 = vadd.f32 %v2464, %v2552
        %2554 = vmatmul.bf16.gmra.mxu0 %v2124
        %v2555 = vpop.f32.mrf.mxu0
        %v2556 = vadd.f32 %v2467, %v2555
        %v2557 = vpop.f32.mrf.mxu0
        %v2558 = vadd.f32 %v2469, %v2557
        %2559 = vmatmul.bf16.gmra.mxu0 %v2127
        %v2560 = vpop.f32.mrf.mxu0
        %v2561 = vadd.f32 %v2472, %v2560
        %v2562 = vpop.f32.mrf.mxu0
        %v2563 = vadd.f32 %v2474, %v2562
        %2564 = vmatmul.bf16.gmra.mxu0 %v2130
        %v2565 = vpop.f32.mrf.mxu0
        %v2566 = vadd.f32 %v2477, %v2565
        %v2567 = vpop.f32.mrf.mxu0
        %v2568 = vadd.f32 %v2479, %v2567
        %2569 = vmatmul.bf16.gmra.mxu0 %v2133
        %v2570 = vpop.f32.mrf.mxu0
        %v2571 = vadd.f32 %v2482, %v2570
        %v2572 = vpop.f32.mrf.mxu0
        %v2573 = vadd.f32 %v2484, %v2572
        %2574 = vmatmul.bf16.gmra.mxu0 %v2136
        %v2575 = vpop.f32.mrf.mxu0
        %v2576 = vadd.f32 %v2487, %v2575
        %v2577 = vpop.f32.mrf.mxu0
        %v2578 = vadd.f32 %v2489, %v2577
        %2579 = vmatmul.bf16.gmra.mxu0 %v2139
        %v2580 = vpop.f32.mrf.mxu0
        %v2581 = vadd.f32 %v2492, %v2580
        %v2582 = vpop.f32.mrf.mxu0
        %v2583 = vadd.f32 %v2494, %v2582
        %2584 = vmatmul.bf16.gmra.mxu0 %v2142
        %v2585 = vpop.f32.mrf.mxu0
        %v2586 = vadd.f32 %v2497, %v2585
        %v2587 = vpop.f32.mrf.mxu0
        %v2588 = vadd.f32 %v2499, %v2587
        %2589 = vmatmul.bf16.gmra.mxu0 %v2145
        %v2590 = vpop.f32.mrf.mxu0
        %v2591 = vadd.f32 %v2502, %v2590
        %v2592 = vpop.f32.mrf.mxu0
        %v2593 = vadd.f32 %v2504, %v2592
        %2594 = vmatmul.bf16.gmra.mxu0 %v2148
        %v2595 = vpop.f32.mrf.mxu0
        %v2596 = vadd.f32 %v2507, %v2595
        %v2597 = vpop.f32.mrf.mxu0
        %v2598 = vadd.f32 %v2509, %v2597
        %2599 = vmatmul.bf16.gmra.mxu0 %v2151
        %v2600 = vpop.f32.mrf.mxu0
        %v2601 = vadd.f32 %v2512, %v2600
        %v2602 = vpop.f32.mrf.mxu0
        %v2603 = vadd.f32 %v2514, %v2602
        %2604 = vmatmul.bf16.gmra.mxu0 %v2154
        %v2605 = vpop.f32.mrf.mxu0
        %v2606 = vadd.f32 %v2517, %v2605
        %v2607 = vpop.f32.mrf.mxu0
        %v2608 = vadd.f32 %v2519, %v2607
        %2609 = vmatmul.bf16.gmra.mxu0 %v2157
        %v2610 = vpop.f32.mrf.mxu0
        %v2611 = vadd.f32 %v2522, %v2610
        %v2612 = vpop.f32.mrf.mxu0
        %v2613 = vadd.f32 %v2524, %v2612
        %2614 = vmatmul.bf16.gmra.mxu0 %v2160
        %v2615 = vpop.f32.mrf.mxu0
        %v2616 = vadd.f32 %v2527, %v2615
        %v2617 = vpop.f32.mrf.mxu0
        %v2618 = vadd.f32 %v2529, %v2617
        %2619 = vdwg.mxu0
        %2620 = vst [vmem:[#allocation4] sm:$0xff] %v2541
        %2621 = vst [vmem:[#allocation4 + $0x8] sm:$0xff] %v2543
        %2622 = vst [vmem:[#allocation4 + $0x10] sm:$0xff] %v2546
        %2623 = vst [vmem:[#allocation4 + $0x18] sm:$0xff] %v2548
        %2624 = vst [vmem:[#allocation4 + $0x20] sm:$0xff] %v2551
        %2625 = vst [vmem:[#allocation4 + $0x28] sm:$0xff] %v2553
        %2626 = vst [vmem:[#allocation4 + $0x30] sm:$0xff] %v2556
        %2627 = vst [vmem:[#allocation4 + $0x38] sm:$0xff] %v2558
        %2628 = vst [vmem:[#allocation4 + $0x40] sm:$0xff] %v2561
        %2629 = vst [vmem:[#allocation4 + $0x48] sm:$0xff] %v2563
        %2630 = vst [vmem:[#allocation4 + $0x50] sm:$0xff] %v2566
        %2631 = vst [vmem:[#allocation4 + $0x58] sm:$0xff] %v2568
        %2632 = vst [vmem:[#allocation4 + $0x60] sm:$0xff] %v2571
        %2633 = vst [vmem:[#allocation4 + $0x68] sm:$0xff] %v2573
        %2634 = vst [vmem:[#allocation4 + $0x70] sm:$0xff] %v2576
        %2635 = vst [vmem:[#allocation4 + $0x78] sm:$0xff] %v2578
        %2636 = vst [vmem:[#allocation4 + $0x80] sm:$0xff] %v2581
        %2637 = vst [vmem:[#allocation4 + $0x88] sm:$0xff] %v2583
        %2638 = vst [vmem:[#allocation4 + $0x90] sm:$0xff] %v2586
        %2639 = vst [vmem:[#allocation4 + $0x98] sm:$0xff] %v2588
        %2640 = vst [vmem:[#allocation4 + $0xa0] sm:$0xff] %v2591
        %2641 = vst [vmem:[#allocation4 + $0xa8] sm:$0xff] %v2593
        %2642 = vst [vmem:[#allocation4 + $0xb0] sm:$0xff] %v2596
        %2643 = vst [vmem:[#allocation4 + $0xb8] sm:$0xff] %v2598
        %2644 = vst [vmem:[#allocation4 + $0xc0] sm:$0xff] %v2601
        %2645 = vst [vmem:[#allocation4 + $0xc8] sm:$0xff] %v2603
        %2646 = vst [vmem:[#allocation4 + $0xd0] sm:$0xff] %v2606
        %2647 = vst [vmem:[#allocation4 + $0xd8] sm:$0xff] %v2608
        %2648 = vst [vmem:[#allocation4 + $0xe0] sm:$0xff] %v2611
        %2649 = vst [vmem:[#allocation4 + $0xe8] sm:$0xff] %v2613
        %2650 = vst [vmem:[#allocation4 + $0xf0] sm:$0xff] %v2616
        %2651 = vst [vmem:[#allocation4 + $0xf8] sm:$0xff] %v2618
        %v2652 = vld [vmem:[#allocation4] sm:$0xff]
        %v2653 = vld [vmem:[#allocation4 + $0x8] sm:$0xff]
        %v2654 = vld [vmem:[#allocation4 + $0x10] sm:$0xff]
        %v2655 = vld [vmem:[#allocation4 + $0x18] sm:$0xff]
        %v2656 = vld [vmem:[#allocation4 + $0x20] sm:$0xff]
        %v2657 = vld [vmem:[#allocation4 + $0x28] sm:$0xff]
        %v2658 = vld [vmem:[#allocation4 + $0x30] sm:$0xff]
        %v2659 = vld [vmem:[#allocation4 + $0x38] sm:$0xff]
        %v2660 = vld [vmem:[#allocation4 + $0x40] sm:$0xff]
        %v2661 = vld [vmem:[#allocation4 + $0x48] sm:$0xff]
        %v2662 = vld [vmem:[#allocation4 + $0x50] sm:$0xff]
        %v2663 = vld [vmem:[#allocation4 + $0x58] sm:$0xff]
        %v2664 = vld [vmem:[#allocation4 + $0x60] sm:$0xff]
        %v2665 = vld [vmem:[#allocation4 + $0x68] sm:$0xff]
        %v2666 = vld [vmem:[#allocation4 + $0x70] sm:$0xff]
        %v2667 = vld [vmem:[#allocation4 + $0x78] sm:$0xff]
        %v2668 = vld [vmem:[#allocation4 + $0x80] sm:$0xff]
        %v2669 = vld [vmem:[#allocation4 + $0x88] sm:$0xff]
        %v2670 = vld [vmem:[#allocation4 + $0x90] sm:$0xff]
        %v2671 = vld [vmem:[#allocation4 + $0x98] sm:$0xff]
        %v2672 = vld [vmem:[#allocation4 + $0xa0] sm:$0xff]
        %v2673 = vld [vmem:[#allocation4 + $0xa8] sm:$0xff]
        %v2674 = vld [vmem:[#allocation4 + $0xb0] sm:$0xff]
        %v2675 = vld [vmem:[#allocation4 + $0xb8] sm:$0xff]
        %v2676 = vld [vmem:[#allocation4 + $0xc0] sm:$0xff]
        %v2677 = vld [vmem:[#allocation4 + $0xc8] sm:$0xff]
        %v2678 = vld [vmem:[#allocation4 + $0xd0] sm:$0xff]
        %v2679 = vld [vmem:[#allocation4 + $0xd8] sm:$0xff]
        %v2680 = vld [vmem:[#allocation4 + $0xe0] sm:$0xff]
        %v2681 = vld [vmem:[#allocation4 + $0xe8] sm:$0xff]
        %v2682 = vld [vmem:[#allocation4 + $0xf0] sm:$0xff]
        %v2683 = vld [vmem:[#allocation4 + $0xf8] sm:$0xff]
        %v2684 = vld [vmem:[#allocation3 + $0x18] sm:$0xff]
        %v2685 = vld [vmem:[#allocation3 + $0x20] sm:$0xf]
        %v2686 = vld [vmem:[#allocation3 + $0x24] sm:$0xff]
        %v2687 = vld [vmem:[#allocation3 + $0x2c] sm:$0xf]
        %v2688 = vld [vmem:[#allocation3 + $0x30] sm:$0xff]
        %v2689 = vld [vmem:[#allocation3 + $0x38] sm:$0xf]
        %v2690 = vld [vmem:[#allocation3 + $0x3c] sm:$0xff]
        %v2691 = vld [vmem:[#allocation3 + $0x44] sm:$0xf]
        %v2692 = vld [vmem:[#allocation3 + $0x48] sm:$0xff]
        %v2693 = vld [vmem:[#allocation3 + $0x50] sm:$0xf]
        %v2694 = vld [vmem:[#allocation3 + $0x54] sm:$0xff]
        %v2695 = vld [vmem:[#allocation3 + $0x5c] sm:$0xf]
        %v2696 = vld [vmem:[#allocation3 + $0x60] sm:$0xff]
        %v2697 = vld [vmem:[#allocation3 + $0x68] sm:$0xf]
        %v2698 = vld [vmem:[#allocation3 + $0x6c] sm:$0xff]
        %v2699 = vld [vmem:[#allocation3 + $0x74] sm:$0xf]
        %v2700 = vld [vmem:[#allocation3 + $0x78] sm:$0xff]
        %v2701 = vld [vmem:[#allocation3 + $0x80] sm:$0xf]
        %v2702 = vld [vmem:[#allocation3 + $0x84] sm:$0xff]
        %v2703 = vld [vmem:[#allocation3 + $0x8c] sm:$0xf]
        %v2704 = vld [vmem:[#allocation3 + $0x90] sm:$0xff]
        %v2705 = vld [vmem:[#allocation3 + $0x98] sm:$0xf]
        %v2706 = vld [vmem:[#allocation3 + $0x9c] sm:$0xff]
        %v2707 = vld [vmem:[#allocation3 + $0xa4] sm:$0xf]
        %v2708 = vld [vmem:[#allocation3 + $0xa8] sm:$0xff]
        %v2709 = vld [vmem:[#allocation3 + $0xb0] sm:$0xf]
        %v2710 = vld [vmem:[#allocation3 + $0xb4] sm:$0xff]
        %v2711 = vld [vmem:[#allocation3 + $0xbc] sm:$0xf]
        %v2712 = vld [vmem:[#allocation3 + $0xc0] sm:$0xff]
        %v2713 = vld [vmem:[#allocation3 + $0xc8] sm:$0xf]
        %v2714 = vld [vmem:[#allocation3 + $0xcc] sm:$0xff]
        %v2715 = vld [vmem:[#allocation3 + $0xd4] sm:$0xf]
        %v2716 = vld [vmem:[#allocation3 + $0xd8] sm:$0xff]
        %v2717 = vld [vmem:[#allocation3 + $0xe0] sm:$0xf]
        %v2718 = vld [vmem:[#allocation3 + $0xe4] sm:$0xff]
        %v2719 = vld [vmem:[#allocation3 + $0xec] sm:$0xf]
        %v2720 = vld [vmem:[#allocation3 + $0xf0] sm:$0xff]
        %v2721 = vld [vmem:[#allocation3 + $0xf8] sm:$0xf]
        %v2722 = vld [vmem:[#allocation3 + $0xfc] sm:$0xff]
        %v2723 = vld [vmem:[#allocation3 + $0x104] sm:$0xf]
        %v2724 = vld [vmem:[#allocation3 + $0x108] sm:$0xff]
        %v2725 = vld [vmem:[#allocation3 + $0x110] sm:$0xf]
        %v2726 = vld [vmem:[#allocation3 + $0x114] sm:$0xff]
        %v2727 = vld [vmem:[#allocation3 + $0x11c] sm:$0xf]
        %v2728 = vld [vmem:[#allocation3 + $0x120] sm:$0xff]
        %v2729 = vld [vmem:[#allocation3 + $0x128] sm:$0xf]
        %v2730 = vld [vmem:[#allocation3 + $0x12c] sm:$0xff]
        %v2731 = vld [vmem:[#allocation3 + $0x134] sm:$0xf]
        %v2732 = vld [vmem:[#allocation3 + $0x138] sm:$0xff]
        %v2733 = vld [vmem:[#allocation3 + $0x140] sm:$0xf]
        %v2734 = vld [vmem:[#allocation3 + $0x144] sm:$0xff]
        %v2735 = vld [vmem:[#allocation3 + $0x14c] sm:$0xf]
        %v2736 = vld [vmem:[#allocation3 + $0x150] sm:$0xff]
        %v2737 = vld [vmem:[#allocation3 + $0x158] sm:$0xf]
        %v2738 = vld [vmem:[#allocation3 + $0x15c] sm:$0xff]
        %v2739 = vld [vmem:[#allocation3 + $0x164] sm:$0xf]
        %v2740 = vld [vmem:[#allocation3 + $0x168] sm:$0xff]
        %v2741 = vld [vmem:[#allocation3 + $0x170] sm:$0xf]
        %v2742 = vld [vmem:[#allocation3 + $0x174] sm:$0xff]
        %v2743 = vld [vmem:[#allocation3 + $0x17c] sm:$0xf]
        %v2744 = vld [vmem:[#allocation3 + $0x180] sm:$0xff]
        %v2745 = vld [vmem:[#allocation3 + $0x188] sm:$0xf]
        %v2746 = vld [vmem:[#allocation3 + $0x18c] sm:$0xff]
        %v2747 = vld [vmem:[#allocation3 + $0x194] sm:$0xf]
        %s2748 = scalar_lea.vmem [#allocation8], 192
        %v2749 = vld [vmem:[%s2748] sm:$0xf]
        %v2750 = vld [vmem:[%s2748 + $0x4] sm:$0xf]
        %v2751 = vld [vmem:[%s2748 + $0x8] sm:$0xf]
        %v2752 = vld [vmem:[%s2748 + $0xc] sm:$0xf]
        %v2753 = vld [vmem:[%s2748 + $0x10] sm:$0xf]
        %v2754 = vld [vmem:[%s2748 + $0x14] sm:$0xf]
        %v2755 = vld [vmem:[%s2748 + $0x18] sm:$0xf]
        %v2756 = vld [vmem:[%s2748 + $0x1c] sm:$0xf]
        %v2757 = vld [vmem:[%s2748 + $0x20] sm:$0xf]
        %v2758 = vld [vmem:[%s2748 + $0x24] sm:$0xf]
        %v2759 = vld [vmem:[%s2748 + $0x28] sm:$0xf]
        %v2760 = vld [vmem:[%s2748 + $0x2c] sm:$0xf]
        %v2761 = vld [vmem:[%s2748 + $0x30] sm:$0xf]
        %v2762 = vld [vmem:[%s2748 + $0x34] sm:$0xf]
        %v2763 = vld [vmem:[%s2748 + $0x38] sm:$0xf]
        %v2764 = vld [vmem:[%s2748 + $0x3c] sm:$0xf]
        %v2765 = vld [vmem:[%s2748 + $0x40] sm:$0xf]
        %v2766 = vld [vmem:[%s2748 + $0x44] sm:$0xf]
        %v2767 = vld [vmem:[%s2748 + $0x48] sm:$0xf]
        %v2768 = vld [vmem:[%s2748 + $0x4c] sm:$0xf]
        %v2769 = vld [vmem:[%s2748 + $0x50] sm:$0xf]
        %v2770 = vld [vmem:[%s2748 + $0x54] sm:$0xf]
        %v2771 = vld [vmem:[%s2748 + $0x58] sm:$0xf]
        %v2772 = vld [vmem:[%s2748 + $0x5c] sm:$0xf]
        %v2773 = vld [vmem:[%s2748 + $0x60] sm:$0xf]
        %v2774 = vld [vmem:[%s2748 + $0x64] sm:$0xf]
        %v2775 = vld [vmem:[%s2748 + $0x68] sm:$0xf]
        %v2776 = vld [vmem:[%s2748 + $0x6c] sm:$0xf]
        %v2777 = vld [vmem:[%s2748 + $0x70] sm:$0xf]
        %v2778 = vld [vmem:[%s2748 + $0x74] sm:$0xf]
        %v2779 = vld [vmem:[%s2748 + $0x78] sm:$0xf]
        %v2780 = vld [vmem:[%s2748 + $0x7c] sm:$0xf]
        %v2781 = vld [vmem:[%s2748 + $0x80] sm:$0xf]
        %v2782 = vld [vmem:[%s2748 + $0x84] sm:$0xf]
        %v2783 = vld [vmem:[%s2748 + $0x88] sm:$0xf]
        %v2784 = vld [vmem:[%s2748 + $0x8c] sm:$0xf]
        %v2785 = vld [vmem:[%s2748 + $0x90] sm:$0xf]
        %v2786 = vld [vmem:[%s2748 + $0x94] sm:$0xf]
        %v2787 = vld [vmem:[%s2748 + $0x98] sm:$0xf]
        %v2788 = vld [vmem:[%s2748 + $0x9c] sm:$0xf]
        %v2789 = vld [vmem:[%s2748 + $0xa0] sm:$0xf]
        %v2790 = vld [vmem:[%s2748 + $0xa4] sm:$0xf]
        %v2791 = vld [vmem:[%s2748 + $0xa8] sm:$0xf]
        %v2792 = vld [vmem:[%s2748 + $0xac] sm:$0xf]
        %v2793 = vld [vmem:[%s2748 + $0xb0] sm:$0xf]
        %v2794 = vld [vmem:[%s2748 + $0xb4] sm:$0xf]
        %v2795 = vld [vmem:[%s2748 + $0xb8] sm:$0xf]
        %v2796 = vld [vmem:[%s2748 + $0xbc] sm:$0xf]
        %v2861 = vunpack.c.l.b16 %v2684
        %v2862 = vunpack.c.h.b16 %v2684
        %v2863 = vunpack.c.l.b16 %v2685
        %v2864 = vunpack.c.l.b16 %v2686
        %v2865 = vunpack.c.h.b16 %v2686
        %v2866 = vunpack.c.l.b16 %v2687
        %v2867 = vunpack.c.l.b16 %v2688
        %v2868 = vunpack.c.h.b16 %v2688
        %v2869 = vunpack.c.l.b16 %v2689
        %v2870 = vunpack.c.l.b16 %v2690
        %v2871 = vunpack.c.h.b16 %v2690
        %v2872 = vunpack.c.l.b16 %v2691
        %v2873 = vunpack.c.l.b16 %v2692
        %v2874 = vunpack.c.h.b16 %v2692
        %v2875 = vunpack.c.l.b16 %v2693
        %v2876 = vunpack.c.l.b16 %v2694
        %v2877 = vunpack.c.h.b16 %v2694
        %v2878 = vunpack.c.l.b16 %v2695
        %v2879 = vunpack.c.l.b16 %v2696
        %v2880 = vunpack.c.h.b16 %v2696
        %v2881 = vunpack.c.l.b16 %v2697
        %v2882 = vunpack.c.l.b16 %v2698
        %v2883 = vunpack.c.h.b16 %v2698
        %v2884 = vunpack.c.l.b16 %v2699
        %v2885 = vunpack.c.l.b16 %v2700
        %v2886 = vunpack.c.h.b16 %v2700
        %v2887 = vunpack.c.l.b16 %v2701
        %v2888 = vunpack.c.l.b16 %v2702
        %v2889 = vunpack.c.h.b16 %v2702
        %v2890 = vunpack.c.l.b16 %v2703
        %v2891 = vunpack.c.l.b16 %v2704
        %v2892 = vunpack.c.h.b16 %v2704
        %v2893 = vunpack.c.l.b16 %v2705
        %v2894 = vunpack.c.l.b16 %v2706
        %v2895 = vunpack.c.h.b16 %v2706
        %v2896 = vunpack.c.l.b16 %v2707
        %v2897 = vunpack.c.l.b16 %v2708
        %v2898 = vunpack.c.h.b16 %v2708
        %v2899 = vunpack.c.l.b16 %v2709
        %v2900 = vunpack.c.l.b16 %v2710
        %v2901 = vunpack.c.h.b16 %v2710
        %v2902 = vunpack.c.l.b16 %v2711
        %v2903 = vunpack.c.l.b16 %v2712
        %v2904 = vunpack.c.h.b16 %v2712
        %v2905 = vunpack.c.l.b16 %v2713
        %v2906 = vunpack.c.l.b16 %v2714
        %v2907 = vunpack.c.h.b16 %v2714
        %v2908 = vunpack.c.l.b16 %v2715
        %v2909 = vunpack.c.l.b16 %v2716
        %v2910 = vunpack.c.h.b16 %v2716
        %v2911 = vunpack.c.l.b16 %v2717
        %v2912 = vunpack.c.l.b16 %v2718
        %v2913 = vunpack.c.h.b16 %v2718
        %v2914 = vunpack.c.l.b16 %v2719
        %v2915 = vunpack.c.l.b16 %v2720
        %v2916 = vunpack.c.h.b16 %v2720
        %v2917 = vunpack.c.l.b16 %v2721
        %v2918 = vunpack.c.l.b16 %v2722
        %v2919 = vunpack.c.h.b16 %v2722
        %v2920 = vunpack.c.l.b16 %v2723
        %v2921 = vunpack.c.l.b16 %v2724
        %v2922 = vunpack.c.h.b16 %v2724
        %v2923 = vunpack.c.l.b16 %v2725
        %v2924 = vunpack.c.l.b16 %v2726
        %v2925 = vunpack.c.h.b16 %v2726
        %v2926 = vunpack.c.l.b16 %v2727
        %v2927 = vunpack.c.l.b16 %v2728
        %v2928 = vunpack.c.h.b16 %v2728
        %v2929 = vunpack.c.l.b16 %v2729
        %v2930 = vunpack.c.l.b16 %v2730
        %v2931 = vunpack.c.h.b16 %v2730
        %v2932 = vunpack.c.l.b16 %v2731
        %v2933 = vunpack.c.l.b16 %v2732
        %v2934 = vunpack.c.h.b16 %v2732
        %v2935 = vunpack.c.l.b16 %v2733
        %v2936 = vunpack.c.l.b16 %v2734
        %v2937 = vunpack.c.h.b16 %v2734
        %v2938 = vunpack.c.l.b16 %v2735
        %v2939 = vunpack.c.l.b16 %v2736
        %v2940 = vunpack.c.h.b16 %v2736
        %v2941 = vunpack.c.l.b16 %v2737
        %v2942 = vunpack.c.l.b16 %v2738
        %v2943 = vunpack.c.h.b16 %v2738
        %v2944 = vunpack.c.l.b16 %v2739
        %v2945 = vunpack.c.l.b16 %v2740
        %v2946 = vunpack.c.h.b16 %v2740
        %v2947 = vunpack.c.l.b16 %v2741
        %v2948 = vunpack.c.l.b16 %v2742
        %v2949 = vunpack.c.h.b16 %v2742
        %v2950 = vunpack.c.l.b16 %v2743
        %v2951 = vunpack.c.l.b16 %v2744
        %v2952 = vunpack.c.h.b16 %v2744
        %v2953 = vunpack.c.l.b16 %v2745
        %v2954 = vunpack.c.l.b16 %v2746
        %v2955 = vunpack.c.h.b16 %v2746
        %v2956 = vunpack.c.l.b16 %v2747
        %v2957 = vpack.c.b16 %v2864, %v2861
        %v2958 = vpack.c.b16 %v2865, %v2862
        %v2959 = vpack.c.b16 %v2866, %v2863
        %v2960 = vpack.c.b16 %v2870, %v2867
        %v2961 = vpack.c.b16 %v2871, %v2868
        %v2962 = vpack.c.b16 %v2872, %v2869
        %v2963 = vpack.c.b16 %v2876, %v2873
        %v2964 = vpack.c.b16 %v2877, %v2874
        %v2965 = vpack.c.b16 %v2878, %v2875
        %v2966 = vpack.c.b16 %v2882, %v2879
        %v2967 = vpack.c.b16 %v2883, %v2880
        %v2968 = vpack.c.b16 %v2884, %v2881
        %v2969 = vpack.c.b16 %v2888, %v2885
        %v2970 = vpack.c.b16 %v2889, %v2886
        %v2971 = vpack.c.b16 %v2890, %v2887
        %v2972 = vpack.c.b16 %v2894, %v2891
        %v2973 = vpack.c.b16 %v2895, %v2892
        %v2974 = vpack.c.b16 %v2896, %v2893
        %v2975 = vpack.c.b16 %v2900, %v2897
        %v2976 = vpack.c.b16 %v2901, %v2898
        %v2977 = vpack.c.b16 %v2902, %v2899
        %v2978 = vpack.c.b16 %v2906, %v2903
        %v2979 = vpack.c.b16 %v2907, %v2904
        %v2980 = vpack.c.b16 %v2908, %v2905
        %v2981 = vpack.c.b16 %v2912, %v2909
        %v2982 = vpack.c.b16 %v2913, %v2910
        %v2983 = vpack.c.b16 %v2914, %v2911
        %v2984 = vpack.c.b16 %v2918, %v2915
        %v2985 = vpack.c.b16 %v2919, %v2916
        %v2986 = vpack.c.b16 %v2920, %v2917
        %v2987 = vpack.c.b16 %v2924, %v2921
        %v2988 = vpack.c.b16 %v2925, %v2922
        %v2989 = vpack.c.b16 %v2926, %v2923
        %v2990 = vpack.c.b16 %v2930, %v2927
        %v2991 = vpack.c.b16 %v2931, %v2928
        %v2992 = vpack.c.b16 %v2932, %v2929
        %v2993 = vpack.c.b16 %v2936, %v2933
        %v2994 = vpack.c.b16 %v2937, %v2934
        %v2995 = vpack.c.b16 %v2938, %v2935
        %v2996 = vpack.c.b16 %v2942, %v2939
        %v2997 = vpack.c.b16 %v2943, %v2940
        %v2998 = vpack.c.b16 %v2944, %v2941
        %v2999 = vpack.c.b16 %v2948, %v2945
        %v3000 = vpack.c.b16 %v2949, %v2946
        %v3001 = vpack.c.b16 %v2950, %v2947
        %v3002 = vpack.c.b16 %v2954, %v2951
        %v3003 = vpack.c.b16 %v2955, %v2952
        %v3004 = vpack.c.b16 %v2956, %v2953
        %v3101 = vunpack.c.l.b16 %v2749
        %v3102 = vunpack.c.l.b16 %v2750
        %v3103 = vunpack.c.l.b16 %v2751
        %v3104 = vunpack.c.l.b16 %v2752
        %v3105 = vunpack.c.l.b16 %v2753
        %v3106 = vunpack.c.l.b16 %v2754
        %v3107 = vunpack.c.l.b16 %v2755
        %v3108 = vunpack.c.l.b16 %v2756
        %v3109 = vunpack.c.l.b16 %v2757
        %v3110 = vunpack.c.l.b16 %v2758
        %v3111 = vunpack.c.l.b16 %v2759
        %v3112 = vunpack.c.l.b16 %v2760
        %v3113 = vunpack.c.l.b16 %v2761
        %v3114 = vunpack.c.l.b16 %v2762
        %v3115 = vunpack.c.l.b16 %v2763
        %v3116 = vunpack.c.l.b16 %v2764
        %v3117 = vunpack.c.l.b16 %v2765
        %v3118 = vunpack.c.l.b16 %v2766
        %v3119 = vunpack.c.l.b16 %v2767
        %v3120 = vunpack.c.l.b16 %v2768
        %v3121 = vunpack.c.l.b16 %v2769
        %v3122 = vunpack.c.l.b16 %v2770
        %v3123 = vunpack.c.l.b16 %v2771
        %v3124 = vunpack.c.l.b16 %v2772
        %v3125 = vunpack.c.l.b16 %v2773
        %v3126 = vunpack.c.l.b16 %v2774
        %v3127 = vunpack.c.l.b16 %v2775
        %v3128 = vunpack.c.l.b16 %v2776
        %v3129 = vunpack.c.l.b16 %v2777
        %v3130 = vunpack.c.l.b16 %v2778
        %v3131 = vunpack.c.l.b16 %v2779
        %v3132 = vunpack.c.l.b16 %v2780
        %v3133 = vunpack.c.l.b16 %v2781
        %v3134 = vunpack.c.l.b16 %v2782
        %v3135 = vunpack.c.l.b16 %v2783
        %v3136 = vunpack.c.l.b16 %v2784
        %v3137 = vunpack.c.l.b16 %v2785
        %v3138 = vunpack.c.l.b16 %v2786
        %v3139 = vunpack.c.l.b16 %v2787
        %v3140 = vunpack.c.l.b16 %v2788
        %v3141 = vunpack.c.l.b16 %v2789
        %v3142 = vunpack.c.l.b16 %v2790
        %v3143 = vunpack.c.l.b16 %v2791
        %v3144 = vunpack.c.l.b16 %v2792
        %v3145 = vunpack.c.l.b16 %v2793
        %v3146 = vunpack.c.l.b16 %v2794
        %v3147 = vunpack.c.l.b16 %v2795
        %v3148 = vunpack.c.l.b16 %v2796
        %v3149 = vpack.c.b16 %v3102, %v3101
        %v3150 = vpack.c.b16 %v3104, %v3103
        %v3151 = vpack.c.b16 %v3106, %v3105
        %v3152 = vpack.c.b16 %v3108, %v3107
        %v3153 = vpack.c.b16 %v3110, %v3109
        %v3154 = vpack.c.b16 %v3112, %v3111
        %v3155 = vpack.c.b16 %v3114, %v3113
        %v3156 = vpack.c.b16 %v3116, %v3115
        %v3157 = vpack.c.b16 %v3118, %v3117
        %v3158 = vpack.c.b16 %v3120, %v3119
        %v3159 = vpack.c.b16 %v3122, %v3121
        %v3160 = vpack.c.b16 %v3124, %v3123
        %v3161 = vpack.c.b16 %v3126, %v3125
        %v3162 = vpack.c.b16 %v3128, %v3127
        %v3163 = vpack.c.b16 %v3130, %v3129
        %v3164 = vpack.c.b16 %v3132, %v3131
        %v3165 = vpack.c.b16 %v3134, %v3133
        %v3166 = vpack.c.b16 %v3136, %v3135
        %v3167 = vpack.c.b16 %v3138, %v3137
        %v3168 = vpack.c.b16 %v3140, %v3139
        %v3169 = vpack.c.b16 %v3142, %v3141
        %v3170 = vpack.c.b16 %v3144, %v3143
        %v3171 = vpack.c.b16 %v3146, %v3145
        %v3172 = vpack.c.b16 %v3148, %v3147
        %3197 = vmatpush.bf16.msra.mxu0 %v3156
        %3198 = vmatpush.bf16.msra.mxu0 %v3155
        %3199 = vmatpush.bf16.msra.mxu0 %v3154
        %3200 = vmatpush.bf16.msra.mxu0 %v3153
        %3201 = vmatpush.bf16.msra.mxu0 %v3152
        %3202 = vmatpush.bf16.msra.mxu0 %v3151
        %3203 = vmatpush.bf16.msra.mxu0 %v3150
        %3204 = vmatpush.bf16.msra.mxu0 %v3149
        %3205 = vmatmul.bf16.gmra.mxu0 %v2957
        %v3206 = vpop.f32.mrf.mxu0
        %v3207 = vadd.f32 0.0, %v3206
        %v3208 = vpop.f32.mrf.mxu0
        %v3209 = vadd.f32 0.0, %v3208
        %3210 = vmatmul.bf16.gmra.mxu0 %v2960
        %v3211 = vpop.f32.mrf.mxu0
        %v3212 = vadd.f32 0.0, %v3211
        %v3213 = vpop.f32.mrf.mxu0
        %v3214 = vadd.f32 0.0, %v3213
        %3215 = vmatmul.bf16.gmra.mxu0 %v2963
        %v3216 = vpop.f32.mrf.mxu0
        %v3217 = vadd.f32 0.0, %v3216
        %v3218 = vpop.f32.mrf.mxu0
        %v3219 = vadd.f32 0.0, %v3218
        %3220 = vmatmul.bf16.gmra.mxu0 %v2966
        %v3221 = vpop.f32.mrf.mxu0
        %v3222 = vadd.f32 0.0, %v3221
        %v3223 = vpop.f32.mrf.mxu0
        %v3224 = vadd.f32 0.0, %v3223
        %3225 = vmatmul.bf16.gmra.mxu0 %v2969
        %v3226 = vpop.f32.mrf.mxu0
        %v3227 = vadd.f32 0.0, %v3226
        %v3228 = vpop.f32.mrf.mxu0
        %v3229 = vadd.f32 0.0, %v3228
        %3230 = vmatmul.bf16.gmra.mxu0 %v2972
        %v3231 = vpop.f32.mrf.mxu0
        %v3232 = vadd.f32 0.0, %v3231
        %v3233 = vpop.f32.mrf.mxu0
        %v3234 = vadd.f32 0.0, %v3233
        %3235 = vmatmul.bf16.gmra.mxu0 %v2975
        %v3236 = vpop.f32.mrf.mxu0
        %v3237 = vadd.f32 0.0, %v3236
        %v3238 = vpop.f32.mrf.mxu0
        %v3239 = vadd.f32 0.0, %v3238
        %3240 = vmatmul.bf16.gmra.mxu0 %v2978
        %v3241 = vpop.f32.mrf.mxu0
        %v3242 = vadd.f32 0.0, %v3241
        %v3243 = vpop.f32.mrf.mxu0
        %v3244 = vadd.f32 0.0, %v3243
        %3245 = vmatmul.bf16.gmra.mxu0 %v2981
        %v3246 = vpop.f32.mrf.mxu0
        %v3247 = vadd.f32 0.0, %v3246
        %v3248 = vpop.f32.mrf.mxu0
        %v3249 = vadd.f32 0.0, %v3248
        %3250 = vmatmul.bf16.gmra.mxu0 %v2984
        %v3251 = vpop.f32.mrf.mxu0
        %v3252 = vadd.f32 0.0, %v3251
        %v3253 = vpop.f32.mrf.mxu0
        %v3254 = vadd.f32 0.0, %v3253
        %3255 = vmatmul.bf16.gmra.mxu0 %v2987
        %v3256 = vpop.f32.mrf.mxu0
        %v3257 = vadd.f32 0.0, %v3256
        %v3258 = vpop.f32.mrf.mxu0
        %v3259 = vadd.f32 0.0, %v3258
        %3260 = vmatmul.bf16.gmra.mxu0 %v2990
        %v3261 = vpop.f32.mrf.mxu0
        %v3262 = vadd.f32 0.0, %v3261
        %v3263 = vpop.f32.mrf.mxu0
        %v3264 = vadd.f32 0.0, %v3263
        %3265 = vmatmul.bf16.gmra.mxu0 %v2993
        %v3266 = vpop.f32.mrf.mxu0
        %v3267 = vadd.f32 0.0, %v3266
        %v3268 = vpop.f32.mrf.mxu0
        %v3269 = vadd.f32 0.0, %v3268
        %3270 = vmatmul.bf16.gmra.mxu0 %v2996
        %v3271 = vpop.f32.mrf.mxu0
        %v3272 = vadd.f32 0.0, %v3271
        %v3273 = vpop.f32.mrf.mxu0
        %v3274 = vadd.f32 0.0, %v3273
        %3275 = vmatmul.bf16.gmra.mxu0 %v2999
        %v3276 = vpop.f32.mrf.mxu0
        %v3277 = vadd.f32 0.0, %v3276
        %v3278 = vpop.f32.mrf.mxu0
        %v3279 = vadd.f32 0.0, %v3278
        %3280 = vmatmul.bf16.gmra.mxu0 %v3002
        %v3281 = vpop.f32.mrf.mxu0
        %v3282 = vadd.f32 0.0, %v3281
        %v3283 = vpop.f32.mrf.mxu0
        %v3284 = vadd.f32 0.0, %v3283
        %3285 = vdwg.mxu0
        %3286 = vmatpush.bf16.msra.mxu0 %v3164
        %3287 = vmatpush.bf16.msra.mxu0 %v3163
        %3288 = vmatpush.bf16.msra.mxu0 %v3162
        %3289 = vmatpush.bf16.msra.mxu0 %v3161
        %3290 = vmatpush.bf16.msra.mxu0 %v3160
        %3291 = vmatpush.bf16.msra.mxu0 %v3159
        %3292 = vmatpush.bf16.msra.mxu0 %v3158
        %3293 = vmatpush.bf16.msra.mxu0 %v3157
        %3294 = vmatmul.bf16.gmra.mxu0 %v2958
        %v3295 = vpop.f32.mrf.mxu0
        %v3296 = vadd.f32 %v3207, %v3295
        %v3297 = vpop.f32.mrf.mxu0
        %v3298 = vadd.f32 %v3209, %v3297
        %3299 = vmatmul.bf16.gmra.mxu0 %v2961
        %v3300 = vpop.f32.mrf.mxu0
        %v3301 = vadd.f32 %v3212, %v3300
        %v3302 = vpop.f32.mrf.mxu0
        %v3303 = vadd.f32 %v3214, %v3302
        %3304 = vmatmul.bf16.gmra.mxu0 %v2964
        %v3305 = vpop.f32.mrf.mxu0
        %v3306 = vadd.f32 %v3217, %v3305
        %v3307 = vpop.f32.mrf.mxu0
        %v3308 = vadd.f32 %v3219, %v3307
        %3309 = vmatmul.bf16.gmra.mxu0 %v2967
        %v3310 = vpop.f32.mrf.mxu0
        %v3311 = vadd.f32 %v3222, %v3310
        %v3312 = vpop.f32.mrf.mxu0
        %v3313 = vadd.f32 %v3224, %v3312
        %3314 = vmatmul.bf16.gmra.mxu0 %v2970
        %v3315 = vpop.f32.mrf.mxu0
        %v3316 = vadd.f32 %v3227, %v3315
        %v3317 = vpop.f32.mrf.mxu0
        %v3318 = vadd.f32 %v3229, %v3317
        %3319 = vmatmul.bf16.gmra.mxu0 %v2973
        %v3320 = vpop.f32.mrf.mxu0
        %v3321 = vadd.f32 %v3232, %v3320
        %v3322 = vpop.f32.mrf.mxu0
        %v3323 = vadd.f32 %v3234, %v3322
        %3324 = vmatmul.bf16.gmra.mxu0 %v2976
        %v3325 = vpop.f32.mrf.mxu0
        %v3326 = vadd.f32 %v3237, %v3325
        %v3327 = vpop.f32.mrf.mxu0
        %v3328 = vadd.f32 %v3239, %v3327
        %3329 = vmatmul.bf16.gmra.mxu0 %v2979
        %v3330 = vpop.f32.mrf.mxu0
        %v3331 = vadd.f32 %v3242, %v3330
        %v3332 = vpop.f32.mrf.mxu0
        %v3333 = vadd.f32 %v3244, %v3332
        %3334 = vmatmul.bf16.gmra.mxu0 %v2982
        %v3335 = vpop.f32.mrf.mxu0
        %v3336 = vadd.f32 %v3247, %v3335
        %v3337 = vpop.f32.mrf.mxu0
        %v3338 = vadd.f32 %v3249, %v3337
        %3339 = vmatmul.bf16.gmra.mxu0 %v2985
        %v3340 = vpop.f32.mrf.mxu0
        %v3341 = vadd.f32 %v3252, %v3340
        %v3342 = vpop.f32.mrf.mxu0
        %v3343 = vadd.f32 %v3254, %v3342
        %3344 = vmatmul.bf16.gmra.mxu0 %v2988
        %v3345 = vpop.f32.mrf.mxu0
        %v3346 = vadd.f32 %v3257, %v3345
        %v3347 = vpop.f32.mrf.mxu0
        %v3348 = vadd.f32 %v3259, %v3347
        %3349 = vmatmul.bf16.gmra.mxu0 %v2991
        %v3350 = vpop.f32.mrf.mxu0
        %v3351 = vadd.f32 %v3262, %v3350
        %v3352 = vpop.f32.mrf.mxu0
        %v3353 = vadd.f32 %v3264, %v3352
        %3354 = vmatmul.bf16.gmra.mxu0 %v2994
        %v3355 = vpop.f32.mrf.mxu0
        %v3356 = vadd.f32 %v3267, %v3355
        %v3357 = vpop.f32.mrf.mxu0
        %v3358 = vadd.f32 %v3269, %v3357
        %3359 = vmatmul.bf16.gmra.mxu0 %v2997
        %v3360 = vpop.f32.mrf.mxu0
        %v3361 = vadd.f32 %v3272, %v3360
        %v3362 = vpop.f32.mrf.mxu0
        %v3363 = vadd.f32 %v3274, %v3362
        %3364 = vmatmul.bf16.gmra.mxu0 %v3000
        %v3365 = vpop.f32.mrf.mxu0
        %v3366 = vadd.f32 %v3277, %v3365
        %v3367 = vpop.f32.mrf.mxu0
        %v3368 = vadd.f32 %v3279, %v3367
        %3369 = vmatmul.bf16.gmra.mxu0 %v3003
        %v3370 = vpop.f32.mrf.mxu0
        %v3371 = vadd.f32 %v3282, %v3370
        %v3372 = vpop.f32.mrf.mxu0
        %v3373 = vadd.f32 %v3284, %v3372
        %3374 = vdwg.mxu0
        %3375 = vmatpush.bf16.msra.mxu0 %v3172
        %3376 = vmatpush.bf16.msra.mxu0 %v3171
        %3377 = vmatpush.bf16.msra.mxu0 %v3170
        %3378 = vmatpush.bf16.msra.mxu0 %v3169
        %3379 = vmatpush.bf16.msra.mxu0 %v3168
        %3380 = vmatpush.bf16.msra.mxu0 %v3167
        %3381 = vmatpush.bf16.msra.mxu0 %v3166
        %3382 = vmatpush.bf16.msra.mxu0 %v3165
        %3383 = vmatmul.bf16.gmra.mxu0 %v2959
        %v3384 = vpop.f32.mrf.mxu0
        %v3385 = vadd.f32 %v3296, %v3384
        %v3386 = vpop.f32.mrf.mxu0
        %v3387 = vadd.f32 %v3298, %v3386
        %3388 = vmatmul.bf16.gmra.mxu0 %v2962
        %v3389 = vpop.f32.mrf.mxu0
        %v3390 = vadd.f32 %v3301, %v3389
        %v3391 = vpop.f32.mrf.mxu0
        %v3392 = vadd.f32 %v3303, %v3391
        %3393 = vmatmul.bf16.gmra.mxu0 %v2965
        %v3394 = vpop.f32.mrf.mxu0
        %v3395 = vadd.f32 %v3306, %v3394
        %v3396 = vpop.f32.mrf.mxu0
        %v3397 = vadd.f32 %v3308, %v3396
        %3398 = vmatmul.bf16.gmra.mxu0 %v2968
        %v3399 = vpop.f32.mrf.mxu0
        %v3400 = vadd.f32 %v3311, %v3399
        %v3401 = vpop.f32.mrf.mxu0
        %v3402 = vadd.f32 %v3313, %v3401
        %3403 = vmatmul.bf16.gmra.mxu0 %v2971
        %v3404 = vpop.f32.mrf.mxu0
        %v3405 = vadd.f32 %v3316, %v3404
        %v3406 = vpop.f32.mrf.mxu0
        %v3407 = vadd.f32 %v3318, %v3406
        %3408 = vmatmul.bf16.gmra.mxu0 %v2974
        %v3409 = vpop.f32.mrf.mxu0
        %v3410 = vadd.f32 %v3321, %v3409
        %v3411 = vpop.f32.mrf.mxu0
        %v3412 = vadd.f32 %v3323, %v3411
        %3413 = vmatmul.bf16.gmra.mxu0 %v2977
        %v3414 = vpop.f32.mrf.mxu0
        %v3415 = vadd.f32 %v3326, %v3414
        %v3416 = vpop.f32.mrf.mxu0
        %v3417 = vadd.f32 %v3328, %v3416
        %3418 = vmatmul.bf16.gmra.mxu0 %v2980
        %v3419 = vpop.f32.mrf.mxu0
        %v3420 = vadd.f32 %v3331, %v3419
        %v3421 = vpop.f32.mrf.mxu0
        %v3422 = vadd.f32 %v3333, %v3421
        %3423 = vmatmul.bf16.gmra.mxu0 %v2983
        %v3424 = vpop.f32.mrf.mxu0
        %v3425 = vadd.f32 %v3336, %v3424
        %v3426 = vpop.f32.mrf.mxu0
        %v3427 = vadd.f32 %v3338, %v3426
        %3428 = vmatmul.bf16.gmra.mxu0 %v2986
        %v3429 = vpop.f32.mrf.mxu0
        %v3430 = vadd.f32 %v3341, %v3429
        %v3431 = vpop.f32.mrf.mxu0
        %v3432 = vadd.f32 %v3343, %v3431
        %3433 = vmatmul.bf16.gmra.mxu0 %v2989
        %v3434 = vpop.f32.mrf.mxu0
        %v3435 = vadd.f32 %v3346, %v3434
        %v3436 = vpop.f32.mrf.mxu0
        %v3437 = vadd.f32 %v3348, %v3436
        %3438 = vmatmul.bf16.gmra.mxu0 %v2992
        %v3439 = vpop.f32.mrf.mxu0
        %v3440 = vadd.f32 %v3351, %v3439
        %v3441 = vpop.f32.mrf.mxu0
        %v3442 = vadd.f32 %v3353, %v3441
        %3443 = vmatmul.bf16.gmra.mxu0 %v2995
        %v3444 = vpop.f32.mrf.mxu0
        %v3445 = vadd.f32 %v3356, %v3444
        %v3446 = vpop.f32.mrf.mxu0
        %v3447 = vadd.f32 %v3358, %v3446
        %3448 = vmatmul.bf16.gmra.mxu0 %v2998
        %v3449 = vpop.f32.mrf.mxu0
        %v3450 = vadd.f32 %v3361, %v3449
        %v3451 = vpop.f32.mrf.mxu0
        %v3452 = vadd.f32 %v3363, %v3451
        %3453 = vmatmul.bf16.gmra.mxu0 %v3001
        %v3454 = vpop.f32.mrf.mxu0
        %v3455 = vadd.f32 %v3366, %v3454
        %v3456 = vpop.f32.mrf.mxu0
        %v3457 = vadd.f32 %v3368, %v3456
        %3458 = vmatmul.bf16.gmra.mxu0 %v3004
        %v3459 = vpop.f32.mrf.mxu0
        %v3460 = vadd.f32 %v3371, %v3459
        %v3461 = vpop.f32.mrf.mxu0
        %v3462 = vadd.f32 %v3373, %v3461
        %3463 = vdwg.mxu0
        %v3464 = vadd.f32 %v2652, %v3385
        %v3465 = vadd.f32 %v2653, %v3387
        %v3466 = vadd.f32 %v2654, %v3390
        %v3467 = vadd.f32 %v2655, %v3392
        %v3468 = vadd.f32 %v2656, %v3395
        %v3469 = vadd.f32 %v2657, %v3397
        %v3470 = vadd.f32 %v2658, %v3400
        %v3471 = vadd.f32 %v2659, %v3402
        %v3472 = vadd.f32 %v2660, %v3405
        %v3473 = vadd.f32 %v2661, %v3407
        %v3474 = vadd.f32 %v2662, %v3410
        %v3475 = vadd.f32 %v2663, %v3412
        %v3476 = vadd.f32 %v2664, %v3415
        %v3477 = vadd.f32 %v2665, %v3417
        %v3478 = vadd.f32 %v2666, %v3420
        %v3479 = vadd.f32 %v2667, %v3422
        %v3480 = vadd.f32 %v2668, %v3425
        %v3481 = vadd.f32 %v2669, %v3427
        %v3482 = vadd.f32 %v2670, %v3430
        %v3483 = vadd.f32 %v2671, %v3432
        %v3484 = vadd.f32 %v2672, %v3435
        %v3485 = vadd.f32 %v2673, %v3437
        %v3486 = vadd.f32 %v2674, %v3440
        %v3487 = vadd.f32 %v2675, %v3442
        %v3488 = vadd.f32 %v2676, %v3445
        %v3489 = vadd.f32 %v2677, %v3447
        %v3490 = vadd.f32 %v2678, %v3450
        %v3491 = vadd.f32 %v2679, %v3452
        %v3492 = vadd.f32 %v2680, %v3455
        %v3493 = vadd.f32 %v2681, %v3457
        %v3494 = vadd.f32 %v2682, %v3460
        %v3495 = vadd.f32 %v2683, %v3462
        %3496 = vst [vmem:[#allocation4] sm:$0xff] %v3464
        %3497 = vst [vmem:[#allocation4 + $0x8] sm:$0xff] %v3465
        %3498 = vst [vmem:[#allocation4 + $0x10] sm:$0xff] %v3466
        %3499 = vst [vmem:[#allocation4 + $0x18] sm:$0xff] %v3467
        %3500 = vst [vmem:[#allocation4 + $0x20] sm:$0xff] %v3468
        %3501 = vst [vmem:[#allocation4 + $0x28] sm:$0xff] %v3469
        %3502 = vst [vmem:[#allocation4 + $0x30] sm:$0xff] %v3470
        %3503 = vst [vmem:[#allocation4 + $0x38] sm:$0xff] %v3471
        %3504 = vst [vmem:[#allocation4 + $0x40] sm:$0xff] %v3472
        %3505 = vst [vmem:[#allocation4 + $0x48] sm:$0xff] %v3473
        %3506 = vst [vmem:[#allocation4 + $0x50] sm:$0xff] %v3474
        %3507 = vst [vmem:[#allocation4 + $0x58] sm:$0xff] %v3475
        %3508 = vst [vmem:[#allocation4 + $0x60] sm:$0xff] %v3476
        %3509 = vst [vmem:[#allocation4 + $0x68] sm:$0xff] %v3477
        %3510 = vst [vmem:[#allocation4 + $0x70] sm:$0xff] %v3478
        %3511 = vst [vmem:[#allocation4 + $0x78] sm:$0xff] %v3479
        %3512 = vst [vmem:[#allocation4 + $0x80] sm:$0xff] %v3480
        %3513 = vst [vmem:[#allocation4 + $0x88] sm:$0xff] %v3481
        %3514 = vst [vmem:[#allocation4 + $0x90] sm:$0xff] %v3482
        %3515 = vst [vmem:[#allocation4 + $0x98] sm:$0xff] %v3483
        %3516 = vst [vmem:[#allocation4 + $0xa0] sm:$0xff] %v3484
        %3517 = vst [vmem:[#allocation4 + $0xa8] sm:$0xff] %v3485
        %3518 = vst [vmem:[#allocation4 + $0xb0] sm:$0xff] %v3486
        %3519 = vst [vmem:[#allocation4 + $0xb8] sm:$0xff] %v3487
        %3520 = vst [vmem:[#allocation4 + $0xc0] sm:$0xff] %v3488
        %3521 = vst [vmem:[#allocation4 + $0xc8] sm:$0xff] %v3489
        %3522 = vst [vmem:[#allocation4 + $0xd0] sm:$0xff] %v3490
        %3523 = vst [vmem:[#allocation4 + $0xd8] sm:$0xff] %v3491
        %3524 = vst [vmem:[#allocation4 + $0xe0] sm:$0xff] %v3492
        %3525 = vst [vmem:[#allocation4 + $0xe8] sm:$0xff] %v3493
        %3526 = vst [vmem:[#allocation4 + $0xf0] sm:$0xff] %v3494
        %3527 = vst [vmem:[#allocation4 + $0xf8] sm:$0xff] %v3495
        %v3528 = vld [vmem:[#allocation4] sm:$0xff]
        %v3529 = vld [vmem:[#allocation4 + $0x8] sm:$0xff]
        %v3530 = vld [vmem:[#allocation4 + $0x10] sm:$0xff]
        %v3531 = vld [vmem:[#allocation4 + $0x18] sm:$0xff]
        %v3532 = vld [vmem:[#allocation4 + $0x20] sm:$0xff]
        %v3533 = vld [vmem:[#allocation4 + $0x28] sm:$0xff]
        %v3534 = vld [vmem:[#allocation4 + $0x30] sm:$0xff]
        %v3535 = vld [vmem:[#allocation4 + $0x38] sm:$0xff]
        %v3536 = vld [vmem:[#allocation4 + $0x40] sm:$0xff]
        %v3537 = vld [vmem:[#allocation4 + $0x48] sm:$0xff]
        %v3538 = vld [vmem:[#allocation4 + $0x50] sm:$0xff]
        %v3539 = vld [vmem:[#allocation4 + $0x58] sm:$0xff]
        %v3540 = vld [vmem:[#allocation4 + $0x60] sm:$0xff]
        %v3541 = vld [vmem:[#allocation4 + $0x68] sm:$0xff]
        %v3542 = vld [vmem:[#allocation4 + $0x70] sm:$0xff]
        %v3543 = vld [vmem:[#allocation4 + $0x78] sm:$0xff]
        %v3544 = vld [vmem:[#allocation4 + $0x80] sm:$0xff]
        %v3545 = vld [vmem:[#allocation4 + $0x88] sm:$0xff]
        %v3546 = vld [vmem:[#allocation4 + $0x90] sm:$0xff]
        %v3547 = vld [vmem:[#allocation4 + $0x98] sm:$0xff]
        %v3548 = vld [vmem:[#allocation4 + $0xa0] sm:$0xff]
        %v3549 = vld [vmem:[#allocation4 + $0xa8] sm:$0xff]
        %v3550 = vld [vmem:[#allocation4 + $0xb0] sm:$0xff]
        %v3551 = vld [vmem:[#allocation4 + $0xb8] sm:$0xff]
        %v3552 = vld [vmem:[#allocation4 + $0xc0] sm:$0xff]
        %v3553 = vld [vmem:[#allocation4 + $0xc8] sm:$0xff]
        %v3554 = vld [vmem:[#allocation4 + $0xd0] sm:$0xff]
        %v3555 = vld [vmem:[#allocation4 + $0xd8] sm:$0xff]
        %v3556 = vld [vmem:[#allocation4 + $0xe0] sm:$0xff]
        %v3557 = vld [vmem:[#allocation4 + $0xe8] sm:$0xff]
        %v3558 = vld [vmem:[#allocation4 + $0xf0] sm:$0xff]
        %v3559 = vld [vmem:[#allocation4 + $0xf8] sm:$0xff]
        %v3560 = vld [vmem:[#allocation3 + $0x30] sm:$0xff]
        %v3561 = vld [vmem:[#allocation3 + $0x38] sm:$0xf]
        %v3562 = vld [vmem:[#allocation3 + $0x3c] sm:$0xff]
        %v3563 = vld [vmem:[#allocation3 + $0x44] sm:$0xf]
        %v3564 = vld [vmem:[#allocation3 + $0x48] sm:$0xff]
        %v3565 = vld [vmem:[#allocation3 + $0x50] sm:$0xf]
        %v3566 = vld [vmem:[#allocation3 + $0x54] sm:$0xff]
        %v3567 = vld [vmem:[#allocation3 + $0x5c] sm:$0xf]
        %v3568 = vld [vmem:[#allocation3 + $0x60] sm:$0xff]
        %v3569 = vld [vmem:[#allocation3 + $0x68] sm:$0xf]
        %v3570 = vld [vmem:[#allocation3 + $0x6c] sm:$0xff]
        %v3571 = vld [vmem:[#allocation3 + $0x74] sm:$0xf]
        %v3572 = vld [vmem:[#allocation3 + $0x78] sm:$0xff]
        %v3573 = vld [vmem:[#allocation3 + $0x80] sm:$0xf]
        %v3574 = vld [vmem:[#allocation3 + $0x84] sm:$0xff]
        %v3575 = vld [vmem:[#allocation3 + $0x8c] sm:$0xf]
        %v3576 = vld [vmem:[#allocation3 + $0x90] sm:$0xff]
        %v3577 = vld [vmem:[#allocation3 + $0x98] sm:$0xf]
        %v3578 = vld [vmem:[#allocation3 + $0x9c] sm:$0xff]
        %v3579 = vld [vmem:[#allocation3 + $0xa4] sm:$0xf]
        %v3580 = vld [vmem:[#allocation3 + $0xa8] sm:$0xff]
        %v3581 = vld [vmem:[#allocation3 + $0xb0] sm:$0xf]
        %v3582 = vld [vmem:[#allocation3 + $0xb4] sm:$0xff]
        %v3583 = vld [vmem:[#allocation3 + $0xbc] sm:$0xf]
        %v3584 = vld [vmem:[#allocation3 + $0xc0] sm:$0xff]
        %v3585 = vld [vmem:[#allocation3 + $0xc8] sm:$0xf]
        %v3586 = vld [vmem:[#allocation3 + $0xcc] sm:$0xff]
        %v3587 = vld [vmem:[#allocation3 + $0xd4] sm:$0xf]
        %v3588 = vld [vmem:[#allocation3 + $0xd8] sm:$0xff]
        %v3589 = vld [vmem:[#allocation3 + $0xe0] sm:$0xf]
        %v3590 = vld [vmem:[#allocation3 + $0xe4] sm:$0xff]
        %v3591 = vld [vmem:[#allocation3 + $0xec] sm:$0xf]
        %v3592 = vld [vmem:[#allocation3 + $0xf0] sm:$0xff]
        %v3593 = vld [vmem:[#allocation3 + $0xf8] sm:$0xf]
        %v3594 = vld [vmem:[#allocation3 + $0xfc] sm:$0xff]
        %v3595 = vld [vmem:[#allocation3 + $0x104] sm:$0xf]
        %v3596 = vld [vmem:[#allocation3 + $0x108] sm:$0xff]
        %v3597 = vld [vmem:[#allocation3 + $0x110] sm:$0xf]
        %v3598 = vld [vmem:[#allocation3 + $0x114] sm:$0xff]
        %v3599 = vld [vmem:[#allocation3 + $0x11c] sm:$0xf]
        %v3600 = vld [vmem:[#allocation3 + $0x120] sm:$0xff]
        %v3601 = vld [vmem:[#allocation3 + $0x128] sm:$0xf]
        %v3602 = vld [vmem:[#allocation3 + $0x12c] sm:$0xff]
        %v3603 = vld [vmem:[#allocation3 + $0x134] sm:$0xf]
        %v3604 = vld [vmem:[#allocation3 + $0x138] sm:$0xff]
        %v3605 = vld [vmem:[#allocation3 + $0x140] sm:$0xf]
        %v3606 = vld [vmem:[#allocation3 + $0x144] sm:$0xff]
        %v3607 = vld [vmem:[#allocation3 + $0x14c] sm:$0xf]
        %v3608 = vld [vmem:[#allocation3 + $0x150] sm:$0xff]
        %v3609 = vld [vmem:[#allocation3 + $0x158] sm:$0xf]
        %v3610 = vld [vmem:[#allocation3 + $0x15c] sm:$0xff]
        %v3611 = vld [vmem:[#allocation3 + $0x164] sm:$0xf]
        %v3612 = vld [vmem:[#allocation3 + $0x168] sm:$0xff]
        %v3613 = vld [vmem:[#allocation3 + $0x170] sm:$0xf]
        %v3614 = vld [vmem:[#allocation3 + $0x174] sm:$0xff]
        %v3615 = vld [vmem:[#allocation3 + $0x17c] sm:$0xf]
        %v3616 = vld [vmem:[#allocation3 + $0x180] sm:$0xff]
        %v3617 = vld [vmem:[#allocation3 + $0x188] sm:$0xf]
        %v3618 = vld [vmem:[#allocation3 + $0x18c] sm:$0xff]
        %v3619 = vld [vmem:[#allocation3 + $0x194] sm:$0xf]
        %v3620 = vld [vmem:[#allocation3 + $0x198] sm:$0xff]
        %v3621 = vld [vmem:[#allocation3 + $0x1a0] sm:$0xf]
        %v3622 = vld [vmem:[#allocation3 + $0x1a4] sm:$0xff]
        %v3623 = vld [vmem:[#allocation3 + $0x1ac] sm:$0xf]
        %s3624 = scalar_lea.vmem [#allocation8], 384
        %v3625 = vld [vmem:[%s3624] sm:$0xf]
        %v3626 = vld [vmem:[%s3624 + $0x4] sm:$0xf]
        %v3627 = vld [vmem:[%s3624 + $0x8] sm:$0xf]
        %v3628 = vld [vmem:[%s3624 + $0xc] sm:$0xf]
        %v3629 = vld [vmem:[%s3624 + $0x10] sm:$0xf]
        %v3630 = vld [vmem:[%s3624 + $0x14] sm:$0xf]
        %v3631 = vld [vmem:[%s3624 + $0x18] sm:$0xf]
        %v3632 = vld [vmem:[%s3624 + $0x1c] sm:$0xf]
        %v3633 = vld [vmem:[%s3624 + $0x20] sm:$0xf]
        %v3634 = vld [vmem:[%s3624 + $0x24] sm:$0xf]
        %v3635 = vld [vmem:[%s3624 + $0x28] sm:$0xf]
        %v3636 = vld [vmem:[%s3624 + $0x2c] sm:$0xf]
        %v3637 = vld [vmem:[%s3624 + $0x30] sm:$0xf]
        %v3638 = vld [vmem:[%s3624 + $0x34] sm:$0xf]
        %v3639 = vld [vmem:[%s3624 + $0x38] sm:$0xf]
        %v3640 = vld [vmem:[%s3624 + $0x3c] sm:$0xf]
        %v3641 = vld [vmem:[%s3624 + $0x40] sm:$0xf]
        %v3642 = vld [vmem:[%s3624 + $0x44] sm:$0xf]
        %v3643 = vld [vmem:[%s3624 + $0x48] sm:$0xf]
        %v3644 = vld [vmem:[%s3624 + $0x4c] sm:$0xf]
        %v3645 = vld [vmem:[%s3624 + $0x50] sm:$0xf]
        %v3646 = vld [vmem:[%s3624 + $0x54] sm:$0xf]
        %v3647 = vld [vmem:[%s3624 + $0x58] sm:$0xf]
        %v3648 = vld [vmem:[%s3624 + $0x5c] sm:$0xf]
        %v3649 = vld [vmem:[%s3624 + $0x60] sm:$0xf]
        %v3650 = vld [vmem:[%s3624 + $0x64] sm:$0xf]
        %v3651 = vld [vmem:[%s3624 + $0x68] sm:$0xf]
        %v3652 = vld [vmem:[%s3624 + $0x6c] sm:$0xf]
        %v3653 = vld [vmem:[%s3624 + $0x70] sm:$0xf]
        %v3654 = vld [vmem:[%s3624 + $0x74] sm:$0xf]
        %v3655 = vld [vmem:[%s3624 + $0x78] sm:$0xf]
        %v3656 = vld [vmem:[%s3624 + $0x7c] sm:$0xf]
        %v3657 = vld [vmem:[%s3624 + $0x80] sm:$0xf]
        %v3658 = vld [vmem:[%s3624 + $0x84] sm:$0xf]
        %v3659 = vld [vmem:[%s3624 + $0x88] sm:$0xf]
        %v3660 = vld [vmem:[%s3624 + $0x8c] sm:$0xf]
        %v3661 = vld [vmem:[%s3624 + $0x90] sm:$0xf]
        %v3662 = vld [vmem:[%s3624 + $0x94] sm:$0xf]
        %v3663 = vld [vmem:[%s3624 + $0x98] sm:$0xf]
        %v3664 = vld [vmem:[%s3624 + $0x9c] sm:$0xf]
        %v3665 = vld [vmem:[%s3624 + $0xa0] sm:$0xf]
        %v3666 = vld [vmem:[%s3624 + $0xa4] sm:$0xf]
        %v3667 = vld [vmem:[%s3624 + $0xa8] sm:$0xf]
        %v3668 = vld [vmem:[%s3624 + $0xac] sm:$0xf]
        %v3669 = vld [vmem:[%s3624 + $0xb0] sm:$0xf]
        %v3670 = vld [vmem:[%s3624 + $0xb4] sm:$0xf]
        %v3671 = vld [vmem:[%s3624 + $0xb8] sm:$0xf]
        %v3672 = vld [vmem:[%s3624 + $0xbc] sm:$0xf]
        %v3737 = vunpack.c.l.b16 %v3560
        %v3738 = vunpack.c.h.b16 %v3560
        %v3739 = vunpack.c.l.b16 %v3561
        %v3740 = vunpack.c.l.b16 %v3562
        %v3741 = vunpack.c.h.b16 %v3562
        %v3742 = vunpack.c.l.b16 %v3563
        %v3743 = vunpack.c.l.b16 %v3564
        %v3744 = vunpack.c.h.b16 %v3564
        %v3745 = vunpack.c.l.b16 %v3565
        %v3746 = vunpack.c.l.b16 %v3566
        %v3747 = vunpack.c.h.b16 %v3566
        %v3748 = vunpack.c.l.b16 %v3567
        %v3749 = vunpack.c.l.b16 %v3568
        %v3750 = vunpack.c.h.b16 %v3568
        %v3751 = vunpack.c.l.b16 %v3569
        %v3752 = vunpack.c.l.b16 %v3570
        %v3753 = vunpack.c.h.b16 %v3570
        %v3754 = vunpack.c.l.b16 %v3571
        %v3755 = vunpack.c.l.b16 %v3572
        %v3756 = vunpack.c.h.b16 %v3572
        %v3757 = vunpack.c.l.b16 %v3573
        %v3758 = vunpack.c.l.b16 %v3574
        %v3759 = vunpack.c.h.b16 %v3574
        %v3760 = vunpack.c.l.b16 %v3575
        %v3761 = vunpack.c.l.b16 %v3576
        %v3762 = vunpack.c.h.b16 %v3576
        %v3763 = vunpack.c.l.b16 %v3577
        %v3764 = vunpack.c.l.b16 %v3578
        %v3765 = vunpack.c.h.b16 %v3578
        %v3766 = vunpack.c.l.b16 %v3579
        %v3767 = vunpack.c.l.b16 %v3580
        %v3768 = vunpack.c.h.b16 %v3580
        %v3769 = vunpack.c.l.b16 %v3581
        %v3770 = vunpack.c.l.b16 %v3582
        %v3771 = vunpack.c.h.b16 %v3582
        %v3772 = vunpack.c.l.b16 %v3583
        %v3773 = vunpack.c.l.b16 %v3584
        %v3774 = vunpack.c.h.b16 %v3584
        %v3775 = vunpack.c.l.b16 %v3585
        %v3776 = vunpack.c.l.b16 %v3586
        %v3777 = vunpack.c.h.b16 %v3586
        %v3778 = vunpack.c.l.b16 %v3587
        %v3779 = vunpack.c.l.b16 %v3588
        %v3780 = vunpack.c.h.b16 %v3588
        %v3781 = vunpack.c.l.b16 %v3589
        %v3782 = vunpack.c.l.b16 %v3590
        %v3783 = vunpack.c.h.b16 %v3590
        %v3784 = vunpack.c.l.b16 %v3591
        %v3785 = vunpack.c.l.b16 %v3592
        %v3786 = vunpack.c.h.b16 %v3592
        %v3787 = vunpack.c.l.b16 %v3593
        %v3788 = vunpack.c.l.b16 %v3594
        %v3789 = vunpack.c.h.b16 %v3594
        %v3790 = vunpack.c.l.b16 %v3595
        %v3791 = vunpack.c.l.b16 %v3596
        %v3792 = vunpack.c.h.b16 %v3596
        %v3793 = vunpack.c.l.b16 %v3597
        %v3794 = vunpack.c.l.b16 %v3598
        %v3795 = vunpack.c.h.b16 %v3598
        %v3796 = vunpack.c.l.b16 %v3599
        %v3797 = vunpack.c.l.b16 %v3600
        %v3798 = vunpack.c.h.b16 %v3600
        %v3799 = vunpack.c.l.b16 %v3601
        %v3800 = vunpack.c.l.b16 %v3602
        %v3801 = vunpack.c.h.b16 %v3602
        %v3802 = vunpack.c.l.b16 %v3603
        %v3803 = vunpack.c.l.b16 %v3604
        %v3804 = vunpack.c.h.b16 %v3604
        %v3805 = vunpack.c.l.b16 %v3605
        %v3806 = vunpack.c.l.b16 %v3606
        %v3807 = vunpack.c.h.b16 %v3606
        %v3808 = vunpack.c.l.b16 %v3607
        %v3809 = vunpack.c.l.b16 %v3608
        %v3810 = vunpack.c.h.b16 %v3608
        %v3811 = vunpack.c.l.b16 %v3609
        %v3812 = vunpack.c.l.b16 %v3610
        %v3813 = vunpack.c.h.b16 %v3610
        %v3814 = vunpack.c.l.b16 %v3611
        %v3815 = vunpack.c.l.b16 %v3612
        %v3816 = vunpack.c.h.b16 %v3612
        %v3817 = vunpack.c.l.b16 %v3613
        %v3818 = vunpack.c.l.b16 %v3614
        %v3819 = vunpack.c.h.b16 %v3614
        %v3820 = vunpack.c.l.b16 %v3615
        %v3821 = vunpack.c.l.b16 %v3616
        %v3822 = vunpack.c.h.b16 %v3616
        %v3823 = vunpack.c.l.b16 %v3617
        %v3824 = vunpack.c.l.b16 %v3618
        %v3825 = vunpack.c.h.b16 %v3618
        %v3826 = vunpack.c.l.b16 %v3619
        %v3827 = vunpack.c.l.b16 %v3620
        %v3828 = vunpack.c.h.b16 %v3620
        %v3829 = vunpack.c.l.b16 %v3621
        %v3830 = vunpack.c.l.b16 %v3622
        %v3831 = vunpack.c.h.b16 %v3622
        %v3832 = vunpack.c.l.b16 %v3623
        %v3833 = vpack.c.b16 %v3740, %v3737
        %v3834 = vpack.c.b16 %v3741, %v3738
        %v3835 = vpack.c.b16 %v3742, %v3739
        %v3836 = vpack.c.b16 %v3746, %v3743
        %v3837 = vpack.c.b16 %v3747, %v3744
        %v3838 = vpack.c.b16 %v3748, %v3745
        %v3839 = vpack.c.b16 %v3752, %v3749
        %v3840 = vpack.c.b16 %v3753, %v3750
        %v3841 = vpack.c.b16 %v3754, %v3751
        %v3842 = vpack.c.b16 %v3758, %v3755
        %v3843 = vpack.c.b16 %v3759, %v3756
        %v3844 = vpack.c.b16 %v3760, %v3757
        %v3845 = vpack.c.b16 %v3764, %v3761
        %v3846 = vpack.c.b16 %v3765, %v3762
        %v3847 = vpack.c.b16 %v3766, %v3763
        %v3848 = vpack.c.b16 %v3770, %v3767
        %v3849 = vpack.c.b16 %v3771, %v3768
        %v3850 = vpack.c.b16 %v3772, %v3769
        %v3851 = vpack.c.b16 %v3776, %v3773
        %v3852 = vpack.c.b16 %v3777, %v3774
        %v3853 = vpack.c.b16 %v3778, %v3775
        %v3854 = vpack.c.b16 %v3782, %v3779
        %v3855 = vpack.c.b16 %v3783, %v3780
        %v3856 = vpack.c.b16 %v3784, %v3781
        %v3857 = vpack.c.b16 %v3788, %v3785
        %v3858 = vpack.c.b16 %v3789, %v3786
        %v3859 = vpack.c.b16 %v3790, %v3787
        %v3860 = vpack.c.b16 %v3794, %v3791
        %v3861 = vpack.c.b16 %v3795, %v3792
        %v3862 = vpack.c.b16 %v3796, %v3793
        %v3863 = vpack.c.b16 %v3800, %v3797
        %v3864 = vpack.c.b16 %v3801, %v3798
        %v3865 = vpack.c.b16 %v3802, %v3799
        %v3866 = vpack.c.b16 %v3806, %v3803
        %v3867 = vpack.c.b16 %v3807, %v3804
        %v3868 = vpack.c.b16 %v3808, %v3805
        %v3869 = vpack.c.b16 %v3812, %v3809
        %v3870 = vpack.c.b16 %v3813, %v3810
        %v3871 = vpack.c.b16 %v3814, %v3811
        %v3872 = vpack.c.b16 %v3818, %v3815
        %v3873 = vpack.c.b16 %v3819, %v3816
        %v3874 = vpack.c.b16 %v3820, %v3817
        %v3875 = vpack.c.b16 %v3824, %v3821
        %v3876 = vpack.c.b16 %v3825, %v3822
        %v3877 = vpack.c.b16 %v3826, %v3823
        %v3878 = vpack.c.b16 %v3830, %v3827
        %v3879 = vpack.c.b16 %v3831, %v3828
        %v3880 = vpack.c.b16 %v3832, %v3829
        %v3977 = vunpack.c.l.b16 %v3625
        %v3978 = vunpack.c.l.b16 %v3626
        %v3979 = vunpack.c.l.b16 %v3627
        %v3980 = vunpack.c.l.b16 %v3628
        %v3981 = vunpack.c.l.b16 %v3629
        %v3982 = vunpack.c.l.b16 %v3630
        %v3983 = vunpack.c.l.b16 %v3631
        %v3984 = vunpack.c.l.b16 %v3632
        %v3985 = vunpack.c.l.b16 %v3633
        %v3986 = vunpack.c.l.b16 %v3634
        %v3987 = vunpack.c.l.b16 %v3635
        %v3988 = vunpack.c.l.b16 %v3636
        %v3989 = vunpack.c.l.b16 %v3637
        %v3990 = vunpack.c.l.b16 %v3638
        %v3991 = vunpack.c.l.b16 %v3639
        %v3992 = vunpack.c.l.b16 %v3640
        %v3993 = vunpack.c.l.b16 %v3641
        %v3994 = vunpack.c.l.b16 %v3642
        %v3995 = vunpack.c.l.b16 %v3643
        %v3996 = vunpack.c.l.b16 %v3644
        %v3997 = vunpack.c.l.b16 %v3645
        %v3998 = vunpack.c.l.b16 %v3646
        %v3999 = vunpack.c.l.b16 %v3647
        %v4000 = vunpack.c.l.b16 %v3648
        %v4001 = vunpack.c.l.b16 %v3649
        %v4002 = vunpack.c.l.b16 %v3650
        %v4003 = vunpack.c.l.b16 %v3651
        %v4004 = vunpack.c.l.b16 %v3652
        %v4005 = vunpack.c.l.b16 %v3653
        %v4006 = vunpack.c.l.b16 %v3654
        %v4007 = vunpack.c.l.b16 %v3655
        %v4008 = vunpack.c.l.b16 %v3656
        %v4009 = vunpack.c.l.b16 %v3657
        %v4010 = vunpack.c.l.b16 %v3658
        %v4011 = vunpack.c.l.b16 %v3659
        %v4012 = vunpack.c.l.b16 %v3660
        %v4013 = vunpack.c.l.b16 %v3661
        %v4014 = vunpack.c.l.b16 %v3662
        %v4015 = vunpack.c.l.b16 %v3663
        %v4016 = vunpack.c.l.b16 %v3664
        %v4017 = vunpack.c.l.b16 %v3665
        %v4018 = vunpack.c.l.b16 %v3666
        %v4019 = vunpack.c.l.b16 %v3667
        %v4020 = vunpack.c.l.b16 %v3668
        %v4021 = vunpack.c.l.b16 %v3669
        %v4022 = vunpack.c.l.b16 %v3670
        %v4023 = vunpack.c.l.b16 %v3671
        %v4024 = vunpack.c.l.b16 %v3672
        %v4025 = vpack.c.b16 %v3978, %v3977
        %v4026 = vpack.c.b16 %v3980, %v3979
        %v4027 = vpack.c.b16 %v3982, %v3981
        %v4028 = vpack.c.b16 %v3984, %v3983
        %v4029 = vpack.c.b16 %v3986, %v3985
        %v4030 = vpack.c.b16 %v3988, %v3987
        %v4031 = vpack.c.b16 %v3990, %v3989
        %v4032 = vpack.c.b16 %v3992, %v3991
        %v4033 = vpack.c.b16 %v3994, %v3993
        %v4034 = vpack.c.b16 %v3996, %v3995
        %v4035 = vpack.c.b16 %v3998, %v3997
        %v4036 = vpack.c.b16 %v4000, %v3999
        %v4037 = vpack.c.b16 %v4002, %v4001
        %v4038 = vpack.c.b16 %v4004, %v4003
        %v4039 = vpack.c.b16 %v4006, %v4005
        %v4040 = vpack.c.b16 %v4008, %v4007
        %v4041 = vpack.c.b16 %v4010, %v4009
        %v4042 = vpack.c.b16 %v4012, %v4011
        %v4043 = vpack.c.b16 %v4014, %v4013
        %v4044 = vpack.c.b16 %v4016, %v4015
        %v4045 = vpack.c.b16 %v4018, %v4017
        %v4046 = vpack.c.b16 %v4020, %v4019
        %v4047 = vpack.c.b16 %v4022, %v4021
        %v4048 = vpack.c.b16 %v4024, %v4023
        %4073 = vmatpush.bf16.msra.mxu0 %v4032
        %4074 = vmatpush.bf16.msra.mxu0 %v4031
        %4075 = vmatpush.bf16.msra.mxu0 %v4030
        %4076 = vmatpush.bf16.msra.mxu0 %v4029
        %4077 = vmatpush.bf16.msra.mxu0 %v4028
        %4078 = vmatpush.bf16.msra.mxu0 %v4027
        %4079 = vmatpush.bf16.msra.mxu0 %v4026
        %4080 = vmatpush.bf16.msra.mxu0 %v4025
        %4081 = vmatmul.bf16.gmra.mxu0 %v3833
        %v4082 = vpop.f32.mrf.mxu0
        %v4083 = vadd.f32 0.0, %v4082
        %v4084 = vpop.f32.mrf.mxu0
        %v4085 = vadd.f32 0.0, %v4084
        %4086 = vmatmul.bf16.gmra.mxu0 %v3836
        %v4087 = vpop.f32.mrf.mxu0
        %v4088 = vadd.f32 0.0, %v4087
        %v4089 = vpop.f32.mrf.mxu0
        %v4090 = vadd.f32 0.0, %v4089
        %4091 = vmatmul.bf16.gmra.mxu0 %v3839
        %v4092 = vpop.f32.mrf.mxu0
        %v4093 = vadd.f32 0.0, %v4092
        %v4094 = vpop.f32.mrf.mxu0
        %v4095 = vadd.f32 0.0, %v4094
        %4096 = vmatmul.bf16.gmra.mxu0 %v3842
        %v4097 = vpop.f32.mrf.mxu0
        %v4098 = vadd.f32 0.0, %v4097
        %v4099 = vpop.f32.mrf.mxu0
        %v4100 = vadd.f32 0.0, %v4099
        %4101 = vmatmul.bf16.gmra.mxu0 %v3845
        %v4102 = vpop.f32.mrf.mxu0
        %v4103 = vadd.f32 0.0, %v4102
        %v4104 = vpop.f32.mrf.mxu0
        %v4105 = vadd.f32 0.0, %v4104
        %4106 = vmatmul.bf16.gmra.mxu0 %v3848
        %v4107 = vpop.f32.mrf.mxu0
        %v4108 = vadd.f32 0.0, %v4107
        %v4109 = vpop.f32.mrf.mxu0
        %v4110 = vadd.f32 0.0, %v4109
        %4111 = vmatmul.bf16.gmra.mxu0 %v3851
        %v4112 = vpop.f32.mrf.mxu0
        %v4113 = vadd.f32 0.0, %v4112
        %v4114 = vpop.f32.mrf.mxu0
        %v4115 = vadd.f32 0.0, %v4114
        %4116 = vmatmul.bf16.gmra.mxu0 %v3854
        %v4117 = vpop.f32.mrf.mxu0
        %v4118 = vadd.f32 0.0, %v4117
        %v4119 = vpop.f32.mrf.mxu0
        %v4120 = vadd.f32 0.0, %v4119
        %4121 = vmatmul.bf16.gmra.mxu0 %v3857
        %v4122 = vpop.f32.mrf.mxu0
        %v4123 = vadd.f32 0.0, %v4122
        %v4124 = vpop.f32.mrf.mxu0
        %v4125 = vadd.f32 0.0, %v4124
        %4126 = vmatmul.bf16.gmra.mxu0 %v3860
        %v4127 = vpop.f32.mrf.mxu0
        %v4128 = vadd.f32 0.0, %v4127
        %v4129 = vpop.f32.mrf.mxu0
        %v4130 = vadd.f32 0.0, %v4129
        %4131 = vmatmul.bf16.gmra.mxu0 %v3863
        %v4132 = vpop.f32.mrf.mxu0
        %v4133 = vadd.f32 0.0, %v4132
        %v4134 = vpop.f32.mrf.mxu0
        %v4135 = vadd.f32 0.0, %v4134
        %4136 = vmatmul.bf16.gmra.mxu0 %v3866
        %v4137 = vpop.f32.mrf.mxu0
        %v4138 = vadd.f32 0.0, %v4137
        %v4139 = vpop.f32.mrf.mxu0
        %v4140 = vadd.f32 0.0, %v4139
        %4141 = vmatmul.bf16.gmra.mxu0 %v3869
        %v4142 = vpop.f32.mrf.mxu0
        %v4143 = vadd.f32 0.0, %v4142
        %v4144 = vpop.f32.mrf.mxu0
        %v4145 = vadd.f32 0.0, %v4144
        %4146 = vmatmul.bf16.gmra.mxu0 %v3872
        %v4147 = vpop.f32.mrf.mxu0
        %v4148 = vadd.f32 0.0, %v4147
        %v4149 = vpop.f32.mrf.mxu0
        %v4150 = vadd.f32 0.0, %v4149
        %4151 = vmatmul.bf16.gmra.mxu0 %v3875
        %v4152 = vpop.f32.mrf.mxu0
        %v4153 = vadd.f32 0.0, %v4152
        %v4154 = vpop.f32.mrf.mxu0
        %v4155 = vadd.f32 0.0, %v4154
        %4156 = vmatmul.bf16.gmra.mxu0 %v3878
        %v4157 = vpop.f32.mrf.mxu0
        %v4158 = vadd.f32 0.0, %v4157
        %v4159 = vpop.f32.mrf.mxu0
        %v4160 = vadd.f32 0.0, %v4159
        %4161 = vdwg.mxu0
        %4162 = vmatpush.bf16.msra.mxu0 %v4040
        %4163 = vmatpush.bf16.msra.mxu0 %v4039
        %4164 = vmatpush.bf16.msra.mxu0 %v4038
        %4165 = vmatpush.bf16.msra.mxu0 %v4037
        %4166 = vmatpush.bf16.msra.mxu0 %v4036
        %4167 = vmatpush.bf16.msra.mxu0 %v4035
        %4168 = vmatpush.bf16.msra.mxu0 %v4034
        %4169 = vmatpush.bf16.msra.mxu0 %v4033
        %4170 = vmatmul.bf16.gmra.mxu0 %v3834
        %v4171 = vpop.f32.mrf.mxu0
        %v4172 = vadd.f32 %v4083, %v4171
        %v4173 = vpop.f32.mrf.mxu0
        %v4174 = vadd.f32 %v4085, %v4173
        %4175 = vmatmul.bf16.gmra.mxu0 %v3837
        %v4176 = vpop.f32.mrf.mxu0
        %v4177 = vadd.f32 %v4088, %v4176
        %v4178 = vpop.f32.mrf.mxu0
        %v4179 = vadd.f32 %v4090, %v4178
        %4180 = vmatmul.bf16.gmra.mxu0 %v3840
        %v4181 = vpop.f32.mrf.mxu0
        %v4182 = vadd.f32 %v4093, %v4181
        %v4183 = vpop.f32.mrf.mxu0
        %v4184 = vadd.f32 %v4095, %v4183
        %4185 = vmatmul.bf16.gmra.mxu0 %v3843
        %v4186 = vpop.f32.mrf.mxu0
        %v4187 = vadd.f32 %v4098, %v4186
        %v4188 = vpop.f32.mrf.mxu0
        %v4189 = vadd.f32 %v4100, %v4188
        %4190 = vmatmul.bf16.gmra.mxu0 %v3846
        %v4191 = vpop.f32.mrf.mxu0
        %v4192 = vadd.f32 %v4103, %v4191
        %v4193 = vpop.f32.mrf.mxu0
        %v4194 = vadd.f32 %v4105, %v4193
        %4195 = vmatmul.bf16.gmra.mxu0 %v3849
        %v4196 = vpop.f32.mrf.mxu0
        %v4197 = vadd.f32 %v4108, %v4196
        %v4198 = vpop.f32.mrf.mxu0
        %v4199 = vadd.f32 %v4110, %v4198
        %4200 = vmatmul.bf16.gmra.mxu0 %v3852
        %v4201 = vpop.f32.mrf.mxu0
        %v4202 = vadd.f32 %v4113, %v4201
        %v4203 = vpop.f32.mrf.mxu0
        %v4204 = vadd.f32 %v4115, %v4203
        %4205 = vmatmul.bf16.gmra.mxu0 %v3855
        %v4206 = vpop.f32.mrf.mxu0
        %v4207 = vadd.f32 %v4118, %v4206
        %v4208 = vpop.f32.mrf.mxu0
        %v4209 = vadd.f32 %v4120, %v4208
        %4210 = vmatmul.bf16.gmra.mxu0 %v3858
        %v4211 = vpop.f32.mrf.mxu0
        %v4212 = vadd.f32 %v4123, %v4211
        %v4213 = vpop.f32.mrf.mxu0
        %v4214 = vadd.f32 %v4125, %v4213
        %4215 = vmatmul.bf16.gmra.mxu0 %v3861
        %v4216 = vpop.f32.mrf.mxu0
        %v4217 = vadd.f32 %v4128, %v4216
        %v4218 = vpop.f32.mrf.mxu0
        %v4219 = vadd.f32 %v4130, %v4218
        %4220 = vmatmul.bf16.gmra.mxu0 %v3864
        %v4221 = vpop.f32.mrf.mxu0
        %v4222 = vadd.f32 %v4133, %v4221
        %v4223 = vpop.f32.mrf.mxu0
        %v4224 = vadd.f32 %v4135, %v4223
        %4225 = vmatmul.bf16.gmra.mxu0 %v3867
        %v4226 = vpop.f32.mrf.mxu0
        %v4227 = vadd.f32 %v4138, %v4226
        %v4228 = vpop.f32.mrf.mxu0
        %v4229 = vadd.f32 %v4140, %v4228
        %4230 = vmatmul.bf16.gmra.mxu0 %v3870
        %v4231 = vpop.f32.mrf.mxu0
        %v4232 = vadd.f32 %v4143, %v4231
        %v4233 = vpop.f32.mrf.mxu0
        %v4234 = vadd.f32 %v4145, %v4233
        %4235 = vmatmul.bf16.gmra.mxu0 %v3873
        %v4236 = vpop.f32.mrf.mxu0
        %v4237 = vadd.f32 %v4148, %v4236
        %v4238 = vpop.f32.mrf.mxu0
        %v4239 = vadd.f32 %v4150, %v4238
        %4240 = vmatmul.bf16.gmra.mxu0 %v3876
        %v4241 = vpop.f32.mrf.mxu0
        %v4242 = vadd.f32 %v4153, %v4241
        %v4243 = vpop.f32.mrf.mxu0
        %v4244 = vadd.f32 %v4155, %v4243
        %4245 = vmatmul.bf16.gmra.mxu0 %v3879
        %v4246 = vpop.f32.mrf.mxu0
        %v4247 = vadd.f32 %v4158, %v4246
        %v4248 = vpop.f32.mrf.mxu0
        %v4249 = vadd.f32 %v4160, %v4248
        %4250 = vdwg.mxu0
        %4251 = vmatpush.bf16.msra.mxu0 %v4048
        %4252 = vmatpush.bf16.msra.mxu0 %v4047
        %4253 = vmatpush.bf16.msra.mxu0 %v4046
        %4254 = vmatpush.bf16.msra.mxu0 %v4045
        %4255 = vmatpush.bf16.msra.mxu0 %v4044
        %4256 = vmatpush.bf16.msra.mxu0 %v4043
        %4257 = vmatpush.bf16.msra.mxu0 %v4042
        %4258 = vmatpush.bf16.msra.mxu0 %v4041
        %4259 = vmatmul.bf16.gmra.mxu0 %v3835
        %v4260 = vpop.f32.mrf.mxu0
        %v4261 = vadd.f32 %v4172, %v4260
        %v4262 = vpop.f32.mrf.mxu0
        %v4263 = vadd.f32 %v4174, %v4262
        %4264 = vmatmul.bf16.gmra.mxu0 %v3838
        %v4265 = vpop.f32.mrf.mxu0
        %v4266 = vadd.f32 %v4177, %v4265
        %v4267 = vpop.f32.mrf.mxu0
        %v4268 = vadd.f32 %v4179, %v4267
        %4269 = vmatmul.bf16.gmra.mxu0 %v3841
        %v4270 = vpop.f32.mrf.mxu0
        %v4271 = vadd.f32 %v4182, %v4270
        %v4272 = vpop.f32.mrf.mxu0
        %v4273 = vadd.f32 %v4184, %v4272
        %4274 = vmatmul.bf16.gmra.mxu0 %v3844
        %v4275 = vpop.f32.mrf.mxu0
        %v4276 = vadd.f32 %v4187, %v4275
        %v4277 = vpop.f32.mrf.mxu0
        %v4278 = vadd.f32 %v4189, %v4277
        %4279 = vmatmul.bf16.gmra.mxu0 %v3847
        %v4280 = vpop.f32.mrf.mxu0
        %v4281 = vadd.f32 %v4192, %v4280
        %v4282 = vpop.f32.mrf.mxu0
        %v4283 = vadd.f32 %v4194, %v4282
        %4284 = vmatmul.bf16.gmra.mxu0 %v3850
        %v4285 = vpop.f32.mrf.mxu0
        %v4286 = vadd.f32 %v4197, %v4285
        %v4287 = vpop.f32.mrf.mxu0
        %v4288 = vadd.f32 %v4199, %v4287
        %4289 = vmatmul.bf16.gmra.mxu0 %v3853
        %v4290 = vpop.f32.mrf.mxu0
        %v4291 = vadd.f32 %v4202, %v4290
        %v4292 = vpop.f32.mrf.mxu0
        %v4293 = vadd.f32 %v4204, %v4292
        %4294 = vmatmul.bf16.gmra.mxu0 %v3856
        %v4295 = vpop.f32.mrf.mxu0
        %v4296 = vadd.f32 %v4207, %v4295
        %v4297 = vpop.f32.mrf.mxu0
        %v4298 = vadd.f32 %v4209, %v4297
        %4299 = vmatmul.bf16.gmra.mxu0 %v3859
        %v4300 = vpop.f32.mrf.mxu0
        %v4301 = vadd.f32 %v4212, %v4300
        %v4302 = vpop.f32.mrf.mxu0
        %v4303 = vadd.f32 %v4214, %v4302
        %4304 = vmatmul.bf16.gmra.mxu0 %v3862
        %v4305 = vpop.f32.mrf.mxu0
        %v4306 = vadd.f32 %v4217, %v4305
        %v4307 = vpop.f32.mrf.mxu0
        %v4308 = vadd.f32 %v4219, %v4307
        %4309 = vmatmul.bf16.gmra.mxu0 %v3865
        %v4310 = vpop.f32.mrf.mxu0
        %v4311 = vadd.f32 %v4222, %v4310
        %v4312 = vpop.f32.mrf.mxu0
        %v4313 = vadd.f32 %v4224, %v4312
        %4314 = vmatmul.bf16.gmra.mxu0 %v3868
        %v4315 = vpop.f32.mrf.mxu0
        %v4316 = vadd.f32 %v4227, %v4315
        %v4317 = vpop.f32.mrf.mxu0
        %v4318 = vadd.f32 %v4229, %v4317
        %4319 = vmatmul.bf16.gmra.mxu0 %v3871
        %v4320 = vpop.f32.mrf.mxu0
        %v4321 = vadd.f32 %v4232, %v4320
        %v4322 = vpop.f32.mrf.mxu0
        %v4323 = vadd.f32 %v4234, %v4322
        %4324 = vmatmul.bf16.gmra.mxu0 %v3874
        %v4325 = vpop.f32.mrf.mxu0
        %v4326 = vadd.f32 %v4237, %v4325
        %v4327 = vpop.f32.mrf.mxu0
        %v4328 = vadd.f32 %v4239, %v4327
        %4329 = vmatmul.bf16.gmra.mxu0 %v3877
        %v4330 = vpop.f32.mrf.mxu0
        %v4331 = vadd.f32 %v4242, %v4330
        %v4332 = vpop.f32.mrf.mxu0
        %v4333 = vadd.f32 %v4244, %v4332
        %4334 = vmatmul.bf16.gmra.mxu0 %v3880
        %v4335 = vpop.f32.mrf.mxu0
        %v4336 = vadd.f32 %v4247, %v4335
        %v4337 = vpop.f32.mrf.mxu0
        %v4338 = vadd.f32 %v4249, %v4337
        %4339 = vdwg.mxu0
        %v4340 = vadd.f32 %v3528, %v4261
        %v4341 = vadd.f32 %v3529, %v4263
        %v4342 = vadd.f32 %v3530, %v4266
        %v4343 = vadd.f32 %v3531, %v4268
        %v4344 = vadd.f32 %v3532, %v4271
        %v4345 = vadd.f32 %v3533, %v4273
        %v4346 = vadd.f32 %v3534, %v4276
        %v4347 = vadd.f32 %v3535, %v4278
        %v4348 = vadd.f32 %v3536, %v4281
        %v4349 = vadd.f32 %v3537, %v4283
        %v4350 = vadd.f32 %v3538, %v4286
        %v4351 = vadd.f32 %v3539, %v4288
        %v4352 = vadd.f32 %v3540, %v4291
        %v4353 = vadd.f32 %v3541, %v4293
        %v4354 = vadd.f32 %v3542, %v4296
        %v4355 = vadd.f32 %v3543, %v4298
        %v4356 = vadd.f32 %v3544, %v4301
        %v4357 = vadd.f32 %v3545, %v4303
        %v4358 = vadd.f32 %v3546, %v4306
        %v4359 = vadd.f32 %v3547, %v4308
        %v4360 = vadd.f32 %v3548, %v4311
        %v4361 = vadd.f32 %v3549, %v4313
        %v4362 = vadd.f32 %v3550, %v4316
        %v4363 = vadd.f32 %v3551, %v4318
        %v4364 = vadd.f32 %v3552, %v4321
        %v4365 = vadd.f32 %v3553, %v4323
        %v4366 = vadd.f32 %v3554, %v4326
        %v4367 = vadd.f32 %v3555, %v4328
        %v4368 = vadd.f32 %v3556, %v4331
        %v4369 = vadd.f32 %v3557, %v4333
        %v4370 = vadd.f32 %v3558, %v4336
        %v4371 = vadd.f32 %v3559, %v4338
        %4372 = vst [vmem:[#allocation4] sm:$0xff] %v4340
        %4373 = vst [vmem:[#allocation4 + $0x8] sm:$0xff] %v4341
        %4374 = vst [vmem:[#allocation4 + $0x10] sm:$0xff] %v4342
        %4375 = vst [vmem:[#allocation4 + $0x18] sm:$0xff] %v4343
        %4376 = vst [vmem:[#allocation4 + $0x20] sm:$0xff] %v4344
        %4377 = vst [vmem:[#allocation4 + $0x28] sm:$0xff] %v4345
        %4378 = vst [vmem:[#allocation4 + $0x30] sm:$0xff] %v4346
        %4379 = vst [vmem:[#allocation4 + $0x38] sm:$0xff] %v4347
        %4380 = vst [vmem:[#allocation4 + $0x40] sm:$0xff] %v4348
        %4381 = vst [vmem:[#allocation4 + $0x48] sm:$0xff] %v4349
        %4382 = vst [vmem:[#allocation4 + $0x50] sm:$0xff] %v4350
        %4383 = vst [vmem:[#allocation4 + $0x58] sm:$0xff] %v4351
        %4384 = vst [vmem:[#allocation4 + $0x60] sm:$0xff] %v4352
        %4385 = vst [vmem:[#allocation4 + $0x68] sm:$0xff] %v4353
        %4386 = vst [vmem:[#allocation4 + $0x70] sm:$0xff] %v4354
        %4387 = vst [vmem:[#allocation4 + $0x78] sm:$0xff] %v4355
        %4388 = vst [vmem:[#allocation4 + $0x80] sm:$0xff] %v4356
        %4389 = vst [vmem:[#allocation4 + $0x88] sm:$0xff] %v4357
        %4390 = vst [vmem:[#allocation4 + $0x90] sm:$0xff] %v4358
        %4391 = vst [vmem:[#allocation4 + $0x98] sm:$0xff] %v4359
        %4392 = vst [vmem:[#allocation4 + $0xa0] sm:$0xff] %v4360
        %4393 = vst [vmem:[#allocation4 + $0xa8] sm:$0xff] %v4361
        %4394 = vst [vmem:[#allocation4 + $0xb0] sm:$0xff] %v4362
        %4395 = vst [vmem:[#allocation4 + $0xb8] sm:$0xff] %v4363
        %4396 = vst [vmem:[#allocation4 + $0xc0] sm:$0xff] %v4364
        %4397 = vst [vmem:[#allocation4 + $0xc8] sm:$0xff] %v4365
        %4398 = vst [vmem:[#allocation4 + $0xd0] sm:$0xff] %v4366
        %4399 = vst [vmem:[#allocation4 + $0xd8] sm:$0xff] %v4367
        %4400 = vst [vmem:[#allocation4 + $0xe0] sm:$0xff] %v4368
        %4401 = vst [vmem:[#allocation4 + $0xe8] sm:$0xff] %v4369
        %4402 = vst [vmem:[#allocation4 + $0xf0] sm:$0xff] %v4370
        %4403 = vst [vmem:[#allocation4 + $0xf8] sm:$0xff] %v4371
        %v4404 = vld [vmem:[#allocation4] sm:$0xff]
        %v4405 = vld [vmem:[#allocation4 + $0x8] sm:$0xff]
        %v4406 = vld [vmem:[#allocation4 + $0x10] sm:$0xff]
        %v4407 = vld [vmem:[#allocation4 + $0x18] sm:$0xff]
        %v4408 = vld [vmem:[#allocation4 + $0x20] sm:$0xff]
        %v4409 = vld [vmem:[#allocation4 + $0x28] sm:$0xff]
        %v4410 = vld [vmem:[#allocation4 + $0x30] sm:$0xff]
        %v4411 = vld [vmem:[#allocation4 + $0x38] sm:$0xff]
        %v4412 = vld [vmem:[#allocation4 + $0x40] sm:$0xff]
        %v4413 = vld [vmem:[#allocation4 + $0x48] sm:$0xff]
        %v4414 = vld [vmem:[#allocation4 + $0x50] sm:$0xff]
        %v4415 = vld [vmem:[#allocation4 + $0x58] sm:$0xff]
        %v4416 = vld [vmem:[#allocation4 + $0x60] sm:$0xff]
        %v4417 = vld [vmem:[#allocation4 + $0x68] sm:$0xff]
        %v4418 = vld [vmem:[#allocation4 + $0x70] sm:$0xff]
        %v4419 = vld [vmem:[#allocation4 + $0x78] sm:$0xff]
        %v4420 = vld [vmem:[#allocation4 + $0x80] sm:$0xff]
        %v4421 = vld [vmem:[#allocation4 + $0x88] sm:$0xff]
        %v4422 = vld [vmem:[#allocation4 + $0x90] sm:$0xff]
        %v4423 = vld [vmem:[#allocation4 + $0x98] sm:$0xff]
        %v4424 = vld [vmem:[#allocation4 + $0xa0] sm:$0xff]
        %v4425 = vld [vmem:[#allocation4 + $0xa8] sm:$0xff]
        %v4426 = vld [vmem:[#allocation4 + $0xb0] sm:$0xff]
        %v4427 = vld [vmem:[#allocation4 + $0xb8] sm:$0xff]
        %v4428 = vld [vmem:[#allocation4 + $0xc0] sm:$0xff]
        %v4429 = vld [vmem:[#allocation4 + $0xc8] sm:$0xff]
        %v4430 = vld [vmem:[#allocation4 + $0xd0] sm:$0xff]
        %v4431 = vld [vmem:[#allocation4 + $0xd8] sm:$0xff]
        %v4432 = vld [vmem:[#allocation4 + $0xe0] sm:$0xff]
        %v4433 = vld [vmem:[#allocation4 + $0xe8] sm:$0xff]
        %v4434 = vld [vmem:[#allocation4 + $0xf0] sm:$0xff]
        %v4435 = vld [vmem:[#allocation4 + $0xf8] sm:$0xff]
        %v4436 = vld [vmem:[%s3] sm:$0x1]
        %v4438 = vperm.slane %v4436, 0
        %v4440 = vmul.f32 %v4404, %v4438
        %v4441 = vmul.f32 %v4405, %v4438
        %v4442 = vmul.f32 %v4406, %v4438
        %v4443 = vmul.f32 %v4407, %v4438
        %v4444 = vmul.f32 %v4408, %v4438
        %v4445 = vmul.f32 %v4409, %v4438
        %v4446 = vmul.f32 %v4410, %v4438
        %v4447 = vmul.f32 %v4411, %v4438
        %v4448 = vmul.f32 %v4412, %v4438
        %v4449 = vmul.f32 %v4413, %v4438
        %v4450 = vmul.f32 %v4414, %v4438
        %v4451 = vmul.f32 %v4415, %v4438
        %v4452 = vmul.f32 %v4416, %v4438
        %v4453 = vmul.f32 %v4417, %v4438
        %v4454 = vmul.f32 %v4418, %v4438
        %v4455 = vmul.f32 %v4419, %v4438
        %v4456 = vmul.f32 %v4420, %v4438
        %v4457 = vmul.f32 %v4421, %v4438
        %v4458 = vmul.f32 %v4422, %v4438
        %v4459 = vmul.f32 %v4423, %v4438
        %v4460 = vmul.f32 %v4424, %v4438
        %v4461 = vmul.f32 %v4425, %v4438
        %v4462 = vmul.f32 %v4426, %v4438
        %v4463 = vmul.f32 %v4427, %v4438
        %v4464 = vmul.f32 %v4428, %v4438
        %v4465 = vmul.f32 %v4429, %v4438
        %v4466 = vmul.f32 %v4430, %v4438
        %v4467 = vmul.f32 %v4431, %v4438
        %v4468 = vmul.f32 %v4432, %v4438
        %v4469 = vmul.f32 %v4433, %v4438
        %v4470 = vmul.f32 %v4434, %v4438
        %v4471 = vmul.f32 %v4435, %v4438
        %v4472 = vld [vmem:[%s4] sm:$0x1]
        %v4474 = vperm.slane %v4472, 0
        %v4476 = vadd.f32 %v4440, %v4474
        %v4477 = vadd.f32 %v4441, %v4474
        %v4478 = vadd.f32 %v4442, %v4474
        %v4479 = vadd.f32 %v4443, %v4474
        %v4480 = vadd.f32 %v4444, %v4474
        %v4481 = vadd.f32 %v4445, %v4474
        %v4482 = vadd.f32 %v4446, %v4474
        %v4483 = vadd.f32 %v4447, %v4474
        %v4484 = vadd.f32 %v4448, %v4474
        %v4485 = vadd.f32 %v4449, %v4474
        %v4486 = vadd.f32 %v4450, %v4474
        %v4487 = vadd.f32 %v4451, %v4474
        %v4488 = vadd.f32 %v4452, %v4474
        %v4489 = vadd.f32 %v4453, %v4474
        %v4490 = vadd.f32 %v4454, %v4474
        %v4491 = vadd.f32 %v4455, %v4474
        %v4492 = vadd.f32 %v4456, %v4474
        %v4493 = vadd.f32 %v4457, %v4474
        %v4494 = vadd.f32 %v4458, %v4474
        %v4495 = vadd.f32 %v4459, %v4474
        %v4496 = vadd.f32 %v4460, %v4474
        %v4497 = vadd.f32 %v4461, %v4474
        %v4498 = vadd.f32 %v4462, %v4474
        %v4499 = vadd.f32 %v4463, %v4474
        %v4500 = vadd.f32 %v4464, %v4474
        %v4501 = vadd.f32 %v4465, %v4474
        %v4502 = vadd.f32 %v4466, %v4474
        %v4503 = vadd.f32 %v4467, %v4474
        %v4504 = vadd.f32 %v4468, %v4474
        %v4505 = vadd.f32 %v4469, %v4474
        %v4506 = vadd.f32 %v4470, %v4474
        %v4507 = vadd.f32 %v4471, %v4474
        %v4508 = vmax.f32 %v4476, 0.0
        %v4509 = vmax.f32 %v4477, 0.0
        %v4510 = vmax.f32 %v4478, 0.0
        %v4511 = vmax.f32 %v4479, 0.0
        %v4512 = vmax.f32 %v4480, 0.0
        %v4513 = vmax.f32 %v4481, 0.0
        %v4514 = vmax.f32 %v4482, 0.0
        %v4515 = vmax.f32 %v4483, 0.0
        %v4516 = vmax.f32 %v4484, 0.0
        %v4517 = vmax.f32 %v4485, 0.0
        %v4518 = vmax.f32 %v4486, 0.0
        %v4519 = vmax.f32 %v4487, 0.0
        %v4520 = vmax.f32 %v4488, 0.0
        %v4521 = vmax.f32 %v4489, 0.0
        %v4522 = vmax.f32 %v4490, 0.0
        %v4523 = vmax.f32 %v4491, 0.0
        %v4524 = vmax.f32 %v4492, 0.0
        %v4525 = vmax.f32 %v4493, 0.0
        %v4526 = vmax.f32 %v4494, 0.0
        %v4527 = vmax.f32 %v4495, 0.0
        %v4528 = vmax.f32 %v4496, 0.0
        %v4529 = vmax.f32 %v4497, 0.0
        %v4530 = vmax.f32 %v4498, 0.0
        %v4531 = vmax.f32 %v4499, 0.0
        %v4532 = vmax.f32 %v4500, 0.0
        %v4533 = vmax.f32 %v4501, 0.0
        %v4534 = vmax.f32 %v4502, 0.0
        %v4535 = vmax.f32 %v4503, 0.0
        %v4536 = vmax.f32 %v4504, 0.0
        %v4537 = vmax.f32 %v4505, 0.0
        %v4538 = vmax.f32 %v4506, 0.0
        %v4539 = vmax.f32 %v4507, 0.0
        %v4540 = vpack.c.bf16 %v4508, %v4508
        %v4541 = vpack.c.bf16 %v4509, %v4509
        %v4542 = vpack.c.bf16 %v4510, %v4510
        %v4543 = vpack.c.bf16 %v4511, %v4511
        %v4544 = vpack.c.bf16 %v4512, %v4512
        %v4545 = vpack.c.bf16 %v4513, %v4513
        %v4546 = vpack.c.bf16 %v4514, %v4514
        %v4547 = vpack.c.bf16 %v4515, %v4515
        %v4548 = vpack.c.bf16 %v4516, %v4516
        %v4549 = vpack.c.bf16 %v4517, %v4517
        %v4550 = vpack.c.bf16 %v4518, %v4518
        %v4551 = vpack.c.bf16 %v4519, %v4519
        %v4552 = vpack.c.bf16 %v4520, %v4520
        %v4553 = vpack.c.bf16 %v4521, %v4521
        %v4554 = vpack.c.bf16 %v4522, %v4522
        %v4555 = vpack.c.bf16 %v4523, %v4523
        %v4556 = vpack.c.bf16 %v4524, %v4524
        %v4557 = vpack.c.bf16 %v4525, %v4525
        %v4558 = vpack.c.bf16 %v4526, %v4526
        %v4559 = vpack.c.bf16 %v4527, %v4527
        %v4560 = vpack.c.bf16 %v4528, %v4528
        %v4561 = vpack.c.bf16 %v4529, %v4529
        %v4562 = vpack.c.bf16 %v4530, %v4530
        %v4563 = vpack.c.bf16 %v4531, %v4531
        %v4564 = vpack.c.bf16 %v4532, %v4532
        %v4565 = vpack.c.bf16 %v4533, %v4533
        %v4566 = vpack.c.bf16 %v4534, %v4534
        %v4567 = vpack.c.bf16 %v4535, %v4535
        %v4568 = vpack.c.bf16 %v4536, %v4536
        %v4569 = vpack.c.bf16 %v4537, %v4537
        %v4570 = vpack.c.bf16 %v4538, %v4538
        %v4571 = vpack.c.bf16 %v4539, %v4539
        %v4573 = vshrl.u32 %v4540, 16
        %v4575 = vrot.slane %v4573, 7
        %v4576 = vshll.u32 %v4540, 16
        %v4578 = vor.u32 %v4575, %v4576
        %v4579 = vrot.slane %v4575, 4
        %v4581 = vshrl.u32 %v4541, 16
        %v4583 = vrot.slane %v4581, 7
        %v4584 = vshll.u32 %v4541, 16
        %v4586 = vor.u32 %v4583, %v4584
        %v4587 = vsel %vm460, %v4579, %v4586
        %v4588 = vrot.slane %v4583, 4
        %v4590 = vshrl.u32 %v4542, 16
        %v4592 = vrot.slane %v4590, 7
        %v4593 = vshll.u32 %v4542, 16
        %v4595 = vor.u32 %v4592, %v4593
        %v4596 = vrot.slane %v4592, 4
        %v4598 = vshrl.u32 %v4543, 16
        %v4600 = vrot.slane %v4598, 7
        %v4601 = vshll.u32 %v4543, 16
        %v4603 = vor.u32 %v4600, %v4601
        %v4604 = vsel %vm460, %v4596, %v4603
        %v4605 = vrot.slane %v4600, 4
        %v4607 = vshrl.u32 %v4544, 16
        %v4609 = vrot.slane %v4607, 7
        %v4610 = vshll.u32 %v4544, 16
        %v4612 = vor.u32 %v4609, %v4610
        %v4613 = vrot.slane %v4609, 4
        %v4615 = vshrl.u32 %v4545, 16
        %v4617 = vrot.slane %v4615, 7
        %v4618 = vshll.u32 %v4545, 16
        %v4620 = vor.u32 %v4617, %v4618
        %v4621 = vsel %vm460, %v4613, %v4620
        %v4622 = vrot.slane %v4617, 4
        %v4624 = vshrl.u32 %v4546, 16
        %v4626 = vrot.slane %v4624, 7
        %v4627 = vshll.u32 %v4546, 16
        %v4629 = vor.u32 %v4626, %v4627
        %v4630 = vrot.slane %v4626, 4
        %v4632 = vshrl.u32 %v4547, 16
        %v4634 = vrot.slane %v4632, 7
        %v4635 = vshll.u32 %v4547, 16
        %v4637 = vor.u32 %v4634, %v4635
        %v4638 = vsel %vm460, %v4630, %v4637
        %v4639 = vrot.slane %v4634, 4
        %v4641 = vshrl.u32 %v4548, 16
        %v4643 = vrot.slane %v4641, 7
        %v4644 = vshll.u32 %v4548, 16
        %v4646 = vor.u32 %v4643, %v4644
        %v4647 = vrot.slane %v4643, 4
        %v4649 = vshrl.u32 %v4549, 16
        %v4651 = vrot.slane %v4649, 7
        %v4652 = vshll.u32 %v4549, 16
        %v4654 = vor.u32 %v4651, %v4652
        %v4655 = vsel %vm460, %v4647, %v4654
        %v4656 = vrot.slane %v4651, 4
        %v4658 = vshrl.u32 %v4550, 16
        %v4660 = vrot.slane %v4658, 7
        %v4661 = vshll.u32 %v4550, 16
        %v4663 = vor.u32 %v4660, %v4661
        %v4664 = vrot.slane %v4660, 4
        %v4666 = vshrl.u32 %v4551, 16
        %v4668 = vrot.slane %v4666, 7
        %v4669 = vshll.u32 %v4551, 16
        %v4671 = vor.u32 %v4668, %v4669
        %v4672 = vsel %vm460, %v4664, %v4671
        %v4673 = vrot.slane %v4668, 4
        %v4675 = vshrl.u32 %v4552, 16
        %v4677 = vrot.slane %v4675, 7
        %v4678 = vshll.u32 %v4552, 16
        %v4680 = vor.u32 %v4677, %v4678
        %v4681 = vrot.slane %v4677, 4
        %v4683 = vshrl.u32 %v4553, 16
        %v4685 = vrot.slane %v4683, 7
        %v4686 = vshll.u32 %v4553, 16
        %v4688 = vor.u32 %v4685, %v4686
        %v4689 = vsel %vm460, %v4681, %v4688
        %v4690 = vrot.slane %v4685, 4
        %v4692 = vshrl.u32 %v4554, 16
        %v4694 = vrot.slane %v4692, 7
        %v4695 = vshll.u32 %v4554, 16
        %v4697 = vor.u32 %v4694, %v4695
        %v4698 = vrot.slane %v4694, 4
        %v4700 = vshrl.u32 %v4555, 16
        %v4702 = vrot.slane %v4700, 7
        %v4703 = vshll.u32 %v4555, 16
        %v4705 = vor.u32 %v4702, %v4703
        %v4706 = vsel %vm460, %v4698, %v4705
        %v4707 = vrot.slane %v4702, 4
        %v4709 = vshrl.u32 %v4556, 16
        %v4711 = vrot.slane %v4709, 7
        %v4712 = vshll.u32 %v4556, 16
        %v4714 = vor.u32 %v4711, %v4712
        %v4715 = vrot.slane %v4711, 4
        %v4717 = vshrl.u32 %v4557, 16
        %v4719 = vrot.slane %v4717, 7
        %v4720 = vshll.u32 %v4557, 16
        %v4722 = vor.u32 %v4719, %v4720
        %v4723 = vsel %vm460, %v4715, %v4722
        %v4724 = vrot.slane %v4719, 4
        %v4726 = vshrl.u32 %v4558, 16
        %v4728 = vrot.slane %v4726, 7
        %v4729 = vshll.u32 %v4558, 16
        %v4731 = vor.u32 %v4728, %v4729
        %v4732 = vrot.slane %v4728, 4
        %v4734 = vshrl.u32 %v4559, 16
        %v4736 = vrot.slane %v4734, 7
        %v4737 = vshll.u32 %v4559, 16
        %v4739 = vor.u32 %v4736, %v4737
        %v4740 = vsel %vm460, %v4732, %v4739
        %v4741 = vrot.slane %v4736, 4
        %v4743 = vshrl.u32 %v4560, 16
        %v4745 = vrot.slane %v4743, 7
        %v4746 = vshll.u32 %v4560, 16
        %v4748 = vor.u32 %v4745, %v4746
        %v4749 = vrot.slane %v4745, 4
        %v4751 = vshrl.u32 %v4561, 16
        %v4753 = vrot.slane %v4751, 7
        %v4754 = vshll.u32 %v4561, 16
        %v4756 = vor.u32 %v4753, %v4754
        %v4757 = vsel %vm460, %v4749, %v4756
        %v4758 = vrot.slane %v4753, 4
        %v4760 = vshrl.u32 %v4562, 16
        %v4762 = vrot.slane %v4760, 7
        %v4763 = vshll.u32 %v4562, 16
        %v4765 = vor.u32 %v4762, %v4763
        %v4766 = vrot.slane %v4762, 4
        %v4768 = vshrl.u32 %v4563, 16
        %v4770 = vrot.slane %v4768, 7
        %v4771 = vshll.u32 %v4563, 16
        %v4773 = vor.u32 %v4770, %v4771
        %v4774 = vsel %vm460, %v4766, %v4773
        %v4775 = vrot.slane %v4770, 4
        %v4777 = vshrl.u32 %v4564, 16
        %v4779 = vrot.slane %v4777, 7
        %v4780 = vshll.u32 %v4564, 16
        %v4782 = vor.u32 %v4779, %v4780
        %v4783 = vrot.slane %v4779, 4
        %v4785 = vshrl.u32 %v4565, 16
        %v4787 = vrot.slane %v4785, 7
        %v4788 = vshll.u32 %v4565, 16
        %v4790 = vor.u32 %v4787, %v4788
        %v4791 = vsel %vm460, %v4783, %v4790
        %v4792 = vrot.slane %v4787, 4
        %v4794 = vshrl.u32 %v4566, 16
        %v4796 = vrot.slane %v4794, 7
        %v4797 = vshll.u32 %v4566, 16
        %v4799 = vor.u32 %v4796, %v4797
        %v4800 = vrot.slane %v4796, 4
        %v4802 = vshrl.u32 %v4567, 16
        %v4804 = vrot.slane %v4802, 7
        %v4805 = vshll.u32 %v4567, 16
        %v4807 = vor.u32 %v4804, %v4805
        %v4808 = vsel %vm460, %v4800, %v4807
        %v4809 = vrot.slane %v4804, 4
        %v4811 = vshrl.u32 %v4568, 16
        %v4813 = vrot.slane %v4811, 7
        %v4814 = vshll.u32 %v4568, 16
        %v4816 = vor.u32 %v4813, %v4814
        %v4817 = vrot.slane %v4813, 4
        %v4819 = vshrl.u32 %v4569, 16
        %v4821 = vrot.slane %v4819, 7
        %v4822 = vshll.u32 %v4569, 16
        %v4824 = vor.u32 %v4821, %v4822
        %v4825 = vsel %vm460, %v4817, %v4824
        %v4826 = vrot.slane %v4821, 4
        %v4828 = vshrl.u32 %v4570, 16
        %v4830 = vrot.slane %v4828, 7
        %v4831 = vshll.u32 %v4570, 16
        %v4833 = vor.u32 %v4830, %v4831
        %v4834 = vrot.slane %v4830, 4
        %v4836 = vshrl.u32 %v4571, 16
        %v4838 = vrot.slane %v4836, 7
        %v4839 = vshll.u32 %v4571, 16
        %v4841 = vor.u32 %v4838, %v4839
        %v4842 = vsel %vm460, %v4834, %v4841
        %v4843 = vrot.slane %v4838, 4
        %v4892 = vld [vmem:[%s781] sm:$0xf]
        %v4893 = vsel %vm784, %v4578, %v4892
        %4894 = vst [vmem:[%s781] sm:$0xf] %v4893
        %4895 = vst [vmem:[%s781 + $0x4] sm:$0xf] %v4587
        %v4896 = vld [vmem:[%s781 + $0x8] sm:$0x1]
        %v4897 = vsel %vm790, %v4588, %v4896
        %4898 = vst [vmem:[%s781 + $0x8] sm:$0x1] %v4897
        %v4899 = vld [vmem:[%s781 + $0xc] sm:$0xf]
        %v4900 = vsel %vm784, %v4595, %v4899
        %4901 = vst [vmem:[%s781 + $0xc] sm:$0xf] %v4900
        %4902 = vst [vmem:[%s781 + $0x10] sm:$0xf] %v4604
        %v4903 = vld [vmem:[%s781 + $0x14] sm:$0x1]
        %v4904 = vsel %vm790, %v4605, %v4903
        %4905 = vst [vmem:[%s781 + $0x14] sm:$0x1] %v4904
        %v4906 = vld [vmem:[%s781 + $0x18] sm:$0xf]
        %v4907 = vsel %vm784, %v4612, %v4906
        %4908 = vst [vmem:[%s781 + $0x18] sm:$0xf] %v4907
        %4909 = vst [vmem:[%s781 + $0x1c] sm:$0xf] %v4621
        %v4910 = vld [vmem:[%s781 + $0x20] sm:$0x1]
        %v4911 = vsel %vm790, %v4622, %v4910
        %4912 = vst [vmem:[%s781 + $0x20] sm:$0x1] %v4911
        %v4913 = vld [vmem:[%s781 + $0x24] sm:$0xf]
        %v4914 = vsel %vm784, %v4629, %v4913
        %4915 = vst [vmem:[%s781 + $0x24] sm:$0xf] %v4914
        %4916 = vst [vmem:[%s781 + $0x28] sm:$0xf] %v4638
        %v4917 = vld [vmem:[%s781 + $0x2c] sm:$0x1]
        %v4918 = vsel %vm790, %v4639, %v4917
        %4919 = vst [vmem:[%s781 + $0x2c] sm:$0x1] %v4918
        %v4920 = vld [vmem:[%s781 + $0x30] sm:$0xf]
        %v4921 = vsel %vm784, %v4646, %v4920
        %4922 = vst [vmem:[%s781 + $0x30] sm:$0xf] %v4921
        %4923 = vst [vmem:[%s781 + $0x34] sm:$0xf] %v4655
        %v4924 = vld [vmem:[%s781 + $0x38] sm:$0x1]
        %v4925 = vsel %vm790, %v4656, %v4924
        %4926 = vst [vmem:[%s781 + $0x38] sm:$0x1] %v4925
        %v4927 = vld [vmem:[%s781 + $0x3c] sm:$0xf]
        %v4928 = vsel %vm784, %v4663, %v4927
        %4929 = vst [vmem:[%s781 + $0x3c] sm:$0xf] %v4928
        %4930 = vst [vmem:[%s781 + $0x40] sm:$0xf] %v4672
        %v4931 = vld [vmem:[%s781 + $0x44] sm:$0x1]
        %v4932 = vsel %vm790, %v4673, %v4931
        %4933 = vst [vmem:[%s781 + $0x44] sm:$0x1] %v4932
        %v4934 = vld [vmem:[%s781 + $0x48] sm:$0xf]
        %v4935 = vsel %vm784, %v4680, %v4934
        %4936 = vst [vmem:[%s781 + $0x48] sm:$0xf] %v4935
        %4937 = vst [vmem:[%s781 + $0x4c] sm:$0xf] %v4689
        %v4938 = vld [vmem:[%s781 + $0x50] sm:$0x1]
        %v4939 = vsel %vm790, %v4690, %v4938
        %4940 = vst [vmem:[%s781 + $0x50] sm:$0x1] %v4939
        %v4941 = vld [vmem:[%s781 + $0x54] sm:$0xf]
        %v4942 = vsel %vm784, %v4697, %v4941
        %4943 = vst [vmem:[%s781 + $0x54] sm:$0xf] %v4942
        %4944 = vst [vmem:[%s781 + $0x58] sm:$0xf] %v4706
        %v4945 = vld [vmem:[%s781 + $0x5c] sm:$0x1]
        %v4946 = vsel %vm790, %v4707, %v4945
        %4947 = vst [vmem:[%s781 + $0x5c] sm:$0x1] %v4946
        %v4948 = vld [vmem:[%s781 + $0x60] sm:$0xf]
        %v4949 = vsel %vm784, %v4714, %v4948
        %4950 = vst [vmem:[%s781 + $0x60] sm:$0xf] %v4949
        %4951 = vst [vmem:[%s781 + $0x64] sm:$0xf] %v4723
        %v4952 = vld [vmem:[%s781 + $0x68] sm:$0x1]
        %v4953 = vsel %vm790, %v4724, %v4952
        %4954 = vst [vmem:[%s781 + $0x68] sm:$0x1] %v4953
        %v4955 = vld [vmem:[%s781 + $0x6c] sm:$0xf]
        %v4956 = vsel %vm784, %v4731, %v4955
        %4957 = vst [vmem:[%s781 + $0x6c] sm:$0xf] %v4956
        %4958 = vst [vmem:[%s781 + $0x70] sm:$0xf] %v4740
        %v4959 = vld [vmem:[%s781 + $0x74] sm:$0x1]
        %v4960 = vsel %vm790, %v4741, %v4959
        %4961 = vst [vmem:[%s781 + $0x74] sm:$0x1] %v4960
        %v4962 = vld [vmem:[%s781 + $0x78] sm:$0xf]
        %v4963 = vsel %vm784, %v4748, %v4962
        %4964 = vst [vmem:[%s781 + $0x78] sm:$0xf] %v4963
        %4965 = vst [vmem:[%s781 + $0x7c] sm:$0xf] %v4757
        %v4966 = vld [vmem:[%s781 + $0x80] sm:$0x1]
        %v4967 = vsel %vm790, %v4758, %v4966
        %4968 = vst [vmem:[%s781 + $0x80] sm:$0x1] %v4967
        %v4969 = vld [vmem:[%s781 + $0x84] sm:$0xf]
        %v4970 = vsel %vm784, %v4765, %v4969
        %4971 = vst [vmem:[%s781 + $0x84] sm:$0xf] %v4970
        %4972 = vst [vmem:[%s781 + $0x88] sm:$0xf] %v4774
        %v4973 = vld [vmem:[%s781 + $0x8c] sm:$0x1]
        %v4974 = vsel %vm790, %v4775, %v4973
        %4975 = vst [vmem:[%s781 + $0x8c] sm:$0x1] %v4974
        %v4976 = vld [vmem:[%s781 + $0x90] sm:$0xf]
        %v4977 = vsel %vm784, %v4782, %v4976
        %4978 = vst [vmem:[%s781 + $0x90] sm:$0xf] %v4977
        %4979 = vst [vmem:[%s781 + $0x94] sm:$0xf] %v4791
        %v4980 = vld [vmem:[%s781 + $0x98] sm:$0x1]
        %v4981 = vsel %vm790, %v4792, %v4980
        %4982 = vst [vmem:[%s781 + $0x98] sm:$0x1] %v4981
        %v4983 = vld [vmem:[%s781 + $0x9c] sm:$0xf]
        %v4984 = vsel %vm784, %v4799, %v4983
        %4985 = vst [vmem:[%s781 + $0x9c] sm:$0xf] %v4984
        %4986 = vst [vmem:[%s781 + $0xa0] sm:$0xf] %v4808
        %v4987 = vld [vmem:[%s781 + $0xa4] sm:$0x1]
        %v4988 = vsel %vm790, %v4809, %v4987
        %4989 = vst [vmem:[%s781 + $0xa4] sm:$0x1] %v4988
        %v4990 = vld [vmem:[%s781 + $0xa8] sm:$0xf]
        %v4991 = vsel %vm784, %v4816, %v4990
        %4992 = vst [vmem:[%s781 + $0xa8] sm:$0xf] %v4991
        %4993 = vst [vmem:[%s781 + $0xac] sm:$0xf] %v4825
        %v4994 = vld [vmem:[%s781 + $0xb0] sm:$0x1]
        %v4995 = vsel %vm790, %v4826, %v4994
        %4996 = vst [vmem:[%s781 + $0xb0] sm:$0x1] %v4995
        %v4997 = vld [vmem:[%s781 + $0xb4] sm:$0xf]
        %v4998 = vsel %vm784, %v4833, %v4997
        %4999 = vst [vmem:[%s781 + $0xb4] sm:$0xf] %v4998
        %5000 = vst [vmem:[%s781 + $0xb8] sm:$0xf] %v4842
        %v5001 = vld [vmem:[%s781 + $0xbc] sm:$0x1]
        %v5002 = vsel %vm790, %v4843, %v5001
        %5003 = vst [vmem:[%s781 + $0xbc] sm:$0x1] %v5002
        %v5004 = vld [vmem:[#allocation2] sm:$0xf]
        %v5005 = vld [vmem:[#allocation2 + $0x4] sm:$0xf]
        %v5006 = vld [vmem:[#allocation2 + $0xc] sm:$0xf]
        %v5007 = vld [vmem:[#allocation2 + $0x10] sm:$0xf]
        %v5008 = vld [vmem:[#allocation2 + $0x18] sm:$0xf]
        %v5009 = vld [vmem:[#allocation2 + $0x1c] sm:$0xf]
        %v5010 = vld [vmem:[#allocation2 + $0x24] sm:$0xf]
        %v5011 = vld [vmem:[#allocation2 + $0x28] sm:$0xf]
        %v5012 = vld [vmem:[#allocation2 + $0x30] sm:$0xf]
        %v5013 = vld [vmem:[#allocation2 + $0x34] sm:$0xf]
        %v5014 = vld [vmem:[#allocation2 + $0x3c] sm:$0xf]
        %v5015 = vld [vmem:[#allocation2 + $0x40] sm:$0xf]
        %v5016 = vld [vmem:[#allocation2 + $0x48] sm:$0xf]
        %v5017 = vld [vmem:[#allocation2 + $0x4c] sm:$0xf]
        %v5018 = vld [vmem:[#allocation2 + $0x54] sm:$0xf]
        %v5019 = vld [vmem:[#allocation2 + $0x58] sm:$0xf]
        %v5020 = vld [vmem:[#allocation2 + $0x60] sm:$0xf]
        %v5021 = vld [vmem:[#allocation2 + $0x64] sm:$0xf]
        %v5022 = vld [vmem:[#allocation2 + $0x6c] sm:$0xf]
        %v5023 = vld [vmem:[#allocation2 + $0x70] sm:$0xf]
        %v5024 = vld [vmem:[#allocation2 + $0x78] sm:$0xf]
        %v5025 = vld [vmem:[#allocation2 + $0x7c] sm:$0xf]
        %v5026 = vld [vmem:[#allocation2 + $0x84] sm:$0xf]
        %v5027 = vld [vmem:[#allocation2 + $0x88] sm:$0xf]
        %v5028 = vld [vmem:[#allocation2 + $0x90] sm:$0xf]
        %v5029 = vld [vmem:[#allocation2 + $0x94] sm:$0xf]
        %v5030 = vld [vmem:[#allocation2 + $0x9c] sm:$0xf]
        %v5031 = vld [vmem:[#allocation2 + $0xa0] sm:$0xf]
        %v5032 = vld [vmem:[#allocation2 + $0xa8] sm:$0xf]
        %v5033 = vld [vmem:[#allocation2 + $0xac] sm:$0xf]
        %v5034 = vld [vmem:[#allocation2 + $0xb4] sm:$0xf]
        %v5035 = vld [vmem:[#allocation2 + $0xb8] sm:$0xf]
        %v5036 = vld [vmem:[#allocation2 + $0xc0] sm:$0xf]
        %v5037 = vld [vmem:[#allocation2 + $0xc4] sm:$0xf]
        %v5038 = vld [vmem:[#allocation2 + $0xcc] sm:$0xf]
        %v5039 = vld [vmem:[#allocation2 + $0xd0] sm:$0xf]
        %5040 = vst [vmem:[#allocation3] sm:$0xf] %v5004
        %5041 = vst [vmem:[#allocation3 + $0xc] sm:$0xf] %v5005
        %5042 = vst [vmem:[#allocation3 + $0x18] sm:$0xf] %v5006
        %5043 = vst [vmem:[#allocation3 + $0x24] sm:$0xf] %v5007
        %5044 = vst [vmem:[#allocation3 + $0x30] sm:$0xf] %v5008
        %5045 = vst [vmem:[#allocation3 + $0x3c] sm:$0xf] %v5009
        %5046 = vst [vmem:[#allocation3 + $0x48] sm:$0xf] %v5010
        %5047 = vst [vmem:[#allocation3 + $0x54] sm:$0xf] %v5011
        %5048 = vst [vmem:[#allocation3 + $0x60] sm:$0xf] %v5012
        %5049 = vst [vmem:[#allocation3 + $0x6c] sm:$0xf] %v5013
        %5050 = vst [vmem:[#allocation3 + $0x78] sm:$0xf] %v5014
        %5051 = vst [vmem:[#allocation3 + $0x84] sm:$0xf] %v5015
        %5052 = vst [vmem:[#allocation3 + $0x90] sm:$0xf] %v5016
        %5053 = vst [vmem:[#allocation3 + $0x9c] sm:$0xf] %v5017
        %5054 = vst [vmem:[#allocation3 + $0xa8] sm:$0xf] %v5018
        %5055 = vst [vmem:[#allocation3 + $0xb4] sm:$0xf] %v5019
        %5056 = vst [vmem:[#allocation3 + $0xc0] sm:$0xf] %v5020
        %5057 = vst [vmem:[#allocation3 + $0xcc] sm:$0xf] %v5021
        %5058 = vst [vmem:[#allocation3 + $0xd8] sm:$0xf] %v5022
        %5059 = vst [vmem:[#allocation3 + $0xe4] sm:$0xf] %v5023
        %5060 = vst [vmem:[#allocation3 + $0xf0] sm:$0xf] %v5024
        %5061 = vst [vmem:[#allocation3 + $0xfc] sm:$0xf] %v5025
        %5062 = vst [vmem:[#allocation3 + $0x108] sm:$0xf] %v5026
        %5063 = vst [vmem:[#allocation3 + $0x114] sm:$0xf] %v5027
        %5064 = vst [vmem:[#allocation3 + $0x120] sm:$0xf] %v5028
        %5065 = vst [vmem:[#allocation3 + $0x12c] sm:$0xf] %v5029
        %5066 = vst [vmem:[#allocation3 + $0x138] sm:$0xf] %v5030
        %5067 = vst [vmem:[#allocation3 + $0x144] sm:$0xf] %v5031
        %5068 = vst [vmem:[#allocation3 + $0x150] sm:$0xf] %v5032
        %5069 = vst [vmem:[#allocation3 + $0x15c] sm:$0xf] %v5033
        %5070 = vst [vmem:[#allocation3 + $0x168] sm:$0xf] %v5034
        %5071 = vst [vmem:[#allocation3 + $0x174] sm:$0xf] %v5035
        %5072 = vst [vmem:[#allocation3 + $0x180] sm:$0xf] %v5036
        %5073 = vst [vmem:[#allocation3 + $0x18c] sm:$0xf] %v5037
        %5074 = vst [vmem:[#allocation3 + $0x198] sm:$0xf] %v5038
        %5075 = vst [vmem:[#allocation3 + $0x1a4] sm:$0xf] %v5039
        %v5076 = vld [vmem:[#allocation2] sm:$0xf]
        %v5077 = vld [vmem:[#allocation2 + $0x4] sm:$0xf]
        %v5078 = vld [vmem:[#allocation2 + $0x8] sm:$0x1]
        %v5079 = vld [vmem:[#allocation2 + $0xc] sm:$0xf]
        %v5080 = vld [vmem:[#allocation2 + $0x10] sm:$0xf]
        %v5081 = vld [vmem:[#allocation2 + $0x14] sm:$0x1]
        %v5082 = vld [vmem:[#allocation2 + $0x18] sm:$0xf]
        %v5083 = vld [vmem:[#allocation2 + $0x1c] sm:$0xf]
        %v5084 = vld [vmem:[#allocation2 + $0x20] sm:$0x1]
        %v5085 = vld [vmem:[#allocation2 + $0x24] sm:$0xf]
        %v5086 = vld [vmem:[#allocation2 + $0x28] sm:$0xf]
        %v5087 = vld [vmem:[#allocation2 + $0x2c] sm:$0x1]
        %v5088 = vld [vmem:[#allocation2 + $0x30] sm:$0xf]
        %v5089 = vld [vmem:[#allocation2 + $0x34] sm:$0xf]
        %v5090 = vld [vmem:[#allocation2 + $0x38] sm:$0x1]
        %v5091 = vld [vmem:[#allocation2 + $0x3c] sm:$0xf]
        %v5092 = vld [vmem:[#allocation2 + $0x40] sm:$0xf]
        %v5093 = vld [vmem:[#allocation2 + $0x44] sm:$0x1]
        %v5094 = vld [vmem:[#allocation2 + $0x48] sm:$0xf]
        %v5095 = vld [vmem:[#allocation2 + $0x4c] sm:$0xf]
        %v5096 = vld [vmem:[#allocation2 + $0x50] sm:$0x1]
        %v5097 = vld [vmem:[#allocation2 + $0x54] sm:$0xf]
        %v5098 = vld [vmem:[#allocation2 + $0x58] sm:$0xf]
        %v5099 = vld [vmem:[#allocation2 + $0x5c] sm:$0x1]
        %v5100 = vld [vmem:[#allocation2 + $0x60] sm:$0xf]
        %v5101 = vld [vmem:[#allocation2 + $0x64] sm:$0xf]
        %v5102 = vld [vmem:[#allocation2 + $0x68] sm:$0x1]
        %v5103 = vld [vmem:[#allocation2 + $0x6c] sm:$0xf]
        %v5104 = vld [vmem:[#allocation2 + $0x70] sm:$0xf]
        %v5105 = vld [vmem:[#allocation2 + $0x74] sm:$0x1]
        %v5106 = vld [vmem:[#allocation2 + $0x78] sm:$0xf]
        %v5107 = vld [vmem:[#allocation2 + $0x7c] sm:$0xf]
        %v5108 = vld [vmem:[#allocation2 + $0x80] sm:$0x1]
        %v5109 = vld [vmem:[#allocation2 + $0x84] sm:$0xf]
        %v5110 = vld [vmem:[#allocation2 + $0x88] sm:$0xf]
        %v5111 = vld [vmem:[#allocation2 + $0x8c] sm:$0x1]
        %v5112 = vld [vmem:[#allocation2 + $0x90] sm:$0xf]
        %v5113 = vld [vmem:[#allocation2 + $0x94] sm:$0xf]
        %v5114 = vld [vmem:[#allocation2 + $0x98] sm:$0x1]
        %v5115 = vld [vmem:[#allocation2 + $0x9c] sm:$0xf]
        %v5116 = vld [vmem:[#allocation2 + $0xa0] sm:$0xf]
        %v5117 = vld [vmem:[#allocation2 + $0xa4] sm:$0x1]
        %v5118 = vld [vmem:[#allocation2 + $0xa8] sm:$0xf]
        %v5119 = vld [vmem:[#allocation2 + $0xac] sm:$0xf]
        %v5120 = vld [vmem:[#allocation2 + $0xb0] sm:$0x1]
        %v5121 = vld [vmem:[#allocation2 + $0xb4] sm:$0xf]
        %v5122 = vld [vmem:[#allocation2 + $0xb8] sm:$0xf]
        %v5123 = vld [vmem:[#allocation2 + $0xbc] sm:$0x1]
        %v5124 = vld [vmem:[#allocation2 + $0xc0] sm:$0xf]
        %v5125 = vld [vmem:[#allocation2 + $0xc4] sm:$0xf]
        %v5126 = vld [vmem:[#allocation2 + $0xc8] sm:$0x1]
        %v5127 = vld [vmem:[#allocation2 + $0xcc] sm:$0xf]
        %v5128 = vld [vmem:[#allocation2 + $0xd0] sm:$0xf]
        %v5129 = vld [vmem:[#allocation2 + $0xd4] sm:$0x1]
        %v5131 = vshrl.u32 %v5076, 16
        %v5133 = vrot.slane %v5131, 4
        %v5134 = vshll.u32 %v5076, 16
        %v5136 = vrot.slane %v5134, 5
        %v5137 = vor.u32 %v5133, %v5136
        %v5138 = vrot.slane %v5137, 4
        %v5140 = vshll.u32 %v5077, 16
        %v5142 = vrot.slane %v5140, 5
        %v5143 = vsel %vm1027, %v5138, %v5142
        %v5144 = vshrl.u32 %v5077, 16
        %v5146 = vrot.slane %v5144, 4
        %v5147 = vor.u32 %v5146, %v5142
        %v5148 = vrot.slane %v5147, 4
        %v5150 = vshll.u32 %v5078, 16
        %v5152 = vrot.slane %v5150, 5
        %v5153 = vsel %vm1027, %v5148, %v5152
        %v5155 = vshrl.u32 %v5079, 16
        %v5157 = vrot.slane %v5155, 4
        %v5158 = vshll.u32 %v5079, 16
        %v5160 = vrot.slane %v5158, 5
        %v5161 = vor.u32 %v5157, %v5160
        %v5162 = vrot.slane %v5161, 4
        %v5164 = vshll.u32 %v5080, 16
        %v5166 = vrot.slane %v5164, 5
        %v5167 = vsel %vm1027, %v5162, %v5166
        %v5168 = vshrl.u32 %v5080, 16
        %v5170 = vrot.slane %v5168, 4
        %v5171 = vor.u32 %v5170, %v5166
        %v5172 = vrot.slane %v5171, 4
        %v5174 = vshll.u32 %v5081, 16
        %v5176 = vrot.slane %v5174, 5
        %v5177 = vsel %vm1027, %v5172, %v5176
        %v5179 = vshrl.u32 %v5082, 16
        %v5181 = vrot.slane %v5179, 4
        %v5182 = vshll.u32 %v5082, 16
        %v5184 = vrot.slane %v5182, 5
        %v5185 = vor.u32 %v5181, %v5184
        %v5186 = vrot.slane %v5185, 4
        %v5188 = vshll.u32 %v5083, 16
        %v5190 = vrot.slane %v5188, 5
        %v5191 = vsel %vm1027, %v5186, %v5190
        %v5192 = vshrl.u32 %v5083, 16
        %v5194 = vrot.slane %v5192, 4
        %v5195 = vor.u32 %v5194, %v5190
        %v5196 = vrot.slane %v5195, 4
        %v5198 = vshll.u32 %v5084, 16
        %v5200 = vrot.slane %v5198, 5
        %v5201 = vsel %vm1027, %v5196, %v5200
        %v5203 = vshrl.u32 %v5085, 16
        %v5205 = vrot.slane %v5203, 4
        %v5206 = vshll.u32 %v5085, 16
        %v5208 = vrot.slane %v5206, 5
        %v5209 = vor.u32 %v5205, %v5208
        %v5210 = vrot.slane %v5209, 4
        %v5212 = vshll.u32 %v5086, 16
        %v5214 = vrot.slane %v5212, 5
        %v5215 = vsel %vm1027, %v5210, %v5214
        %v5216 = vshrl.u32 %v5086, 16
        %v5218 = vrot.slane %v5216, 4
        %v5219 = vor.u32 %v5218, %v5214
        %v5220 = vrot.slane %v5219, 4
        %v5222 = vshll.u32 %v5087, 16
        %v5224 = vrot.slane %v5222, 5
        %v5225 = vsel %vm1027, %v5220, %v5224
        %v5227 = vshrl.u32 %v5088, 16
        %v5229 = vrot.slane %v5227, 4
        %v5230 = vshll.u32 %v5088, 16
        %v5232 = vrot.slane %v5230, 5
        %v5233 = vor.u32 %v5229, %v5232
        %v5234 = vrot.slane %v5233, 4
        %v5236 = vshll.u32 %v5089, 16
        %v5238 = vrot.slane %v5236, 5
        %v5239 = vsel %vm1027, %v5234, %v5238
        %v5240 = vshrl.u32 %v5089, 16
        %v5242 = vrot.slane %v5240, 4
        %v5243 = vor.u32 %v5242, %v5238
        %v5244 = vrot.slane %v5243, 4
        %v5246 = vshll.u32 %v5090, 16
        %v5248 = vrot.slane %v5246, 5
        %v5249 = vsel %vm1027, %v5244, %v5248
        %v5251 = vshrl.u32 %v5091, 16
        %v5253 = vrot.slane %v5251, 4
        %v5254 = vshll.u32 %v5091, 16
        %v5256 = vrot.slane %v5254, 5
        %v5257 = vor.u32 %v5253, %v5256
        %v5258 = vrot.slane %v5257, 4
        %v5260 = vshll.u32 %v5092, 16
        %v5262 = vrot.slane %v5260, 5
        %v5263 = vsel %vm1027, %v5258, %v5262
        %v5264 = vshrl.u32 %v5092, 16
        %v5266 = vrot.slane %v5264, 4
        %v5267 = vor.u32 %v5266, %v5262
        %v5268 = vrot.slane %v5267, 4
        %v5270 = vshll.u32 %v5093, 16
        %v5272 = vrot.slane %v5270, 5
        %v5273 = vsel %vm1027, %v5268, %v5272
        %v5275 = vshrl.u32 %v5094, 16
        %v5277 = vrot.slane %v5275, 4
        %v5278 = vshll.u32 %v5094, 16
        %v5280 = vrot.slane %v5278, 5
        %v5281 = vor.u32 %v5277, %v5280
        %v5282 = vrot.slane %v5281, 4
        %v5284 = vshll.u32 %v5095, 16
        %v5286 = vrot.slane %v5284, 5
        %v5287 = vsel %vm1027, %v5282, %v5286
        %v5288 = vshrl.u32 %v5095, 16
        %v5290 = vrot.slane %v5288, 4
        %v5291 = vor.u32 %v5290, %v5286
        %v5292 = vrot.slane %v5291, 4
        %v5294 = vshll.u32 %v5096, 16
        %v5296 = vrot.slane %v5294, 5
        %v5297 = vsel %vm1027, %v5292, %v5296
        %v5299 = vshrl.u32 %v5097, 16
        %v5301 = vrot.slane %v5299, 4
        %v5302 = vshll.u32 %v5097, 16
        %v5304 = vrot.slane %v5302, 5
        %v5305 = vor.u32 %v5301, %v5304
        %v5306 = vrot.slane %v5305, 4
        %v5308 = vshll.u32 %v5098, 16
        %v5310 = vrot.slane %v5308, 5
        %v5311 = vsel %vm1027, %v5306, %v5310
        %v5312 = vshrl.u32 %v5098, 16
        %v5314 = vrot.slane %v5312, 4
        %v5315 = vor.u32 %v5314, %v5310
        %v5316 = vrot.slane %v5315, 4
        %v5318 = vshll.u32 %v5099, 16
        %v5320 = vrot.slane %v5318, 5
        %v5321 = vsel %vm1027, %v5316, %v5320
        %v5323 = vshrl.u32 %v5100, 16
        %v5325 = vrot.slane %v5323, 4
        %v5326 = vshll.u32 %v5100, 16
        %v5328 = vrot.slane %v5326, 5
        %v5329 = vor.u32 %v5325, %v5328
        %v5330 = vrot.slane %v5329, 4
        %v5332 = vshll.u32 %v5101, 16
        %v5334 = vrot.slane %v5332, 5
        %v5335 = vsel %vm1027, %v5330, %v5334
        %v5336 = vshrl.u32 %v5101, 16
        %v5338 = vrot.slane %v5336, 4
        %v5339 = vor.u32 %v5338, %v5334
        %v5340 = vrot.slane %v5339, 4
        %v5342 = vshll.u32 %v5102, 16
        %v5344 = vrot.slane %v5342, 5
        %v5345 = vsel %vm1027, %v5340, %v5344
        %v5347 = vshrl.u32 %v5103, 16
        %v5349 = vrot.slane %v5347, 4
        %v5350 = vshll.u32 %v5103, 16
        %v5352 = vrot.slane %v5350, 5
        %v5353 = vor.u32 %v5349, %v5352
        %v5354 = vrot.slane %v5353, 4
        %v5356 = vshll.u32 %v5104, 16
        %v5358 = vrot.slane %v5356, 5
        %v5359 = vsel %vm1027, %v5354, %v5358
        %v5360 = vshrl.u32 %v5104, 16
        %v5362 = vrot.slane %v5360, 4
        %v5363 = vor.u32 %v5362, %v5358
        %v5364 = vrot.slane %v5363, 4
        %v5366 = vshll.u32 %v5105, 16
        %v5368 = vrot.slane %v5366, 5
        %v5369 = vsel %vm1027, %v5364, %v5368
        %v5371 = vshrl.u32 %v5106, 16
        %v5373 = vrot.slane %v5371, 4
        %v5374 = vshll.u32 %v5106, 16
        %v5376 = vrot.slane %v5374, 5
        %v5377 = vor.u32 %v5373, %v5376
        %v5378 = vrot.slane %v5377, 4
        %v5380 = vshll.u32 %v5107, 16
        %v5382 = vrot.slane %v5380, 5
        %v5383 = vsel %vm1027, %v5378, %v5382
        %v5384 = vshrl.u32 %v5107, 16
        %v5386 = vrot.slane %v5384, 4
        %v5387 = vor.u32 %v5386, %v5382
        %v5388 = vrot.slane %v5387, 4
        %v5390 = vshll.u32 %v5108, 16
        %v5392 = vrot.slane %v5390, 5
        %v5393 = vsel %vm1027, %v5388, %v5392
        %v5395 = vshrl.u32 %v5109, 16
        %v5397 = vrot.slane %v5395, 4
        %v5398 = vshll.u32 %v5109, 16
        %v5400 = vrot.slane %v5398, 5
        %v5401 = vor.u32 %v5397, %v5400
        %v5402 = vrot.slane %v5401, 4
        %v5404 = vshll.u32 %v5110, 16
        %v5406 = vrot.slane %v5404, 5
        %v5407 = vsel %vm1027, %v5402, %v5406
        %v5408 = vshrl.u32 %v5110, 16
        %v5410 = vrot.slane %v5408, 4
        %v5411 = vor.u32 %v5410, %v5406
        %v5412 = vrot.slane %v5411, 4
        %v5414 = vshll.u32 %v5111, 16
        %v5416 = vrot.slane %v5414, 5
        %v5417 = vsel %vm1027, %v5412, %v5416
        %v5419 = vshrl.u32 %v5112, 16
        %v5421 = vrot.slane %v5419, 4
        %v5422 = vshll.u32 %v5112, 16
        %v5424 = vrot.slane %v5422, 5
        %v5425 = vor.u32 %v5421, %v5424
        %v5426 = vrot.slane %v5425, 4
        %v5428 = vshll.u32 %v5113, 16
        %v5430 = vrot.slane %v5428, 5
        %v5431 = vsel %vm1027, %v5426, %v5430
        %v5432 = vshrl.u32 %v5113, 16
        %v5434 = vrot.slane %v5432, 4
        %v5435 = vor.u32 %v5434, %v5430
        %v5436 = vrot.slane %v5435, 4
        %v5438 = vshll.u32 %v5114, 16
        %v5440 = vrot.slane %v5438, 5
        %v5441 = vsel %vm1027, %v5436, %v5440
        %v5443 = vshrl.u32 %v5115, 16
        %v5445 = vrot.slane %v5443, 4
        %v5446 = vshll.u32 %v5115, 16
        %v5448 = vrot.slane %v5446, 5
        %v5449 = vor.u32 %v5445, %v5448
        %v5450 = vrot.slane %v5449, 4
        %v5452 = vshll.u32 %v5116, 16
        %v5454 = vrot.slane %v5452, 5
        %v5455 = vsel %vm1027, %v5450, %v5454
        %v5456 = vshrl.u32 %v5116, 16
        %v5458 = vrot.slane %v5456, 4
        %v5459 = vor.u32 %v5458, %v5454
        %v5460 = vrot.slane %v5459, 4
        %v5462 = vshll.u32 %v5117, 16
        %v5464 = vrot.slane %v5462, 5
        %v5465 = vsel %vm1027, %v5460, %v5464
        %v5467 = vshrl.u32 %v5118, 16
        %v5469 = vrot.slane %v5467, 4
        %v5470 = vshll.u32 %v5118, 16
        %v5472 = vrot.slane %v5470, 5
        %v5473 = vor.u32 %v5469, %v5472
        %v5474 = vrot.slane %v5473, 4
        %v5476 = vshll.u32 %v5119, 16
        %v5478 = vrot.slane %v5476, 5
        %v5479 = vsel %vm1027, %v5474, %v5478
        %v5480 = vshrl.u32 %v5119, 16
        %v5482 = vrot.slane %v5480, 4
        %v5483 = vor.u32 %v5482, %v5478
        %v5484 = vrot.slane %v5483, 4
        %v5486 = vshll.u32 %v5120, 16
        %v5488 = vrot.slane %v5486, 5
        %v5489 = vsel %vm1027, %v5484, %v5488
        %v5491 = vshrl.u32 %v5121, 16
        %v5493 = vrot.slane %v5491, 4
        %v5494 = vshll.u32 %v5121, 16
        %v5496 = vrot.slane %v5494, 5
        %v5497 = vor.u32 %v5493, %v5496
        %v5498 = vrot.slane %v5497, 4
        %v5500 = vshll.u32 %v5122, 16
        %v5502 = vrot.slane %v5500, 5
        %v5503 = vsel %vm1027, %v5498, %v5502
        %v5504 = vshrl.u32 %v5122, 16
        %v5506 = vrot.slane %v5504, 4
        %v5507 = vor.u32 %v5506, %v5502
        %v5508 = vrot.slane %v5507, 4
        %v5510 = vshll.u32 %v5123, 16
        %v5512 = vrot.slane %v5510, 5
        %v5513 = vsel %vm1027, %v5508, %v5512
        %v5515 = vshrl.u32 %v5124, 16
        %v5517 = vrot.slane %v5515, 4
        %v5518 = vshll.u32 %v5124, 16
        %v5520 = vrot.slane %v5518, 5
        %v5521 = vor.u32 %v5517, %v5520
        %v5522 = vrot.slane %v5521, 4
        %v5524 = vshll.u32 %v5125, 16
        %v5526 = vrot.slane %v5524, 5
        %v5527 = vsel %vm1027, %v5522, %v5526
        %v5528 = vshrl.u32 %v5125, 16
        %v5530 = vrot.slane %v5528, 4
        %v5531 = vor.u32 %v5530, %v5526
        %v5532 = vrot.slane %v5531, 4
        %v5534 = vshll.u32 %v5126, 16
        %v5536 = vrot.slane %v5534, 5
        %v5537 = vsel %vm1027, %v5532, %v5536
        %v5539 = vshrl.u32 %v5127, 16
        %v5541 = vrot.slane %v5539, 4
        %v5542 = vshll.u32 %v5127, 16
        %v5544 = vrot.slane %v5542, 5
        %v5545 = vor.u32 %v5541, %v5544
        %v5546 = vrot.slane %v5545, 4
        %v5548 = vshll.u32 %v5128, 16
        %v5550 = vrot.slane %v5548, 5
        %v5551 = vsel %vm1027, %v5546, %v5550
        %v5552 = vshrl.u32 %v5128, 16
        %v5554 = vrot.slane %v5552, 4
        %v5555 = vor.u32 %v5554, %v5550
        %v5556 = vrot.slane %v5555, 4
        %v5558 = vshll.u32 %v5129, 16
        %v5560 = vrot.slane %v5558, 5
        %v5561 = vsel %vm1027, %v5556, %v5560
        %5598 = vst [vmem:[#allocation3 + $0x4] sm:$0xf] %v5143
        %5599 = vst [vmem:[#allocation3 + $0x10] sm:$0xf] %v5153
        %5600 = vst [vmem:[#allocation3 + $0x1c] sm:$0xf] %v5167
        %5601 = vst [vmem:[#allocation3 + $0x28] sm:$0xf] %v5177
        %5602 = vst [vmem:[#allocation3 + $0x34] sm:$0xf] %v5191
        %5603 = vst [vmem:[#allocation3 + $0x40] sm:$0xf] %v5201
        %5604 = vst [vmem:[#allocation3 + $0x4c] sm:$0xf] %v5215
        %5605 = vst [vmem:[#allocation3 + $0x58] sm:$0xf] %v5225
        %5606 = vst [vmem:[#allocation3 + $0x64] sm:$0xf] %v5239
        %5607 = vst [vmem:[#allocation3 + $0x70] sm:$0xf] %v5249
        %5608 = vst [vmem:[#allocation3 + $0x7c] sm:$0xf] %v5263
        %5609 = vst [vmem:[#allocation3 + $0x88] sm:$0xf] %v5273
        %5610 = vst [vmem:[#allocation3 + $0x94] sm:$0xf] %v5287
        %5611 = vst [vmem:[#allocation3 + $0xa0] sm:$0xf] %v5297
        %5612 = vst [vmem:[#allocation3 + $0xac] sm:$0xf] %v5311
        %5613 = vst [vmem:[#allocation3 + $0xb8] sm:$0xf] %v5321
        %5614 = vst [vmem:[#allocation3 + $0xc4] sm:$0xf] %v5335
        %5615 = vst [vmem:[#allocation3 + $0xd0] sm:$0xf] %v5345
        %5616 = vst [vmem:[#allocation3 + $0xdc] sm:$0xf] %v5359
        %5617 = vst [vmem:[#allocation3 + $0xe8] sm:$0xf] %v5369
        %5618 = vst [vmem:[#allocation3 + $0xf4] sm:$0xf] %v5383
        %5619 = vst [vmem:[#allocation3 + $0x100] sm:$0xf] %v5393
        %5620 = vst [vmem:[#allocation3 + $0x10c] sm:$0xf] %v5407
        %5621 = vst [vmem:[#allocation3 + $0x118] sm:$0xf] %v5417
        %5622 = vst [vmem:[#allocation3 + $0x124] sm:$0xf] %v5431
        %5623 = vst [vmem:[#allocation3 + $0x130] sm:$0xf] %v5441
        %5624 = vst [vmem:[#allocation3 + $0x13c] sm:$0xf] %v5455
        %5625 = vst [vmem:[#allocation3 + $0x148] sm:$0xf] %v5465
        %5626 = vst [vmem:[#allocation3 + $0x154] sm:$0xf] %v5479
        %5627 = vst [vmem:[#allocation3 + $0x160] sm:$0xf] %v5489
        %5628 = vst [vmem:[#allocation3 + $0x16c] sm:$0xf] %v5503
        %5629 = vst [vmem:[#allocation3 + $0x178] sm:$0xf] %v5513
        %5630 = vst [vmem:[#allocation3 + $0x184] sm:$0xf] %v5527
        %5631 = vst [vmem:[#allocation3 + $0x190] sm:$0xf] %v5537
        %5632 = vst [vmem:[#allocation3 + $0x19c] sm:$0xf] %v5551
        %5633 = vst [vmem:[#allocation3 + $0x1a8] sm:$0xf] %v5561
        %v5634 = vld [vmem:[#allocation2] sm:$0xe]
        %v5635 = vld [vmem:[#allocation2 + $0x4] sm:$0xf]
        %v5636 = vld [vmem:[#allocation2 + $0x8] sm:$0x1]
        %v5637 = vld [vmem:[#allocation2 + $0xc] sm:$0xe]
        %v5638 = vld [vmem:[#allocation2 + $0x10] sm:$0xf]
        %v5639 = vld [vmem:[#allocation2 + $0x14] sm:$0x1]
        %v5640 = vld [vmem:[#allocation2 + $0x18] sm:$0xe]
        %v5641 = vld [vmem:[#allocation2 + $0x1c] sm:$0xf]
        %v5642 = vld [vmem:[#allocation2 + $0x20] sm:$0x1]
        %v5643 = vld [vmem:[#allocation2 + $0x24] sm:$0xe]
        %v5644 = vld [vmem:[#allocation2 + $0x28] sm:$0xf]
        %v5645 = vld [vmem:[#allocation2 + $0x2c] sm:$0x1]
        %v5646 = vld [vmem:[#allocation2 + $0x30] sm:$0xe]
        %v5647 = vld [vmem:[#allocation2 + $0x34] sm:$0xf]
        %v5648 = vld [vmem:[#allocation2 + $0x38] sm:$0x1]
        %v5649 = vld [vmem:[#allocation2 + $0x3c] sm:$0xe]
        %v5650 = vld [vmem:[#allocation2 + $0x40] sm:$0xf]
        %v5651 = vld [vmem:[#allocation2 + $0x44] sm:$0x1]
        %v5652 = vld [vmem:[#allocation2 + $0x48] sm:$0xe]
        %v5653 = vld [vmem:[#allocation2 + $0x4c] sm:$0xf]
        %v5654 = vld [vmem:[#allocation2 + $0x50] sm:$0x1]
        %v5655 = vld [vmem:[#allocation2 + $0x54] sm:$0xe]
        %v5656 = vld [vmem:[#allocation2 + $0x58] sm:$0xf]
        %v5657 = vld [vmem:[#allocation2 + $0x5c] sm:$0x1]
        %v5658 = vld [vmem:[#allocation2 + $0x60] sm:$0xe]
        %v5659 = vld [vmem:[#allocation2 + $0x64] sm:$0xf]
        %v5660 = vld [vmem:[#allocation2 + $0x68] sm:$0x1]
        %v5661 = vld [vmem:[#allocation2 + $0x6c] sm:$0xe]
        %v5662 = vld [vmem:[#allocation2 + $0x70] sm:$0xf]
        %v5663 = vld [vmem:[#allocation2 + $0x74] sm:$0x1]
        %v5664 = vld [vmem:[#allocation2 + $0x78] sm:$0xe]
        %v5665 = vld [vmem:[#allocation2 + $0x7c] sm:$0xf]
        %v5666 = vld [vmem:[#allocation2 + $0x80] sm:$0x1]
        %v5667 = vld [vmem:[#allocation2 + $0x84] sm:$0xe]
        %v5668 = vld [vmem:[#allocation2 + $0x88] sm:$0xf]
        %v5669 = vld [vmem:[#allocation2 + $0x8c] sm:$0x1]
        %v5670 = vld [vmem:[#allocation2 + $0x90] sm:$0xe]
        %v5671 = vld [vmem:[#allocation2 + $0x94] sm:$0xf]
        %v5672 = vld [vmem:[#allocation2 + $0x98] sm:$0x1]
        %v5673 = vld [vmem:[#allocation2 + $0x9c] sm:$0xe]
        %v5674 = vld [vmem:[#allocation2 + $0xa0] sm:$0xf]
        %v5675 = vld [vmem:[#allocation2 + $0xa4] sm:$0x1]
        %v5676 = vld [vmem:[#allocation2 + $0xa8] sm:$0xe]
        %v5677 = vld [vmem:[#allocation2 + $0xac] sm:$0xf]
        %v5678 = vld [vmem:[#allocation2 + $0xb0] sm:$0x1]
        %v5679 = vld [vmem:[#allocation2 + $0xb4] sm:$0xe]
        %v5680 = vld [vmem:[#allocation2 + $0xb8] sm:$0xf]
        %v5681 = vld [vmem:[#allocation2 + $0xbc] sm:$0x1]
        %v5682 = vld [vmem:[#allocation2 + $0xc0] sm:$0xe]
        %v5683 = vld [vmem:[#allocation2 + $0xc4] sm:$0xf]
        %v5684 = vld [vmem:[#allocation2 + $0xc8] sm:$0x1]
        %v5685 = vld [vmem:[#allocation2 + $0xcc] sm:$0xe]
        %v5686 = vld [vmem:[#allocation2 + $0xd0] sm:$0xf]
        %v5687 = vld [vmem:[#allocation2 + $0xd4] sm:$0x1]
        %v5742 = vrot.slane %v5634, 5
        %v5743 = vrot.slane %v5742, 4
        %v5744 = vrot.slane %v5635, 5
        %v5745 = vsel %vm1642, %v5743, %v5744
        %v5746 = vrot.slane %v5744, 4
        %v5747 = vrot.slane %v5636, 5
        %v5748 = vsel %vm1642, %v5746, %v5747
        %v5749 = vrot.slane %v5637, 5
        %v5750 = vrot.slane %v5749, 4
        %v5751 = vrot.slane %v5638, 5
        %v5752 = vsel %vm1642, %v5750, %v5751
        %v5753 = vrot.slane %v5751, 4
        %v5754 = vrot.slane %v5639, 5
        %v5755 = vsel %vm1642, %v5753, %v5754
        %v5756 = vrot.slane %v5640, 5
        %v5757 = vrot.slane %v5756, 4
        %v5758 = vrot.slane %v5641, 5
        %v5759 = vsel %vm1642, %v5757, %v5758
        %v5760 = vrot.slane %v5758, 4
        %v5761 = vrot.slane %v5642, 5
        %v5762 = vsel %vm1642, %v5760, %v5761
        %v5763 = vrot.slane %v5643, 5
        %v5764 = vrot.slane %v5763, 4
        %v5765 = vrot.slane %v5644, 5
        %v5766 = vsel %vm1642, %v5764, %v5765
        %v5767 = vrot.slane %v5765, 4
        %v5768 = vrot.slane %v5645, 5
        %v5769 = vsel %vm1642, %v5767, %v5768
        %v5770 = vrot.slane %v5646, 5
        %v5771 = vrot.slane %v5770, 4
        %v5772 = vrot.slane %v5647, 5
        %v5773 = vsel %vm1642, %v5771, %v5772
        %v5774 = vrot.slane %v5772, 4
        %v5775 = vrot.slane %v5648, 5
        %v5776 = vsel %vm1642, %v5774, %v5775
        %v5777 = vrot.slane %v5649, 5
        %v5778 = vrot.slane %v5777, 4
        %v5779 = vrot.slane %v5650, 5
        %v5780 = vsel %vm1642, %v5778, %v5779
        %v5781 = vrot.slane %v5779, 4
        %v5782 = vrot.slane %v5651, 5
        %v5783 = vsel %vm1642, %v5781, %v5782
        %v5784 = vrot.slane %v5652, 5
        %v5785 = vrot.slane %v5784, 4
        %v5786 = vrot.slane %v5653, 5
        %v5787 = vsel %vm1642, %v5785, %v5786
        %v5788 = vrot.slane %v5786, 4
        %v5789 = vrot.slane %v5654, 5
        %v5790 = vsel %vm1642, %v5788, %v5789
        %v5791 = vrot.slane %v5655, 5
        %v5792 = vrot.slane %v5791, 4
        %v5793 = vrot.slane %v5656, 5
        %v5794 = vsel %vm1642, %v5792, %v5793
        %v5795 = vrot.slane %v5793, 4
        %v5796 = vrot.slane %v5657, 5
        %v5797 = vsel %vm1642, %v5795, %v5796
        %v5798 = vrot.slane %v5658, 5
        %v5799 = vrot.slane %v5798, 4
        %v5800 = vrot.slane %v5659, 5
        %v5801 = vsel %vm1642, %v5799, %v5800
        %v5802 = vrot.slane %v5800, 4
        %v5803 = vrot.slane %v5660, 5
        %v5804 = vsel %vm1642, %v5802, %v5803
        %v5805 = vrot.slane %v5661, 5
        %v5806 = vrot.slane %v5805, 4
        %v5807 = vrot.slane %v5662, 5
        %v5808 = vsel %vm1642, %v5806, %v5807
        %v5809 = vrot.slane %v5807, 4
        %v5810 = vrot.slane %v5663, 5
        %v5811 = vsel %vm1642, %v5809, %v5810
        %v5812 = vrot.slane %v5664, 5
        %v5813 = vrot.slane %v5812, 4
        %v5814 = vrot.slane %v5665, 5
        %v5815 = vsel %vm1642, %v5813, %v5814
        %v5816 = vrot.slane %v5814, 4
        %v5817 = vrot.slane %v5666, 5
        %v5818 = vsel %vm1642, %v5816, %v5817
        %v5819 = vrot.slane %v5667, 5
        %v5820 = vrot.slane %v5819, 4
        %v5821 = vrot.slane %v5668, 5
        %v5822 = vsel %vm1642, %v5820, %v5821
        %v5823 = vrot.slane %v5821, 4
        %v5824 = vrot.slane %v5669, 5
        %v5825 = vsel %vm1642, %v5823, %v5824
        %v5826 = vrot.slane %v5670, 5
        %v5827 = vrot.slane %v5826, 4
        %v5828 = vrot.slane %v5671, 5
        %v5829 = vsel %vm1642, %v5827, %v5828
        %v5830 = vrot.slane %v5828, 4
        %v5831 = vrot.slane %v5672, 5
        %v5832 = vsel %vm1642, %v5830, %v5831
        %v5833 = vrot.slane %v5673, 5
        %v5834 = vrot.slane %v5833, 4
        %v5835 = vrot.slane %v5674, 5
        %v5836 = vsel %vm1642, %v5834, %v5835
        %v5837 = vrot.slane %v5835, 4
        %v5838 = vrot.slane %v5675, 5
        %v5839 = vsel %vm1642, %v5837, %v5838
        %v5840 = vrot.slane %v5676, 5
        %v5841 = vrot.slane %v5840, 4
        %v5842 = vrot.slane %v5677, 5
        %v5843 = vsel %vm1642, %v5841, %v5842
        %v5844 = vrot.slane %v5842, 4
        %v5845 = vrot.slane %v5678, 5
        %v5846 = vsel %vm1642, %v5844, %v5845
        %v5847 = vrot.slane %v5679, 5
        %v5848 = vrot.slane %v5847, 4
        %v5849 = vrot.slane %v5680, 5
        %v5850 = vsel %vm1642, %v5848, %v5849
        %v5851 = vrot.slane %v5849, 4
        %v5852 = vrot.slane %v5681, 5
        %v5853 = vsel %vm1642, %v5851, %v5852
        %v5854 = vrot.slane %v5682, 5
        %v5855 = vrot.slane %v5854, 4
        %v5856 = vrot.slane %v5683, 5
        %v5857 = vsel %vm1642, %v5855, %v5856
        %v5858 = vrot.slane %v5856, 4
        %v5859 = vrot.slane %v5684, 5
        %v5860 = vsel %vm1642, %v5858, %v5859
        %v5861 = vrot.slane %v5685, 5
        %v5862 = vrot.slane %v5861, 4
        %v5863 = vrot.slane %v5686, 5
        %v5864 = vsel %vm1642, %v5862, %v5863
        %v5865 = vrot.slane %v5863, 4
        %v5866 = vrot.slane %v5687, 5
        %v5867 = vsel %vm1642, %v5865, %v5866
        %5904 = vst [vmem:[#allocation3 + $0x8] sm:$0xf] %v5745
        %5905 = vst [vmem:[#allocation3 + $0x14] sm:$0xf] %v5748
        %5906 = vst [vmem:[#allocation3 + $0x20] sm:$0xf] %v5752
        %5907 = vst [vmem:[#allocation3 + $0x2c] sm:$0xf] %v5755
        %5908 = vst [vmem:[#allocation3 + $0x38] sm:$0xf] %v5759
        %5909 = vst [vmem:[#allocation3 + $0x44] sm:$0xf] %v5762
        %5910 = vst [vmem:[#allocation3 + $0x50] sm:$0xf] %v5766
        %5911 = vst [vmem:[#allocation3 + $0x5c] sm:$0xf] %v5769
        %5912 = vst [vmem:[#allocation3 + $0x68] sm:$0xf] %v5773
        %5913 = vst [vmem:[#allocation3 + $0x74] sm:$0xf] %v5776
        %5914 = vst [vmem:[#allocation3 + $0x80] sm:$0xf] %v5780
        %5915 = vst [vmem:[#allocation3 + $0x8c] sm:$0xf] %v5783
        %5916 = vst [vmem:[#allocation3 + $0x98] sm:$0xf] %v5787
        %5917 = vst [vmem:[#allocation3 + $0xa4] sm:$0xf] %v5790
        %5918 = vst [vmem:[#allocation3 + $0xb0] sm:$0xf] %v5794
        %5919 = vst [vmem:[#allocation3 + $0xbc] sm:$0xf] %v5797
        %5920 = vst [vmem:[#allocation3 + $0xc8] sm:$0xf] %v5801
        %5921 = vst [vmem:[#allocation3 + $0xd4] sm:$0xf] %v5804
        %5922 = vst [vmem:[#allocation3 + $0xe0] sm:$0xf] %v5808
        %5923 = vst [vmem:[#allocation3 + $0xec] sm:$0xf] %v5811
        %5924 = vst [vmem:[#allocation3 + $0xf8] sm:$0xf] %v5815
        %5925 = vst [vmem:[#allocation3 + $0x104] sm:$0xf] %v5818
        %5926 = vst [vmem:[#allocation3 + $0x110] sm:$0xf] %v5822
        %5927 = vst [vmem:[#allocation3 + $0x11c] sm:$0xf] %v5825
        %5928 = vst [vmem:[#allocation3 + $0x128] sm:$0xf] %v5829
        %5929 = vst [vmem:[#allocation3 + $0x134] sm:$0xf] %v5832
        %5930 = vst [vmem:[#allocation3 + $0x140] sm:$0xf] %v5836
        %5931 = vst [vmem:[#allocation3 + $0x14c] sm:$0xf] %v5839
        %5932 = vst [vmem:[#allocation3 + $0x158] sm:$0xf] %v5843
        %5933 = vst [vmem:[#allocation3 + $0x164] sm:$0xf] %v5846
        %5934 = vst [vmem:[#allocation3 + $0x170] sm:$0xf] %v5850
        %5935 = vst [vmem:[#allocation3 + $0x17c] sm:$0xf] %v5853
        %5936 = vst [vmem:[#allocation3 + $0x188] sm:$0xf] %v5857
        %5937 = vst [vmem:[#allocation3 + $0x194] sm:$0xf] %v5860
        %5938 = vst [vmem:[#allocation3 + $0x1a0] sm:$0xf] %v5864
        %5939 = vst [vmem:[#allocation3 + $0x1ac] sm:$0xf] %v5867
        %v5940 = vld [vmem:[#allocation3] sm:$0xff]
        %v5941 = vld [vmem:[#allocation3 + $0x8] sm:$0xf]
        %v5942 = vld [vmem:[#allocation3 + $0xc] sm:$0xff]
        %v5943 = vld [vmem:[#allocation3 + $0x14] sm:$0xf]
        %v5944 = vld [vmem:[#allocation3 + $0x18] sm:$0xff]
        %v5945 = vld [vmem:[#allocation3 + $0x20] sm:$0xf]
        %v5946 = vld [vmem:[#allocation3 + $0x24] sm:$0xff]
        %v5947 = vld [vmem:[#allocation3 + $0x2c] sm:$0xf]
        %v5948 = vld [vmem:[#allocation3 + $0x30] sm:$0xff]
        %v5949 = vld [vmem:[#allocation3 + $0x38] sm:$0xf]
        %v5950 = vld [vmem:[#allocation3 + $0x3c] sm:$0xff]
        %v5951 = vld [vmem:[#allocation3 + $0x44] sm:$0xf]
        %v5952 = vld [vmem:[#allocation3 + $0x48] sm:$0xff]
        %v5953 = vld [vmem:[#allocation3 + $0x50] sm:$0xf]
        %v5954 = vld [vmem:[#allocation3 + $0x54] sm:$0xff]
        %v5955 = vld [vmem:[#allocation3 + $0x5c] sm:$0xf]
        %v5956 = vld [vmem:[#allocation3 + $0x60] sm:$0xff]
        %v5957 = vld [vmem:[#allocation3 + $0x68] sm:$0xf]
        %v5958 = vld [vmem:[#allocation3 + $0x6c] sm:$0xff]
        %v5959 = vld [vmem:[#allocation3 + $0x74] sm:$0xf]
        %v5960 = vld [vmem:[#allocation3 + $0x78] sm:$0xff]
        %v5961 = vld [vmem:[#allocation3 + $0x80] sm:$0xf]
        %v5962 = vld [vmem:[#allocation3 + $0x84] sm:$0xff]
        %v5963 = vld [vmem:[#allocation3 + $0x8c] sm:$0xf]
        %v5964 = vld [vmem:[#allocation3 + $0x90] sm:$0xff]
        %v5965 = vld [vmem:[#allocation3 + $0x98] sm:$0xf]
        %v5966 = vld [vmem:[#allocation3 + $0x9c] sm:$0xff]
        %v5967 = vld [vmem:[#allocation3 + $0xa4] sm:$0xf]
        %v5968 = vld [vmem:[#allocation3 + $0xa8] sm:$0xff]
        %v5969 = vld [vmem:[#allocation3 + $0xb0] sm:$0xf]
        %v5970 = vld [vmem:[#allocation3 + $0xb4] sm:$0xff]
        %v5971 = vld [vmem:[#allocation3 + $0xbc] sm:$0xf]
        %v5972 = vld [vmem:[#allocation3 + $0xc0] sm:$0xff]
        %v5973 = vld [vmem:[#allocation3 + $0xc8] sm:$0xf]
        %v5974 = vld [vmem:[#allocation3 + $0xcc] sm:$0xff]
        %v5975 = vld [vmem:[#allocation3 + $0xd4] sm:$0xf]
        %v5976 = vld [vmem:[#allocation3 + $0xd8] sm:$0xff]
        %v5977 = vld [vmem:[#allocation3 + $0xe0] sm:$0xf]
        %v5978 = vld [vmem:[#allocation3 + $0xe4] sm:$0xff]
        %v5979 = vld [vmem:[#allocation3 + $0xec] sm:$0xf]
        %v5980 = vld [vmem:[#allocation3 + $0xf0] sm:$0xff]
        %v5981 = vld [vmem:[#allocation3 + $0xf8] sm:$0xf]
        %v5982 = vld [vmem:[#allocation3 + $0xfc] sm:$0xff]
        %v5983 = vld [vmem:[#allocation3 + $0x104] sm:$0xf]
        %v5984 = vld [vmem:[#allocation3 + $0x108] sm:$0xff]
        %v5985 = vld [vmem:[#allocation3 + $0x110] sm:$0xf]
        %v5986 = vld [vmem:[#allocation3 + $0x114] sm:$0xff]
        %v5987 = vld [vmem:[#allocation3 + $0x11c] sm:$0xf]
        %v5988 = vld [vmem:[#allocation3 + $0x120] sm:$0xff]
        %v5989 = vld [vmem:[#allocation3 + $0x128] sm:$0xf]
        %v5990 = vld [vmem:[#allocation3 + $0x12c] sm:$0xff]
        %v5991 = vld [vmem:[#allocation3 + $0x134] sm:$0xf]
        %v5992 = vld [vmem:[#allocation3 + $0x138] sm:$0xff]
        %v5993 = vld [vmem:[#allocation3 + $0x140] sm:$0xf]
        %v5994 = vld [vmem:[#allocation3 + $0x144] sm:$0xff]
        %v5995 = vld [vmem:[#allocation3 + $0x14c] sm:$0xf]
        %v5996 = vld [vmem:[#allocation3 + $0x150] sm:$0xff]
        %v5997 = vld [vmem:[#allocation3 + $0x158] sm:$0xf]
        %v5998 = vld [vmem:[#allocation3 + $0x15c] sm:$0xff]
        %v5999 = vld [vmem:[#allocation3 + $0x164] sm:$0xf]
        %v6000 = vld [vmem:[#allocation3 + $0x168] sm:$0xff]
        %v6001 = vld [vmem:[#allocation3 + $0x170] sm:$0xf]
        %v6002 = vld [vmem:[#allocation3 + $0x174] sm:$0xff]
        %v6003 = vld [vmem:[#allocation3 + $0x17c] sm:$0xf]
        %v6004 = vld [vmem:[#allocation10] sm:$0xf]
        %v6005 = vld [vmem:[#allocation10 + $0x4] sm:$0xf]
        %v6006 = vld [vmem:[#allocation10 + $0x8] sm:$0xf]
        %v6007 = vld [vmem:[#allocation10 + $0xc] sm:$0xf]
        %v6008 = vld [vmem:[#allocation10 + $0x10] sm:$0xf]
        %v6009 = vld [vmem:[#allocation10 + $0x14] sm:$0xf]
        %v6010 = vld [vmem:[#allocation10 + $0x18] sm:$0xf]
        %v6011 = vld [vmem:[#allocation10 + $0x1c] sm:$0xf]
        %v6012 = vld [vmem:[#allocation10 + $0x20] sm:$0xf]
        %v6013 = vld [vmem:[#allocation10 + $0x24] sm:$0xf]
        %v6014 = vld [vmem:[#allocation10 + $0x28] sm:$0xf]
        %v6015 = vld [vmem:[#allocation10 + $0x2c] sm:$0xf]
        %v6016 = vld [vmem:[#allocation10 + $0x30] sm:$0xf]
        %v6017 = vld [vmem:[#allocation10 + $0x34] sm:$0xf]
        %v6018 = vld [vmem:[#allocation10 + $0x38] sm:$0xf]
        %v6019 = vld [vmem:[#allocation10 + $0x3c] sm:$0xf]
        %v6020 = vld [vmem:[#allocation10 + $0x40] sm:$0xf]
        %v6021 = vld [vmem:[#allocation10 + $0x44] sm:$0xf]
        %v6022 = vld [vmem:[#allocation10 + $0x48] sm:$0xf]
        %v6023 = vld [vmem:[#allocation10 + $0x4c] sm:$0xf]
        %v6024 = vld [vmem:[#allocation10 + $0x50] sm:$0xf]
        %v6025 = vld [vmem:[#allocation10 + $0x54] sm:$0xf]
        %v6026 = vld [vmem:[#allocation10 + $0x58] sm:$0xf]
        %v6027 = vld [vmem:[#allocation10 + $0x5c] sm:$0xf]
        %v6028 = vld [vmem:[#allocation10 + $0x60] sm:$0xf]
        %v6029 = vld [vmem:[#allocation10 + $0x64] sm:$0xf]
        %v6030 = vld [vmem:[#allocation10 + $0x68] sm:$0xf]
        %v6031 = vld [vmem:[#allocation10 + $0x6c] sm:$0xf]
        %v6032 = vld [vmem:[#allocation10 + $0x70] sm:$0xf]
        %v6033 = vld [vmem:[#allocation10 + $0x74] sm:$0xf]
        %v6034 = vld [vmem:[#allocation10 + $0x78] sm:$0xf]
        %v6035 = vld [vmem:[#allocation10 + $0x7c] sm:$0xf]
        %v6036 = vld [vmem:[#allocation10 + $0x80] sm:$0xf]
        %v6037 = vld [vmem:[#allocation10 + $0x84] sm:$0xf]
        %v6038 = vld [vmem:[#allocation10 + $0x88] sm:$0xf]
        %v6039 = vld [vmem:[#allocation10 + $0x8c] sm:$0xf]
        %v6040 = vld [vmem:[#allocation10 + $0x90] sm:$0xf]
        %v6041 = vld [vmem:[#allocation10 + $0x94] sm:$0xf]
        %v6042 = vld [vmem:[#allocation10 + $0x98] sm:$0xf]
        %v6043 = vld [vmem:[#allocation10 + $0x9c] sm:$0xf]
        %v6044 = vld [vmem:[#allocation10 + $0xa0] sm:$0xf]
        %v6045 = vld [vmem:[#allocation10 + $0xa4] sm:$0xf]
        %v6046 = vld [vmem:[#allocation10 + $0xa8] sm:$0xf]
        %v6047 = vld [vmem:[#allocation10 + $0xac] sm:$0xf]
        %v6048 = vld [vmem:[#allocation10 + $0xb0] sm:$0xf]
        %v6049 = vld [vmem:[#allocation10 + $0xb4] sm:$0xf]
        %v6050 = vld [vmem:[#allocation10 + $0xb8] sm:$0xf]
        %v6051 = vld [vmem:[#allocation10 + $0xbc] sm:$0xf]
        %v6116 = vunpack.c.l.b16 %v5940
        %v6117 = vunpack.c.h.b16 %v5940
        %v6118 = vunpack.c.l.b16 %v5941
        %v6119 = vunpack.c.l.b16 %v5942
        %v6120 = vunpack.c.h.b16 %v5942
        %v6121 = vunpack.c.l.b16 %v5943
        %v6122 = vunpack.c.l.b16 %v5944
        %v6123 = vunpack.c.h.b16 %v5944
        %v6124 = vunpack.c.l.b16 %v5945
        %v6125 = vunpack.c.l.b16 %v5946
        %v6126 = vunpack.c.h.b16 %v5946
        %v6127 = vunpack.c.l.b16 %v5947
        %v6128 = vunpack.c.l.b16 %v5948
        %v6129 = vunpack.c.h.b16 %v5948
        %v6130 = vunpack.c.l.b16 %v5949
        %v6131 = vunpack.c.l.b16 %v5950
        %v6132 = vunpack.c.h.b16 %v5950
        %v6133 = vunpack.c.l.b16 %v5951
        %v6134 = vunpack.c.l.b16 %v5952
        %v6135 = vunpack.c.h.b16 %v5952
        %v6136 = vunpack.c.l.b16 %v5953
        %v6137 = vunpack.c.l.b16 %v5954
        %v6138 = vunpack.c.h.b16 %v5954
        %v6139 = vunpack.c.l.b16 %v5955
        %v6140 = vunpack.c.l.b16 %v5956
        %v6141 = vunpack.c.h.b16 %v5956
        %v6142 = vunpack.c.l.b16 %v5957
        %v6143 = vunpack.c.l.b16 %v5958
        %v6144 = vunpack.c.h.b16 %v5958
        %v6145 = vunpack.c.l.b16 %v5959
        %v6146 = vunpack.c.l.b16 %v5960
        %v6147 = vunpack.c.h.b16 %v5960
        %v6148 = vunpack.c.l.b16 %v5961
        %v6149 = vunpack.c.l.b16 %v5962
        %v6150 = vunpack.c.h.b16 %v5962
        %v6151 = vunpack.c.l.b16 %v5963
        %v6152 = vunpack.c.l.b16 %v5964
        %v6153 = vunpack.c.h.b16 %v5964
        %v6154 = vunpack.c.l.b16 %v5965
        %v6155 = vunpack.c.l.b16 %v5966
        %v6156 = vunpack.c.h.b16 %v5966
        %v6157 = vunpack.c.l.b16 %v5967
        %v6158 = vunpack.c.l.b16 %v5968
        %v6159 = vunpack.c.h.b16 %v5968
        %v6160 = vunpack.c.l.b16 %v5969
        %v6161 = vunpack.c.l.b16 %v5970
        %v6162 = vunpack.c.h.b16 %v5970
        %v6163 = vunpack.c.l.b16 %v5971
        %v6164 = vunpack.c.l.b16 %v5972
        %v6165 = vunpack.c.h.b16 %v5972
        %v6166 = vunpack.c.l.b16 %v5973
        %v6167 = vunpack.c.l.b16 %v5974
        %v6168 = vunpack.c.h.b16 %v5974
        %v6169 = vunpack.c.l.b16 %v5975
        %v6170 = vunpack.c.l.b16 %v5976
        %v6171 = vunpack.c.h.b16 %v5976
        %v6172 = vunpack.c.l.b16 %v5977
        %v6173 = vunpack.c.l.b16 %v5978
        %v6174 = vunpack.c.h.b16 %v5978
        %v6175 = vunpack.c.l.b16 %v5979
        %v6176 = vunpack.c.l.b16 %v5980
        %v6177 = vunpack.c.h.b16 %v5980
        %v6178 = vunpack.c.l.b16 %v5981
        %v6179 = vunpack.c.l.b16 %v5982
        %v6180 = vunpack.c.h.b16 %v5982
        %v6181 = vunpack.c.l.b16 %v5983
        %v6182 = vunpack.c.l.b16 %v5984
        %v6183 = vunpack.c.h.b16 %v5984
        %v6184 = vunpack.c.l.b16 %v5985
        %v6185 = vunpack.c.l.b16 %v5986
        %v6186 = vunpack.c.h.b16 %v5986
        %v6187 = vunpack.c.l.b16 %v5987
        %v6188 = vunpack.c.l.b16 %v5988
        %v6189 = vunpack.c.h.b16 %v5988
        %v6190 = vunpack.c.l.b16 %v5989
        %v6191 = vunpack.c.l.b16 %v5990
        %v6192 = vunpack.c.h.b16 %v5990
        %v6193 = vunpack.c.l.b16 %v5991
        %v6194 = vunpack.c.l.b16 %v5992
        %v6195 = vunpack.c.h.b16 %v5992
        %v6196 = vunpack.c.l.b16 %v5993
        %v6197 = vunpack.c.l.b16 %v5994
        %v6198 = vunpack.c.h.b16 %v5994
        %v6199 = vunpack.c.l.b16 %v5995
        %v6200 = vunpack.c.l.b16 %v5996
        %v6201 = vunpack.c.h.b16 %v5996
        %v6202 = vunpack.c.l.b16 %v5997
        %v6203 = vunpack.c.l.b16 %v5998
        %v6204 = vunpack.c.h.b16 %v5998
        %v6205 = vunpack.c.l.b16 %v5999
        %v6206 = vunpack.c.l.b16 %v6000
        %v6207 = vunpack.c.h.b16 %v6000
        %v6208 = vunpack.c.l.b16 %v6001
        %v6209 = vunpack.c.l.b16 %v6002
        %v6210 = vunpack.c.h.b16 %v6002
        %v6211 = vunpack.c.l.b16 %v6003
        %v6212 = vpack.c.b16 %v6119, %v6116
        %v6213 = vpack.c.b16 %v6120, %v6117
        %v6214 = vpack.c.b16 %v6121, %v6118
        %v6215 = vpack.c.b16 %v6125, %v6122
        %v6216 = vpack.c.b16 %v6126, %v6123
        %v6217 = vpack.c.b16 %v6127, %v6124
        %v6218 = vpack.c.b16 %v6131, %v6128
        %v6219 = vpack.c.b16 %v6132, %v6129
        %v6220 = vpack.c.b16 %v6133, %v6130
        %v6221 = vpack.c.b16 %v6137, %v6134
        %v6222 = vpack.c.b16 %v6138, %v6135
        %v6223 = vpack.c.b16 %v6139, %v6136
        %v6224 = vpack.c.b16 %v6143, %v6140
        %v6225 = vpack.c.b16 %v6144, %v6141
        %v6226 = vpack.c.b16 %v6145, %v6142
        %v6227 = vpack.c.b16 %v6149, %v6146
        %v6228 = vpack.c.b16 %v6150, %v6147
        %v6229 = vpack.c.b16 %v6151, %v6148
        %v6230 = vpack.c.b16 %v6155, %v6152
        %v6231 = vpack.c.b16 %v6156, %v6153
        %v6232 = vpack.c.b16 %v6157, %v6154
        %v6233 = vpack.c.b16 %v6161, %v6158
        %v6234 = vpack.c.b16 %v6162, %v6159
        %v6235 = vpack.c.b16 %v6163, %v6160
        %v6236 = vpack.c.b16 %v6167, %v6164
        %v6237 = vpack.c.b16 %v6168, %v6165
        %v6238 = vpack.c.b16 %v6169, %v6166
        %v6239 = vpack.c.b16 %v6173, %v6170
        %v6240 = vpack.c.b16 %v6174, %v6171
        %v6241 = vpack.c.b16 %v6175, %v6172
        %v6242 = vpack.c.b16 %v6179, %v6176
        %v6243 = vpack.c.b16 %v6180, %v6177
        %v6244 = vpack.c.b16 %v6181, %v6178
        %v6245 = vpack.c.b16 %v6185, %v6182
        %v6246 = vpack.c.b16 %v6186, %v6183
        %v6247 = vpack.c.b16 %v6187, %v6184
        %v6248 = vpack.c.b16 %v6191, %v6188
        %v6249 = vpack.c.b16 %v6192, %v6189
        %v6250 = vpack.c.b16 %v6193, %v6190
        %v6251 = vpack.c.b16 %v6197, %v6194
        %v6252 = vpack.c.b16 %v6198, %v6195
        %v6253 = vpack.c.b16 %v6199, %v6196
        %v6254 = vpack.c.b16 %v6203, %v6200
        %v6255 = vpack.c.b16 %v6204, %v6201
        %v6256 = vpack.c.b16 %v6205, %v6202
        %v6257 = vpack.c.b16 %v6209, %v6206
        %v6258 = vpack.c.b16 %v6210, %v6207
        %v6259 = vpack.c.b16 %v6211, %v6208
        %v6356 = vunpack.c.l.b16 %v6004
        %v6357 = vunpack.c.l.b16 %v6005
        %v6358 = vunpack.c.l.b16 %v6006
        %v6359 = vunpack.c.l.b16 %v6007
        %v6360 = vunpack.c.l.b16 %v6008
        %v6361 = vunpack.c.l.b16 %v6009
        %v6362 = vunpack.c.l.b16 %v6010
        %v6363 = vunpack.c.l.b16 %v6011
        %v6364 = vunpack.c.l.b16 %v6012
        %v6365 = vunpack.c.l.b16 %v6013
        %v6366 = vunpack.c.l.b16 %v6014
        %v6367 = vunpack.c.l.b16 %v6015
        %v6368 = vunpack.c.l.b16 %v6016
        %v6369 = vunpack.c.l.b16 %v6017
        %v6370 = vunpack.c.l.b16 %v6018
        %v6371 = vunpack.c.l.b16 %v6019
        %v6372 = vunpack.c.l.b16 %v6020
        %v6373 = vunpack.c.l.b16 %v6021
        %v6374 = vunpack.c.l.b16 %v6022
        %v6375 = vunpack.c.l.b16 %v6023
        %v6376 = vunpack.c.l.b16 %v6024
        %v6377 = vunpack.c.l.b16 %v6025
        %v6378 = vunpack.c.l.b16 %v6026
        %v6379 = vunpack.c.l.b16 %v6027
        %v6380 = vunpack.c.l.b16 %v6028
        %v6381 = vunpack.c.l.b16 %v6029
        %v6382 = vunpack.c.l.b16 %v6030
        %v6383 = vunpack.c.l.b16 %v6031
        %v6384 = vunpack.c.l.b16 %v6032
        %v6385 = vunpack.c.l.b16 %v6033
        %v6386 = vunpack.c.l.b16 %v6034
        %v6387 = vunpack.c.l.b16 %v6035
        %v6388 = vunpack.c.l.b16 %v6036
        %v6389 = vunpack.c.l.b16 %v6037
        %v6390 = vunpack.c.l.b16 %v6038
        %v6391 = vunpack.c.l.b16 %v6039
        %v6392 = vunpack.c.l.b16 %v6040
        %v6393 = vunpack.c.l.b16 %v6041
        %v6394 = vunpack.c.l.b16 %v6042
        %v6395 = vunpack.c.l.b16 %v6043
        %v6396 = vunpack.c.l.b16 %v6044
        %v6397 = vunpack.c.l.b16 %v6045
        %v6398 = vunpack.c.l.b16 %v6046
        %v6399 = vunpack.c.l.b16 %v6047
        %v6400 = vunpack.c.l.b16 %v6048
        %v6401 = vunpack.c.l.b16 %v6049
        %v6402 = vunpack.c.l.b16 %v6050
        %v6403 = vunpack.c.l.b16 %v6051
        %v6404 = vpack.c.b16 %v6357, %v6356
        %v6405 = vpack.c.b16 %v6359, %v6358
        %v6406 = vpack.c.b16 %v6361, %v6360
        %v6407 = vpack.c.b16 %v6363, %v6362
        %v6408 = vpack.c.b16 %v6365, %v6364
        %v6409 = vpack.c.b16 %v6367, %v6366
        %v6410 = vpack.c.b16 %v6369, %v6368
        %v6411 = vpack.c.b16 %v6371, %v6370
        %v6412 = vpack.c.b16 %v6373, %v6372
        %v6413 = vpack.c.b16 %v6375, %v6374
        %v6414 = vpack.c.b16 %v6377, %v6376
        %v6415 = vpack.c.b16 %v6379, %v6378
        %v6416 = vpack.c.b16 %v6381, %v6380
        %v6417 = vpack.c.b16 %v6383, %v6382
        %v6418 = vpack.c.b16 %v6385, %v6384
        %v6419 = vpack.c.b16 %v6387, %v6386
        %v6420 = vpack.c.b16 %v6389, %v6388
        %v6421 = vpack.c.b16 %v6391, %v6390
        %v6422 = vpack.c.b16 %v6393, %v6392
        %v6423 = vpack.c.b16 %v6395, %v6394
        %v6424 = vpack.c.b16 %v6397, %v6396
        %v6425 = vpack.c.b16 %v6399, %v6398
        %v6426 = vpack.c.b16 %v6401, %v6400
        %v6427 = vpack.c.b16 %v6403, %v6402
        %6452 = vmatpush.bf16.msra.mxu0 %v6411
        %6453 = vmatpush.bf16.msra.mxu0 %v6410
        %6454 = vmatpush.bf16.msra.mxu0 %v6409
        %6455 = vmatpush.bf16.msra.mxu0 %v6408
        %6456 = vmatpush.bf16.msra.mxu0 %v6407
        %6457 = vmatpush.bf16.msra.mxu0 %v6406
        %6458 = vmatpush.bf16.msra.mxu0 %v6405
        %6459 = vmatpush.bf16.msra.mxu0 %v6404
        %6460 = vmatmul.bf16.gmra.mxu0 %v6212
        %v6461 = vpop.f32.mrf.mxu0
        %v6462 = vadd.f32 0.0, %v6461
        %v6463 = vpop.f32.mrf.mxu0
        %v6464 = vadd.f32 0.0, %v6463
        %6465 = vmatmul.bf16.gmra.mxu0 %v6215
        %v6466 = vpop.f32.mrf.mxu0
        %v6467 = vadd.f32 0.0, %v6466
        %v6468 = vpop.f32.mrf.mxu0
        %v6469 = vadd.f32 0.0, %v6468
        %6470 = vmatmul.bf16.gmra.mxu0 %v6218
        %v6471 = vpop.f32.mrf.mxu0
        %v6472 = vadd.f32 0.0, %v6471
        %v6473 = vpop.f32.mrf.mxu0
        %v6474 = vadd.f32 0.0, %v6473
        %6475 = vmatmul.bf16.gmra.mxu0 %v6221
        %v6476 = vpop.f32.mrf.mxu0
        %v6477 = vadd.f32 0.0, %v6476
        %v6478 = vpop.f32.mrf.mxu0
        %v6479 = vadd.f32 0.0, %v6478
        %6480 = vmatmul.bf16.gmra.mxu0 %v6224
        %v6481 = vpop.f32.mrf.mxu0
        %v6482 = vadd.f32 0.0, %v6481
        %v6483 = vpop.f32.mrf.mxu0
        %v6484 = vadd.f32 0.0, %v6483
        %6485 = vmatmul.bf16.gmra.mxu0 %v6227
        %v6486 = vpop.f32.mrf.mxu0
        %v6487 = vadd.f32 0.0, %v6486
        %v6488 = vpop.f32.mrf.mxu0
        %v6489 = vadd.f32 0.0, %v6488
        %6490 = vmatmul.bf16.gmra.mxu0 %v6230
        %v6491 = vpop.f32.mrf.mxu0
        %v6492 = vadd.f32 0.0, %v6491
        %v6493 = vpop.f32.mrf.mxu0
        %v6494 = vadd.f32 0.0, %v6493
        %6495 = vmatmul.bf16.gmra.mxu0 %v6233
        %v6496 = vpop.f32.mrf.mxu0
        %v6497 = vadd.f32 0.0, %v6496
        %v6498 = vpop.f32.mrf.mxu0
        %v6499 = vadd.f32 0.0, %v6498
        %6500 = vmatmul.bf16.gmra.mxu0 %v6236
        %v6501 = vpop.f32.mrf.mxu0
        %v6502 = vadd.f32 0.0, %v6501
        %v6503 = vpop.f32.mrf.mxu0
        %v6504 = vadd.f32 0.0, %v6503
        %6505 = vmatmul.bf16.gmra.mxu0 %v6239
        %v6506 = vpop.f32.mrf.mxu0
        %v6507 = vadd.f32 0.0, %v6506
        %v6508 = vpop.f32.mrf.mxu0
        %v6509 = vadd.f32 0.0, %v6508
        %6510 = vmatmul.bf16.gmra.mxu0 %v6242
        %v6511 = vpop.f32.mrf.mxu0
        %v6512 = vadd.f32 0.0, %v6511
        %v6513 = vpop.f32.mrf.mxu0
        %v6514 = vadd.f32 0.0, %v6513
        %6515 = vmatmul.bf16.gmra.mxu0 %v6245
        %v6516 = vpop.f32.mrf.mxu0
        %v6517 = vadd.f32 0.0, %v6516
        %v6518 = vpop.f32.mrf.mxu0
        %v6519 = vadd.f32 0.0, %v6518
        %6520 = vmatmul.bf16.gmra.mxu0 %v6248
        %v6521 = vpop.f32.mrf.mxu0
        %v6522 = vadd.f32 0.0, %v6521
        %v6523 = vpop.f32.mrf.mxu0
        %v6524 = vadd.f32 0.0, %v6523
        %6525 = vmatmul.bf16.gmra.mxu0 %v6251
        %v6526 = vpop.f32.mrf.mxu0
        %v6527 = vadd.f32 0.0, %v6526
        %v6528 = vpop.f32.mrf.mxu0
        %v6529 = vadd.f32 0.0, %v6528
        %6530 = vmatmul.bf16.gmra.mxu0 %v6254
        %v6531 = vpop.f32.mrf.mxu0
        %v6532 = vadd.f32 0.0, %v6531
        %v6533 = vpop.f32.mrf.mxu0
        %v6534 = vadd.f32 0.0, %v6533
        %6535 = vmatmul.bf16.gmra.mxu0 %v6257
        %v6536 = vpop.f32.mrf.mxu0
        %v6537 = vadd.f32 0.0, %v6536
        %v6538 = vpop.f32.mrf.mxu0
        %v6539 = vadd.f32 0.0, %v6538
        %6540 = vdwg.mxu0
        %6541 = vmatpush.bf16.msra.mxu0 %v6419
        %6542 = vmatpush.bf16.msra.mxu0 %v6418
        %6543 = vmatpush.bf16.msra.mxu0 %v6417
        %6544 = vmatpush.bf16.msra.mxu0 %v6416
        %6545 = vmatpush.bf16.msra.mxu0 %v6415
        %6546 = vmatpush.bf16.msra.mxu0 %v6414
        %6547 = vmatpush.bf16.msra.mxu0 %v6413
        %6548 = vmatpush.bf16.msra.mxu0 %v6412
        %6549 = vmatmul.bf16.gmra.mxu0 %v6213
        %v6550 = vpop.f32.mrf.mxu0
        %v6551 = vadd.f32 %v6462, %v6550
        %v6552 = vpop.f32.mrf.mxu0
        %v6553 = vadd.f32 %v6464, %v6552
        %6554 = vmatmul.bf16.gmra.mxu0 %v6216
        %v6555 = vpop.f32.mrf.mxu0
        %v6556 = vadd.f32 %v6467, %v6555
        %v6557 = vpop.f32.mrf.mxu0
        %v6558 = vadd.f32 %v6469, %v6557
        %6559 = vmatmul.bf16.gmra.mxu0 %v6219
        %v6560 = vpop.f32.mrf.mxu0
        %v6561 = vadd.f32 %v6472, %v6560
        %v6562 = vpop.f32.mrf.mxu0
        %v6563 = vadd.f32 %v6474, %v6562
        %6564 = vmatmul.bf16.gmra.mxu0 %v6222
        %v6565 = vpop.f32.mrf.mxu0
        %v6566 = vadd.f32 %v6477, %v6565
        %v6567 = vpop.f32.mrf.mxu0
        %v6568 = vadd.f32 %v6479, %v6567
        %6569 = vmatmul.bf16.gmra.mxu0 %v6225
        %v6570 = vpop.f32.mrf.mxu0
        %v6571 = vadd.f32 %v6482, %v6570
        %v6572 = vpop.f32.mrf.mxu0
        %v6573 = vadd.f32 %v6484, %v6572
        %6574 = vmatmul.bf16.gmra.mxu0 %v6228
        %v6575 = vpop.f32.mrf.mxu0
        %v6576 = vadd.f32 %v6487, %v6575
        %v6577 = vpop.f32.mrf.mxu0
        %v6578 = vadd.f32 %v6489, %v6577
        %6579 = vmatmul.bf16.gmra.mxu0 %v6231
        %v6580 = vpop.f32.mrf.mxu0
        %v6581 = vadd.f32 %v6492, %v6580
        %v6582 = vpop.f32.mrf.mxu0
        %v6583 = vadd.f32 %v6494, %v6582
        %6584 = vmatmul.bf16.gmra.mxu0 %v6234
        %v6585 = vpop.f32.mrf.mxu0
        %v6586 = vadd.f32 %v6497, %v6585
        %v6587 = vpop.f32.mrf.mxu0
        %v6588 = vadd.f32 %v6499, %v6587
        %6589 = vmatmul.bf16.gmra.mxu0 %v6237
        %v6590 = vpop.f32.mrf.mxu0
        %v6591 = vadd.f32 %v6502, %v6590
        %v6592 = vpop.f32.mrf.mxu0
        %v6593 = vadd.f32 %v6504, %v6592
        %6594 = vmatmul.bf16.gmra.mxu0 %v6240
        %v6595 = vpop.f32.mrf.mxu0
        %v6596 = vadd.f32 %v6507, %v6595
        %v6597 = vpop.f32.mrf.mxu0
        %v6598 = vadd.f32 %v6509, %v6597
        %6599 = vmatmul.bf16.gmra.mxu0 %v6243
        %v6600 = vpop.f32.mrf.mxu0
        %v6601 = vadd.f32 %v6512, %v6600
        %v6602 = vpop.f32.mrf.mxu0
        %v6603 = vadd.f32 %v6514, %v6602
        %6604 = vmatmul.bf16.gmra.mxu0 %v6246
        %v6605 = vpop.f32.mrf.mxu0
        %v6606 = vadd.f32 %v6517, %v6605
        %v6607 = vpop.f32.mrf.mxu0
        %v6608 = vadd.f32 %v6519, %v6607
        %6609 = vmatmul.bf16.gmra.mxu0 %v6249
        %v6610 = vpop.f32.mrf.mxu0
        %v6611 = vadd.f32 %v6522, %v6610
        %v6612 = vpop.f32.mrf.mxu0
        %v6613 = vadd.f32 %v6524, %v6612
        %6614 = vmatmul.bf16.gmra.mxu0 %v6252
        %v6615 = vpop.f32.mrf.mxu0
        %v6616 = vadd.f32 %v6527, %v6615
        %v6617 = vpop.f32.mrf.mxu0
        %v6618 = vadd.f32 %v6529, %v6617
        %6619 = vmatmul.bf16.gmra.mxu0 %v6255
        %v6620 = vpop.f32.mrf.mxu0
        %v6621 = vadd.f32 %v6532, %v6620
        %v6622 = vpop.f32.mrf.mxu0
        %v6623 = vadd.f32 %v6534, %v6622
        %6624 = vmatmul.bf16.gmra.mxu0 %v6258
        %v6625 = vpop.f32.mrf.mxu0
        %v6626 = vadd.f32 %v6537, %v6625
        %v6627 = vpop.f32.mrf.mxu0
        %v6628 = vadd.f32 %v6539, %v6627
        %6629 = vdwg.mxu0
        %6630 = vmatpush.bf16.msra.mxu0 %v6427
        %6631 = vmatpush.bf16.msra.mxu0 %v6426
        %6632 = vmatpush.bf16.msra.mxu0 %v6425
        %6633 = vmatpush.bf16.msra.mxu0 %v6424
        %6634 = vmatpush.bf16.msra.mxu0 %v6423
        %6635 = vmatpush.bf16.msra.mxu0 %v6422
        %6636 = vmatpush.bf16.msra.mxu0 %v6421
        %6637 = vmatpush.bf16.msra.mxu0 %v6420
        %6638 = vmatmul.bf16.gmra.mxu0 %v6214
        %v6639 = vpop.f32.mrf.mxu0
        %v6640 = vadd.f32 %v6551, %v6639
        %v6641 = vpop.f32.mrf.mxu0
        %v6642 = vadd.f32 %v6553, %v6641
        %6643 = vmatmul.bf16.gmra.mxu0 %v6217
        %v6644 = vpop.f32.mrf.mxu0
        %v6645 = vadd.f32 %v6556, %v6644
        %v6646 = vpop.f32.mrf.mxu0
        %v6647 = vadd.f32 %v6558, %v6646
        %6648 = vmatmul.bf16.gmra.mxu0 %v6220
        %v6649 = vpop.f32.mrf.mxu0
        %v6650 = vadd.f32 %v6561, %v6649
        %v6651 = vpop.f32.mrf.mxu0
        %v6652 = vadd.f32 %v6563, %v6651
        %6653 = vmatmul.bf16.gmra.mxu0 %v6223
        %v6654 = vpop.f32.mrf.mxu0
        %v6655 = vadd.f32 %v6566, %v6654
        %v6656 = vpop.f32.mrf.mxu0
        %v6657 = vadd.f32 %v6568, %v6656
        %6658 = vmatmul.bf16.gmra.mxu0 %v6226
        %v6659 = vpop.f32.mrf.mxu0
        %v6660 = vadd.f32 %v6571, %v6659
        %v6661 = vpop.f32.mrf.mxu0
        %v6662 = vadd.f32 %v6573, %v6661
        %6663 = vmatmul.bf16.gmra.mxu0 %v6229
        %v6664 = vpop.f32.mrf.mxu0
        %v6665 = vadd.f32 %v6576, %v6664
        %v6666 = vpop.f32.mrf.mxu0
        %v6667 = vadd.f32 %v6578, %v6666
        %6668 = vmatmul.bf16.gmra.mxu0 %v6232
        %v6669 = vpop.f32.mrf.mxu0
        %v6670 = vadd.f32 %v6581, %v6669
        %v6671 = vpop.f32.mrf.mxu0
        %v6672 = vadd.f32 %v6583, %v6671
        %6673 = vmatmul.bf16.gmra.mxu0 %v6235
        %v6674 = vpop.f32.mrf.mxu0
        %v6675 = vadd.f32 %v6586, %v6674
        %v6676 = vpop.f32.mrf.mxu0
        %v6677 = vadd.f32 %v6588, %v6676
        %6678 = vmatmul.bf16.gmra.mxu0 %v6238
        %v6679 = vpop.f32.mrf.mxu0
        %v6680 = vadd.f32 %v6591, %v6679
        %v6681 = vpop.f32.mrf.mxu0
        %v6682 = vadd.f32 %v6593, %v6681
        %6683 = vmatmul.bf16.gmra.mxu0 %v6241
        %v6684 = vpop.f32.mrf.mxu0
        %v6685 = vadd.f32 %v6596, %v6684
        %v6686 = vpop.f32.mrf.mxu0
        %v6687 = vadd.f32 %v6598, %v6686
        %6688 = vmatmul.bf16.gmra.mxu0 %v6244
        %v6689 = vpop.f32.mrf.mxu0
        %v6690 = vadd.f32 %v6601, %v6689
        %v6691 = vpop.f32.mrf.mxu0
        %v6692 = vadd.f32 %v6603, %v6691
        %6693 = vmatmul.bf16.gmra.mxu0 %v6247
        %v6694 = vpop.f32.mrf.mxu0
        %v6695 = vadd.f32 %v6606, %v6694
        %v6696 = vpop.f32.mrf.mxu0
        %v6697 = vadd.f32 %v6608, %v6696
        %6698 = vmatmul.bf16.gmra.mxu0 %v6250
        %v6699 = vpop.f32.mrf.mxu0
        %v6700 = vadd.f32 %v6611, %v6699
        %v6701 = vpop.f32.mrf.mxu0
        %v6702 = vadd.f32 %v6613, %v6701
        %6703 = vmatmul.bf16.gmra.mxu0 %v6253
        %v6704 = vpop.f32.mrf.mxu0
        %v6705 = vadd.f32 %v6616, %v6704
        %v6706 = vpop.f32.mrf.mxu0
        %v6707 = vadd.f32 %v6618, %v6706
        %6708 = vmatmul.bf16.gmra.mxu0 %v6256
        %v6709 = vpop.f32.mrf.mxu0
        %v6710 = vadd.f32 %v6621, %v6709
        %v6711 = vpop.f32.mrf.mxu0
        %v6712 = vadd.f32 %v6623, %v6711
        %6713 = vmatmul.bf16.gmra.mxu0 %v6259
        %v6714 = vpop.f32.mrf.mxu0
        %v6715 = vadd.f32 %v6626, %v6714
        %v6716 = vpop.f32.mrf.mxu0
        %v6717 = vadd.f32 %v6628, %v6716
        %6718 = vdwg.mxu0
        %6719 = vst [vmem:[#allocation4] sm:$0xff] %v6640
        %6720 = vst [vmem:[#allocation4 + $0x8] sm:$0xff] %v6642
        %6721 = vst [vmem:[#allocation4 + $0x10] sm:$0xff] %v6645
        %6722 = vst [vmem:[#allocation4 + $0x18] sm:$0xff] %v6647
        %6723 = vst [vmem:[#allocation4 + $0x20] sm:$0xff] %v6650
        %6724 = vst [vmem:[#allocation4 + $0x28] sm:$0xff] %v6652
        %6725 = vst [vmem:[#allocation4 + $0x30] sm:$0xff] %v6655
        %6726 = vst [vmem:[#allocation4 + $0x38] sm:$0xff] %v6657
        %6727 = vst [vmem:[#allocation4 + $0x40] sm:$0xff] %v6660
        %6728 = vst [vmem:[#allocation4 + $0x48] sm:$0xff] %v6662
        %6729 = vst [vmem:[#allocation4 + $0x50] sm:$0xff] %v6665
        %6730 = vst [vmem:[#allocation4 + $0x58] sm:$0xff] %v6667
        %6731 = vst [vmem:[#allocation4 + $0x60] sm:$0xff] %v6670
        %6732 = vst [vmem:[#allocation4 + $0x68] sm:$0xff] %v6672
        %6733 = vst [vmem:[#allocation4 + $0x70] sm:$0xff] %v6675
        %6734 = vst [vmem:[#allocation4 + $0x78] sm:$0xff] %v6677
        %6735 = vst [vmem:[#allocation4 + $0x80] sm:$0xff] %v6680
        %6736 = vst [vmem:[#allocation4 + $0x88] sm:$0xff] %v6682
        %6737 = vst [vmem:[#allocation4 + $0x90] sm:$0xff] %v6685
        %6738 = vst [vmem:[#allocation4 + $0x98] sm:$0xff] %v6687
        %6739 = vst [vmem:[#allocation4 + $0xa0] sm:$0xff] %v6690
        %6740 = vst [vmem:[#allocation4 + $0xa8] sm:$0xff] %v6692
        %6741 = vst [vmem:[#allocation4 + $0xb0] sm:$0xff] %v6695
        %6742 = vst [vmem:[#allocation4 + $0xb8] sm:$0xff] %v6697
        %6743 = vst [vmem:[#allocation4 + $0xc0] sm:$0xff] %v6700
        %6744 = vst [vmem:[#allocation4 + $0xc8] sm:$0xff] %v6702
        %6745 = vst [vmem:[#allocation4 + $0xd0] sm:$0xff] %v6705
        %6746 = vst [vmem:[#allocation4 + $0xd8] sm:$0xff] %v6707
        %6747 = vst [vmem:[#allocation4 + $0xe0] sm:$0xff] %v6710
        %6748 = vst [vmem:[#allocation4 + $0xe8] sm:$0xff] %v6712
        %6749 = vst [vmem:[#allocation4 + $0xf0] sm:$0xff] %v6715
        %6750 = vst [vmem:[#allocation4 + $0xf8] sm:$0xff] %v6717
        %v6751 = vld [vmem:[#allocation4] sm:$0xff]
        %v6752 = vld [vmem:[#allocation4 + $0x8] sm:$0xff]
        %v6753 = vld [vmem:[#allocation4 + $0x10] sm:$0xff]
        %v6754 = vld [vmem:[#allocation4 + $0x18] sm:$0xff]
        %v6755 = vld [vmem:[#allocation4 + $0x20] sm:$0xff]
        %v6756 = vld [vmem:[#allocation4 + $0x28] sm:$0xff]
        %v6757 = vld [vmem:[#allocation4 + $0x30] sm:$0xff]
        %v6758 = vld [vmem:[#allocation4 + $0x38] sm:$0xff]
        %v6759 = vld [vmem:[#allocation4 + $0x40] sm:$0xff]
        %v6760 = vld [vmem:[#allocation4 + $0x48] sm:$0xff]
        %v6761 = vld [vmem:[#allocation4 + $0x50] sm:$0xff]
        %v6762 = vld [vmem:[#allocation4 + $0x58] sm:$0xff]
        %v6763 = vld [vmem:[#allocation4 + $0x60] sm:$0xff]
        %v6764 = vld [vmem:[#allocation4 + $0x68] sm:$0xff]
        %v6765 = vld [vmem:[#allocation4 + $0x70] sm:$0xff]
        %v6766 = vld [vmem:[#allocation4 + $0x78] sm:$0xff]
        %v6767 = vld [vmem:[#allocation4 + $0x80] sm:$0xff]
        %v6768 = vld [vmem:[#allocation4 + $0x88] sm:$0xff]
        %v6769 = vld [vmem:[#allocation4 + $0x90] sm:$0xff]
        %v6770 = vld [vmem:[#allocation4 + $0x98] sm:$0xff]
        %v6771 = vld [vmem:[#allocation4 + $0xa0] sm:$0xff]
        %v6772 = vld [vmem:[#allocation4 + $0xa8] sm:$0xff]
        %v6773 = vld [vmem:[#allocation4 + $0xb0] sm:$0xff]
        %v6774 = vld [vmem:[#allocation4 + $0xb8] sm:$0xff]
        %v6775 = vld [vmem:[#allocation4 + $0xc0] sm:$0xff]
        %v6776 = vld [vmem:[#allocation4 + $0xc8] sm:$0xff]
        %v6777 = vld [vmem:[#allocation4 + $0xd0] sm:$0xff]
        %v6778 = vld [vmem:[#allocation4 + $0xd8] sm:$0xff]
        %v6779 = vld [vmem:[#allocation4 + $0xe0] sm:$0xff]
        %v6780 = vld [vmem:[#allocation4 + $0xe8] sm:$0xff]
        %v6781 = vld [vmem:[#allocation4 + $0xf0] sm:$0xff]
        %v6782 = vld [vmem:[#allocation4 + $0xf8] sm:$0xff]
        %v6783 = vld [vmem:[#allocation3 + $0x18] sm:$0xff]
        %v6784 = vld [vmem:[#allocation3 + $0x20] sm:$0xf]
        %v6785 = vld [vmem:[#allocation3 + $0x24] sm:$0xff]
        %v6786 = vld [vmem:[#allocation3 + $0x2c] sm:$0xf]
        %v6787 = vld [vmem:[#allocation3 + $0x30] sm:$0xff]
        %v6788 = vld [vmem:[#allocation3 + $0x38] sm:$0xf]
        %v6789 = vld [vmem:[#allocation3 + $0x3c] sm:$0xff]
        %v6790 = vld [vmem:[#allocation3 + $0x44] sm:$0xf]
        %v6791 = vld [vmem:[#allocation3 + $0x48] sm:$0xff]
        %v6792 = vld [vmem:[#allocation3 + $0x50] sm:$0xf]
        %v6793 = vld [vmem:[#allocation3 + $0x54] sm:$0xff]
        %v6794 = vld [vmem:[#allocation3 + $0x5c] sm:$0xf]
        %v6795 = vld [vmem:[#allocation3 + $0x60] sm:$0xff]
        %v6796 = vld [vmem:[#allocation3 + $0x68] sm:$0xf]
        %v6797 = vld [vmem:[#allocation3 + $0x6c] sm:$0xff]
        %v6798 = vld [vmem:[#allocation3 + $0x74] sm:$0xf]
        %v6799 = vld [vmem:[#allocation3 + $0x78] sm:$0xff]
        %v6800 = vld [vmem:[#allocation3 + $0x80] sm:$0xf]
        %v6801 = vld [vmem:[#allocation3 + $0x84] sm:$0xff]
        %v6802 = vld [vmem:[#allocation3 + $0x8c] sm:$0xf]
        %v6803 = vld [vmem:[#allocation3 + $0x90] sm:$0xff]
        %v6804 = vld [vmem:[#allocation3 + $0x98] sm:$0xf]
        %v6805 = vld [vmem:[#allocation3 + $0x9c] sm:$0xff]
        %v6806 = vld [vmem:[#allocation3 + $0xa4] sm:$0xf]
        %v6807 = vld [vmem:[#allocation3 + $0xa8] sm:$0xff]
        %v6808 = vld [vmem:[#allocation3 + $0xb0] sm:$0xf]
        %v6809 = vld [vmem:[#allocation3 + $0xb4] sm:$0xff]
        %v6810 = vld [vmem:[#allocation3 + $0xbc] sm:$0xf]
        %v6811 = vld [vmem:[#allocation3 + $0xc0] sm:$0xff]
        %v6812 = vld [vmem:[#allocation3 + $0xc8] sm:$0xf]
        %v6813 = vld [vmem:[#allocation3 + $0xcc] sm:$0xff]
        %v6814 = vld [vmem:[#allocation3 + $0xd4] sm:$0xf]
        %v6815 = vld [vmem:[#allocation3 + $0xd8] sm:$0xff]
        %v6816 = vld [vmem:[#allocation3 + $0xe0] sm:$0xf]
        %v6817 = vld [vmem:[#allocation3 + $0xe4] sm:$0xff]
        %v6818 = vld [vmem:[#allocation3 + $0xec] sm:$0xf]
        %v6819 = vld [vmem:[#allocation3 + $0xf0] sm:$0xff]
        %v6820 = vld [vmem:[#allocation3 + $0xf8] sm:$0xf]
        %v6821 = vld [vmem:[#allocation3 + $0xfc] sm:$0xff]
        %v6822 = vld [vmem:[#allocation3 + $0x104] sm:$0xf]
        %v6823 = vld [vmem:[#allocation3 + $0x108] sm:$0xff]
        %v6824 = vld [vmem:[#allocation3 + $0x110] sm:$0xf]
        %v6825 = vld [vmem:[#allocation3 + $0x114] sm:$0xff]
        %v6826 = vld [vmem:[#allocation3 + $0x11c] sm:$0xf]
        %v6827 = vld [vmem:[#allocation3 + $0x120] sm:$0xff]
        %v6828 = vld [vmem:[#allocation3 + $0x128] sm:$0xf]
        %v6829 = vld [vmem:[#allocation3 + $0x12c] sm:$0xff]
        %v6830 = vld [vmem:[#allocation3 + $0x134] sm:$0xf]
        %v6831 = vld [vmem:[#allocation3 + $0x138] sm:$0xff]
        %v6832 = vld [vmem:[#allocation3 + $0x140] sm:$0xf]
        %v6833 = vld [vmem:[#allocation3 + $0x144] sm:$0xff]
        %v6834 = vld [vmem:[#allocation3 + $0x14c] sm:$0xf]
        %v6835 = vld [vmem:[#allocation3 + $0x150] sm:$0xff]
        %v6836 = vld [vmem:[#allocation3 + $0x158] sm:$0xf]
        %v6837 = vld [vmem:[#allocation3 + $0x15c] sm:$0xff]
        %v6838 = vld [vmem:[#allocation3 + $0x164] sm:$0xf]
        %v6839 = vld [vmem:[#allocation3 + $0x168] sm:$0xff]
        %v6840 = vld [vmem:[#allocation3 + $0x170] sm:$0xf]
        %v6841 = vld [vmem:[#allocation3 + $0x174] sm:$0xff]
        %v6842 = vld [vmem:[#allocation3 + $0x17c] sm:$0xf]
        %v6843 = vld [vmem:[#allocation3 + $0x180] sm:$0xff]
        %v6844 = vld [vmem:[#allocation3 + $0x188] sm:$0xf]
        %v6845 = vld [vmem:[#allocation3 + $0x18c] sm:$0xff]
        %v6846 = vld [vmem:[#allocation3 + $0x194] sm:$0xf]
        %s6847 = scalar_lea.vmem [#allocation10], 192
        %v6848 = vld [vmem:[%s6847] sm:$0xf]
        %v6849 = vld [vmem:[%s6847 + $0x4] sm:$0xf]
        %v6850 = vld [vmem:[%s6847 + $0x8] sm:$0xf]
        %v6851 = vld [vmem:[%s6847 + $0xc] sm:$0xf]
        %v6852 = vld [vmem:[%s6847 + $0x10] sm:$0xf]
        %v6853 = vld [vmem:[%s6847 + $0x14] sm:$0xf]
        %v6854 = vld [vmem:[%s6847 + $0x18] sm:$0xf]
        %v6855 = vld [vmem:[%s6847 + $0x1c] sm:$0xf]
        %v6856 = vld [vmem:[%s6847 + $0x20] sm:$0xf]
        %v6857 = vld [vmem:[%s6847 + $0x24] sm:$0xf]
        %v6858 = vld [vmem:[%s6847 + $0x28] sm:$0xf]
        %v6859 = vld [vmem:[%s6847 + $0x2c] sm:$0xf]
        %v6860 = vld [vmem:[%s6847 + $0x30] sm:$0xf]
        %v6861 = vld [vmem:[%s6847 + $0x34] sm:$0xf]
        %v6862 = vld [vmem:[%s6847 + $0x38] sm:$0xf]
        %v6863 = vld [vmem:[%s6847 + $0x3c] sm:$0xf]
        %v6864 = vld [vmem:[%s6847 + $0x40] sm:$0xf]
        %v6865 = vld [vmem:[%s6847 + $0x44] sm:$0xf]
        %v6866 = vld [vmem:[%s6847 + $0x48] sm:$0xf]
        %v6867 = vld [vmem:[%s6847 + $0x4c] sm:$0xf]
        %v6868 = vld [vmem:[%s6847 + $0x50] sm:$0xf]
        %v6869 = vld [vmem:[%s6847 + $0x54] sm:$0xf]
        %v6870 = vld [vmem:[%s6847 + $0x58] sm:$0xf]
        %v6871 = vld [vmem:[%s6847 + $0x5c] sm:$0xf]
        %v6872 = vld [vmem:[%s6847 + $0x60] sm:$0xf]
        %v6873 = vld [vmem:[%s6847 + $0x64] sm:$0xf]
        %v6874 = vld [vmem:[%s6847 + $0x68] sm:$0xf]
        %v6875 = vld [vmem:[%s6847 + $0x6c] sm:$0xf]
        %v6876 = vld [vmem:[%s6847 + $0x70] sm:$0xf]
        %v6877 = vld [vmem:[%s6847 + $0x74] sm:$0xf]
        %v6878 = vld [vmem:[%s6847 + $0x78] sm:$0xf]
        %v6879 = vld [vmem:[%s6847 + $0x7c] sm:$0xf]
        %v6880 = vld [vmem:[%s6847 + $0x80] sm:$0xf]
        %v6881 = vld [vmem:[%s6847 + $0x84] sm:$0xf]
        %v6882 = vld [vmem:[%s6847 + $0x88] sm:$0xf]
        %v6883 = vld [vmem:[%s6847 + $0x8c] sm:$0xf]
        %v6884 = vld [vmem:[%s6847 + $0x90] sm:$0xf]
        %v6885 = vld [vmem:[%s6847 + $0x94] sm:$0xf]
        %v6886 = vld [vmem:[%s6847 + $0x98] sm:$0xf]
        %v6887 = vld [vmem:[%s6847 + $0x9c] sm:$0xf]
        %v6888 = vld [vmem:[%s6847 + $0xa0] sm:$0xf]
        %v6889 = vld [vmem:[%s6847 + $0xa4] sm:$0xf]
        %v6890 = vld [vmem:[%s6847 + $0xa8] sm:$0xf]
        %v6891 = vld [vmem:[%s6847 + $0xac] sm:$0xf]
        %v6892 = vld [vmem:[%s6847 + $0xb0] sm:$0xf]
        %v6893 = vld [vmem:[%s6847 + $0xb4] sm:$0xf]
        %v6894 = vld [vmem:[%s6847 + $0xb8] sm:$0xf]
        %v6895 = vld [vmem:[%s6847 + $0xbc] sm:$0xf]
        %v6960 = vunpack.c.l.b16 %v6783
        %v6961 = vunpack.c.h.b16 %v6783
        %v6962 = vunpack.c.l.b16 %v6784
        %v6963 = vunpack.c.l.b16 %v6785
        %v6964 = vunpack.c.h.b16 %v6785
        %v6965 = vunpack.c.l.b16 %v6786
        %v6966 = vunpack.c.l.b16 %v6787
        %v6967 = vunpack.c.h.b16 %v6787
        %v6968 = vunpack.c.l.b16 %v6788
        %v6969 = vunpack.c.l.b16 %v6789
        %v6970 = vunpack.c.h.b16 %v6789
        %v6971 = vunpack.c.l.b16 %v6790
        %v6972 = vunpack.c.l.b16 %v6791
        %v6973 = vunpack.c.h.b16 %v6791
        %v6974 = vunpack.c.l.b16 %v6792
        %v6975 = vunpack.c.l.b16 %v6793
        %v6976 = vunpack.c.h.b16 %v6793
        %v6977 = vunpack.c.l.b16 %v6794
        %v6978 = vunpack.c.l.b16 %v6795
        %v6979 = vunpack.c.h.b16 %v6795
        %v6980 = vunpack.c.l.b16 %v6796
        %v6981 = vunpack.c.l.b16 %v6797
        %v6982 = vunpack.c.h.b16 %v6797
        %v6983 = vunpack.c.l.b16 %v6798
        %v6984 = vunpack.c.l.b16 %v6799
        %v6985 = vunpack.c.h.b16 %v6799
        %v6986 = vunpack.c.l.b16 %v6800
        %v6987 = vunpack.c.l.b16 %v6801
        %v6988 = vunpack.c.h.b16 %v6801
        %v6989 = vunpack.c.l.b16 %v6802
        %v6990 = vunpack.c.l.b16 %v6803
        %v6991 = vunpack.c.h.b16 %v6803
        %v6992 = vunpack.c.l.b16 %v6804
        %v6993 = vunpack.c.l.b16 %v6805
        %v6994 = vunpack.c.h.b16 %v6805
        %v6995 = vunpack.c.l.b16 %v6806
        %v6996 = vunpack.c.l.b16 %v6807
        %v6997 = vunpack.c.h.b16 %v6807
        %v6998 = vunpack.c.l.b16 %v6808
        %v6999 = vunpack.c.l.b16 %v6809
        %v7000 = vunpack.c.h.b16 %v6809
        %v7001 = vunpack.c.l.b16 %v6810
        %v7002 = vunpack.c.l.b16 %v6811
        %v7003 = vunpack.c.h.b16 %v6811
        %v7004 = vunpack.c.l.b16 %v6812
        %v7005 = vunpack.c.l.b16 %v6813
        %v7006 = vunpack.c.h.b16 %v6813
        %v7007 = vunpack.c.l.b16 %v6814
        %v7008 = vunpack.c.l.b16 %v6815
        %v7009 = vunpack.c.h.b16 %v6815
        %v7010 = vunpack.c.l.b16 %v6816
        %v7011 = vunpack.c.l.b16 %v6817
        %v7012 = vunpack.c.h.b16 %v6817
        %v7013 = vunpack.c.l.b16 %v6818
        %v7014 = vunpack.c.l.b16 %v6819
        %v7015 = vunpack.c.h.b16 %v6819
        %v7016 = vunpack.c.l.b16 %v6820
        %v7017 = vunpack.c.l.b16 %v6821
        %v7018 = vunpack.c.h.b16 %v6821
        %v7019 = vunpack.c.l.b16 %v6822
        %v7020 = vunpack.c.l.b16 %v6823
        %v7021 = vunpack.c.h.b16 %v6823
        %v7022 = vunpack.c.l.b16 %v6824
        %v7023 = vunpack.c.l.b16 %v6825
        %v7024 = vunpack.c.h.b16 %v6825
        %v7025 = vunpack.c.l.b16 %v6826
        %v7026 = vunpack.c.l.b16 %v6827
        %v7027 = vunpack.c.h.b16 %v6827
        %v7028 = vunpack.c.l.b16 %v6828
        %v7029 = vunpack.c.l.b16 %v6829
        %v7030 = vunpack.c.h.b16 %v6829
        %v7031 = vunpack.c.l.b16 %v6830
        %v7032 = vunpack.c.l.b16 %v6831
        %v7033 = vunpack.c.h.b16 %v6831
        %v7034 = vunpack.c.l.b16 %v6832
        %v7035 = vunpack.c.l.b16 %v6833
        %v7036 = vunpack.c.h.b16 %v6833
        %v7037 = vunpack.c.l.b16 %v6834
        %v7038 = vunpack.c.l.b16 %v6835
        %v7039 = vunpack.c.h.b16 %v6835
        %v7040 = vunpack.c.l.b16 %v6836
        %v7041 = vunpack.c.l.b16 %v6837
        %v7042 = vunpack.c.h.b16 %v6837
        %v7043 = vunpack.c.l.b16 %v6838
        %v7044 = vunpack.c.l.b16 %v6839
        %v7045 = vunpack.c.h.b16 %v6839
        %v7046 = vunpack.c.l.b16 %v6840
        %v7047 = vunpack.c.l.b16 %v6841
        %v7048 = vunpack.c.h.b16 %v6841
        %v7049 = vunpack.c.l.b16 %v6842
        %v7050 = vunpack.c.l.b16 %v6843
        %v7051 = vunpack.c.h.b16 %v6843
        %v7052 = vunpack.c.l.b16 %v6844
        %v7053 = vunpack.c.l.b16 %v6845
        %v7054 = vunpack.c.h.b16 %v6845
        %v7055 = vunpack.c.l.b16 %v6846
        %v7056 = vpack.c.b16 %v6963, %v6960
        %v7057 = vpack.c.b16 %v6964, %v6961
        %v7058 = vpack.c.b16 %v6965, %v6962
        %v7059 = vpack.c.b16 %v6969, %v6966
        %v7060 = vpack.c.b16 %v6970, %v6967
        %v7061 = vpack.c.b16 %v6971, %v6968
        %v7062 = vpack.c.b16 %v6975, %v6972
        %v7063 = vpack.c.b16 %v6976, %v6973
        %v7064 = vpack.c.b16 %v6977, %v6974
        %v7065 = vpack.c.b16 %v6981, %v6978
        %v7066 = vpack.c.b16 %v6982, %v6979
        %v7067 = vpack.c.b16 %v6983, %v6980
        %v7068 = vpack.c.b16 %v6987, %v6984
        %v7069 = vpack.c.b16 %v6988, %v6985
        %v7070 = vpack.c.b16 %v6989, %v6986
        %v7071 = vpack.c.b16 %v6993, %v6990
        %v7072 = vpack.c.b16 %v6994, %v6991
        %v7073 = vpack.c.b16 %v6995, %v6992
        %v7074 = vpack.c.b16 %v6999, %v6996
        %v7075 = vpack.c.b16 %v7000, %v6997
        %v7076 = vpack.c.b16 %v7001, %v6998
        %v7077 = vpack.c.b16 %v7005, %v7002
        %v7078 = vpack.c.b16 %v7006, %v7003
        %v7079 = vpack.c.b16 %v7007, %v7004
        %v7080 = vpack.c.b16 %v7011, %v7008
        %v7081 = vpack.c.b16 %v7012, %v7009
        %v7082 = vpack.c.b16 %v7013, %v7010
        %v7083 = vpack.c.b16 %v7017, %v7014
        %v7084 = vpack.c.b16 %v7018, %v7015
        %v7085 = vpack.c.b16 %v7019, %v7016
        %v7086 = vpack.c.b16 %v7023, %v7020
        %v7087 = vpack.c.b16 %v7024, %v7021
        %v7088 = vpack.c.b16 %v7025, %v7022
        %v7089 = vpack.c.b16 %v7029, %v7026
        %v7090 = vpack.c.b16 %v7030, %v7027
        %v7091 = vpack.c.b16 %v7031, %v7028
        %v7092 = vpack.c.b16 %v7035, %v7032
        %v7093 = vpack.c.b16 %v7036, %v7033
        %v7094 = vpack.c.b16 %v7037, %v7034
        %v7095 = vpack.c.b16 %v7041, %v7038
        %v7096 = vpack.c.b16 %v7042, %v7039
        %v7097 = vpack.c.b16 %v7043, %v7040
        %v7098 = vpack.c.b16 %v7047, %v7044
        %v7099 = vpack.c.b16 %v7048, %v7045
        %v7100 = vpack.c.b16 %v7049, %v7046
        %v7101 = vpack.c.b16 %v7053, %v7050
        %v7102 = vpack.c.b16 %v7054, %v7051
        %v7103 = vpack.c.b16 %v7055, %v7052
        %v7200 = vunpack.c.l.b16 %v6848
        %v7201 = vunpack.c.l.b16 %v6849
        %v7202 = vunpack.c.l.b16 %v6850
        %v7203 = vunpack.c.l.b16 %v6851
        %v7204 = vunpack.c.l.b16 %v6852
        %v7205 = vunpack.c.l.b16 %v6853
        %v7206 = vunpack.c.l.b16 %v6854
        %v7207 = vunpack.c.l.b16 %v6855
        %v7208 = vunpack.c.l.b16 %v6856
        %v7209 = vunpack.c.l.b16 %v6857
        %v7210 = vunpack.c.l.b16 %v6858
        %v7211 = vunpack.c.l.b16 %v6859
        %v7212 = vunpack.c.l.b16 %v6860
        %v7213 = vunpack.c.l.b16 %v6861
        %v7214 = vunpack.c.l.b16 %v6862
        %v7215 = vunpack.c.l.b16 %v6863
        %v7216 = vunpack.c.l.b16 %v6864
        %v7217 = vunpack.c.l.b16 %v6865
        %v7218 = vunpack.c.l.b16 %v6866
        %v7219 = vunpack.c.l.b16 %v6867
        %v7220 = vunpack.c.l.b16 %v6868
        %v7221 = vunpack.c.l.b16 %v6869
        %v7222 = vunpack.c.l.b16 %v6870
        %v7223 = vunpack.c.l.b16 %v6871
        %v7224 = vunpack.c.l.b16 %v6872
        %v7225 = vunpack.c.l.b16 %v6873
        %v7226 = vunpack.c.l.b16 %v6874
        %v7227 = vunpack.c.l.b16 %v6875
        %v7228 = vunpack.c.l.b16 %v6876
        %v7229 = vunpack.c.l.b16 %v6877
        %v7230 = vunpack.c.l.b16 %v6878
        %v7231 = vunpack.c.l.b16 %v6879
        %v7232 = vunpack.c.l.b16 %v6880
        %v7233 = vunpack.c.l.b16 %v6881
        %v7234 = vunpack.c.l.b16 %v6882
        %v7235 = vunpack.c.l.b16 %v6883
        %v7236 = vunpack.c.l.b16 %v6884
        %v7237 = vunpack.c.l.b16 %v6885
        %v7238 = vunpack.c.l.b16 %v6886
        %v7239 = vunpack.c.l.b16 %v6887
        %v7240 = vunpack.c.l.b16 %v6888
        %v7241 = vunpack.c.l.b16 %v6889
        %v7242 = vunpack.c.l.b16 %v6890
        %v7243 = vunpack.c.l.b16 %v6891
        %v7244 = vunpack.c.l.b16 %v6892
        %v7245 = vunpack.c.l.b16 %v6893
        %v7246 = vunpack.c.l.b16 %v6894
        %v7247 = vunpack.c.l.b16 %v6895
        %v7248 = vpack.c.b16 %v7201, %v7200
        %v7249 = vpack.c.b16 %v7203, %v7202
        %v7250 = vpack.c.b16 %v7205, %v7204
        %v7251 = vpack.c.b16 %v7207, %v7206
        %v7252 = vpack.c.b16 %v7209, %v7208
        %v7253 = vpack.c.b16 %v7211, %v7210
        %v7254 = vpack.c.b16 %v7213, %v7212
        %v7255 = vpack.c.b16 %v7215, %v7214
        %v7256 = vpack.c.b16 %v7217, %v7216
        %v7257 = vpack.c.b16 %v7219, %v7218
        %v7258 = vpack.c.b16 %v7221, %v7220
        %v7259 = vpack.c.b16 %v7223, %v7222
        %v7260 = vpack.c.b16 %v7225, %v7224
        %v7261 = vpack.c.b16 %v7227, %v7226
        %v7262 = vpack.c.b16 %v7229, %v7228
        %v7263 = vpack.c.b16 %v7231, %v7230
        %v7264 = vpack.c.b16 %v7233, %v7232
        %v7265 = vpack.c.b16 %v7235, %v7234
        %v7266 = vpack.c.b16 %v7237, %v7236
        %v7267 = vpack.c.b16 %v7239, %v7238
        %v7268 = vpack.c.b16 %v7241, %v7240
        %v7269 = vpack.c.b16 %v7243, %v7242
        %v7270 = vpack.c.b16 %v7245, %v7244
        %v7271 = vpack.c.b16 %v7247, %v7246
        %7296 = vmatpush.bf16.msra.mxu0 %v7255
        %7297 = vmatpush.bf16.msra.mxu0 %v7254
        %7298 = vmatpush.bf16.msra.mxu0 %v7253
        %7299 = vmatpush.bf16.msra.mxu0 %v7252
        %7300 = vmatpush.bf16.msra.mxu0 %v7251
        %7301 = vmatpush.bf16.msra.mxu0 %v7250
        %7302 = vmatpush.bf16.msra.mxu0 %v7249
        %7303 = vmatpush.bf16.msra.mxu0 %v7248
        %7304 = vmatmul.bf16.gmra.mxu0 %v7056
        %v7305 = vpop.f32.mrf.mxu0
        %v7306 = vadd.f32 0.0, %v7305
        %v7307 = vpop.f32.mrf.mxu0
        %v7308 = vadd.f32 0.0, %v7307
        %7309 = vmatmul.bf16.gmra.mxu0 %v7059
        %v7310 = vpop.f32.mrf.mxu0
        %v7311 = vadd.f32 0.0, %v7310
        %v7312 = vpop.f32.mrf.mxu0
        %v7313 = vadd.f32 0.0, %v7312
        %7314 = vmatmul.bf16.gmra.mxu0 %v7062
        %v7315 = vpop.f32.mrf.mxu0
        %v7316 = vadd.f32 0.0, %v7315
        %v7317 = vpop.f32.mrf.mxu0
        %v7318 = vadd.f32 0.0, %v7317
        %7319 = vmatmul.bf16.gmra.mxu0 %v7065
        %v7320 = vpop.f32.mrf.mxu0
        %v7321 = vadd.f32 0.0, %v7320
        %v7322 = vpop.f32.mrf.mxu0
        %v7323 = vadd.f32 0.0, %v7322
        %7324 = vmatmul.bf16.gmra.mxu0 %v7068
        %v7325 = vpop.f32.mrf.mxu0
        %v7326 = vadd.f32 0.0, %v7325
        %v7327 = vpop.f32.mrf.mxu0
        %v7328 = vadd.f32 0.0, %v7327
        %7329 = vmatmul.bf16.gmra.mxu0 %v7071
        %v7330 = vpop.f32.mrf.mxu0
        %v7331 = vadd.f32 0.0, %v7330
        %v7332 = vpop.f32.mrf.mxu0
        %v7333 = vadd.f32 0.0, %v7332
        %7334 = vmatmul.bf16.gmra.mxu0 %v7074
        %v7335 = vpop.f32.mrf.mxu0
        %v7336 = vadd.f32 0.0, %v7335
        %v7337 = vpop.f32.mrf.mxu0
        %v7338 = vadd.f32 0.0, %v7337
        %7339 = vmatmul.bf16.gmra.mxu0 %v7077
        %v7340 = vpop.f32.mrf.mxu0
        %v7341 = vadd.f32 0.0, %v7340
        %v7342 = vpop.f32.mrf.mxu0
        %v7343 = vadd.f32 0.0, %v7342
        %7344 = vmatmul.bf16.gmra.mxu0 %v7080
        %v7345 = vpop.f32.mrf.mxu0
        %v7346 = vadd.f32 0.0, %v7345
        %v7347 = vpop.f32.mrf.mxu0
        %v7348 = vadd.f32 0.0, %v7347
        %7349 = vmatmul.bf16.gmra.mxu0 %v7083
        %v7350 = vpop.f32.mrf.mxu0
        %v7351 = vadd.f32 0.0, %v7350
        %v7352 = vpop.f32.mrf.mxu0
        %v7353 = vadd.f32 0.0, %v7352
        %7354 = vmatmul.bf16.gmra.mxu0 %v7086
        %v7355 = vpop.f32.mrf.mxu0
        %v7356 = vadd.f32 0.0, %v7355
        %v7357 = vpop.f32.mrf.mxu0
        %v7358 = vadd.f32 0.0, %v7357
        %7359 = vmatmul.bf16.gmra.mxu0 %v7089
        %v7360 = vpop.f32.mrf.mxu0
        %v7361 = vadd.f32 0.0, %v7360
        %v7362 = vpop.f32.mrf.mxu0
        %v7363 = vadd.f32 0.0, %v7362
        %7364 = vmatmul.bf16.gmra.mxu0 %v7092
        %v7365 = vpop.f32.mrf.mxu0
        %v7366 = vadd.f32 0.0, %v7365
        %v7367 = vpop.f32.mrf.mxu0
        %v7368 = vadd.f32 0.0, %v7367
        %7369 = vmatmul.bf16.gmra.mxu0 %v7095
        %v7370 = vpop.f32.mrf.mxu0
        %v7371 = vadd.f32 0.0, %v7370
        %v7372 = vpop.f32.mrf.mxu0
        %v7373 = vadd.f32 0.0, %v7372
        %7374 = vmatmul.bf16.gmra.mxu0 %v7098
        %v7375 = vpop.f32.mrf.mxu0
        %v7376 = vadd.f32 0.0, %v7375
        %v7377 = vpop.f32.mrf.mxu0
        %v7378 = vadd.f32 0.0, %v7377
        %7379 = vmatmul.bf16.gmra.mxu0 %v7101
        %v7380 = vpop.f32.mrf.mxu0
        %v7381 = vadd.f32 0.0, %v7380
        %v7382 = vpop.f32.mrf.mxu0
        %v7383 = vadd.f32 0.0, %v7382
        %7384 = vdwg.mxu0
        %7385 = vmatpush.bf16.msra.mxu0 %v7263
        %7386 = vmatpush.bf16.msra.mxu0 %v7262
        %7387 = vmatpush.bf16.msra.mxu0 %v7261
        %7388 = vmatpush.bf16.msra.mxu0 %v7260
        %7389 = vmatpush.bf16.msra.mxu0 %v7259
        %7390 = vmatpush.bf16.msra.mxu0 %v7258
        %7391 = vmatpush.bf16.msra.mxu0 %v7257
        %7392 = vmatpush.bf16.msra.mxu0 %v7256
        %7393 = vmatmul.bf16.gmra.mxu0 %v7057
        %v7394 = vpop.f32.mrf.mxu0
        %v7395 = vadd.f32 %v7306, %v7394
        %v7396 = vpop.f32.mrf.mxu0
        %v7397 = vadd.f32 %v7308, %v7396
        %7398 = vmatmul.bf16.gmra.mxu0 %v7060
        %v7399 = vpop.f32.mrf.mxu0
        %v7400 = vadd.f32 %v7311, %v7399
        %v7401 = vpop.f32.mrf.mxu0
        %v7402 = vadd.f32 %v7313, %v7401
        %7403 = vmatmul.bf16.gmra.mxu0 %v7063
        %v7404 = vpop.f32.mrf.mxu0
        %v7405 = vadd.f32 %v7316, %v7404
        %v7406 = vpop.f32.mrf.mxu0
        %v7407 = vadd.f32 %v7318, %v7406
        %7408 = vmatmul.bf16.gmra.mxu0 %v7066
        %v7409 = vpop.f32.mrf.mxu0
        %v7410 = vadd.f32 %v7321, %v7409
        %v7411 = vpop.f32.mrf.mxu0
        %v7412 = vadd.f32 %v7323, %v7411
        %7413 = vmatmul.bf16.gmra.mxu0 %v7069
        %v7414 = vpop.f32.mrf.mxu0
        %v7415 = vadd.f32 %v7326, %v7414
        %v7416 = vpop.f32.mrf.mxu0
        %v7417 = vadd.f32 %v7328, %v7416
        %7418 = vmatmul.bf16.gmra.mxu0 %v7072
        %v7419 = vpop.f32.mrf.mxu0
        %v7420 = vadd.f32 %v7331, %v7419
        %v7421 = vpop.f32.mrf.mxu0
        %v7422 = vadd.f32 %v7333, %v7421
        %7423 = vmatmul.bf16.gmra.mxu0 %v7075
        %v7424 = vpop.f32.mrf.mxu0
        %v7425 = vadd.f32 %v7336, %v7424
        %v7426 = vpop.f32.mrf.mxu0
        %v7427 = vadd.f32 %v7338, %v7426
        %7428 = vmatmul.bf16.gmra.mxu0 %v7078
        %v7429 = vpop.f32.mrf.mxu0
        %v7430 = vadd.f32 %v7341, %v7429
        %v7431 = vpop.f32.mrf.mxu0
        %v7432 = vadd.f32 %v7343, %v7431
        %7433 = vmatmul.bf16.gmra.mxu0 %v7081
        %v7434 = vpop.f32.mrf.mxu0
        %v7435 = vadd.f32 %v7346, %v7434
        %v7436 = vpop.f32.mrf.mxu0
        %v7437 = vadd.f32 %v7348, %v7436
        %7438 = vmatmul.bf16.gmra.mxu0 %v7084
        %v7439 = vpop.f32.mrf.mxu0
        %v7440 = vadd.f32 %v7351, %v7439
        %v7441 = vpop.f32.mrf.mxu0
        %v7442 = vadd.f32 %v7353, %v7441
        %7443 = vmatmul.bf16.gmra.mxu0 %v7087
        %v7444 = vpop.f32.mrf.mxu0
        %v7445 = vadd.f32 %v7356, %v7444
        %v7446 = vpop.f32.mrf.mxu0
        %v7447 = vadd.f32 %v7358, %v7446
        %7448 = vmatmul.bf16.gmra.mxu0 %v7090
        %v7449 = vpop.f32.mrf.mxu0
        %v7450 = vadd.f32 %v7361, %v7449
        %v7451 = vpop.f32.mrf.mxu0
        %v7452 = vadd.f32 %v7363, %v7451
        %7453 = vmatmul.bf16.gmra.mxu0 %v7093
        %v7454 = vpop.f32.mrf.mxu0
        %v7455 = vadd.f32 %v7366, %v7454
        %v7456 = vpop.f32.mrf.mxu0
        %v7457 = vadd.f32 %v7368, %v7456
        %7458 = vmatmul.bf16.gmra.mxu0 %v7096
        %v7459 = vpop.f32.mrf.mxu0
        %v7460 = vadd.f32 %v7371, %v7459
        %v7461 = vpop.f32.mrf.mxu0
        %v7462 = vadd.f32 %v7373, %v7461
        %7463 = vmatmul.bf16.gmra.mxu0 %v7099
        %v7464 = vpop.f32.mrf.mxu0
        %v7465 = vadd.f32 %v7376, %v7464
        %v7466 = vpop.f32.mrf.mxu0
        %v7467 = vadd.f32 %v7378, %v7466
        %7468 = vmatmul.bf16.gmra.mxu0 %v7102
        %v7469 = vpop.f32.mrf.mxu0
        %v7470 = vadd.f32 %v7381, %v7469
        %v7471 = vpop.f32.mrf.mxu0
        %v7472 = vadd.f32 %v7383, %v7471
        %7473 = vdwg.mxu0
        %7474 = vmatpush.bf16.msra.mxu0 %v7271
        %7475 = vmatpush.bf16.msra.mxu0 %v7270
        %7476 = vmatpush.bf16.msra.mxu0 %v7269
        %7477 = vmatpush.bf16.msra.mxu0 %v7268
        %7478 = vmatpush.bf16.msra.mxu0 %v7267
        %7479 = vmatpush.bf16.msra.mxu0 %v7266
        %7480 = vmatpush.bf16.msra.mxu0 %v7265
        %7481 = vmatpush.bf16.msra.mxu0 %v7264
        %7482 = vmatmul.bf16.gmra.mxu0 %v7058
        %v7483 = vpop.f32.mrf.mxu0
        %v7484 = vadd.f32 %v7395, %v7483
        %v7485 = vpop.f32.mrf.mxu0
        %v7486 = vadd.f32 %v7397, %v7485
        %7487 = vmatmul.bf16.gmra.mxu0 %v7061
        %v7488 = vpop.f32.mrf.mxu0
        %v7489 = vadd.f32 %v7400, %v7488
        %v7490 = vpop.f32.mrf.mxu0
        %v7491 = vadd.f32 %v7402, %v7490
        %7492 = vmatmul.bf16.gmra.mxu0 %v7064
        %v7493 = vpop.f32.mrf.mxu0
        %v7494 = vadd.f32 %v7405, %v7493
        %v7495 = vpop.f32.mrf.mxu0
        %v7496 = vadd.f32 %v7407, %v7495
        %7497 = vmatmul.bf16.gmra.mxu0 %v7067
        %v7498 = vpop.f32.mrf.mxu0
        %v7499 = vadd.f32 %v7410, %v7498
        %v7500 = vpop.f32.mrf.mxu0
        %v7501 = vadd.f32 %v7412, %v7500
        %7502 = vmatmul.bf16.gmra.mxu0 %v7070
        %v7503 = vpop.f32.mrf.mxu0
        %v7504 = vadd.f32 %v7415, %v7503
        %v7505 = vpop.f32.mrf.mxu0
        %v7506 = vadd.f32 %v7417, %v7505
        %7507 = vmatmul.bf16.gmra.mxu0 %v7073
        %v7508 = vpop.f32.mrf.mxu0
        %v7509 = vadd.f32 %v7420, %v7508
        %v7510 = vpop.f32.mrf.mxu0
        %v7511 = vadd.f32 %v7422, %v7510
        %7512 = vmatmul.bf16.gmra.mxu0 %v7076
        %v7513 = vpop.f32.mrf.mxu0
        %v7514 = vadd.f32 %v7425, %v7513
        %v7515 = vpop.f32.mrf.mxu0
        %v7516 = vadd.f32 %v7427, %v7515
        %7517 = vmatmul.bf16.gmra.mxu0 %v7079
        %v7518 = vpop.f32.mrf.mxu0
        %v7519 = vadd.f32 %v7430, %v7518
        %v7520 = vpop.f32.mrf.mxu0
        %v7521 = vadd.f32 %v7432, %v7520
        %7522 = vmatmul.bf16.gmra.mxu0 %v7082
        %v7523 = vpop.f32.mrf.mxu0
        %v7524 = vadd.f32 %v7435, %v7523
        %v7525 = vpop.f32.mrf.mxu0
        %v7526 = vadd.f32 %v7437, %v7525
        %7527 = vmatmul.bf16.gmra.mxu0 %v7085
        %v7528 = vpop.f32.mrf.mxu0
        %v7529 = vadd.f32 %v7440, %v7528
        %v7530 = vpop.f32.mrf.mxu0
        %v7531 = vadd.f32 %v7442, %v7530
        %7532 = vmatmul.bf16.gmra.mxu0 %v7088
        %v7533 = vpop.f32.mrf.mxu0
        %v7534 = vadd.f32 %v7445, %v7533
        %v7535 = vpop.f32.mrf.mxu0
        %v7536 = vadd.f32 %v7447, %v7535
        %7537 = vmatmul.bf16.gmra.mxu0 %v7091
        %v7538 = vpop.f32.mrf.mxu0
        %v7539 = vadd.f32 %v7450, %v7538
        %v7540 = vpop.f32.mrf.mxu0
        %v7541 = vadd.f32 %v7452, %v7540
        %7542 = vmatmul.bf16.gmra.mxu0 %v7094
        %v7543 = vpop.f32.mrf.mxu0
        %v7544 = vadd.f32 %v7455, %v7543
        %v7545 = vpop.f32.mrf.mxu0
        %v7546 = vadd.f32 %v7457, %v7545
        %7547 = vmatmul.bf16.gmra.mxu0 %v7097
        %v7548 = vpop.f32.mrf.mxu0
        %v7549 = vadd.f32 %v7460, %v7548
        %v7550 = vpop.f32.mrf.mxu0
        %v7551 = vadd.f32 %v7462, %v7550
        %7552 = vmatmul.bf16.gmra.mxu0 %v7100
        %v7553 = vpop.f32.mrf.mxu0
        %v7554 = vadd.f32 %v7465, %v7553
        %v7555 = vpop.f32.mrf.mxu0
        %v7556 = vadd.f32 %v7467, %v7555
        %7557 = vmatmul.bf16.gmra.mxu0 %v7103
        %v7558 = vpop.f32.mrf.mxu0
        %v7559 = vadd.f32 %v7470, %v7558
        %v7560 = vpop.f32.mrf.mxu0
        %v7561 = vadd.f32 %v7472, %v7560
        %7562 = vdwg.mxu0
        %v7563 = vadd.f32 %v6751, %v7484
        %v7564 = vadd.f32 %v6752, %v7486
        %v7565 = vadd.f32 %v6753, %v7489
        %v7566 = vadd.f32 %v6754, %v7491
        %v7567 = vadd.f32 %v6755, %v7494
        %v7568 = vadd.f32 %v6756, %v7496
        %v7569 = vadd.f32 %v6757, %v7499
        %v7570 = vadd.f32 %v6758, %v7501
        %v7571 = vadd.f32 %v6759, %v7504
        %v7572 = vadd.f32 %v6760, %v7506
        %v7573 = vadd.f32 %v6761, %v7509
        %v7574 = vadd.f32 %v6762, %v7511
        %v7575 = vadd.f32 %v6763, %v7514
        %v7576 = vadd.f32 %v6764, %v7516
        %v7577 = vadd.f32 %v6765, %v7519
        %v7578 = vadd.f32 %v6766, %v7521
        %v7579 = vadd.f32 %v6767, %v7524
        %v7580 = vadd.f32 %v6768, %v7526
        %v7581 = vadd.f32 %v6769, %v7529
        %v7582 = vadd.f32 %v6770, %v7531
        %v7583 = vadd.f32 %v6771, %v7534
        %v7584 = vadd.f32 %v6772, %v7536
        %v7585 = vadd.f32 %v6773, %v7539
        %v7586 = vadd.f32 %v6774, %v7541
        %v7587 = vadd.f32 %v6775, %v7544
        %v7588 = vadd.f32 %v6776, %v7546
        %v7589 = vadd.f32 %v6777, %v7549
        %v7590 = vadd.f32 %v6778, %v7551
        %v7591 = vadd.f32 %v6779, %v7554
        %v7592 = vadd.f32 %v6780, %v7556
        %v7593 = vadd.f32 %v6781, %v7559
        %v7594 = vadd.f32 %v6782, %v7561
        %7595 = vst [vmem:[#allocation4] sm:$0xff] %v7563
        %7596 = vst [vmem:[#allocation4 + $0x8] sm:$0xff] %v7564
        %7597 = vst [vmem:[#allocation4 + $0x10] sm:$0xff] %v7565
        %7598 = vst [vmem:[#allocation4 + $0x18] sm:$0xff] %v7566
        %7599 = vst [vmem:[#allocation4 + $0x20] sm:$0xff] %v7567
        %7600 = vst [vmem:[#allocation4 + $0x28] sm:$0xff] %v7568
        %7601 = vst [vmem:[#allocation4 + $0x30] sm:$0xff] %v7569
        %7602 = vst [vmem:[#allocation4 + $0x38] sm:$0xff] %v7570
        %7603 = vst [vmem:[#allocation4 + $0x40] sm:$0xff] %v7571
        %7604 = vst [vmem:[#allocation4 + $0x48] sm:$0xff] %v7572
        %7605 = vst [vmem:[#allocation4 + $0x50] sm:$0xff] %v7573
        %7606 = vst [vmem:[#allocation4 + $0x58] sm:$0xff] %v7574
        %7607 = vst [vmem:[#allocation4 + $0x60] sm:$0xff] %v7575
        %7608 = vst [vmem:[#allocation4 + $0x68] sm:$0xff] %v7576
        %7609 = vst [vmem:[#allocation4 + $0x70] sm:$0xff] %v7577
        %7610 = vst [vmem:[#allocation4 + $0x78] sm:$0xff] %v7578
        %7611 = vst [vmem:[#allocation4 + $0x80] sm:$0xff] %v7579
        %7612 = vst [vmem:[#allocation4 + $0x88] sm:$0xff] %v7580
        %7613 = vst [vmem:[#allocation4 + $0x90] sm:$0xff] %v7581
        %7614 = vst [vmem:[#allocation4 + $0x98] sm:$0xff] %v7582
        %7615 = vst [vmem:[#allocation4 + $0xa0] sm:$0xff] %v7583
        %7616 = vst [vmem:[#allocation4 + $0xa8] sm:$0xff] %v7584
        %7617 = vst [vmem:[#allocation4 + $0xb0] sm:$0xff] %v7585
        %7618 = vst [vmem:[#allocation4 + $0xb8] sm:$0xff] %v7586
        %7619 = vst [vmem:[#allocation4 + $0xc0] sm:$0xff] %v7587
        %7620 = vst [vmem:[#allocation4 + $0xc8] sm:$0xff] %v7588
        %7621 = vst [vmem:[#allocation4 + $0xd0] sm:$0xff] %v7589
        %7622 = vst [vmem:[#allocation4 + $0xd8] sm:$0xff] %v7590
        %7623 = vst [vmem:[#allocation4 + $0xe0] sm:$0xff] %v7591
        %7624 = vst [vmem:[#allocation4 + $0xe8] sm:$0xff] %v7592
        %7625 = vst [vmem:[#allocation4 + $0xf0] sm:$0xff] %v7593
        %7626 = vst [vmem:[#allocation4 + $0xf8] sm:$0xff] %v7594
        %v7627 = vld [vmem:[#allocation4] sm:$0xff]
        %v7628 = vld [vmem:[#allocation4 + $0x8] sm:$0xff]
        %v7629 = vld [vmem:[#allocation4 + $0x10] sm:$0xff]
        %v7630 = vld [vmem:[#allocation4 + $0x18] sm:$0xff]
        %v7631 = vld [vmem:[#allocation4 + $0x20] sm:$0xff]
        %v7632 = vld [vmem:[#allocation4 + $0x28] sm:$0xff]
        %v7633 = vld [vmem:[#allocation4 + $0x30] sm:$0xff]
        %v7634 = vld [vmem:[#allocation4 + $0x38] sm:$0xff]
        %v7635 = vld [vmem:[#allocation4 + $0x40] sm:$0xff]
        %v7636 = vld [vmem:[#allocation4 + $0x48] sm:$0xff]
        %v7637 = vld [vmem:[#allocation4 + $0x50] sm:$0xff]
        %v7638 = vld [vmem:[#allocation4 + $0x58] sm:$0xff]
        %v7639 = vld [vmem:[#allocation4 + $0x60] sm:$0xff]
        %v7640 = vld [vmem:[#allocation4 + $0x68] sm:$0xff]
        %v7641 = vld [vmem:[#allocation4 + $0x70] sm:$0xff]
        %v7642 = vld [vmem:[#allocation4 + $0x78] sm:$0xff]
        %v7643 = vld [vmem:[#allocation4 + $0x80] sm:$0xff]
        %v7644 = vld [vmem:[#allocation4 + $0x88] sm:$0xff]
        %v7645 = vld [vmem:[#allocation4 + $0x90] sm:$0xff]
        %v7646 = vld [vmem:[#allocation4 + $0x98] sm:$0xff]
        %v7647 = vld [vmem:[#allocation4 + $0xa0] sm:$0xff]
        %v7648 = vld [vmem:[#allocation4 + $0xa8] sm:$0xff]
        %v7649 = vld [vmem:[#allocation4 + $0xb0] sm:$0xff]
        %v7650 = vld [vmem:[#allocation4 + $0xb8] sm:$0xff]
        %v7651 = vld [vmem:[#allocation4 + $0xc0] sm:$0xff]
        %v7652 = vld [vmem:[#allocation4 + $0xc8] sm:$0xff]
        %v7653 = vld [vmem:[#allocation4 + $0xd0] sm:$0xff]
        %v7654 = vld [vmem:[#allocation4 + $0xd8] sm:$0xff]
        %v7655 = vld [vmem:[#allocation4 + $0xe0] sm:$0xff]
        %v7656 = vld [vmem:[#allocation4 + $0xe8] sm:$0xff]
        %v7657 = vld [vmem:[#allocation4 + $0xf0] sm:$0xff]
        %v7658 = vld [vmem:[#allocation4 + $0xf8] sm:$0xff]
        %v7659 = vld [vmem:[#allocation3 + $0x30] sm:$0xff]
        %v7660 = vld [vmem:[#allocation3 + $0x38] sm:$0xf]
        %v7661 = vld [vmem:[#allocation3 + $0x3c] sm:$0xff]
        %v7662 = vld [vmem:[#allocation3 + $0x44] sm:$0xf]
        %v7663 = vld [vmem:[#allocation3 + $0x48] sm:$0xff]
        %v7664 = vld [vmem:[#allocation3 + $0x50] sm:$0xf]
        %v7665 = vld [vmem:[#allocation3 + $0x54] sm:$0xff]
        %v7666 = vld [vmem:[#allocation3 + $0x5c] sm:$0xf]
        %v7667 = vld [vmem:[#allocation3 + $0x60] sm:$0xff]
        %v7668 = vld [vmem:[#allocation3 + $0x68] sm:$0xf]
        %v7669 = vld [vmem:[#allocation3 + $0x6c] sm:$0xff]
        %v7670 = vld [vmem:[#allocation3 + $0x74] sm:$0xf]
        %v7671 = vld [vmem:[#allocation3 + $0x78] sm:$0xff]
        %v7672 = vld [vmem:[#allocation3 + $0x80] sm:$0xf]
        %v7673 = vld [vmem:[#allocation3 + $0x84] sm:$0xff]
        %v7674 = vld [vmem:[#allocation3 + $0x8c] sm:$0xf]
        %v7675 = vld [vmem:[#allocation3 + $0x90] sm:$0xff]
        %v7676 = vld [vmem:[#allocation3 + $0x98] sm:$0xf]
        %v7677 = vld [vmem:[#allocation3 + $0x9c] sm:$0xff]
        %v7678 = vld [vmem:[#allocation3 + $0xa4] sm:$0xf]
        %v7679 = vld [vmem:[#allocation3 + $0xa8] sm:$0xff]
        %v7680 = vld [vmem:[#allocation3 + $0xb0] sm:$0xf]
        %v7681 = vld [vmem:[#allocation3 + $0xb4] sm:$0xff]
        %v7682 = vld [vmem:[#allocation3 + $0xbc] sm:$0xf]
        %v7683 = vld [vmem:[#allocation3 + $0xc0] sm:$0xff]
        %v7684 = vld [vmem:[#allocation3 + $0xc8] sm:$0xf]
        %v7685 = vld [vmem:[#allocation3 + $0xcc] sm:$0xff]
        %v7686 = vld [vmem:[#allocation3 + $0xd4] sm:$0xf]
        %v7687 = vld [vmem:[#allocation3 + $0xd8] sm:$0xff]
        %v7688 = vld [vmem:[#allocation3 + $0xe0] sm:$0xf]
        %v7689 = vld [vmem:[#allocation3 + $0xe4] sm:$0xff]
        %v7690 = vld [vmem:[#allocation3 + $0xec] sm:$0xf]
        %v7691 = vld [vmem:[#allocation3 + $0xf0] sm:$0xff]
        %v7692 = vld [vmem:[#allocation3 + $0xf8] sm:$0xf]
        %v7693 = vld [vmem:[#allocation3 + $0xfc] sm:$0xff]
        %v7694 = vld [vmem:[#allocation3 + $0x104] sm:$0xf]
        %v7695 = vld [vmem:[#allocation3 + $0x108] sm:$0xff]
        %v7696 = vld [vmem:[#allocation3 + $0x110] sm:$0xf]
        %v7697 = vld [vmem:[#allocation3 + $0x114] sm:$0xff]
        %v7698 = vld [vmem:[#allocation3 + $0x11c] sm:$0xf]
        %v7699 = vld [vmem:[#allocation3 + $0x120] sm:$0xff]
        %v7700 = vld [vmem:[#allocation3 + $0x128] sm:$0xf]
        %v7701 = vld [vmem:[#allocation3 + $0x12c] sm:$0xff]
        %v7702 = vld [vmem:[#allocation3 + $0x134] sm:$0xf]
        %v7703 = vld [vmem:[#allocation3 + $0x138] sm:$0xff]
        %v7704 = vld [vmem:[#allocation3 + $0x140] sm:$0xf]
        %v7705 = vld [vmem:[#allocation3 + $0x144] sm:$0xff]
        %v7706 = vld [vmem:[#allocation3 + $0x14c] sm:$0xf]
        %v7707 = vld [vmem:[#allocation3 + $0x150] sm:$0xff]
        %v7708 = vld [vmem:[#allocation3 + $0x158] sm:$0xf]
        %v7709 = vld [vmem:[#allocation3 + $0x15c] sm:$0xff]
        %v7710 = vld [vmem:[#allocation3 + $0x164] sm:$0xf]
        %v7711 = vld [vmem:[#allocation3 + $0x168] sm:$0xff]
        %v7712 = vld [vmem:[#allocation3 + $0x170] sm:$0xf]
        %v7713 = vld [vmem:[#allocation3 + $0x174] sm:$0xff]
        %v7714 = vld [vmem:[#allocation3 + $0x17c] sm:$0xf]
        %v7715 = vld [vmem:[#allocation3 + $0x180] sm:$0xff]
        %v7716 = vld [vmem:[#allocation3 + $0x188] sm:$0xf]
        %v7717 = vld [vmem:[#allocation3 + $0x18c] sm:$0xff]
        %v7718 = vld [vmem:[#allocation3 + $0x194] sm:$0xf]
        %v7719 = vld [vmem:[#allocation3 + $0x198] sm:$0xff]
        %v7720 = vld [vmem:[#allocation3 + $0x1a0] sm:$0xf]
        %v7721 = vld [vmem:[#allocation3 + $0x1a4] sm:$0xff]
        %v7722 = vld [vmem:[#allocation3 + $0x1ac] sm:$0xf]
        %s7723 = scalar_lea.vmem [#allocation10], 384
        %v7724 = vld [vmem:[%s7723] sm:$0xf]
        %v7725 = vld [vmem:[%s7723 + $0x4] sm:$0xf]
        %v7726 = vld [vmem:[%s7723 + $0x8] sm:$0xf]
        %v7727 = vld [vmem:[%s7723 + $0xc] sm:$0xf]
        %v7728 = vld [vmem:[%s7723 + $0x10] sm:$0xf]
        %v7729 = vld [vmem:[%s7723 + $0x14] sm:$0xf]
        %v7730 = vld [vmem:[%s7723 + $0x18] sm:$0xf]
        %v7731 = vld [vmem:[%s7723 + $0x1c] sm:$0xf]
        %v7732 = vld [vmem:[%s7723 + $0x20] sm:$0xf]
        %v7733 = vld [vmem:[%s7723 + $0x24] sm:$0xf]
        %v7734 = vld [vmem:[%s7723 + $0x28] sm:$0xf]
        %v7735 = vld [vmem:[%s7723 + $0x2c] sm:$0xf]
        %v7736 = vld [vmem:[%s7723 + $0x30] sm:$0xf]
        %v7737 = vld [vmem:[%s7723 + $0x34] sm:$0xf]
        %v7738 = vld [vmem:[%s7723 + $0x38] sm:$0xf]
        %v7739 = vld [vmem:[%s7723 + $0x3c] sm:$0xf]
        %v7740 = vld [vmem:[%s7723 + $0x40] sm:$0xf]
        %v7741 = vld [vmem:[%s7723 + $0x44] sm:$0xf]
        %v7742 = vld [vmem:[%s7723 + $0x48] sm:$0xf]
        %v7743 = vld [vmem:[%s7723 + $0x4c] sm:$0xf]
        %v7744 = vld [vmem:[%s7723 + $0x50] sm:$0xf]
        %v7745 = vld [vmem:[%s7723 + $0x54] sm:$0xf]
        %v7746 = vld [vmem:[%s7723 + $0x58] sm:$0xf]
        %v7747 = vld [vmem:[%s7723 + $0x5c] sm:$0xf]
        %v7748 = vld [vmem:[%s7723 + $0x60] sm:$0xf]
        %v7749 = vld [vmem:[%s7723 + $0x64] sm:$0xf]
        %v7750 = vld [vmem:[%s7723 + $0x68] sm:$0xf]
        %v7751 = vld [vmem:[%s7723 + $0x6c] sm:$0xf]
        %v7752 = vld [vmem:[%s7723 + $0x70] sm:$0xf]
        %v7753 = vld [vmem:[%s7723 + $0x74] sm:$0xf]
        %v7754 = vld [vmem:[%s7723 + $0x78] sm:$0xf]
        %v7755 = vld [vmem:[%s7723 + $0x7c] sm:$0xf]
        %v7756 = vld [vmem:[%s7723 + $0x80] sm:$0xf]
        %v7757 = vld [vmem:[%s7723 + $0x84] sm:$0xf]
        %v7758 = vld [vmem:[%s7723 + $0x88] sm:$0xf]
        %v7759 = vld [vmem:[%s7723 + $0x8c] sm:$0xf]
        %v7760 = vld [vmem:[%s7723 + $0x90] sm:$0xf]
        %v7761 = vld [vmem:[%s7723 + $0x94] sm:$0xf]
        %v7762 = vld [vmem:[%s7723 + $0x98] sm:$0xf]
        %v7763 = vld [vmem:[%s7723 + $0x9c] sm:$0xf]
        %v7764 = vld [vmem:[%s7723 + $0xa0] sm:$0xf]
        %v7765 = vld [vmem:[%s7723 + $0xa4] sm:$0xf]
        %v7766 = vld [vmem:[%s7723 + $0xa8] sm:$0xf]
        %v7767 = vld [vmem:[%s7723 + $0xac] sm:$0xf]
        %v7768 = vld [vmem:[%s7723 + $0xb0] sm:$0xf]
        %v7769 = vld [vmem:[%s7723 + $0xb4] sm:$0xf]
        %v7770 = vld [vmem:[%s7723 + $0xb8] sm:$0xf]
        %v7771 = vld [vmem:[%s7723 + $0xbc] sm:$0xf]
        %v7836 = vunpack.c.l.b16 %v7659
        %v7837 = vunpack.c.h.b16 %v7659
        %v7838 = vunpack.c.l.b16 %v7660
        %v7839 = vunpack.c.l.b16 %v7661
        %v7840 = vunpack.c.h.b16 %v7661
        %v7841 = vunpack.c.l.b16 %v7662
        %v7842 = vunpack.c.l.b16 %v7663
        %v7843 = vunpack.c.h.b16 %v7663
        %v7844 = vunpack.c.l.b16 %v7664
        %v7845 = vunpack.c.l.b16 %v7665
        %v7846 = vunpack.c.h.b16 %v7665
        %v7847 = vunpack.c.l.b16 %v7666
        %v7848 = vunpack.c.l.b16 %v7667
        %v7849 = vunpack.c.h.b16 %v7667
        %v7850 = vunpack.c.l.b16 %v7668
        %v7851 = vunpack.c.l.b16 %v7669
        %v7852 = vunpack.c.h.b16 %v7669
        %v7853 = vunpack.c.l.b16 %v7670
        %v7854 = vunpack.c.l.b16 %v7671
        %v7855 = vunpack.c.h.b16 %v7671
        %v7856 = vunpack.c.l.b16 %v7672
        %v7857 = vunpack.c.l.b16 %v7673
        %v7858 = vunpack.c.h.b16 %v7673
        %v7859 = vunpack.c.l.b16 %v7674
        %v7860 = vunpack.c.l.b16 %v7675
        %v7861 = vunpack.c.h.b16 %v7675
        %v7862 = vunpack.c.l.b16 %v7676
        %v7863 = vunpack.c.l.b16 %v7677
        %v7864 = vunpack.c.h.b16 %v7677
        %v7865 = vunpack.c.l.b16 %v7678
        %v7866 = vunpack.c.l.b16 %v7679
        %v7867 = vunpack.c.h.b16 %v7679
        %v7868 = vunpack.c.l.b16 %v7680
        %v7869 = vunpack.c.l.b16 %v7681
        %v7870 = vunpack.c.h.b16 %v7681
        %v7871 = vunpack.c.l.b16 %v7682
        %v7872 = vunpack.c.l.b16 %v7683
        %v7873 = vunpack.c.h.b16 %v7683
        %v7874 = vunpack.c.l.b16 %v7684
        %v7875 = vunpack.c.l.b16 %v7685
        %v7876 = vunpack.c.h.b16 %v7685
        %v7877 = vunpack.c.l.b16 %v7686
        %v7878 = vunpack.c.l.b16 %v7687
        %v7879 = vunpack.c.h.b16 %v7687
        %v7880 = vunpack.c.l.b16 %v7688
        %v7881 = vunpack.c.l.b16 %v7689
        %v7882 = vunpack.c.h.b16 %v7689
        %v7883 = vunpack.c.l.b16 %v7690
        %v7884 = vunpack.c.l.b16 %v7691
        %v7885 = vunpack.c.h.b16 %v7691
        %v7886 = vunpack.c.l.b16 %v7692
        %v7887 = vunpack.c.l.b16 %v7693
        %v7888 = vunpack.c.h.b16 %v7693
        %v7889 = vunpack.c.l.b16 %v7694
        %v7890 = vunpack.c.l.b16 %v7695
        %v7891 = vunpack.c.h.b16 %v7695
        %v7892 = vunpack.c.l.b16 %v7696
        %v7893 = vunpack.c.l.b16 %v7697
        %v7894 = vunpack.c.h.b16 %v7697
        %v7895 = vunpack.c.l.b16 %v7698
        %v7896 = vunpack.c.l.b16 %v7699
        %v7897 = vunpack.c.h.b16 %v7699
        %v7898 = vunpack.c.l.b16 %v7700
        %v7899 = vunpack.c.l.b16 %v7701
        %v7900 = vunpack.c.h.b16 %v7701
        %v7901 = vunpack.c.l.b16 %v7702
        %v7902 = vunpack.c.l.b16 %v7703
        %v7903 = vunpack.c.h.b16 %v7703
        %v7904 = vunpack.c.l.b16 %v7704
        %v7905 = vunpack.c.l.b16 %v7705
        %v7906 = vunpack.c.h.b16 %v7705
        %v7907 = vunpack.c.l.b16 %v7706
        %v7908 = vunpack.c.l.b16 %v7707
        %v7909 = vunpack.c.h.b16 %v7707
        %v7910 = vunpack.c.l.b16 %v7708
        %v7911 = vunpack.c.l.b16 %v7709
        %v7912 = vunpack.c.h.b16 %v7709
        %v7913 = vunpack.c.l.b16 %v7710
        %v7914 = vunpack.c.l.b16 %v7711
        %v7915 = vunpack.c.h.b16 %v7711
        %v7916 = vunpack.c.l.b16 %v7712
        %v7917 = vunpack.c.l.b16 %v7713
        %v7918 = vunpack.c.h.b16 %v7713
        %v7919 = vunpack.c.l.b16 %v7714
        %v7920 = vunpack.c.l.b16 %v7715
        %v7921 = vunpack.c.h.b16 %v7715
        %v7922 = vunpack.c.l.b16 %v7716
        %v7923 = vunpack.c.l.b16 %v7717
        %v7924 = vunpack.c.h.b16 %v7717
        %v7925 = vunpack.c.l.b16 %v7718
        %v7926 = vunpack.c.l.b16 %v7719
        %v7927 = vunpack.c.h.b16 %v7719
        %v7928 = vunpack.c.l.b16 %v7720
        %v7929 = vunpack.c.l.b16 %v7721
        %v7930 = vunpack.c.h.b16 %v7721
        %v7931 = vunpack.c.l.b16 %v7722
        %v7932 = vpack.c.b16 %v7839, %v7836
        %v7933 = vpack.c.b16 %v7840, %v7837
        %v7934 = vpack.c.b16 %v7841, %v7838
        %v7935 = vpack.c.b16 %v7845, %v7842
        %v7936 = vpack.c.b16 %v7846, %v7843
        %v7937 = vpack.c.b16 %v7847, %v7844
        %v7938 = vpack.c.b16 %v7851, %v7848
        %v7939 = vpack.c.b16 %v7852, %v7849
        %v7940 = vpack.c.b16 %v7853, %v7850
        %v7941 = vpack.c.b16 %v7857, %v7854
        %v7942 = vpack.c.b16 %v7858, %v7855
        %v7943 = vpack.c.b16 %v7859, %v7856
        %v7944 = vpack.c.b16 %v7863, %v7860
        %v7945 = vpack.c.b16 %v7864, %v7861
        %v7946 = vpack.c.b16 %v7865, %v7862
        %v7947 = vpack.c.b16 %v7869, %v7866
        %v7948 = vpack.c.b16 %v7870, %v7867
        %v7949 = vpack.c.b16 %v7871, %v7868
        %v7950 = vpack.c.b16 %v7875, %v7872
        %v7951 = vpack.c.b16 %v7876, %v7873
        %v7952 = vpack.c.b16 %v7877, %v7874
        %v7953 = vpack.c.b16 %v7881, %v7878
        %v7954 = vpack.c.b16 %v7882, %v7879
        %v7955 = vpack.c.b16 %v7883, %v7880
        %v7956 = vpack.c.b16 %v7887, %v7884
        %v7957 = vpack.c.b16 %v7888, %v7885
        %v7958 = vpack.c.b16 %v7889, %v7886
        %v7959 = vpack.c.b16 %v7893, %v7890
        %v7960 = vpack.c.b16 %v7894, %v7891
        %v7961 = vpack.c.b16 %v7895, %v7892
        %v7962 = vpack.c.b16 %v7899, %v7896
        %v7963 = vpack.c.b16 %v7900, %v7897
        %v7964 = vpack.c.b16 %v7901, %v7898
        %v7965 = vpack.c.b16 %v7905, %v7902
        %v7966 = vpack.c.b16 %v7906, %v7903
        %v7967 = vpack.c.b16 %v7907, %v7904
        %v7968 = vpack.c.b16 %v7911, %v7908
        %v7969 = vpack.c.b16 %v7912, %v7909
        %v7970 = vpack.c.b16 %v7913, %v7910
        %v7971 = vpack.c.b16 %v7917, %v7914
        %v7972 = vpack.c.b16 %v7918, %v7915
        %v7973 = vpack.c.b16 %v7919, %v7916
        %v7974 = vpack.c.b16 %v7923, %v7920
        %v7975 = vpack.c.b16 %v7924, %v7921
        %v7976 = vpack.c.b16 %v7925, %v7922
        %v7977 = vpack.c.b16 %v7929, %v7926
        %v7978 = vpack.c.b16 %v7930, %v7927
        %v7979 = vpack.c.b16 %v7931, %v7928
        %v8076 = vunpack.c.l.b16 %v7724
        %v8077 = vunpack.c.l.b16 %v7725
        %v8078 = vunpack.c.l.b16 %v7726
        %v8079 = vunpack.c.l.b16 %v7727
        %v8080 = vunpack.c.l.b16 %v7728
        %v8081 = vunpack.c.l.b16 %v7729
        %v8082 = vunpack.c.l.b16 %v7730
        %v8083 = vunpack.c.l.b16 %v7731
        %v8084 = vunpack.c.l.b16 %v7732
        %v8085 = vunpack.c.l.b16 %v7733
        %v8086 = vunpack.c.l.b16 %v7734
        %v8087 = vunpack.c.l.b16 %v7735
        %v8088 = vunpack.c.l.b16 %v7736
        %v8089 = vunpack.c.l.b16 %v7737
        %v8090 = vunpack.c.l.b16 %v7738
        %v8091 = vunpack.c.l.b16 %v7739
        %v8092 = vunpack.c.l.b16 %v7740
        %v8093 = vunpack.c.l.b16 %v7741
        %v8094 = vunpack.c.l.b16 %v7742
        %v8095 = vunpack.c.l.b16 %v7743
        %v8096 = vunpack.c.l.b16 %v7744
        %v8097 = vunpack.c.l.b16 %v7745
        %v8098 = vunpack.c.l.b16 %v7746
        %v8099 = vunpack.c.l.b16 %v7747
        %v8100 = vunpack.c.l.b16 %v7748
        %v8101 = vunpack.c.l.b16 %v7749
        %v8102 = vunpack.c.l.b16 %v7750
        %v8103 = vunpack.c.l.b16 %v7751
        %v8104 = vunpack.c.l.b16 %v7752
        %v8105 = vunpack.c.l.b16 %v7753
        %v8106 = vunpack.c.l.b16 %v7754
        %v8107 = vunpack.c.l.b16 %v7755
        %v8108 = vunpack.c.l.b16 %v7756
        %v8109 = vunpack.c.l.b16 %v7757
        %v8110 = vunpack.c.l.b16 %v7758
        %v8111 = vunpack.c.l.b16 %v7759
        %v8112 = vunpack.c.l.b16 %v7760
        %v8113 = vunpack.c.l.b16 %v7761
        %v8114 = vunpack.c.l.b16 %v7762
        %v8115 = vunpack.c.l.b16 %v7763
        %v8116 = vunpack.c.l.b16 %v7764
        %v8117 = vunpack.c.l.b16 %v7765
        %v8118 = vunpack.c.l.b16 %v7766
        %v8119 = vunpack.c.l.b16 %v7767
        %v8120 = vunpack.c.l.b16 %v7768
        %v8121 = vunpack.c.l.b16 %v7769
        %v8122 = vunpack.c.l.b16 %v7770
        %v8123 = vunpack.c.l.b16 %v7771
        %v8124 = vpack.c.b16 %v8077, %v8076
        %v8125 = vpack.c.b16 %v8079, %v8078
        %v8126 = vpack.c.b16 %v8081, %v8080
        %v8127 = vpack.c.b16 %v8083, %v8082
        %v8128 = vpack.c.b16 %v8085, %v8084
        %v8129 = vpack.c.b16 %v8087, %v8086
        %v8130 = vpack.c.b16 %v8089, %v8088
        %v8131 = vpack.c.b16 %v8091, %v8090
        %v8132 = vpack.c.b16 %v8093, %v8092
        %v8133 = vpack.c.b16 %v8095, %v8094
        %v8134 = vpack.c.b16 %v8097, %v8096
        %v8135 = vpack.c.b16 %v8099, %v8098
        %v8136 = vpack.c.b16 %v8101, %v8100
        %v8137 = vpack.c.b16 %v8103, %v8102
        %v8138 = vpack.c.b16 %v8105, %v8104
        %v8139 = vpack.c.b16 %v8107, %v8106
        %v8140 = vpack.c.b16 %v8109, %v8108
        %v8141 = vpack.c.b16 %v8111, %v8110
        %v8142 = vpack.c.b16 %v8113, %v8112
        %v8143 = vpack.c.b16 %v8115, %v8114
        %v8144 = vpack.c.b16 %v8117, %v8116
        %v8145 = vpack.c.b16 %v8119, %v8118
        %v8146 = vpack.c.b16 %v8121, %v8120
        %v8147 = vpack.c.b16 %v8123, %v8122
        %8172 = vmatpush.bf16.msra.mxu0 %v8131
        %8173 = vmatpush.bf16.msra.mxu0 %v8130
        %8174 = vmatpush.bf16.msra.mxu0 %v8129
        %8175 = vmatpush.bf16.msra.mxu0 %v8128
        %8176 = vmatpush.bf16.msra.mxu0 %v8127
        %8177 = vmatpush.bf16.msra.mxu0 %v8126
        %8178 = vmatpush.bf16.msra.mxu0 %v8125
        %8179 = vmatpush.bf16.msra.mxu0 %v8124
        %8180 = vmatmul.bf16.gmra.mxu0 %v7932
        %v8181 = vpop.f32.mrf.mxu0
        %v8182 = vadd.f32 0.0, %v8181
        %v8183 = vpop.f32.mrf.mxu0
        %v8184 = vadd.f32 0.0, %v8183
        %8185 = vmatmul.bf16.gmra.mxu0 %v7935
        %v8186 = vpop.f32.mrf.mxu0
        %v8187 = vadd.f32 0.0, %v8186
        %v8188 = vpop.f32.mrf.mxu0
        %v8189 = vadd.f32 0.0, %v8188
        %8190 = vmatmul.bf16.gmra.mxu0 %v7938
        %v8191 = vpop.f32.mrf.mxu0
        %v8192 = vadd.f32 0.0, %v8191
        %v8193 = vpop.f32.mrf.mxu0
        %v8194 = vadd.f32 0.0, %v8193
        %8195 = vmatmul.bf16.gmra.mxu0 %v7941
        %v8196 = vpop.f32.mrf.mxu0
        %v8197 = vadd.f32 0.0, %v8196
        %v8198 = vpop.f32.mrf.mxu0
        %v8199 = vadd.f32 0.0, %v8198
        %8200 = vmatmul.bf16.gmra.mxu0 %v7944
        %v8201 = vpop.f32.mrf.mxu0
        %v8202 = vadd.f32 0.0, %v8201
        %v8203 = vpop.f32.mrf.mxu0
        %v8204 = vadd.f32 0.0, %v8203
        %8205 = vmatmul.bf16.gmra.mxu0 %v7947
        %v8206 = vpop.f32.mrf.mxu0
        %v8207 = vadd.f32 0.0, %v8206
        %v8208 = vpop.f32.mrf.mxu0
        %v8209 = vadd.f32 0.0, %v8208
        %8210 = vmatmul.bf16.gmra.mxu0 %v7950
        %v8211 = vpop.f32.mrf.mxu0
        %v8212 = vadd.f32 0.0, %v8211
        %v8213 = vpop.f32.mrf.mxu0
        %v8214 = vadd.f32 0.0, %v8213
        %8215 = vmatmul.bf16.gmra.mxu0 %v7953
        %v8216 = vpop.f32.mrf.mxu0
        %v8217 = vadd.f32 0.0, %v8216
        %v8218 = vpop.f32.mrf.mxu0
        %v8219 = vadd.f32 0.0, %v8218
        %8220 = vmatmul.bf16.gmra.mxu0 %v7956
        %v8221 = vpop.f32.mrf.mxu0
        %v8222 = vadd.f32 0.0, %v8221
        %v8223 = vpop.f32.mrf.mxu0
        %v8224 = vadd.f32 0.0, %v8223
        %8225 = vmatmul.bf16.gmra.mxu0 %v7959
        %v8226 = vpop.f32.mrf.mxu0
        %v8227 = vadd.f32 0.0, %v8226
        %v8228 = vpop.f32.mrf.mxu0
        %v8229 = vadd.f32 0.0, %v8228
        %8230 = vmatmul.bf16.gmra.mxu0 %v7962
        %v8231 = vpop.f32.mrf.mxu0
        %v8232 = vadd.f32 0.0, %v8231
        %v8233 = vpop.f32.mrf.mxu0
        %v8234 = vadd.f32 0.0, %v8233
        %8235 = vmatmul.bf16.gmra.mxu0 %v7965
        %v8236 = vpop.f32.mrf.mxu0
        %v8237 = vadd.f32 0.0, %v8236
        %v8238 = vpop.f32.mrf.mxu0
        %v8239 = vadd.f32 0.0, %v8238
        %8240 = vmatmul.bf16.gmra.mxu0 %v7968
        %v8241 = vpop.f32.mrf.mxu0
        %v8242 = vadd.f32 0.0, %v8241
        %v8243 = vpop.f32.mrf.mxu0
        %v8244 = vadd.f32 0.0, %v8243
        %8245 = vmatmul.bf16.gmra.mxu0 %v7971
        %v8246 = vpop.f32.mrf.mxu0
        %v8247 = vadd.f32 0.0, %v8246
        %v8248 = vpop.f32.mrf.mxu0
        %v8249 = vadd.f32 0.0, %v8248
        %8250 = vmatmul.bf16.gmra.mxu0 %v7974
        %v8251 = vpop.f32.mrf.mxu0
        %v8252 = vadd.f32 0.0, %v8251
        %v8253 = vpop.f32.mrf.mxu0
        %v8254 = vadd.f32 0.0, %v8253
        %8255 = vmatmul.bf16.gmra.mxu0 %v7977
        %v8256 = vpop.f32.mrf.mxu0
        %v8257 = vadd.f32 0.0, %v8256
        %v8258 = vpop.f32.mrf.mxu0
        %v8259 = vadd.f32 0.0, %v8258
        %8260 = vdwg.mxu0
        %8261 = vmatpush.bf16.msra.mxu0 %v8139
        %8262 = vmatpush.bf16.msra.mxu0 %v8138
        %8263 = vmatpush.bf16.msra.mxu0 %v8137
        %8264 = vmatpush.bf16.msra.mxu0 %v8136
        %8265 = vmatpush.bf16.msra.mxu0 %v8135
        %8266 = vmatpush.bf16.msra.mxu0 %v8134
        %8267 = vmatpush.bf16.msra.mxu0 %v8133
        %8268 = vmatpush.bf16.msra.mxu0 %v8132
        %8269 = vmatmul.bf16.gmra.mxu0 %v7933
        %v8270 = vpop.f32.mrf.mxu0
        %v8271 = vadd.f32 %v8182, %v8270
        %v8272 = vpop.f32.mrf.mxu0
        %v8273 = vadd.f32 %v8184, %v8272
        %8274 = vmatmul.bf16.gmra.mxu0 %v7936
        %v8275 = vpop.f32.mrf.mxu0
        %v8276 = vadd.f32 %v8187, %v8275
        %v8277 = vpop.f32.mrf.mxu0
        %v8278 = vadd.f32 %v8189, %v8277
        %8279 = vmatmul.bf16.gmra.mxu0 %v7939
        %v8280 = vpop.f32.mrf.mxu0
        %v8281 = vadd.f32 %v8192, %v8280
        %v8282 = vpop.f32.mrf.mxu0
        %v8283 = vadd.f32 %v8194, %v8282
        %8284 = vmatmul.bf16.gmra.mxu0 %v7942
        %v8285 = vpop.f32.mrf.mxu0
        %v8286 = vadd.f32 %v8197, %v8285
        %v8287 = vpop.f32.mrf.mxu0
        %v8288 = vadd.f32 %v8199, %v8287
        %8289 = vmatmul.bf16.gmra.mxu0 %v7945
        %v8290 = vpop.f32.mrf.mxu0
        %v8291 = vadd.f32 %v8202, %v8290
        %v8292 = vpop.f32.mrf.mxu0
        %v8293 = vadd.f32 %v8204, %v8292
        %8294 = vmatmul.bf16.gmra.mxu0 %v7948
        %v8295 = vpop.f32.mrf.mxu0
        %v8296 = vadd.f32 %v8207, %v8295
        %v8297 = vpop.f32.mrf.mxu0
        %v8298 = vadd.f32 %v8209, %v8297
        %8299 = vmatmul.bf16.gmra.mxu0 %v7951
        %v8300 = vpop.f32.mrf.mxu0
        %v8301 = vadd.f32 %v8212, %v8300
        %v8302 = vpop.f32.mrf.mxu0
        %v8303 = vadd.f32 %v8214, %v8302
        %8304 = vmatmul.bf16.gmra.mxu0 %v7954
        %v8305 = vpop.f32.mrf.mxu0
        %v8306 = vadd.f32 %v8217, %v8305
        %v8307 = vpop.f32.mrf.mxu0
        %v8308 = vadd.f32 %v8219, %v8307
        %8309 = vmatmul.bf16.gmra.mxu0 %v7957
        %v8310 = vpop.f32.mrf.mxu0
        %v8311 = vadd.f32 %v8222, %v8310
        %v8312 = vpop.f32.mrf.mxu0
        %v8313 = vadd.f32 %v8224, %v8312
        %8314 = vmatmul.bf16.gmra.mxu0 %v7960
        %v8315 = vpop.f32.mrf.mxu0
        %v8316 = vadd.f32 %v8227, %v8315
        %v8317 = vpop.f32.mrf.mxu0
        %v8318 = vadd.f32 %v8229, %v8317
        %8319 = vmatmul.bf16.gmra.mxu0 %v7963
        %v8320 = vpop.f32.mrf.mxu0
        %v8321 = vadd.f32 %v8232, %v8320
        %v8322 = vpop.f32.mrf.mxu0
        %v8323 = vadd.f32 %v8234, %v8322
        %8324 = vmatmul.bf16.gmra.mxu0 %v7966
        %v8325 = vpop.f32.mrf.mxu0
        %v8326 = vadd.f32 %v8237, %v8325
        %v8327 = vpop.f32.mrf.mxu0
        %v8328 = vadd.f32 %v8239, %v8327
        %8329 = vmatmul.bf16.gmra.mxu0 %v7969
        %v8330 = vpop.f32.mrf.mxu0
        %v8331 = vadd.f32 %v8242, %v8330
        %v8332 = vpop.f32.mrf.mxu0
        %v8333 = vadd.f32 %v8244, %v8332
        %8334 = vmatmul.bf16.gmra.mxu0 %v7972
        %v8335 = vpop.f32.mrf.mxu0
        %v8336 = vadd.f32 %v8247, %v8335
        %v8337 = vpop.f32.mrf.mxu0
        %v8338 = vadd.f32 %v8249, %v8337
        %8339 = vmatmul.bf16.gmra.mxu0 %v7975
        %v8340 = vpop.f32.mrf.mxu0
        %v8341 = vadd.f32 %v8252, %v8340
        %v8342 = vpop.f32.mrf.mxu0
        %v8343 = vadd.f32 %v8254, %v8342
        %8344 = vmatmul.bf16.gmra.mxu0 %v7978
        %v8345 = vpop.f32.mrf.mxu0
        %v8346 = vadd.f32 %v8257, %v8345
        %v8347 = vpop.f32.mrf.mxu0
        %v8348 = vadd.f32 %v8259, %v8347
        %8349 = vdwg.mxu0
        %8350 = vmatpush.bf16.msra.mxu0 %v8147
        %8351 = vmatpush.bf16.msra.mxu0 %v8146
        %8352 = vmatpush.bf16.msra.mxu0 %v8145
        %8353 = vmatpush.bf16.msra.mxu0 %v8144
        %8354 = vmatpush.bf16.msra.mxu0 %v8143
        %8355 = vmatpush.bf16.msra.mxu0 %v8142
        %8356 = vmatpush.bf16.msra.mxu0 %v8141
        %8357 = vmatpush.bf16.msra.mxu0 %v8140
        %8358 = vmatmul.bf16.gmra.mxu0 %v7934
        %v8359 = vpop.f32.mrf.mxu0
        %v8360 = vadd.f32 %v8271, %v8359
        %v8361 = vpop.f32.mrf.mxu0
        %v8362 = vadd.f32 %v8273, %v8361
        %8363 = vmatmul.bf16.gmra.mxu0 %v7937
        %v8364 = vpop.f32.mrf.mxu0
        %v8365 = vadd.f32 %v8276, %v8364
        %v8366 = vpop.f32.mrf.mxu0
        %v8367 = vadd.f32 %v8278, %v8366
        %8368 = vmatmul.bf16.gmra.mxu0 %v7940
        %v8369 = vpop.f32.mrf.mxu0
        %v8370 = vadd.f32 %v8281, %v8369
        %v8371 = vpop.f32.mrf.mxu0
        %v8372 = vadd.f32 %v8283, %v8371
        %8373 = vmatmul.bf16.gmra.mxu0 %v7943
        %v8374 = vpop.f32.mrf.mxu0
        %v8375 = vadd.f32 %v8286, %v8374
        %v8376 = vpop.f32.mrf.mxu0
        %v8377 = vadd.f32 %v8288, %v8376
        %8378 = vmatmul.bf16.gmra.mxu0 %v7946
        %v8379 = vpop.f32.mrf.mxu0
        %v8380 = vadd.f32 %v8291, %v8379
        %v8381 = vpop.f32.mrf.mxu0
        %v8382 = vadd.f32 %v8293, %v8381
        %8383 = vmatmul.bf16.gmra.mxu0 %v7949
        %v8384 = vpop.f32.mrf.mxu0
        %v8385 = vadd.f32 %v8296, %v8384
        %v8386 = vpop.f32.mrf.mxu0
        %v8387 = vadd.f32 %v8298, %v8386
        %8388 = vmatmul.bf16.gmra.mxu0 %v7952
        %v8389 = vpop.f32.mrf.mxu0
        %v8390 = vadd.f32 %v8301, %v8389
        %v8391 = vpop.f32.mrf.mxu0
        %v8392 = vadd.f32 %v8303, %v8391
        %8393 = vmatmul.bf16.gmra.mxu0 %v7955
        %v8394 = vpop.f32.mrf.mxu0
        %v8395 = vadd.f32 %v8306, %v8394
        %v8396 = vpop.f32.mrf.mxu0
        %v8397 = vadd.f32 %v8308, %v8396
        %8398 = vmatmul.bf16.gmra.mxu0 %v7958
        %v8399 = vpop.f32.mrf.mxu0
        %v8400 = vadd.f32 %v8311, %v8399
        %v8401 = vpop.f32.mrf.mxu0
        %v8402 = vadd.f32 %v8313, %v8401
        %8403 = vmatmul.bf16.gmra.mxu0 %v7961
        %v8404 = vpop.f32.mrf.mxu0
        %v8405 = vadd.f32 %v8316, %v8404
        %v8406 = vpop.f32.mrf.mxu0
        %v8407 = vadd.f32 %v8318, %v8406
        %8408 = vmatmul.bf16.gmra.mxu0 %v7964
        %v8409 = vpop.f32.mrf.mxu0
        %v8410 = vadd.f32 %v8321, %v8409
        %v8411 = vpop.f32.mrf.mxu0
        %v8412 = vadd.f32 %v8323, %v8411
        %8413 = vmatmul.bf16.gmra.mxu0 %v7967
        %v8414 = vpop.f32.mrf.mxu0
        %v8415 = vadd.f32 %v8326, %v8414
        %v8416 = vpop.f32.mrf.mxu0
        %v8417 = vadd.f32 %v8328, %v8416
        %8418 = vmatmul.bf16.gmra.mxu0 %v7970
        %v8419 = vpop.f32.mrf.mxu0
        %v8420 = vadd.f32 %v8331, %v8419
        %v8421 = vpop.f32.mrf.mxu0
        %v8422 = vadd.f32 %v8333, %v8421
        %8423 = vmatmul.bf16.gmra.mxu0 %v7973
        %v8424 = vpop.f32.mrf.mxu0
        %v8425 = vadd.f32 %v8336, %v8424
        %v8426 = vpop.f32.mrf.mxu0
        %v8427 = vadd.f32 %v8338, %v8426
        %8428 = vmatmul.bf16.gmra.mxu0 %v7976
        %v8429 = vpop.f32.mrf.mxu0
        %v8430 = vadd.f32 %v8341, %v8429
        %v8431 = vpop.f32.mrf.mxu0
        %v8432 = vadd.f32 %v8343, %v8431
        %8433 = vmatmul.bf16.gmra.mxu0 %v7979
        %v8434 = vpop.f32.mrf.mxu0
        %v8435 = vadd.f32 %v8346, %v8434
        %v8436 = vpop.f32.mrf.mxu0
        %v8437 = vadd.f32 %v8348, %v8436
        %8438 = vdwg.mxu0
        %v8439 = vadd.f32 %v7627, %v8360
        %v8440 = vadd.f32 %v7628, %v8362
        %v8441 = vadd.f32 %v7629, %v8365
        %v8442 = vadd.f32 %v7630, %v8367
        %v8443 = vadd.f32 %v7631, %v8370
        %v8444 = vadd.f32 %v7632, %v8372
        %v8445 = vadd.f32 %v7633, %v8375
        %v8446 = vadd.f32 %v7634, %v8377
        %v8447 = vadd.f32 %v7635, %v8380
        %v8448 = vadd.f32 %v7636, %v8382
        %v8449 = vadd.f32 %v7637, %v8385
        %v8450 = vadd.f32 %v7638, %v8387
        %v8451 = vadd.f32 %v7639, %v8390
        %v8452 = vadd.f32 %v7640, %v8392
        %v8453 = vadd.f32 %v7641, %v8395
        %v8454 = vadd.f32 %v7642, %v8397
        %v8455 = vadd.f32 %v7643, %v8400
        %v8456 = vadd.f32 %v7644, %v8402
        %v8457 = vadd.f32 %v7645, %v8405
        %v8458 = vadd.f32 %v7646, %v8407
        %v8459 = vadd.f32 %v7647, %v8410
        %v8460 = vadd.f32 %v7648, %v8412
        %v8461 = vadd.f32 %v7649, %v8415
        %v8462 = vadd.f32 %v7650, %v8417
        %v8463 = vadd.f32 %v7651, %v8420
        %v8464 = vadd.f32 %v7652, %v8422
        %v8465 = vadd.f32 %v7653, %v8425
        %v8466 = vadd.f32 %v7654, %v8427
        %v8467 = vadd.f32 %v7655, %v8430
        %v8468 = vadd.f32 %v7656, %v8432
        %v8469 = vadd.f32 %v7657, %v8435
        %v8470 = vadd.f32 %v7658, %v8437
        %8471 = vst [vmem:[#allocation4] sm:$0xff] %v8439
        %8472 = vst [vmem:[#allocation4 + $0x8] sm:$0xff] %v8440
        %8473 = vst [vmem:[#allocation4 + $0x10] sm:$0xff] %v8441
        %8474 = vst [vmem:[#allocation4 + $0x18] sm:$0xff] %v8442
        %8475 = vst [vmem:[#allocation4 + $0x20] sm:$0xff] %v8443
        %8476 = vst [vmem:[#allocation4 + $0x28] sm:$0xff] %v8444
        %8477 = vst [vmem:[#allocation4 + $0x30] sm:$0xff] %v8445
        %8478 = vst [vmem:[#allocation4 + $0x38] sm:$0xff] %v8446
        %8479 = vst [vmem:[#allocation4 + $0x40] sm:$0xff] %v8447
        %8480 = vst [vmem:[#allocation4 + $0x48] sm:$0xff] %v8448
        %8481 = vst [vmem:[#allocation4 + $0x50] sm:$0xff] %v8449
        %8482 = vst [vmem:[#allocation4 + $0x58] sm:$0xff] %v8450
        %8483 = vst [vmem:[#allocation4 + $0x60] sm:$0xff] %v8451
        %8484 = vst [vmem:[#allocation4 + $0x68] sm:$0xff] %v8452
        %8485 = vst [vmem:[#allocation4 + $0x70] sm:$0xff] %v8453
        %8486 = vst [vmem:[#allocation4 + $0x78] sm:$0xff] %v8454
        %8487 = vst [vmem:[#allocation4 + $0x80] sm:$0xff] %v8455
        %8488 = vst [vmem:[#allocation4 + $0x88] sm:$0xff] %v8456
        %8489 = vst [vmem:[#allocation4 + $0x90] sm:$0xff] %v8457
        %8490 = vst [vmem:[#allocation4 + $0x98] sm:$0xff] %v8458
        %8491 = vst [vmem:[#allocation4 + $0xa0] sm:$0xff] %v8459
        %8492 = vst [vmem:[#allocation4 + $0xa8] sm:$0xff] %v8460
        %8493 = vst [vmem:[#allocation4 + $0xb0] sm:$0xff] %v8461
        %8494 = vst [vmem:[#allocation4 + $0xb8] sm:$0xff] %v8462
        %8495 = vst [vmem:[#allocation4 + $0xc0] sm:$0xff] %v8463
        %8496 = vst [vmem:[#allocation4 + $0xc8] sm:$0xff] %v8464
        %8497 = vst [vmem:[#allocation4 + $0xd0] sm:$0xff] %v8465
        %8498 = vst [vmem:[#allocation4 + $0xd8] sm:$0xff] %v8466
        %8499 = vst [vmem:[#allocation4 + $0xe0] sm:$0xff] %v8467
        %8500 = vst [vmem:[#allocation4 + $0xe8] sm:$0xff] %v8468
        %8501 = vst [vmem:[#allocation4 + $0xf0] sm:$0xff] %v8469
        %8502 = vst [vmem:[#allocation4 + $0xf8] sm:$0xff] %v8470
        %v8503 = vld [vmem:[%s290] sm:$0xff]
        %v8504 = vld [vmem:[%s290 + $0x8] sm:$0xff]
        %v8505 = vld [vmem:[%s290 + $0x10] sm:$0xff]
        %v8506 = vld [vmem:[%s290 + $0x18] sm:$0xff]
        %v8507 = vld [vmem:[%s290 + $0x20] sm:$0xff]
        %v8508 = vld [vmem:[%s290 + $0x28] sm:$0xff]
        %v8509 = vld [vmem:[%s290 + $0x30] sm:$0xff]
        %v8510 = vld [vmem:[%s290 + $0x38] sm:$0xff]
        %v8511 = vld [vmem:[%s290 + $0x40] sm:$0xff]
        %v8512 = vld [vmem:[%s290 + $0x48] sm:$0xff]
        %v8513 = vld [vmem:[%s290 + $0x50] sm:$0xff]
        %v8514 = vld [vmem:[%s290 + $0x58] sm:$0xff]
        %v8515 = vld [vmem:[%s290 + $0x60] sm:$0xff]
        %v8516 = vld [vmem:[%s290 + $0x68] sm:$0xff]
        %v8517 = vld [vmem:[%s290 + $0x70] sm:$0xff]
        %v8518 = vld [vmem:[%s290 + $0x78] sm:$0xff]
        %v8519 = vld [vmem:[%s290 + $0x80] sm:$0xff]
        %v8520 = vld [vmem:[%s290 + $0x88] sm:$0xff]
        %v8521 = vld [vmem:[%s290 + $0x90] sm:$0xff]
        %v8522 = vld [vmem:[%s290 + $0x98] sm:$0xff]
        %v8523 = vld [vmem:[%s290 + $0xa0] sm:$0xff]
        %v8524 = vld [vmem:[%s290 + $0xa8] sm:$0xff]
        %v8525 = vld [vmem:[%s290 + $0xb0] sm:$0xff]
        %v8526 = vld [vmem:[%s290 + $0xb8] sm:$0xff]
        %v8527 = vld [vmem:[%s290 + $0xc0] sm:$0xff]
        %v8528 = vld [vmem:[%s290 + $0xc8] sm:$0xff]
        %v8529 = vld [vmem:[%s290 + $0xd0] sm:$0xff]
        %v8530 = vld [vmem:[%s290 + $0xd8] sm:$0xff]
        %v8531 = vld [vmem:[%s290 + $0xe0] sm:$0xff]
        %v8532 = vld [vmem:[%s290 + $0xe8] sm:$0xff]
        %v8533 = vld [vmem:[%s290 + $0xf0] sm:$0xff]
        %v8534 = vld [vmem:[%s290 + $0xf8] sm:$0xff]
        %v8535 = vld [vmem:[#allocation4] sm:$0xff]
        %v8536 = vld [vmem:[#allocation4 + $0x8] sm:$0xff]
        %v8537 = vld [vmem:[#allocation4 + $0x10] sm:$0xff]
        %v8538 = vld [vmem:[#allocation4 + $0x18] sm:$0xff]
        %v8539 = vld [vmem:[#allocation4 + $0x20] sm:$0xff]
        %v8540 = vld [vmem:[#allocation4 + $0x28] sm:$0xff]
        %v8541 = vld [vmem:[#allocation4 + $0x30] sm:$0xff]
        %v8542 = vld [vmem:[#allocation4 + $0x38] sm:$0xff]
        %v8543 = vld [vmem:[#allocation4 + $0x40] sm:$0xff]
        %v8544 = vld [vmem:[#allocation4 + $0x48] sm:$0xff]
        %v8545 = vld [vmem:[#allocation4 + $0x50] sm:$0xff]
        %v8546 = vld [vmem:[#allocation4 + $0x58] sm:$0xff]
        %v8547 = vld [vmem:[#allocation4 + $0x60] sm:$0xff]
        %v8548 = vld [vmem:[#allocation4 + $0x68] sm:$0xff]
        %v8549 = vld [vmem:[#allocation4 + $0x70] sm:$0xff]
        %v8550 = vld [vmem:[#allocation4 + $0x78] sm:$0xff]
        %v8551 = vld [vmem:[#allocation4 + $0x80] sm:$0xff]
        %v8552 = vld [vmem:[#allocation4 + $0x88] sm:$0xff]
        %v8553 = vld [vmem:[#allocation4 + $0x90] sm:$0xff]
        %v8554 = vld [vmem:[#allocation4 + $0x98] sm:$0xff]
        %v8555 = vld [vmem:[#allocation4 + $0xa0] sm:$0xff]
        %v8556 = vld [vmem:[#allocation4 + $0xa8] sm:$0xff]
        %v8557 = vld [vmem:[#allocation4 + $0xb0] sm:$0xff]
        %v8558 = vld [vmem:[#allocation4 + $0xb8] sm:$0xff]
        %v8559 = vld [vmem:[#allocation4 + $0xc0] sm:$0xff]
        %v8560 = vld [vmem:[#allocation4 + $0xc8] sm:$0xff]
        %v8561 = vld [vmem:[#allocation4 + $0xd0] sm:$0xff]
        %v8562 = vld [vmem:[#allocation4 + $0xd8] sm:$0xff]
        %v8563 = vld [vmem:[#allocation4 + $0xe0] sm:$0xff]
        %v8564 = vld [vmem:[#allocation4 + $0xe8] sm:$0xff]
        %v8565 = vld [vmem:[#allocation4 + $0xf0] sm:$0xff]
        %v8566 = vld [vmem:[#allocation4 + $0xf8] sm:$0xff]
        %v8567 = vld [vmem:[%s5] sm:$0x1]
        %v8569 = vperm.slane %v8567, 0
        %v8571 = vmul.f32 %v8535, %v8569
        %v8572 = vmul.f32 %v8536, %v8569
        %v8573 = vmul.f32 %v8537, %v8569
        %v8574 = vmul.f32 %v8538, %v8569
        %v8575 = vmul.f32 %v8539, %v8569
        %v8576 = vmul.f32 %v8540, %v8569
        %v8577 = vmul.f32 %v8541, %v8569
        %v8578 = vmul.f32 %v8542, %v8569
        %v8579 = vmul.f32 %v8543, %v8569
        %v8580 = vmul.f32 %v8544, %v8569
        %v8581 = vmul.f32 %v8545, %v8569
        %v8582 = vmul.f32 %v8546, %v8569
        %v8583 = vmul.f32 %v8547, %v8569
        %v8584 = vmul.f32 %v8548, %v8569
        %v8585 = vmul.f32 %v8549, %v8569
        %v8586 = vmul.f32 %v8550, %v8569
        %v8587 = vmul.f32 %v8551, %v8569
        %v8588 = vmul.f32 %v8552, %v8569
        %v8589 = vmul.f32 %v8553, %v8569
        %v8590 = vmul.f32 %v8554, %v8569
        %v8591 = vmul.f32 %v8555, %v8569
        %v8592 = vmul.f32 %v8556, %v8569
        %v8593 = vmul.f32 %v8557, %v8569
        %v8594 = vmul.f32 %v8558, %v8569
        %v8595 = vmul.f32 %v8559, %v8569
        %v8596 = vmul.f32 %v8560, %v8569
        %v8597 = vmul.f32 %v8561, %v8569
        %v8598 = vmul.f32 %v8562, %v8569
        %v8599 = vmul.f32 %v8563, %v8569
        %v8600 = vmul.f32 %v8564, %v8569
        %v8601 = vmul.f32 %v8565, %v8569
        %v8602 = vmul.f32 %v8566, %v8569
        %v8603 = vld [vmem:[%s6] sm:$0x1]
        %v8605 = vperm.slane %v8603, 0
        %v8607 = vadd.f32 %v8571, %v8605
        %v8608 = vadd.f32 %v8572, %v8605
        %v8609 = vadd.f32 %v8573, %v8605
        %v8610 = vadd.f32 %v8574, %v8605
        %v8611 = vadd.f32 %v8575, %v8605
        %v8612 = vadd.f32 %v8576, %v8605
        %v8613 = vadd.f32 %v8577, %v8605
        %v8614 = vadd.f32 %v8578, %v8605
        %v8615 = vadd.f32 %v8579, %v8605
        %v8616 = vadd.f32 %v8580, %v8605
        %v8617 = vadd.f32 %v8581, %v8605
        %v8618 = vadd.f32 %v8582, %v8605
        %v8619 = vadd.f32 %v8583, %v8605
        %v8620 = vadd.f32 %v8584, %v8605
        %v8621 = vadd.f32 %v8585, %v8605
        %v8622 = vadd.f32 %v8586, %v8605
        %v8623 = vadd.f32 %v8587, %v8605
        %v8624 = vadd.f32 %v8588, %v8605
        %v8625 = vadd.f32 %v8589, %v8605
        %v8626 = vadd.f32 %v8590, %v8605
        %v8627 = vadd.f32 %v8591, %v8605
        %v8628 = vadd.f32 %v8592, %v8605
        %v8629 = vadd.f32 %v8593, %v8605
        %v8630 = vadd.f32 %v8594, %v8605
        %v8631 = vadd.f32 %v8595, %v8605
        %v8632 = vadd.f32 %v8596, %v8605
        %v8633 = vadd.f32 %v8597, %v8605
        %v8634 = vadd.f32 %v8598, %v8605
        %v8635 = vadd.f32 %v8599, %v8605
        %v8636 = vadd.f32 %v8600, %v8605
        %v8637 = vadd.f32 %v8601, %v8605
        %v8638 = vadd.f32 %v8602, %v8605
        %v8639 = vadd.f32 %v8607, %v8503
        %v8640 = vadd.f32 %v8608, %v8504
        %v8641 = vadd.f32 %v8609, %v8505
        %v8642 = vadd.f32 %v8610, %v8506
        %v8643 = vadd.f32 %v8611, %v8507
        %v8644 = vadd.f32 %v8612, %v8508
        %v8645 = vadd.f32 %v8613, %v8509
        %v8646 = vadd.f32 %v8614, %v8510
        %v8647 = vadd.f32 %v8615, %v8511
        %v8648 = vadd.f32 %v8616, %v8512
        %v8649 = vadd.f32 %v8617, %v8513
        %v8650 = vadd.f32 %v8618, %v8514
        %v8651 = vadd.f32 %v8619, %v8515
        %v8652 = vadd.f32 %v8620, %v8516
        %v8653 = vadd.f32 %v8621, %v8517
        %v8654 = vadd.f32 %v8622, %v8518
        %v8655 = vadd.f32 %v8623, %v8519
        %v8656 = vadd.f32 %v8624, %v8520
        %v8657 = vadd.f32 %v8625, %v8521
        %v8658 = vadd.f32 %v8626, %v8522
        %v8659 = vadd.f32 %v8627, %v8523
        %v8660 = vadd.f32 %v8628, %v8524
        %v8661 = vadd.f32 %v8629, %v8525
        %v8662 = vadd.f32 %v8630, %v8526
        %v8663 = vadd.f32 %v8631, %v8527
        %v8664 = vadd.f32 %v8632, %v8528
        %v8665 = vadd.f32 %v8633, %v8529
        %v8666 = vadd.f32 %v8634, %v8530
        %v8667 = vadd.f32 %v8635, %v8531
        %v8668 = vadd.f32 %v8636, %v8532
        %v8669 = vadd.f32 %v8637, %v8533
        %v8670 = vadd.f32 %v8638, %v8534
        %v8671 = vmax.f32 %v8639, 0.0
        %v8672 = vmax.f32 %v8640, 0.0
        %v8673 = vmax.f32 %v8641, 0.0
        %v8674 = vmax.f32 %v8642, 0.0
        %v8675 = vmax.f32 %v8643, 0.0
        %v8676 = vmax.f32 %v8644, 0.0
        %v8677 = vmax.f32 %v8645, 0.0
        %v8678 = vmax.f32 %v8646, 0.0
        %v8679 = vmax.f32 %v8647, 0.0
        %v8680 = vmax.f32 %v8648, 0.0
        %v8681 = vmax.f32 %v8649, 0.0
        %v8682 = vmax.f32 %v8650, 0.0
        %v8683 = vmax.f32 %v8651, 0.0
        %v8684 = vmax.f32 %v8652, 0.0
        %v8685 = vmax.f32 %v8653, 0.0
        %v8686 = vmax.f32 %v8654, 0.0
        %v8687 = vmax.f32 %v8655, 0.0
        %v8688 = vmax.f32 %v8656, 0.0
        %v8689 = vmax.f32 %v8657, 0.0
        %v8690 = vmax.f32 %v8658, 0.0
        %v8691 = vmax.f32 %v8659, 0.0
        %v8692 = vmax.f32 %v8660, 0.0
        %v8693 = vmax.f32 %v8661, 0.0
        %v8694 = vmax.f32 %v8662, 0.0
        %v8695 = vmax.f32 %v8663, 0.0
        %v8696 = vmax.f32 %v8664, 0.0
        %v8697 = vmax.f32 %v8665, 0.0
        %v8698 = vmax.f32 %v8666, 0.0
        %v8699 = vmax.f32 %v8667, 0.0
        %v8700 = vmax.f32 %v8668, 0.0
        %v8701 = vmax.f32 %v8669, 0.0
        %v8702 = vmax.f32 %v8670, 0.0
        %8703 = vst [vmem:[%s331] sm:$0xff] %v8671
        %8704 = vst [vmem:[%s331 + $0x8] sm:$0xff] %v8672
        %8705 = vst [vmem:[%s331 + $0x10] sm:$0xff] %v8673
        %8706 = vst [vmem:[%s331 + $0x18] sm:$0xff] %v8674
        %8707 = vst [vmem:[%s331 + $0x20] sm:$0xff] %v8675
        %8708 = vst [vmem:[%s331 + $0x28] sm:$0xff] %v8676
        %8709 = vst [vmem:[%s331 + $0x30] sm:$0xff] %v8677
        %8710 = vst [vmem:[%s331 + $0x38] sm:$0xff] %v8678
        %8711 = vst [vmem:[%s331 + $0x40] sm:$0xff] %v8679
        %8712 = vst [vmem:[%s331 + $0x48] sm:$0xff] %v8680
        %8713 = vst [vmem:[%s331 + $0x50] sm:$0xff] %v8681
        %8714 = vst [vmem:[%s331 + $0x58] sm:$0xff] %v8682
        %8715 = vst [vmem:[%s331 + $0x60] sm:$0xff] %v8683
        %8716 = vst [vmem:[%s331 + $0x68] sm:$0xff] %v8684
        %8717 = vst [vmem:[%s331 + $0x70] sm:$0xff] %v8685
        %8718 = vst [vmem:[%s331 + $0x78] sm:$0xff] %v8686
        %8719 = vst [vmem:[%s331 + $0x80] sm:$0xff] %v8687
        %8720 = vst [vmem:[%s331 + $0x88] sm:$0xff] %v8688
        %8721 = vst [vmem:[%s331 + $0x90] sm:$0xff] %v8689
        %8722 = vst [vmem:[%s331 + $0x98] sm:$0xff] %v8690
        %8723 = vst [vmem:[%s331 + $0xa0] sm:$0xff] %v8691
        %8724 = vst [vmem:[%s331 + $0xa8] sm:$0xff] %v8692
        %8725 = vst [vmem:[%s331 + $0xb0] sm:$0xff] %v8693
        %8726 = vst [vmem:[%s331 + $0xb8] sm:$0xff] %v8694
        %8727 = vst [vmem:[%s331 + $0xc0] sm:$0xff] %v8695
        %8728 = vst [vmem:[%s331 + $0xc8] sm:$0xff] %v8696
        %8729 = vst [vmem:[%s331 + $0xd0] sm:$0xff] %v8697
        %8730 = vst [vmem:[%s331 + $0xd8] sm:$0xff] %v8698
        %8731 = vst [vmem:[%s331 + $0xe0] sm:$0xff] %v8699
        %8732 = vst [vmem:[%s331 + $0xe8] sm:$0xff] %v8700
        %8733 = vst [vmem:[%s331 + $0xf0] sm:$0xff] %v8701
        %8734 = vst [vmem:[%s331 + $0xf8] sm:$0xff] %v8702
        %s8735 = sand.u32 %s185, 1
        %s8736 = scalar_lea.sflag [#allocation7], %s8735
        %s8737 = sand.u32 %s185, 1
        %s8738 = smul.addr %s8737, 256
        %s8739 = scalar_lea.vmem [#allocation11], %s8738
        // Predicated region
        $region61: #{tpu_custom_call.1} parent=47 // pred_check
          %p8740 = pneg %p195
        $region62: #{tpu_custom_call.1} parent=47 // pred_check_branch
          %8742 = sbr.rel (%p8740) target = $region64
        $region63: #{tpu_custom_call.1} parent=47 // pred_region
          %8744 = vsyncadd %s8736, 0
          %s8745 = smul.addr %s25, 32
          %s8746 = smul.addr %s8745, 8
          %s8747 = scalar_lea.hbm %s7, %s8746
          %s8748 = sshll.u32 %s8739, 4
          %s8749 = int_to_ptr.vmem [resolvable:$true] %s8748
          %s8750 = sshll.u32 %s8747, 4
          %s8751 = int_to_ptr.hbm [resolvable:$true] %s8750
          %8756 = dma.vmem_to_hbm [thread:$0]  %s8749, 4096, %s8751, %s8736, 128, 128, 8
        $region64: #{tpu_custom_call.1} parent=47 // pred_fallthru
          _
      $region48: #{tpu_custom_call.1} parent=5 // pred_fallthru
        _
      %p8757 = scmp.le.s32.totalorder 2, %s20
      // Predicated region
      $region65: #{tpu_custom_call.1} parent=5 // pred_check
        %p8758 = pneg %p8757
      $region66: #{tpu_custom_call.1} parent=5 // pred_check_branch
        %8760 = sbr.rel (%p8758) target = $region68
      $region67: #{tpu_custom_call.1} parent=5 // pred_region
        %s8761 = ssub.s32 %s20, 2
        // Predicated region
        $region69: #{tpu_custom_call.1} parent=67 // pred_check
          %p8762 = pneg %p201
        $region70: #{tpu_custom_call.1} parent=67 // pred_check_branch
          %8764 = sbr.rel (%p8762) target = $region72
        $region71: #{tpu_custom_call.1} parent=67 // pred_region
          %s8765 = sand.u32 %s186, 1
          %s8766 = scalar_lea.sflag [#allocation7], %s8765
          %s8767 = sand.u32 %s186, 1
          %s8768 = smul.addr %s8767, 256
          %s8769 = scalar_lea.vmem [#allocation11], %s8768
          %8771 = dma.done %s8766, 4096
        $region72: #{tpu_custom_call.1} parent=67 // pred_fallthru
          _
      $region68: #{tpu_custom_call.1} parent=5 // pred_fallthru
        _
    $region6: #{tpu_custom_call.1} parent=1 // loop_footer
      %s24 = sadd.s32 1, %s20
    $region7: #{tpu_custom_call.1} parent=1 // loop_footer_branch
      %19 = sbr.rel target = $region3
    $region8: #{tpu_custom_call.1} parent=1 // loop_exit
      _
    %8772 = vsyncpa [#allocation6], 1
    %s8773 = scalar_lea.sflag [#allocation6], 1
    %8774 = vsyncpa %s8773, 1
    %8775 = vsyncpa [#allocation9], 1
    %8776 = vsyncpa [#allocation7], 1
    %s8777 = scalar_lea.sflag [#allocation7], 1
    %8778 = vsyncpa %s8777, 1

</llo_original>
